<compile_context>
chip_gen: v5e
topology: v5e:2x2
jax: 0.10.0
libtpu: 0.0.40
codegen_flags: <defaults>
</compile_context>

<pallas_src>
import functools

import numpy as np
import jax
import jax.numpy as jnp
from jax.experimental import pallas as pl
from jax.experimental.pallas import tpu as pltpu

# ----------------------------- model config (reduced ResNeXt) -----------------------------
GROUPS = 8                      # cardinality (real model: 64)
STEM_OUT = 16                   # real model: 64
# (bottleneck width, output channels, stride, num_blocks) per stage
STAGES = [
    (32, 64, 1, 1),
    (64, 128, 2, 1),
    (128, 256, 2, 1),
    (256, 512, 2, 1),
]
NUM_CLASSES = 10
BN_EPS = 1e-5
ACT_DTYPE = jnp.bfloat16
VMEM_LIMIT_BYTES = 32 * 1024 * 1024   # explicit budget: safe on v5e/v6e (128 MiB) and v7x (64 MiB)


def _pick_tm(m):
    """Largest M-tile <= 256 that divides M and is sublane-aligned; else the full M."""
    for tm in (256, 128, 64, 32, 16, 8):
        if m % tm == 0:
            return tm
    return m


# ------------------- conv (+ folded-BN shift + residual + ReLU) Pallas kernel --------------
def _conv_mm_kernel(*refs, relu, has_residual):
    # refs: x (tm, K) bf16, weight (K, Cout) bf16, shift (1, Cout) f32,
    #       [residual (tm, Cout) bf16], out (tm, Cout) bf16
    if has_residual:
        x_ref, w_ref, shift_ref, res_ref, o_ref = refs
    else:
        x_ref, w_ref, shift_ref, o_ref = refs
        res_ref = None
    y = jnp.dot(x_ref[...], w_ref[...], preferred_element_type=jnp.float32)
    y = y + shift_ref[...]                              # f32 epilogue
    if has_residual:
        y = y + res_ref[...].astype(jnp.float32)
    if relu:
        y = jnp.maximum(y, 0.0)
    o_ref[...] = y.astype(o_ref.dtype)


def _conv_matmul(x2d, wmm, shift, *, relu, residual=None):
    """x2d: (M, K) bf16, wmm: (K, Cout) bf16, shift: (1, Cout) f32 -> (M, Cout) bf16."""
    m, k = x2d.shape
    cout = wmm.shape[-1]
    tm = _pick_tm(m)
    kernel = functools.partial(_conv_mm_kernel, relu=relu,
                               has_residual=residual is not None)
    in_specs = [
        pl.BlockSpec((tm, k), lambda mi: (mi, 0)),
        pl.BlockSpec((k, cout), lambda mi: (0, 0)),
        pl.BlockSpec((1, cout), lambda mi: (0, 0)),
    ]
    args = [x2d, wmm, shift]
    if residual is not None:
        in_specs.append(pl.BlockSpec((tm, cout), lambda mi: (mi, 0)))
        args.append(residual)
    return pl.pallas_call(
        kernel,
        out_shape=jax.ShapeDtypeStruct((m, cout), ACT_DTYPE),
        grid=(m // tm,),
        in_specs=in_specs,
        out_specs=pl.BlockSpec((tm, cout), lambda mi: (mi, 0)),
        compiler_params=pltpu.CompilerParams(
            dimension_semantics=("parallel",),
            vmem_limit_bytes=VMEM_LIMIT_BYTES),
    )(*args)


def conv_layer(x, wk, shift, *, ksize, stride, pad, relu, residual=None):
    """Conv2d (grouped convs pre-expanded block-diagonally) + folded-BN shift
    (+ optional fused residual add) (+ optional ReLU).  x is NHWC."""
    n, h, w, cin = x.shape
    cout = wk.shape[-1]
    ho = (h + 2 * pad - ksize) // stride + 1
    wo = (w + 2 * pad - ksize) // stride + 1
    m = n * ho * wo

    xb = x.astype(ACT_DTYPE)                         # bf16 operands, f32 accumulate
    if ksize == 1:
        xs = xb if stride == 1 else xb[:, ::stride, ::stride, :]
        x2d = xs.reshape(m, cin)                     # NHWC: pure reshape, no transpose
        wmm = wk.reshape(cin, cout)
    else:
        # im2col in the wrapper: the whole kh*kw reduction lands in one wide-K matmul.
        # TODO(synk): for large spatial inputs gather the taps inside the kernel (Element-
        # offset index maps on the padded NHWC input) to avoid the kh*kw HBM duplication.
        xp = jnp.pad(xb, ((0, 0), (pad, pad), (pad, pad), (0, 0)))
        views = [
            xp[:, i:i + (ho - 1) * stride + 1:stride,
                  j:j + (wo - 1) * stride + 1:stride, :].reshape(m, cin)
            for i in range(ksize) for j in range(ksize)
        ]
        x2d = jnp.concatenate(views, axis=-1)        # (M, kh*kw*Cin)
        wmm = wk.reshape(ksize * ksize * cin, cout)

    res2d = None if residual is None else residual.reshape(m, cout).astype(ACT_DTYPE)
    out = _conv_matmul(x2d, wmm, shift, relu=relu, residual=res2d)
    return out.reshape(n, ho, wo, cout)


# ----------------------------------- max-pool kernel ---------------------------------------
def _max_pool_kernel(x_ref, o_ref):
    # x: (k*k, tm, C) -> elementwise VPU max over the tap axis, lane-dense (tm, C) store
    o_ref[...] = jnp.max(x_ref[...], axis=0)


def max_pool2d(x, k=3, stride=2, pad=1):
    n, h, w, c = x.shape
    ho = (h + 2 * pad - k) // stride + 1
    wo = (w + 2 * pad - k) // stride + 1
    m = n * ho * wo
    xp = jnp.pad(x, ((0, 0), (pad, pad), (pad, pad), (0, 0)), constant_values=-jnp.inf)
    views = [
        xp[:, i:i + (ho - 1) * stride + 1:stride,
              j:j + (wo - 1) * stride + 1:stride, :].reshape(m, c)
        for i in range(k) for j in range(k)
    ]
    taps = jnp.stack(views, axis=0)                  # (k*k, M, C)
    tm = _pick_tm(m)
    out = pl.pallas_call(
        _max_pool_kernel,
        out_shape=jax.ShapeDtypeStruct((m, c), x.dtype),
        grid=(m // tm,),
        in_specs=[pl.BlockSpec((k * k, tm, c), lambda mi: (0, mi, 0))],
        out_specs=pl.BlockSpec((tm, c), lambda mi: (mi, 0)),
        compiler_params=pltpu.CompilerParams(
            dimension_semantics=("parallel",),
            vmem_limit_bytes=VMEM_LIMIT_BYTES),
    )(taps)
    return out.reshape(n, ho, wo, c)


# -------------------------- fused global-avg-pool + fc head kernel -------------------------
def _head_kernel(x_ref, w_ref, b_ref, o_ref):
    # x: (N, H*W, C) bf16, w: (C, num_classes) f32, b: (1, num_classes) f32
    feat = jnp.mean(x_ref[...].astype(jnp.float32), axis=1)
    o_ref[...] = jnp.dot(feat, w_ref[...], preferred_element_type=jnp.float32) + b_ref[...]


def head(x, fc_w, fc_b):
    n, h, w, c = x.shape
    return pl.pallas_call(
        _head_kernel,
        out_shape=jax.ShapeDtypeStruct((n, fc_w.shape[1]), jnp.float32),
        compiler_params=pltpu.CompilerParams(vmem_limit_bytes=VMEM_LIMIT_BYTES),
    )(x.reshape(n, h * w, c), fc_w, fc_b.reshape(1, -1))


# --------------------------------- parameter construction ---------------------------------
def _make_conv_bn(key, cout, cin, ksize, groups=1):
    """Returns (wk, shift): wk is (kh*kw, Cin, Cout) bf16 with BN scale folded in (grouped
    convs expanded to a block-diagonal dense weight), shift is (1, Cout) f32."""
    k1, k2, k3, k4, k5 = jax.random.split(key, 5)
    cin_pg = cin // groups
    fan_in = cin_pg * ksize * ksize
    w = jax.random.normal(k1, (cout, cin_pg, ksize, ksize), jnp.float32) / np.sqrt(fan_in)
    gamma = jax.random.uniform(k2, (cout,), minval=0.8, maxval=1.2, dtype=jnp.float32)
    beta = jax.random.normal(k3, (cout,), jnp.float32) * 0.05
    mean = jax.random.normal(k4, (cout,), jnp.float32) * 0.05
    var = jax.random.uniform(k5, (cout,), minval=0.8, maxval=1.2, dtype=jnp.float32)
    scale = gamma / jnp.sqrt(var + BN_EPS)           # folded eval-mode BatchNorm
    shift = beta - mean * scale

    if groups > 1:
        # block-diagonal dense expansion so the matmul output stays Cout-last / lane-dense
        ng = cout // groups
        blocks = []
        for g in range(groups):
            wg = w[g * ng:(g + 1) * ng]              # (ng, cin_pg, k, k)
            wg = jnp.pad(wg, ((0, 0), (g * cin_pg, cin - (g + 1) * cin_pg), (0, 0), (0, 0)))
            blocks.append(wg)
        w = jnp.concatenate(blocks, axis=0)          # (cout, cin, k, k)

    wk = jnp.transpose(w, (2, 3, 1, 0)).reshape(ksize * ksize, cin, cout)
    wk = (wk * scale[None, None, :]).astype(jnp.bfloat16)     # fold BN scale, bf16 operands
    return wk, shift.reshape(1, cout).astype(jnp.float32)


def make_params(key):
    keys = list(jax.random.split(key, 64))
    ki = iter(keys)
    params = {"stem": _make_conv_bn(next(ki), STEM_OUT, 3, 7), "stages": []}
    in_ch = STEM_OUT
    for (width, out_ch, stride, nblocks) in STAGES:
        blocks = []
        for b in range(nblocks):
            s = stride if b == 0 else 1
            blk = {
                "stride": s,
                "conv1": _make_conv_bn(next(ki), width, in_ch, 1),
                "conv2": _make_conv_bn(next(ki), width, width, 3, groups=GROUPS),
                "conv3": _make_conv_bn(next(ki), out_ch, width, 1),
                "downsample": (_make_conv_bn(next(ki), out_ch, in_ch, 1)
                               if (s != 1 or in_ch != out_ch) else None),
            }
            blocks.append(blk)
            in_ch = out_ch
        params["stages"].append(blocks)
    kf1, kf2 = jax.random.split(next(ki))
    params["fc_w"] = jax.random.normal(kf1, (in_ch, NUM_CLASSES), jnp.float32) / np.sqrt(in_ch)
    params["fc_b"] = jax.random.normal(kf2, (NUM_CLASSES,), jnp.float32) * 0.01
    return params


# -------------------------------------- forward pass --------------------------------------
def bottleneck(x, blk):
    if blk["downsample"] is not None:
        shortcut = conv_layer(x, *blk["downsample"], ksize=1, stride=blk["stride"],
                              pad=0, relu=False)
    else:
        shortcut = x
    out = conv_layer(x, *blk["conv1"], ksize=1, stride=1, pad=0, relu=True)
    out = conv_layer(out, *blk["conv2"], ksize=3, stride=blk["stride"], pad=1, relu=True)
    # residual add + ReLU fused into the conv3 epilogue
    out = conv_layer(out, *blk["conv3"], ksize=1, stride=1, pad=0, relu=True,
                     residual=shortcut)
    return out


def resnext_forward(params, x_nchw):
    x = jnp.transpose(x_nchw, (0, 2, 3, 1))          # NCHW -> NHWC once, at the boundary
    x = conv_layer(x, *params["stem"], ksize=7, stride=2, pad=3, relu=True)  # 7x7/2 + BN + ReLU
    x = max_pool2d(x, k=3, stride=2, pad=1)                                  # maxpool 3x3/2
    for stage in params["stages"]:
        for blk in stage:
            x = bottleneck(x, blk)
    return head(x, params["fc_w"], params["fc_b"])   # fused global-avg-pool + fc -> (N, 10)


# ------------------------------------------ main ------------------------------------------
if __name__ == "__main__":
    key = jax.random.PRNGKey(0)
    k_params, k_input = jax.random.split(key)
    params = make_params(k_params)
    x = jax.random.normal(k_input, (2, 3, 32, 32), jnp.float32)   # NCHW, like PyTorch

    forward = jax.jit(lambda inp: resnext_forward(params, inp))
    logits = jax.block_until_ready(forward(x))

    assert logits.shape == (2, NUM_CLASSES), logits.shape
    assert bool(jnp.all(jnp.isfinite(logits)))
    print("KERNEL_OK")
</pallas_src>

<mosaic_0001>
module attributes {stable_mosaic.version = 11 : i64} {
  func.func @_conv_mm_kernel(%arg0: i32, %arg1: memref<256x147xbf16, #tpu.memory_space<vmem>>, %arg2: memref<147x16xbf16, #tpu.memory_space<vmem>>, %arg3: memref<1x16xf32, #tpu.memory_space<vmem>>, %arg4: memref<256x16xbf16, #tpu.memory_space<vmem>>) attributes {dimension_semantics = [#tpu.dimension_semantics<parallel>], iteration_bounds = array<i64: 2>, scalar_prefetch = 0 : i64, scratch_operands = 0 : i64, tpu.core_type = #tpu.core_type<tc>, window_params = [{transform_indices = @transform_0, window_bounds = array<i64: 256, 147>}, {pipeline_mode = #tpu.pipeline_mode<synchronous>, transform_indices = @transform_1, window_bounds = array<i64: 147, 16>}, {pipeline_mode = #tpu.pipeline_mode<synchronous>, transform_indices = @transform_2, window_bounds = array<i64: 1, 16>}, {transform_indices = @transform_3, window_bounds = array<i64: 256, 16>}]} {
    %c0 = arith.constant 0 : index
    %c0_0 = arith.constant 0 : index
    %0 = vector.load %arg1[%c0, %c0_0] : memref<256x147xbf16, #tpu.memory_space<vmem>>, vector<256x147xbf16>
    %c0_1 = arith.constant 0 : index
    %c0_2 = arith.constant 0 : index
    %1 = vector.load %arg2[%c0_1, %c0_2] : memref<147x16xbf16, #tpu.memory_space<vmem>>, vector<147x16xbf16>
    %cst = arith.constant dense<0.000000e+00> : vector<256x16xf32>
    %2 = tpu.matmul %0, %1, %cst {dimension_numbers = #tpu.dot_dimension_numbers<[1], [0], [0], [1], [0, 0, 1, 1], [], []>} : vector<256x147xbf16>, vector<147x16xbf16>, vector<256x16xf32> -> vector<256x16xf32>
    %c0_3 = arith.constant 0 : index
    %c0_4 = arith.constant 0 : index
    %3 = vector.load %arg3[%c0_3, %c0_4] : memref<1x16xf32, #tpu.memory_space<vmem>>, vector<1x16xf32>
    %4 = vector.broadcast %3 : vector<1x16xf32> to vector<256x16xf32>
    %5 = arith.addf %2, %4 : vector<256x16xf32>
    %cst_5 = arith.constant 0.000000e+00 : f32
    %6 = vector.broadcast %cst_5 : f32 to vector<256x16xf32>
    %7 = arith.maximumf %5, %6 : vector<256x16xf32>
    %8 = arith.truncf %7 : vector<256x16xf32> to vector<256x16xbf16>
    %c0_6 = arith.constant 0 : index
    %c0_7 = arith.constant 0 : index
    %9 = vector.load %arg4[%c0_6, %c0_7] : memref<256x16xbf16, #tpu.memory_space<vmem>>, vector<256x16xbf16>
    tpu.vector_store %arg4[%c0_6, %c0_7], %8 {strides = array<i32>} : memref<256x16xbf16, #tpu.memory_space<vmem>>, vector<256x16xbf16>,
    return
  }
  func.func @transform_0(%arg0: i32) -> (i32, i32) {
    %c0_i32 = arith.constant 0 : i32
    %c0_i32_0 = arith.constant 0 : i32
    return %arg0, %c0_i32 : i32, i32
  }
  func.func @transform_1(%arg0: i32) -> (i32, i32) {
    %c0_i32 = arith.constant 0 : i32
    %c0_i32_0 = arith.constant 0 : i32
    %c0_i32_1 = arith.constant 0 : i32
    return %c0_i32, %c0_i32_0 : i32, i32
  }
  func.func @transform_2(%arg0: i32) -> (i32, i32) {
    %c0_i32 = arith.constant 0 : i32
    %c0_i32_0 = arith.constant 0 : i32
    %c0_i32_1 = arith.constant 0 : i32
    return %c0_i32, %c0_i32_0 : i32, i32
  }
  func.func @transform_3(%arg0: i32) -> (i32, i32) {
    %c0_i32 = arith.constant 0 : i32
    %c0_i32_0 = arith.constant 0 : i32
    return %arg0, %c0_i32 : i32, i32
  }
}

module attributes {stable_mosaic.version = 11 : i64} {
  func.func @_max_pool_kernel(%arg0: i32, %arg1: memref<9x128x16xbf16, #tpu.memory_space<vmem>>, %arg2: memref<128x16xbf16, #tpu.memory_space<vmem>>) attributes {dimension_semantics = [#tpu.dimension_semantics<parallel>], iteration_bounds = array<i64: 1>, scalar_prefetch = 0 : i64, scratch_operands = 0 : i64, tpu.core_type = #tpu.core_type<tc>, window_params = [{transform_indices = @transform_0, window_bounds = array<i64: 9, 128, 16>}, {transform_indices = @transform_1, window_bounds = array<i64: 128, 16>}]} {
    %c0 = arith.constant 0 : index
    %c0_0 = arith.constant 0 : index
    %c0_1 = arith.constant 0 : index
    %0 = vector.load %arg1[%c0, %c0_0, %c0_1] : memref<9x128x16xbf16, #tpu.memory_space<vmem>>, vector<9x128x16xbf16>
    %cst = arith.constant dense<0xFF80> : vector<128x16xbf16>
    %1 = vector.multi_reduction <maximumf>, %0, %cst [0] : vector<9x128x16xbf16> to vector<128x16xbf16>
    %c0_2 = arith.constant 0 : index
    %c0_3 = arith.constant 0 : index
    %2 = vector.load %arg2[%c0_2, %c0_3] : memref<128x16xbf16, #tpu.memory_space<vmem>>, vector<128x16xbf16>
    tpu.vector_store %arg2[%c0_2, %c0_3], %1 {strides = array<i32>} : memref<128x16xbf16, #tpu.memory_space<vmem>>, vector<128x16xbf16>,
    return
  }
  func.func @transform_0(%arg0: i32) -> (i32, i32, i32) {
    %c0_i32 = arith.constant 0 : i32
    %c0_i32_0 = arith.constant 0 : i32
    %c0_i32_1 = arith.constant 0 : i32
    return %c0_i32, %arg0, %c0_i32_0 : i32, i32, i32
  }
  func.func @transform_1(%arg0: i32) -> (i32, i32) {
    %c0_i32 = arith.constant 0 : i32
    %c0_i32_0 = arith.constant 0 : i32
    return %arg0, %c0_i32 : i32, i32
  }
}

module attributes {stable_mosaic.version = 11 : i64} {
  func.func @_conv_mm_kernel(%arg0: i32, %arg1: memref<128x16xbf16, #tpu.memory_space<vmem>>, %arg2: memref<16x32xbf16, #tpu.memory_space<vmem>>, %arg3: memref<1x32xf32, #tpu.memory_space<vmem>>, %arg4: memref<128x32xbf16, #tpu.memory_space<vmem>>) attributes {dimension_semantics = [#tpu.dimension_semantics<parallel>], iteration_bounds = array<i64: 1>, scalar_prefetch = 0 : i64, scratch_operands = 0 : i64, tpu.core_type = #tpu.core_type<tc>, window_params = [{transform_indices = @transform_0, window_bounds = array<i64: 128, 16>}, {pipeline_mode = #tpu.pipeline_mode<synchronous>, transform_indices = @transform_1, window_bounds = array<i64: 16, 32>}, {pipeline_mode = #tpu.pipeline_mode<synchronous>, transform_indices = @transform_2, window_bounds = array<i64: 1, 32>}, {transform_indices = @transform_3, window_bounds = array<i64: 128, 32>}]} {
    %c0 = arith.constant 0 : index
    %c0_0 = arith.constant 0 : index
    %0 = vector.load %arg1[%c0, %c0_0] : memref<128x16xbf16, #tpu.memory_space<vmem>>, vector<128x16xbf16>
    %c0_1 = arith.constant 0 : index
    %c0_2 = arith.constant 0 : index
    %1 = vector.load %arg2[%c0_1, %c0_2] : memref<16x32xbf16, #tpu.memory_space<vmem>>, vector<16x32xbf16>
    %cst = arith.constant dense<0.000000e+00> : vector<128x32xf32>
    %2 = tpu.matmul %0, %1, %cst {dimension_numbers = #tpu.dot_dimension_numbers<[1], [0], [0], [1], [0, 0, 1, 1], [], []>} : vector<128x16xbf16>, vector<16x32xbf16>, vector<128x32xf32> -> vector<128x32xf32>
    %c0_3 = arith.constant 0 : index
    %c0_4 = arith.constant 0 : index
    %3 = vector.load %arg3[%c0_3, %c0_4] : memref<1x32xf32, #tpu.memory_space<vmem>>, vector<1x32xf32>
    %4 = vector.broadcast %3 : vector<1x32xf32> to vector<128x32xf32>
    %5 = arith.addf %2, %4 : vector<128x32xf32>
    %cst_5 = arith.constant 0.000000e+00 : f32
    %6 = vector.broadcast %cst_5 : f32 to vector<128x32xf32>
    %7 = arith.maximumf %5, %6 : vector<128x32xf32>
    %8 = arith.truncf %7 : vector<128x32xf32> to vector<128x32xbf16>
    %c0_6 = arith.constant 0 : index
    %c0_7 = arith.constant 0 : index
    %9 = vector.load %arg4[%c0_6, %c0_7] : memref<128x32xbf16, #tpu.memory_space<vmem>>, vector<128x32xbf16>
    tpu.vector_store %arg4[%c0_6, %c0_7], %8 {strides = array<i32>} : memref<128x32xbf16, #tpu.memory_space<vmem>>, vector<128x32xbf16>,
    return
  }
  func.func @transform_0(%arg0: i32) -> (i32, i32) {
    %c0_i32 = arith.constant 0 : i32
    %c0_i32_0 = arith.constant 0 : i32
    return %arg0, %c0_i32 : i32, i32
  }
  func.func @transform_1(%arg0: i32) -> (i32, i32) {
    %c0_i32 = arith.constant 0 : i32
    %c0_i32_0 = arith.constant 0 : i32
    %c0_i32_1 = arith.constant 0 : i32
    return %c0_i32, %c0_i32_0 : i32, i32
  }
  func.func @transform_2(%arg0: i32) -> (i32, i32) {
    %c0_i32 = arith.constant 0 : i32
    %c0_i32_0 = arith.constant 0 : i32
    %c0_i32_1 = arith.constant 0 : i32
    return %c0_i32, %c0_i32_0 : i32, i32
  }
  func.func @transform_3(%arg0: i32) -> (i32, i32) {
    %c0_i32 = arith.constant 0 : i32
    %c0_i32_0 = arith.constant 0 : i32
    return %arg0, %c0_i32 : i32, i32
  }
}

module attributes {stable_mosaic.version = 11 : i64} {
  func.func @_conv_mm_kernel(%arg0: i32, %arg1: memref<128x288xbf16, #tpu.memory_space<vmem>>, %arg2: memref<288x32xbf16, #tpu.memory_space<vmem>>, %arg3: memref<1x32xf32, #tpu.memory_space<vmem>>, %arg4: memref<128x32xbf16, #tpu.memory_space<vmem>>) attributes {dimension_semantics = [#tpu.dimension_semantics<parallel>], iteration_bounds = array<i64: 1>, scalar_prefetch = 0 : i64, scratch_operands = 0 : i64, tpu.core_type = #tpu.core_type<tc>, window_params = [{transform_indices = @transform_0, window_bounds = array<i64: 128, 288>}, {pipeline_mode = #tpu.pipeline_mode<synchronous>, transform_indices = @transform_1, window_bounds = array<i64: 288, 32>}, {pipeline_mode = #tpu.pipeline_mode<synchronous>, transform_indices = @transform_2, window_bounds = array<i64: 1, 32>}, {transform_indices = @transform_3, window_bounds = array<i64: 128, 32>}]} {
    %c0 = arith.constant 0 : index
    %c0_0 = arith.constant 0 : index
    %0 = vector.load %arg1[%c0, %c0_0] : memref<128x288xbf16, #tpu.memory_space<vmem>>, vector<128x288xbf16>
    %c0_1 = arith.constant 0 : index
    %c0_2 = arith.constant 0 : index
    %1 = vector.load %arg2[%c0_1, %c0_2] : memref<288x32xbf16, #tpu.memory_space<vmem>>, vector<288x32xbf16>
    %cst = arith.constant dense<0.000000e+00> : vector<128x32xf32>
    %2 = tpu.matmul %0, %1, %cst {dimension_numbers = #tpu.dot_dimension_numbers<[1], [0], [0], [1], [0, 0, 1, 1], [], []>} : vector<128x288xbf16>, vector<288x32xbf16>, vector<128x32xf32> -> vector<128x32xf32>
    %c0_3 = arith.constant 0 : index
    %c0_4 = arith.constant 0 : index
    %3 = vector.load %arg3[%c0_3, %c0_4] : memref<1x32xf32, #tpu.memory_space<vmem>>, vector<1x32xf32>
    %4 = vector.broadcast %3 : vector<1x32xf32> to vector<128x32xf32>
    %5 = arith.addf %2, %4 : vector<128x32xf32>
    %cst_5 = arith.constant 0.000000e+00 : f32
    %6 = vector.broadcast %cst_5 : f32 to vector<128x32xf32>
    %7 = arith.maximumf %5, %6 : vector<128x32xf32>
    %8 = arith.truncf %7 : vector<128x32xf32> to vector<128x32xbf16>
    %c0_6 = arith.constant 0 : index
    %c0_7 = arith.constant 0 : index
    %9 = vector.load %arg4[%c0_6, %c0_7] : memref<128x32xbf16, #tpu.memory_space<vmem>>, vector<128x32xbf16>
    tpu.vector_store %arg4[%c0_6, %c0_7], %8 {strides = array<i32>} : memref<128x32xbf16, #tpu.memory_space<vmem>>, vector<128x32xbf16>,
    return
  }
  func.func @transform_0(%arg0: i32) -> (i32, i32) {
    %c0_i32 = arith.constant 0 : i32
    %c0_i32_0 = arith.constant 0 : i32
    return %arg0, %c0_i32 : i32, i32
  }
  func.func @transform_1(%arg0: i32) -> (i32, i32) {
    %c0_i32 = arith.constant 0 : i32
    %c0_i32_0 = arith.constant 0 : i32
    %c0_i32_1 = arith.constant 0 : i32
    return %c0_i32, %c0_i32_0 : i32, i32
  }
  func.func @transform_2(%arg0: i32) -> (i32, i32) {
    %c0_i32 = arith.constant 0 : i32
    %c0_i32_0 = arith.constant 0 : i32
    %c0_i32_1 = arith.constant 0 : i32
    return %c0_i32, %c0_i32_0 : i32, i32
  }
  func.func @transform_3(%arg0: i32) -> (i32, i32) {
    %c0_i32 = arith.constant 0 : i32
    %c0_i32_0 = arith.constant 0 : i32
    return %arg0, %c0_i32 : i32, i32
  }
}

module attributes {stable_mosaic.version = 11 : i64} {
  func.func @_conv_mm_kernel(%arg0: i32, %arg1: memref<128x16xbf16, #tpu.memory_space<vmem>>, %arg2: memref<16x64xbf16, #tpu.memory_space<vmem>>, %arg3: memref<1x64xf32, #tpu.memory_space<vmem>>, %arg4: memref<128x64xbf16, #tpu.memory_space<vmem>>) attributes {dimension_semantics = [#tpu.dimension_semantics<parallel>], iteration_bounds = array<i64: 1>, scalar_prefetch = 0 : i64, scratch_operands = 0 : i64, tpu.core_type = #tpu.core_type<tc>, window_params = [{transform_indices = @transform_0, window_bounds = array<i64: 128, 16>}, {pipeline_mode = #tpu.pipeline_mode<synchronous>, transform_indices = @transform_1, window_bounds = array<i64: 16, 64>}, {pipeline_mode = #tpu.pipeline_mode<synchronous>, transform_indices = @transform_2, window_bounds = array<i64: 1, 64>}, {transform_indices = @transform_3, window_bounds = array<i64: 128, 64>}]} {
    %c0 = arith.constant 0 : index
    %c0_0 = arith.constant 0 : index
    %0 = vector.load %arg1[%c0, %c0_0] : memref<128x16xbf16, #tpu.memory_space<vmem>>, vector<128x16xbf16>
    %c0_1 = arith.constant 0 : index
    %c0_2 = arith.constant 0 : index
    %1 = vector.load %arg2[%c0_1, %c0_2] : memref<16x64xbf16, #tpu.memory_space<vmem>>, vector<16x64xbf16>
    %cst = arith.constant dense<0.000000e+00> : vector<128x64xf32>
    %2 = tpu.matmul %0, %1, %cst {dimension_numbers = #tpu.dot_dimension_numbers<[1], [0], [0], [1], [0, 0, 1, 1], [], []>} : vector<128x16xbf16>, vector<16x64xbf16>, vector<128x64xf32> -> vector<128x64xf32>
    %c0_3 = arith.constant 0 : index
    %c0_4 = arith.constant 0 : index
    %3 = vector.load %arg3[%c0_3, %c0_4] : memref<1x64xf32, #tpu.memory_space<vmem>>, vector<1x64xf32>
    %4 = vector.broadcast %3 : vector<1x64xf32> to vector<128x64xf32>
    %5 = arith.addf %2, %4 : vector<128x64xf32>
    %6 = arith.truncf %5 : vector<128x64xf32> to vector<128x64xbf16>
    %c0_5 = arith.constant 0 : index
    %c0_6 = arith.constant 0 : index
    %7 = vector.load %arg4[%c0_5, %c0_6] : memref<128x64xbf16, #tpu.memory_space<vmem>>, vector<128x64xbf16>
    tpu.vector_store %arg4[%c0_5, %c0_6], %6 {strides = array<i32>} : memref<128x64xbf16, #tpu.memory_space<vmem>>, vector<128x64xbf16>,
    return
  }
  func.func @transform_0(%arg0: i32) -> (i32, i32) {
    %c0_i32 = arith.constant 0 : i32
    %c0_i32_0 = arith.constant 0 : i32
    return %arg0, %c0_i32 : i32, i32
  }
  func.func @transform_1(%arg0: i32) -> (i32, i32) {
    %c0_i32 = arith.constant 0 : i32
    %c0_i32_0 = arith.constant 0 : i32
    %c0_i32_1 = arith.constant 0 : i32
    return %c0_i32, %c0_i32_0 : i32, i32
  }
  func.func @transform_2(%arg0: i32) -> (i32, i32) {
    %c0_i32 = arith.constant 0 : i32
    %c0_i32_0 = arith.constant 0 : i32
    %c0_i32_1 = arith.constant 0 : i32
    return %c0_i32, %c0_i32_0 : i32, i32
  }
  func.func @transform_3(%arg0: i32) -> (i32, i32) {
    %c0_i32 = arith.constant 0 : i32
    %c0_i32_0 = arith.constant 0 : i32
    return %arg0, %c0_i32 : i32, i32
  }
}

module attributes {stable_mosaic.version = 11 : i64} {
  func.func @_conv_mm_kernel(%arg0: i32, %arg1: memref<128x32xbf16, #tpu.memory_space<vmem>>, %arg2: memref<32x64xbf16, #tpu.memory_space<vmem>>, %arg3: memref<1x64xf32, #tpu.memory_space<vmem>>, %arg4: memref<128x64xbf16, #tpu.memory_space<vmem>>, %arg5: memref<128x64xbf16, #tpu.memory_space<vmem>>) attributes {dimension_semantics = [#tpu.dimension_semantics<parallel>], iteration_bounds = array<i64: 1>, scalar_prefetch = 0 : i64, scratch_operands = 0 : i64, tpu.core_type = #tpu.core_type<tc>, window_params = [{transform_indices = @transform_0, window_bounds = array<i64: 128, 32>}, {pipeline_mode = #tpu.pipeline_mode<synchronous>, transform_indices = @transform_1, window_bounds = array<i64: 32, 64>}, {pipeline_mode = #tpu.pipeline_mode<synchronous>, transform_indices = @transform_2, window_bounds = array<i64: 1, 64>}, {transform_indices = @transform_3, window_bounds = array<i64: 128, 64>}, {transform_indices = @transform_4, window_bounds = array<i64: 128, 64>}]} {
    %c0 = arith.constant 0 : index
    %c0_0 = arith.constant 0 : index
    %0 = vector.load %arg1[%c0, %c0_0] : memref<128x32xbf16, #tpu.memory_space<vmem>>, vector<128x32xbf16>
    %c0_1 = arith.constant 0 : index
    %c0_2 = arith.constant 0 : index
    %1 = vector.load %arg2[%c0_1, %c0_2] : memref<32x64xbf16, #tpu.memory_space<vmem>>, vector<32x64xbf16>
    %cst = arith.constant dense<0.000000e+00> : vector<128x64xf32>
    %2 = tpu.matmul %0, %1, %cst {dimension_numbers = #tpu.dot_dimension_numbers<[1], [0], [0], [1], [0, 0, 1, 1], [], []>} : vector<128x32xbf16>, vector<32x64xbf16>, vector<128x64xf32> -> vector<128x64xf32>
    %c0_3 = arith.constant 0 : index
    %c0_4 = arith.constant 0 : index
    %3 = vector.load %arg3[%c0_3, %c0_4] : memref<1x64xf32, #tpu.memory_space<vmem>>, vector<1x64xf32>
    %4 = vector.broadcast %3 : vector<1x64xf32> to vector<128x64xf32>
    %5 = arith.addf %2, %4 : vector<128x64xf32>
    %c0_5 = arith.constant 0 : index
    %c0_6 = arith.constant 0 : index
    %6 = vector.load %arg4[%c0_5, %c0_6] : memref<128x64xbf16, #tpu.memory_space<vmem>>, vector<128x64xbf16>
    %7 = arith.extf %6 : vector<128x64xbf16> to vector<128x64xf32>
    %8 = arith.addf %5, %7 : vector<128x64xf32>
    %cst_7 = arith.constant 0.000000e+00 : f32
    %9 = vector.broadcast %cst_7 : f32 to vector<128x64xf32>
    %10 = arith.maximumf %8, %9 : vector<128x64xf32>
    %11 = arith.truncf %10 : vector<128x64xf32> to vector<128x64xbf16>
    %c0_8 = arith.constant 0 : index
    %c0_9 = arith.constant 0 : index
    %12 = vector.load %arg5[%c0_8, %c0_9] : memref<128x64xbf16, #tpu.memory_space<vmem>>, vector<128x64xbf16>
    tpu.vector_store %arg5[%c0_8, %c0_9], %11 {strides = array<i32>} : memref<128x64xbf16, #tpu.memory_space<vmem>>, vector<128x64xbf16>,
    return
  }
  func.func @transform_0(%arg0: i32) -> (i32, i32) {
    %c0_i32 = arith.constant 0 : i32
    %c0_i32_0 = arith.constant 0 : i32
    return %arg0, %c0_i32 : i32, i32
  }
  func.func @transform_1(%arg0: i32) -> (i32, i32) {
    %c0_i32 = arith.constant 0 : i32
    %c0_i32_0 = arith.constant 0 : i32
    %c0_i32_1 = arith.constant 0 : i32
    return %c0_i32, %c0_i32_0 : i32, i32
  }
  func.func @transform_2(%arg0: i32) -> (i32, i32) {
    %c0_i32 = arith.constant 0 : i32
    %c0_i32_0 = arith.constant 0 : i32
    %c0_i32_1 = arith.constant 0 : i32
    return %c0_i32, %c0_i32_0 : i32, i32
  }
  func.func @transform_3(%arg0: i32) -> (i32, i32) {
    %c0_i32 = arith.constant 0 : i32
    %c0_i32_0 = arith.constant 0 : i32
    return %arg0, %c0_i32 : i32, i32
  }
  func.func @transform_4(%arg0: i32) -> (i32, i32) {
    %c0_i32 = arith.constant 0 : i32
    %c0_i32_0 = arith.constant 0 : i32
    return %arg0, %c0_i32 : i32, i32
  }
}

module attributes {stable_mosaic.version = 11 : i64} {
  func.func @_conv_mm_kernel(%arg0: i32, %arg1: memref<128x64xbf16, #tpu.memory_space<vmem>>, %arg2: memref<64x64xbf16, #tpu.memory_space<vmem>>, %arg3: memref<1x64xf32, #tpu.memory_space<vmem>>, %arg4: memref<128x64xbf16, #tpu.memory_space<vmem>>) attributes {dimension_semantics = [#tpu.dimension_semantics<parallel>], iteration_bounds = array<i64: 1>, scalar_prefetch = 0 : i64, scratch_operands = 0 : i64, tpu.core_type = #tpu.core_type<tc>, window_params = [{transform_indices = @transform_0, window_bounds = array<i64: 128, 64>}, {pipeline_mode = #tpu.pipeline_mode<synchronous>, transform_indices = @transform_1, window_bounds = array<i64: 64, 64>}, {pipeline_mode = #tpu.pipeline_mode<synchronous>, transform_indices = @transform_2, window_bounds = array<i64: 1, 64>}, {transform_indices = @transform_3, window_bounds = array<i64: 128, 64>}]} {
    %c0 = arith.constant 0 : index
    %c0_0 = arith.constant 0 : index
    %0 = vector.load %arg1[%c0, %c0_0] : memref<128x64xbf16, #tpu.memory_space<vmem>>, vector<128x64xbf16>
    %c0_1 = arith.constant 0 : index
    %c0_2 = arith.constant 0 : index
    %1 = vector.load %arg2[%c0_1, %c0_2] : memref<64x64xbf16, #tpu.memory_space<vmem>>, vector<64x64xbf16>
    %cst = arith.constant dense<0.000000e+00> : vector<128x64xf32>
    %2 = tpu.matmul %0, %1, %cst {dimension_numbers = #tpu.dot_dimension_numbers<[1], [0], [0], [1], [0, 0, 1, 1], [], []>} : vector<128x64xbf16>, vector<64x64xbf16>, vector<128x64xf32> -> vector<128x64xf32>
    %c0_3 = arith.constant 0 : index
    %c0_4 = arith.constant 0 : index
    %3 = vector.load %arg3[%c0_3, %c0_4] : memref<1x64xf32, #tpu.memory_space<vmem>>, vector<1x64xf32>
    %4 = vector.broadcast %3 : vector<1x64xf32> to vector<128x64xf32>
    %5 = arith.addf %2, %4 : vector<128x64xf32>
    %cst_5 = arith.constant 0.000000e+00 : f32
    %6 = vector.broadcast %cst_5 : f32 to vector<128x64xf32>
    %7 = arith.maximumf %5, %6 : vector<128x64xf32>
    %8 = arith.truncf %7 : vector<128x64xf32> to vector<128x64xbf16>
    %c0_6 = arith.constant 0 : index
    %c0_7 = arith.constant 0 : index
    %9 = vector.load %arg4[%c0_6, %c0_7] : memref<128x64xbf16, #tpu.memory_space<vmem>>, vector<128x64xbf16>
    tpu.vector_store %arg4[%c0_6, %c0_7], %8 {strides = array<i32>} : memref<128x64xbf16, #tpu.memory_space<vmem>>, vector<128x64xbf16>,
    return
  }
  func.func @transform_0(%arg0: i32) -> (i32, i32) {
    %c0_i32 = arith.constant 0 : i32
    %c0_i32_0 = arith.constant 0 : i32
    return %arg0, %c0_i32 : i32, i32
  }
  func.func @transform_1(%arg0: i32) -> (i32, i32) {
    %c0_i32 = arith.constant 0 : i32
    %c0_i32_0 = arith.constant 0 : i32
    %c0_i32_1 = arith.constant 0 : i32
    return %c0_i32, %c0_i32_0 : i32, i32
  }
  func.func @transform_2(%arg0: i32) -> (i32, i32) {
    %c0_i32 = arith.constant 0 : i32
    %c0_i32_0 = arith.constant 0 : i32
    %c0_i32_1 = arith.constant 0 : i32
    return %c0_i32, %c0_i32_0 : i32, i32
  }
  func.func @transform_3(%arg0: i32) -> (i32, i32) {
    %c0_i32 = arith.constant 0 : i32
    %c0_i32_0 = arith.constant 0 : i32
    return %arg0, %c0_i32 : i32, i32
  }
}

module attributes {stable_mosaic.version = 11 : i64} {
  func.func @_conv_mm_kernel(%arg0: i32, %arg1: memref<32x576xbf16, #tpu.memory_space<vmem>>, %arg2: memref<576x64xbf16, #tpu.memory_space<vmem>>, %arg3: memref<1x64xf32, #tpu.memory_space<vmem>>, %arg4: memref<32x64xbf16, #tpu.memory_space<vmem>>) attributes {dimension_semantics = [#tpu.dimension_semantics<parallel>], iteration_bounds = array<i64: 1>, scalar_prefetch = 0 : i64, scratch_operands = 0 : i64, tpu.core_type = #tpu.core_type<tc>, window_params = [{transform_indices = @transform_0, window_bounds = array<i64: 32, 576>}, {pipeline_mode = #tpu.pipeline_mode<synchronous>, transform_indices = @transform_1, window_bounds = array<i64: 576, 64>}, {pipeline_mode = #tpu.pipeline_mode<synchronous>, transform_indices = @transform_2, window_bounds = array<i64: 1, 64>}, {transform_indices = @transform_3, window_bounds = array<i64: 32, 64>}]} {
    %c0 = arith.constant 0 : index
    %c0_0 = arith.constant 0 : index
    %0 = vector.load %arg1[%c0, %c0_0] : memref<32x576xbf16, #tpu.memory_space<vmem>>, vector<32x576xbf16>
    %c0_1 = arith.constant 0 : index
    %c0_2 = arith.constant 0 : index
    %1 = vector.load %arg2[%c0_1, %c0_2] : memref<576x64xbf16, #tpu.memory_space<vmem>>, vector<576x64xbf16>
    %cst = arith.constant dense<0.000000e+00> : vector<32x64xf32>
    %2 = tpu.matmul %0, %1, %cst {dimension_numbers = #tpu.dot_dimension_numbers<[1], [0], [0], [1], [0, 0, 1, 1], [], []>} : vector<32x576xbf16>, vector<576x64xbf16>, vector<32x64xf32> -> vector<32x64xf32>
    %c0_3 = arith.constant 0 : index
    %c0_4 = arith.constant 0 : index
    %3 = vector.load %arg3[%c0_3, %c0_4] : memref<1x64xf32, #tpu.memory_space<vmem>>, vector<1x64xf32>
    %4 = vector.broadcast %3 : vector<1x64xf32> to vector<32x64xf32>
    %5 = arith.addf %2, %4 : vector<32x64xf32>
    %cst_5 = arith.constant 0.000000e+00 : f32
    %6 = vector.broadcast %cst_5 : f32 to vector<32x64xf32>
    %7 = arith.maximumf %5, %6 : vector<32x64xf32>
    %8 = arith.truncf %7 : vector<32x64xf32> to vector<32x64xbf16>
    %c0_6 = arith.constant 0 : index
    %c0_7 = arith.constant 0 : index
    %9 = vector.load %arg4[%c0_6, %c0_7] : memref<32x64xbf16, #tpu.memory_space<vmem>>, vector<32x64xbf16>
    tpu.vector_store %arg4[%c0_6, %c0_7], %8 {strides = array<i32>} : memref<32x64xbf16, #tpu.memory_space<vmem>>, vector<32x64xbf16>,
    return
  }
  func.func @transform_0(%arg0: i32) -> (i32, i32) {
    %c0_i32 = arith.constant 0 : i32
    %c0_i32_0 = arith.constant 0 : i32
    return %arg0, %c0_i32 : i32, i32
  }
  func.func @transform_1(%arg0: i32) -> (i32, i32) {
    %c0_i32 = arith.constant 0 : i32
    %c0_i32_0 = arith.constant 0 : i32
    %c0_i32_1 = arith.constant 0 : i32
    return %c0_i32, %c0_i32_0 : i32, i32
  }
  func.func @transform_2(%arg0: i32) -> (i32, i32) {
    %c0_i32 = arith.constant 0 : i32
    %c0_i32_0 = arith.constant 0 : i32
    %c0_i32_1 = arith.constant 0 : i32
    return %c0_i32, %c0_i32_0 : i32, i32
  }
  func.func @transform_3(%arg0: i32) -> (i32, i32) {
    %c0_i32 = arith.constant 0 : i32
    %c0_i32_0 = arith.constant 0 : i32
    return %arg0, %c0_i32 : i32, i32
  }
}

module attributes {stable_mosaic.version = 11 : i64} {
  func.func @_conv_mm_kernel(%arg0: i32, %arg1: memref<32x64xbf16, #tpu.memory_space<vmem>>, %arg2: memref<64x128xbf16, #tpu.memory_space<vmem>>, %arg3: memref<1x128xf32, #tpu.memory_space<vmem>>, %arg4: memref<32x128xbf16, #tpu.memory_space<vmem>>) attributes {dimension_semantics = [#tpu.dimension_semantics<parallel>], iteration_bounds = array<i64: 1>, scalar_prefetch = 0 : i64, scratch_operands = 0 : i64, tpu.core_type = #tpu.core_type<tc>, window_params = [{transform_indices = @transform_0, window_bounds = array<i64: 32, 64>}, {pipeline_mode = #tpu.pipeline_mode<synchronous>, transform_indices = @transform_1, window_bounds = array<i64: 64, 128>}, {pipeline_mode = #tpu.pipeline_mode<synchronous>, transform_indices = @transform_2, window_bounds = array<i64: 1, 128>}, {transform_indices = @transform_3, window_bounds = array<i64: 32, 128>}]} {
    %c0 = arith.constant 0 : index
    %c0_0 = arith.constant 0 : index
    %0 = vector.load %arg1[%c0, %c0_0] : memref<32x64xbf16, #tpu.memory_space<vmem>>, vector<32x64xbf16>
    %c0_1 = arith.constant 0 : index
    %c0_2 = arith.constant 0 : index
    %1 = vector.load %arg2[%c0_1, %c0_2] : memref<64x128xbf16, #tpu.memory_space<vmem>>, vector<64x128xbf16>
    %cst = arith.constant dense<0.000000e+00> : vector<32x128xf32>
    %2 = tpu.matmul %0, %1, %cst {dimension_numbers = #tpu.dot_dimension_numbers<[1], [0], [0], [1], [0, 0, 1, 1], [], []>} : vector<32x64xbf16>, vector<64x128xbf16>, vector<32x128xf32> -> vector<32x128xf32>
    %c0_3 = arith.constant 0 : index
    %c0_4 = arith.constant 0 : index
    %3 = vector.load %arg3[%c0_3, %c0_4] : memref<1x128xf32, #tpu.memory_space<vmem>>, vector<1x128xf32>
    %4 = vector.broadcast %3 : vector<1x128xf32> to vector<32x128xf32>
    %5 = arith.addf %2, %4 : vector<32x128xf32>
    %6 = arith.truncf %5 : vector<32x128xf32> to vector<32x128xbf16>
    %c0_5 = arith.constant 0 : index
    %c0_6 = arith.constant 0 : index
    %7 = vector.load %arg4[%c0_5, %c0_6] : memref<32x128xbf16, #tpu.memory_space<vmem>>, vector<32x128xbf16>
    tpu.vector_store %arg4[%c0_5, %c0_6], %6 {strides = array<i32>} : memref<32x128xbf16, #tpu.memory_space<vmem>>, vector<32x128xbf16>,
    return
  }
  func.func @transform_0(%arg0: i32) -> (i32, i32) {
    %c0_i32 = arith.constant 0 : i32
    %c0_i32_0 = arith.constant 0 : i32
    return %arg0, %c0_i32 : i32, i32
  }
  func.func @transform_1(%arg0: i32) -> (i32, i32) {
    %c0_i32 = arith.constant 0 : i32
    %c0_i32_0 = arith.constant 0 : i32
    %c0_i32_1 = arith.constant 0 : i32
    return %c0_i32, %c0_i32_0 : i32, i32
  }
  func.func @transform_2(%arg0: i32) -> (i32, i32) {
    %c0_i32 = arith.constant 0 : i32
    %c0_i32_0 = arith.constant 0 : i32
    %c0_i32_1 = arith.constant 0 : i32
    return %c0_i32, %c0_i32_0 : i32, i32
  }
  func.func @transform_3(%arg0: i32) -> (i32, i32) {
    %c0_i32 = arith.constant 0 : i32
    %c0_i32_0 = arith.constant 0 : i32
    return %arg0, %c0_i32 : i32, i32
  }
}

module attributes {stable_mosaic.version = 11 : i64} {
  func.func @_conv_mm_kernel(%arg0: i32, %arg1: memref<32x64xbf16, #tpu.memory_space<vmem>>, %arg2: memref<64x128xbf16, #tpu.memory_space<vmem>>, %arg3: memref<1x128xf32, #tpu.memory_space<vmem>>, %arg4: memref<32x128xbf16, #tpu.memory_space<vmem>>, %arg5: memref<32x128xbf16, #tpu.memory_space<vmem>>) attributes {dimension_semantics = [#tpu.dimension_semantics<parallel>], iteration_bounds = array<i64: 1>, scalar_prefetch = 0 : i64, scratch_operands = 0 : i64, tpu.core_type = #tpu.core_type<tc>, window_params = [{transform_indices = @transform_0, window_bounds = array<i64: 32, 64>}, {pipeline_mode = #tpu.pipeline_mode<synchronous>, transform_indices = @transform_1, window_bounds = array<i64: 64, 128>}, {pipeline_mode = #tpu.pipeline_mode<synchronous>, transform_indices = @transform_2, window_bounds = array<i64: 1, 128>}, {transform_indices = @transform_3, window_bounds = array<i64: 32, 128>}, {transform_indices = @transform_4, window_bounds = array<i64: 32, 128>}]} {
    %c0 = arith.constant 0 : index
    %c0_0 = arith.constant 0 : index
    %0 = vector.load %arg1[%c0, %c0_0] : memref<32x64xbf16, #tpu.memory_space<vmem>>, vector<32x64xbf16>
    %c0_1 = arith.constant 0 : index
    %c0_2 = arith.constant 0 : index
    %1 = vector.load %arg2[%c0_1, %c0_2] : memref<64x128xbf16, #tpu.memory_space<vmem>>, vector<64x128xbf16>
    %cst = arith.constant dense<0.000000e+00> : vector<32x128xf32>
    %2 = tpu.matmul %0, %1, %cst {dimension_numbers = #tpu.dot_dimension_numbers<[1], [0], [0], [1], [0, 0, 1, 1], [], []>} : vector<32x64xbf16>, vector<64x128xbf16>, vector<32x128xf32> -> vector<32x128xf32>
    %c0_3 = arith.constant 0 : index
    %c0_4 = arith.constant 0 : index
    %3 = vector.load %arg3[%c0_3, %c0_4] : memref<1x128xf32, #tpu.memory_space<vmem>>, vector<1x128xf32>
    %4 = vector.broadcast %3 : vector<1x128xf32> to vector<32x128xf32>
    %5 = arith.addf %2, %4 : vector<32x128xf32>
    %c0_5 = arith.constant 0 : index
    %c0_6 = arith.constant 0 : index
    %6 = vector.load %arg4[%c0_5, %c0_6] : memref<32x128xbf16, #tpu.memory_space<vmem>>, vector<32x128xbf16>
    %7 = arith.extf %6 : vector<32x128xbf16> to vector<32x128xf32>
    %8 = arith.addf %5, %7 : vector<32x128xf32>
    %cst_7 = arith.constant 0.000000e+00 : f32
    %9 = vector.broadcast %cst_7 : f32 to vector<32x128xf32>
    %10 = arith.maximumf %8, %9 : vector<32x128xf32>
    %11 = arith.truncf %10 : vector<32x128xf32> to vector<32x128xbf16>
    %c0_8 = arith.constant 0 : index
    %c0_9 = arith.constant 0 : index
    %12 = vector.load %arg5[%c0_8, %c0_9] : memref<32x128xbf16, #tpu.memory_space<vmem>>, vector<32x128xbf16>
    tpu.vector_store %arg5[%c0_8, %c0_9], %11 {strides = array<i32>} : memref<32x128xbf16, #tpu.memory_space<vmem>>, vector<32x128xbf16>,
    return
  }
  func.func @transform_0(%arg0: i32) -> (i32, i32) {
    %c0_i32 = arith.constant 0 : i32
    %c0_i32_0 = arith.constant 0 : i32
    return %arg0, %c0_i32 : i32, i32
  }
  func.func @transform_1(%arg0: i32) -> (i32, i32) {
    %c0_i32 = arith.constant 0 : i32
    %c0_i32_0 = arith.constant 0 : i32
    %c0_i32_1 = arith.constant 0 : i32
    return %c0_i32, %c0_i32_0 : i32, i32
  }
  func.func @transform_2(%arg0: i32) -> (i32, i32) {
    %c0_i32 = arith.constant 0 : i32
    %c0_i32_0 = arith.constant 0 : i32
    %c0_i32_1 = arith.constant 0 : i32
    return %c0_i32, %c0_i32_0 : i32, i32
  }
  func.func @transform_3(%arg0: i32) -> (i32, i32) {
    %c0_i32 = arith.constant 0 : i32
    %c0_i32_0 = arith.constant 0 : i32
    return %arg0, %c0_i32 : i32, i32
  }
  func.func @transform_4(%arg0: i32) -> (i32, i32) {
    %c0_i32 = arith.constant 0 : i32
    %c0_i32_0 = arith.constant 0 : i32
    return %arg0, %c0_i32 : i32, i32
  }
}

module attributes {stable_mosaic.version = 11 : i64} {
  func.func @_conv_mm_kernel(%arg0: i32, %arg1: memref<32x128xbf16, #tpu.memory_space<vmem>>, %arg2: memref<128x128xbf16, #tpu.memory_space<vmem>>, %arg3: memref<1x128xf32, #tpu.memory_space<vmem>>, %arg4: memref<32x128xbf16, #tpu.memory_space<vmem>>) attributes {dimension_semantics = [#tpu.dimension_semantics<parallel>], iteration_bounds = array<i64: 1>, scalar_prefetch = 0 : i64, scratch_operands = 0 : i64, tpu.core_type = #tpu.core_type<tc>, window_params = [{transform_indices = @transform_0, window_bounds = array<i64: 32, 128>}, {pipeline_mode = #tpu.pipeline_mode<synchronous>, transform_indices = @transform_1, window_bounds = array<i64: 128, 128>}, {pipeline_mode = #tpu.pipeline_mode<synchronous>, transform_indices = @transform_2, window_bounds = array<i64: 1, 128>}, {transform_indices = @transform_3, window_bounds = array<i64: 32, 128>}]} {
    %c0 = arith.constant 0 : index
    %c0_0 = arith.constant 0 : index
    %0 = vector.load %arg1[%c0, %c0_0] : memref<32x128xbf16, #tpu.memory_space<vmem>>, vector<32x128xbf16>
    %c0_1 = arith.constant 0 : index
    %c0_2 = arith.constant 0 : index
    %1 = vector.load %arg2[%c0_1, %c0_2] : memref<128x128xbf16, #tpu.memory_space<vmem>>, vector<128x128xbf16>
    %cst = arith.constant dense<0.000000e+00> : vector<32x128xf32>
    %2 = tpu.matmul %0, %1, %cst {dimension_numbers = #tpu.dot_dimension_numbers<[1], [0], [0], [1], [0, 0, 1, 1], [], []>} : vector<32x128xbf16>, vector<128x128xbf16>, vector<32x128xf32> -> vector<32x128xf32>
    %c0_3 = arith.constant 0 : index
    %c0_4 = arith.constant 0 : index
    %3 = vector.load %arg3[%c0_3, %c0_4] : memref<1x128xf32, #tpu.memory_space<vmem>>, vector<1x128xf32>
    %4 = vector.broadcast %3 : vector<1x128xf32> to vector<32x128xf32>
    %5 = arith.addf %2, %4 : vector<32x128xf32>
    %cst_5 = arith.constant 0.000000e+00 : f32
    %6 = vector.broadcast %cst_5 : f32 to vector<32x128xf32>
    %7 = arith.maximumf %5, %6 : vector<32x128xf32>
    %8 = arith.truncf %7 : vector<32x128xf32> to vector<32x128xbf16>
    %c0_6 = arith.constant 0 : index
    %c0_7 = arith.constant 0 : index
    %9 = vector.load %arg4[%c0_6, %c0_7] : memref<32x128xbf16, #tpu.memory_space<vmem>>, vector<32x128xbf16>
    tpu.vector_store %arg4[%c0_6, %c0_7], %8 {strides = array<i32>} : memref<32x128xbf16, #tpu.memory_space<vmem>>, vector<32x128xbf16>,
    return
  }
  func.func @transform_0(%arg0: i32) -> (i32, i32) {
    %c0_i32 = arith.constant 0 : i32
    %c0_i32_0 = arith.constant 0 : i32
    return %arg0, %c0_i32 : i32, i32
  }
  func.func @transform_1(%arg0: i32) -> (i32, i32) {
    %c0_i32 = arith.constant 0 : i32
    %c0_i32_0 = arith.constant 0 : i32
    %c0_i32_1 = arith.constant 0 : i32
    return %c0_i32, %c0_i32_0 : i32, i32
  }
  func.func @transform_2(%arg0: i32) -> (i32, i32) {
    %c0_i32 = arith.constant 0 : i32
    %c0_i32_0 = arith.constant 0 : i32
    %c0_i32_1 = arith.constant 0 : i32
    return %c0_i32, %c0_i32_0 : i32, i32
  }
  func.func @transform_3(%arg0: i32) -> (i32, i32) {
    %c0_i32 = arith.constant 0 : i32
    %c0_i32_0 = arith.constant 0 : i32
    return %arg0, %c0_i32 : i32, i32
  }
}

module attributes {stable_mosaic.version = 11 : i64} {
  func.func @_conv_mm_kernel(%arg0: i32, %arg1: memref<8x1152xbf16, #tpu.memory_space<vmem>>, %arg2: memref<1152x128xbf16, #tpu.memory_space<vmem>>, %arg3: memref<1x128xf32, #tpu.memory_space<vmem>>, %arg4: memref<8x128xbf16, #tpu.memory_space<vmem>>) attributes {dimension_semantics = [#tpu.dimension_semantics<parallel>], iteration_bounds = array<i64: 1>, scalar_prefetch = 0 : i64, scratch_operands = 0 : i64, tpu.core_type = #tpu.core_type<tc>, window_params = [{transform_indices = @transform_0, window_bounds = array<i64: 8, 1152>}, {pipeline_mode = #tpu.pipeline_mode<synchronous>, transform_indices = @transform_1, window_bounds = array<i64: 1152, 128>}, {pipeline_mode = #tpu.pipeline_mode<synchronous>, transform_indices = @transform_2, window_bounds = array<i64: 1, 128>}, {transform_indices = @transform_3, window_bounds = array<i64: 8, 128>}]} {
    %c0 = arith.constant 0 : index
    %c0_0 = arith.constant 0 : index
    %0 = vector.load %arg1[%c0, %c0_0] : memref<8x1152xbf16, #tpu.memory_space<vmem>>, vector<8x1152xbf16>
    %c0_1 = arith.constant 0 : index
    %c0_2 = arith.constant 0 : index
    %1 = vector.load %arg2[%c0_1, %c0_2] : memref<1152x128xbf16, #tpu.memory_space<vmem>>, vector<1152x128xbf16>
    %cst = arith.constant dense<0.000000e+00> : vector<8x128xf32>
    %2 = tpu.matmul %0, %1, %cst {dimension_numbers = #tpu.dot_dimension_numbers<[1], [0], [0], [1], [0, 0, 1, 1], [], []>} : vector<8x1152xbf16>, vector<1152x128xbf16>, vector<8x128xf32> -> vector<8x128xf32>
    %c0_3 = arith.constant 0 : index
    %c0_4 = arith.constant 0 : index
    %3 = vector.load %arg3[%c0_3, %c0_4] : memref<1x128xf32, #tpu.memory_space<vmem>>, vector<1x128xf32>
    %4 = vector.broadcast %3 : vector<1x128xf32> to vector<8x128xf32>
    %5 = arith.addf %2, %4 : vector<8x128xf32>
    %cst_5 = arith.constant 0.000000e+00 : f32
    %6 = vector.broadcast %cst_5 : f32 to vector<8x128xf32>
    %7 = arith.maximumf %5, %6 : vector<8x128xf32>
    %8 = arith.truncf %7 : vector<8x128xf32> to vector<8x128xbf16>
    %c0_6 = arith.constant 0 : index
    %c0_7 = arith.constant 0 : index
    %9 = vector.load %arg4[%c0_6, %c0_7] : memref<8x128xbf16, #tpu.memory_space<vmem>>, vector<8x128xbf16>
    tpu.vector_store %arg4[%c0_6, %c0_7], %8 {strides = array<i32>} : memref<8x128xbf16, #tpu.memory_space<vmem>>, vector<8x128xbf16>,
    return
  }
  func.func @transform_0(%arg0: i32) -> (i32, i32) {
    %c0_i32 = arith.constant 0 : i32
    %c0_i32_0 = arith.constant 0 : i32
    return %arg0, %c0_i32 : i32, i32
  }
  func.func @transform_1(%arg0: i32) -> (i32, i32) {
    %c0_i32 = arith.constant 0 : i32
    %c0_i32_0 = arith.constant 0 : i32
    %c0_i32_1 = arith.constant 0 : i32
    return %c0_i32, %c0_i32_0 : i32, i32
  }
  func.func @transform_2(%arg0: i32) -> (i32, i32) {
    %c0_i32 = arith.constant 0 : i32
    %c0_i32_0 = arith.constant 0 : i32
    %c0_i32_1 = arith.constant 0 : i32
    return %c0_i32, %c0_i32_0 : i32, i32
  }
  func.func @transform_3(%arg0: i32) -> (i32, i32) {
    %c0_i32 = arith.constant 0 : i32
    %c0_i32_0 = arith.constant 0 : i32
    return %arg0, %c0_i32 : i32, i32
  }
}

module attributes {stable_mosaic.version = 11 : i64} {
  func.func @_conv_mm_kernel(%arg0: i32, %arg1: memref<8x128xbf16, #tpu.memory_space<vmem>>, %arg2: memref<128x256xbf16, #tpu.memory_space<vmem>>, %arg3: memref<1x256xf32, #tpu.memory_space<vmem>>, %arg4: memref<8x256xbf16, #tpu.memory_space<vmem>>) attributes {dimension_semantics = [#tpu.dimension_semantics<parallel>], iteration_bounds = array<i64: 1>, scalar_prefetch = 0 : i64, scratch_operands = 0 : i64, tpu.core_type = #tpu.core_type<tc>, window_params = [{transform_indices = @transform_0, window_bounds = array<i64: 8, 128>}, {pipeline_mode = #tpu.pipeline_mode<synchronous>, transform_indices = @transform_1, window_bounds = array<i64: 128, 256>}, {pipeline_mode = #tpu.pipeline_mode<synchronous>, transform_indices = @transform_2, window_bounds = array<i64: 1, 256>}, {transform_indices = @transform_3, window_bounds = array<i64: 8, 256>}]} {
    %c0 = arith.constant 0 : index
    %c0_0 = arith.constant 0 : index
    %0 = vector.load %arg1[%c0, %c0_0] : memref<8x128xbf16, #tpu.memory_space<vmem>>, vector<8x128xbf16>
    %c0_1 = arith.constant 0 : index
    %c0_2 = arith.constant 0 : index
    %1 = vector.load %arg2[%c0_1, %c0_2] : memref<128x256xbf16, #tpu.memory_space<vmem>>, vector<128x256xbf16>
    %cst = arith.constant dense<0.000000e+00> : vector<8x256xf32>
    %2 = tpu.matmul %0, %1, %cst {dimension_numbers = #tpu.dot_dimension_numbers<[1], [0], [0], [1], [0, 0, 1, 1], [], []>} : vector<8x128xbf16>, vector<128x256xbf16>, vector<8x256xf32> -> vector<8x256xf32>
    %c0_3 = arith.constant 0 : index
    %c0_4 = arith.constant 0 : index
    %3 = vector.load %arg3[%c0_3, %c0_4] : memref<1x256xf32, #tpu.memory_space<vmem>>, vector<1x256xf32>
    %4 = vector.broadcast %3 : vector<1x256xf32> to vector<8x256xf32>
    %5 = arith.addf %2, %4 : vector<8x256xf32>
    %6 = arith.truncf %5 : vector<8x256xf32> to vector<8x256xbf16>
    %c0_5 = arith.constant 0 : index
    %c0_6 = arith.constant 0 : index
    %7 = vector.load %arg4[%c0_5, %c0_6] : memref<8x256xbf16, #tpu.memory_space<vmem>>, vector<8x256xbf16>
    tpu.vector_store %arg4[%c0_5, %c0_6], %6 {strides = array<i32>} : memref<8x256xbf16, #tpu.memory_space<vmem>>, vector<8x256xbf16>,
    return
  }
  func.func @transform_0(%arg0: i32) -> (i32, i32) {
    %c0_i32 = arith.constant 0 : i32
    %c0_i32_0 = arith.constant 0 : i32
    return %arg0, %c0_i32 : i32, i32
  }
  func.func @transform_1(%arg0: i32) -> (i32, i32) {
    %c0_i32 = arith.constant 0 : i32
    %c0_i32_0 = arith.constant 0 : i32
    %c0_i32_1 = arith.constant 0 : i32
    return %c0_i32, %c0_i32_0 : i32, i32
  }
  func.func @transform_2(%arg0: i32) -> (i32, i32) {
    %c0_i32 = arith.constant 0 : i32
    %c0_i32_0 = arith.constant 0 : i32
    %c0_i32_1 = arith.constant 0 : i32
    return %c0_i32, %c0_i32_0 : i32, i32
  }
  func.func @transform_3(%arg0: i32) -> (i32, i32) {
    %c0_i32 = arith.constant 0 : i32
    %c0_i32_0 = arith.constant 0 : i32
    return %arg0, %c0_i32 : i32, i32
  }
}

module attributes {stable_mosaic.version = 11 : i64} {
  func.func @_conv_mm_kernel(%arg0: i32, %arg1: memref<8x256xbf16, #tpu.memory_space<vmem>>, %arg2: memref<256x256xbf16, #tpu.memory_space<vmem>>, %arg3: memref<1x256xf32, #tpu.memory_space<vmem>>, %arg4: memref<8x256xbf16, #tpu.memory_space<vmem>>) attributes {dimension_semantics = [#tpu.dimension_semantics<parallel>], iteration_bounds = array<i64: 1>, scalar_prefetch = 0 : i64, scratch_operands = 0 : i64, tpu.core_type = #tpu.core_type<tc>, window_params = [{transform_indices = @transform_0, window_bounds = array<i64: 8, 256>}, {pipeline_mode = #tpu.pipeline_mode<synchronous>, transform_indices = @transform_1, window_bounds = array<i64: 256, 256>}, {pipeline_mode = #tpu.pipeline_mode<synchronous>, transform_indices = @transform_2, window_bounds = array<i64: 1, 256>}, {transform_indices = @transform_3, window_bounds = array<i64: 8, 256>}]} {
    %c0 = arith.constant 0 : index
    %c0_0 = arith.constant 0 : index
    %0 = vector.load %arg1[%c0, %c0_0] : memref<8x256xbf16, #tpu.memory_space<vmem>>, vector<8x256xbf16>
    %c0_1 = arith.constant 0 : index
    %c0_2 = arith.constant 0 : index
    %1 = vector.load %arg2[%c0_1, %c0_2] : memref<256x256xbf16, #tpu.memory_space<vmem>>, vector<256x256xbf16>
    %cst = arith.constant dense<0.000000e+00> : vector<8x256xf32>
    %2 = tpu.matmul %0, %1, %cst {dimension_numbers = #tpu.dot_dimension_numbers<[1], [0], [0], [1], [0, 0, 1, 1], [], []>} : vector<8x256xbf16>, vector<256x256xbf16>, vector<8x256xf32> -> vector<8x256xf32>
    %c0_3 = arith.constant 0 : index
    %c0_4 = arith.constant 0 : index
    %3 = vector.load %arg3[%c0_3, %c0_4] : memref<1x256xf32, #tpu.memory_space<vmem>>, vector<1x256xf32>
    %4 = vector.broadcast %3 : vector<1x256xf32> to vector<8x256xf32>
    %5 = arith.addf %2, %4 : vector<8x256xf32>
    %cst_5 = arith.constant 0.000000e+00 : f32
    %6 = vector.broadcast %cst_5 : f32 to vector<8x256xf32>
    %7 = arith.maximumf %5, %6 : vector<8x256xf32>
    %8 = arith.truncf %7 : vector<8x256xf32> to vector<8x256xbf16>
    %c0_6 = arith.constant 0 : index
    %c0_7 = arith.constant 0 : index
    %9 = vector.load %arg4[%c0_6, %c0_7] : memref<8x256xbf16, #tpu.memory_space<vmem>>, vector<8x256xbf16>
    tpu.vector_store %arg4[%c0_6, %c0_7], %8 {strides = array<i32>} : memref<8x256xbf16, #tpu.memory_space<vmem>>, vector<8x256xbf16>,
    return
  }
  func.func @transform_0(%arg0: i32) -> (i32, i32) {
    %c0_i32 = arith.constant 0 : i32
    %c0_i32_0 = arith.constant 0 : i32
    return %arg0, %c0_i32 : i32, i32
  }
  func.func @transform_1(%arg0: i32) -> (i32, i32) {
    %c0_i32 = arith.constant 0 : i32
    %c0_i32_0 = arith.constant 0 : i32
    %c0_i32_1 = arith.constant 0 : i32
    return %c0_i32, %c0_i32_0 : i32, i32
  }
  func.func @transform_2(%arg0: i32) -> (i32, i32) {
    %c0_i32 = arith.constant 0 : i32
    %c0_i32_0 = arith.constant 0 : i32
    %c0_i32_1 = arith.constant 0 : i32
    return %c0_i32, %c0_i32_0 : i32, i32
  }
  func.func @transform_3(%arg0: i32) -> (i32, i32) {
    %c0_i32 = arith.constant 0 : i32
    %c0_i32_0 = arith.constant 0 : i32
    return %arg0, %c0_i32 : i32, i32
  }
}

module attributes {stable_mosaic.version = 11 : i64} {
  func.func @_conv_mm_kernel(%arg0: i32, %arg1: memref<8x128xbf16, #tpu.memory_space<vmem>>, %arg2: memref<128x256xbf16, #tpu.memory_space<vmem>>, %arg3: memref<1x256xf32, #tpu.memory_space<vmem>>, %arg4: memref<8x256xbf16, #tpu.memory_space<vmem>>, %arg5: memref<8x256xbf16, #tpu.memory_space<vmem>>) attributes {dimension_semantics = [#tpu.dimension_semantics<parallel>], iteration_bounds = array<i64: 1>, scalar_prefetch = 0 : i64, scratch_operands = 0 : i64, tpu.core_type = #tpu.core_type<tc>, window_params = [{transform_indices = @transform_0, window_bounds = array<i64: 8, 128>}, {pipeline_mode = #tpu.pipeline_mode<synchronous>, transform_indices = @transform_1, window_bounds = array<i64: 128, 256>}, {pipeline_mode = #tpu.pipeline_mode<synchronous>, transform_indices = @transform_2, window_bounds = array<i64: 1, 256>}, {transform_indices = @transform_3, window_bounds = array<i64: 8, 256>}, {transform_indices = @transform_4, window_bounds = array<i64: 8, 256>}]} {
    %c0 = arith.constant 0 : index
    %c0_0 = arith.constant 0 : index
    %0 = vector.load %arg1[%c0, %c0_0] : memref<8x128xbf16, #tpu.memory_space<vmem>>, vector<8x128xbf16>
    %c0_1 = arith.constant 0 : index
    %c0_2 = arith.constant 0 : index
    %1 = vector.load %arg2[%c0_1, %c0_2] : memref<128x256xbf16, #tpu.memory_space<vmem>>, vector<128x256xbf16>
    %cst = arith.constant dense<0.000000e+00> : vector<8x256xf32>
    %2 = tpu.matmul %0, %1, %cst {dimension_numbers = #tpu.dot_dimension_numbers<[1], [0], [0], [1], [0, 0, 1, 1], [], []>} : vector<8x128xbf16>, vector<128x256xbf16>, vector<8x256xf32> -> vector<8x256xf32>
    %c0_3 = arith.constant 0 : index
    %c0_4 = arith.constant 0 : index
    %3 = vector.load %arg3[%c0_3, %c0_4] : memref<1x256xf32, #tpu.memory_space<vmem>>, vector<1x256xf32>
    %4 = vector.broadcast %3 : vector<1x256xf32> to vector<8x256xf32>
    %5 = arith.addf %2, %4 : vector<8x256xf32>
    %c0_5 = arith.constant 0 : index
    %c0_6 = arith.constant 0 : index
    %6 = vector.load %arg4[%c0_5, %c0_6] : memref<8x256xbf16, #tpu.memory_space<vmem>>, vector<8x256xbf16>
    %7 = arith.extf %6 : vector<8x256xbf16> to vector<8x256xf32>
    %8 = arith.addf %5, %7 : vector<8x256xf32>
    %cst_7 = arith.constant 0.000000e+00 : f32
    %9 = vector.broadcast %cst_7 : f32 to vector<8x256xf32>
    %10 = arith.maximumf %8, %9 : vector<8x256xf32>
    %11 = arith.truncf %10 : vector<8x256xf32> to vector<8x256xbf16>
    %c0_8 = arith.constant 0 : index
    %c0_9 = arith.constant 0 : index
    %12 = vector.load %arg5[%c0_8, %c0_9] : memref<8x256xbf16, #tpu.memory_space<vmem>>, vector<8x256xbf16>
    tpu.vector_store %arg5[%c0_8, %c0_9], %11 {strides = array<i32>} : memref<8x256xbf16, #tpu.memory_space<vmem>>, vector<8x256xbf16>,
    return
  }
  func.func @transform_0(%arg0: i32) -> (i32, i32) {
    %c0_i32 = arith.constant 0 : i32
    %c0_i32_0 = arith.constant 0 : i32
    return %arg0, %c0_i32 : i32, i32
  }
  func.func @transform_1(%arg0: i32) -> (i32, i32) {
    %c0_i32 = arith.constant 0 : i32
    %c0_i32_0 = arith.constant 0 : i32
    %c0_i32_1 = arith.constant 0 : i32
    return %c0_i32, %c0_i32_0 : i32, i32
  }
  func.func @transform_2(%arg0: i32) -> (i32, i32) {
    %c0_i32 = arith.constant 0 : i32
    %c0_i32_0 = arith.constant 0 : i32
    %c0_i32_1 = arith.constant 0 : i32
    return %c0_i32, %c0_i32_0 : i32, i32
  }
  func.func @transform_3(%arg0: i32) -> (i32, i32) {
    %c0_i32 = arith.constant 0 : i32
    %c0_i32_0 = arith.constant 0 : i32
    return %arg0, %c0_i32 : i32, i32
  }
  func.func @transform_4(%arg0: i32) -> (i32, i32) {
    %c0_i32 = arith.constant 0 : i32
    %c0_i32_0 = arith.constant 0 : i32
    return %arg0, %c0_i32 : i32, i32
  }
}

module attributes {stable_mosaic.version = 11 : i64} {
  func.func @_conv_mm_kernel(%arg0: i32, %arg1: memref<2x2304xbf16, #tpu.memory_space<vmem>>, %arg2: memref<2304x256xbf16, #tpu.memory_space<vmem>>, %arg3: memref<1x256xf32, #tpu.memory_space<vmem>>, %arg4: memref<2x256xbf16, #tpu.memory_space<vmem>>) attributes {dimension_semantics = [#tpu.dimension_semantics<parallel>], iteration_bounds = array<i64: 1>, scalar_prefetch = 0 : i64, scratch_operands = 0 : i64, tpu.core_type = #tpu.core_type<tc>, window_params = [{transform_indices = @transform_0, window_bounds = array<i64: 2, 2304>}, {pipeline_mode = #tpu.pipeline_mode<synchronous>, transform_indices = @transform_1, window_bounds = array<i64: 2304, 256>}, {pipeline_mode = #tpu.pipeline_mode<synchronous>, transform_indices = @transform_2, window_bounds = array<i64: 1, 256>}, {transform_indices = @transform_3, window_bounds = array<i64: 2, 256>}]} {
    %c0 = arith.constant 0 : index
    %c0_0 = arith.constant 0 : index
    %0 = vector.load %arg1[%c0, %c0_0] : memref<2x2304xbf16, #tpu.memory_space<vmem>>, vector<2x2304xbf16>
    %c0_1 = arith.constant 0 : index
    %c0_2 = arith.constant 0 : index
    %1 = vector.load %arg2[%c0_1, %c0_2] : memref<2304x256xbf16, #tpu.memory_space<vmem>>, vector<2304x256xbf16>
    %cst = arith.constant dense<0.000000e+00> : vector<2x256xf32>
    %2 = tpu.matmul %0, %1, %cst {dimension_numbers = #tpu.dot_dimension_numbers<[1], [0], [0], [1], [0, 0, 1, 1], [], []>} : vector<2x2304xbf16>, vector<2304x256xbf16>, vector<2x256xf32> -> vector<2x256xf32>
    %c0_3 = arith.constant 0 : index
    %c0_4 = arith.constant 0 : index
    %3 = vector.load %arg3[%c0_3, %c0_4] : memref<1x256xf32, #tpu.memory_space<vmem>>, vector<1x256xf32>
    %4 = vector.broadcast %3 : vector<1x256xf32> to vector<2x256xf32>
    %5 = arith.addf %2, %4 : vector<2x256xf32>
    %cst_5 = arith.constant 0.000000e+00 : f32
    %6 = vector.broadcast %cst_5 : f32 to vector<2x256xf32>
    %7 = arith.maximumf %5, %6 : vector<2x256xf32>
    %8 = arith.truncf %7 : vector<2x256xf32> to vector<2x256xbf16>
    %c0_6 = arith.constant 0 : index
    %c0_7 = arith.constant 0 : index
    %9 = vector.load %arg4[%c0_6, %c0_7] : memref<2x256xbf16, #tpu.memory_space<vmem>>, vector<2x256xbf16>
    tpu.vector_store %arg4[%c0_6, %c0_7], %8 {strides = array<i32>} : memref<2x256xbf16, #tpu.memory_space<vmem>>, vector<2x256xbf16>,
    return
  }
  func.func @transform_0(%arg0: i32) -> (i32, i32) {
    %c0_i32 = arith.constant 0 : i32
    %c0_i32_0 = arith.constant 0 : i32
    return %arg0, %c0_i32 : i32, i32
  }
  func.func @transform_1(%arg0: i32) -> (i32, i32) {
    %c0_i32 = arith.constant 0 : i32
    %c0_i32_0 = arith.constant 0 : i32
    %c0_i32_1 = arith.constant 0 : i32
    return %c0_i32, %c0_i32_0 : i32, i32
  }
  func.func @transform_2(%arg0: i32) -> (i32, i32) {
    %c0_i32 = arith.constant 0 : i32
    %c0_i32_0 = arith.constant 0 : i32
    %c0_i32_1 = arith.constant 0 : i32
    return %c0_i32, %c0_i32_0 : i32, i32
  }
  func.func @transform_3(%arg0: i32) -> (i32, i32) {
    %c0_i32 = arith.constant 0 : i32
    %c0_i32_0 = arith.constant 0 : i32
    return %arg0, %c0_i32 : i32, i32
  }
}

module attributes {stable_mosaic.version = 11 : i64} {
  func.func @_conv_mm_kernel(%arg0: i32, %arg1: memref<2x256xbf16, #tpu.memory_space<vmem>>, %arg2: memref<256x512xbf16, #tpu.memory_space<vmem>>, %arg3: memref<1x512xf32, #tpu.memory_space<vmem>>, %arg4: memref<2x512xbf16, #tpu.memory_space<vmem>>, %arg5: memref<2x512xbf16, #tpu.memory_space<vmem>>) attributes {dimension_semantics = [#tpu.dimension_semantics<parallel>], iteration_bounds = array<i64: 1>, scalar_prefetch = 0 : i64, scratch_operands = 0 : i64, tpu.core_type = #tpu.core_type<tc>, window_params = [{transform_indices = @transform_0, window_bounds = array<i64: 2, 256>}, {pipeline_mode = #tpu.pipeline_mode<synchronous>, transform_indices = @transform_1, window_bounds = array<i64: 256, 512>}, {pipeline_mode = #tpu.pipeline_mode<synchronous>, transform_indices = @transform_2, window_bounds = array<i64: 1, 512>}, {transform_indices = @transform_3, window_bounds = array<i64: 2, 512>}, {transform_indices = @transform_4, window_bounds = array<i64: 2, 512>}]} {
    %c0 = arith.constant 0 : index
    %c0_0 = arith.constant 0 : index
    %0 = vector.load %arg1[%c0, %c0_0] : memref<2x256xbf16, #tpu.memory_space<vmem>>, vector<2x256xbf16>
    %c0_1 = arith.constant 0 : index
    %c0_2 = arith.constant 0 : index
    %1 = vector.load %arg2[%c0_1, %c0_2] : memref<256x512xbf16, #tpu.memory_space<vmem>>, vector<256x512xbf16>
    %cst = arith.constant dense<0.000000e+00> : vector<2x512xf32>
    %2 = tpu.matmul %0, %1, %cst {dimension_numbers = #tpu.dot_dimension_numbers<[1], [0], [0], [1], [0, 0, 1, 1], [], []>} : vector<2x256xbf16>, vector<256x512xbf16>, vector<2x512xf32> -> vector<2x512xf32>
    %c0_3 = arith.constant 0 : index
    %c0_4 = arith.constant 0 : index
    %3 = vector.load %arg3[%c0_3, %c0_4] : memref<1x512xf32, #tpu.memory_space<vmem>>, vector<1x512xf32>
    %4 = vector.broadcast %3 : vector<1x512xf32> to vector<2x512xf32>
    %5 = arith.addf %2, %4 : vector<2x512xf32>
    %c0_5 = arith.constant 0 : index
    %c0_6 = arith.constant 0 : index
    %6 = vector.load %arg4[%c0_5, %c0_6] : memref<2x512xbf16, #tpu.memory_space<vmem>>, vector<2x512xbf16>
    %7 = arith.extf %6 : vector<2x512xbf16> to vector<2x512xf32>
    %8 = arith.addf %5, %7 : vector<2x512xf32>
    %cst_7 = arith.constant 0.000000e+00 : f32
    %9 = vector.broadcast %cst_7 : f32 to vector<2x512xf32>
    %10 = arith.maximumf %8, %9 : vector<2x512xf32>
    %11 = arith.truncf %10 : vector<2x512xf32> to vector<2x512xbf16>
    %c0_8 = arith.constant 0 : index
    %c0_9 = arith.constant 0 : index
    %12 = vector.load %arg5[%c0_8, %c0_9] : memref<2x512xbf16, #tpu.memory_space<vmem>>, vector<2x512xbf16>
    tpu.vector_store %arg5[%c0_8, %c0_9], %11 {strides = array<i32>} : memref<2x512xbf16, #tpu.memory_space<vmem>>, vector<2x512xbf16>,
    return
  }
  func.func @transform_0(%arg0: i32) -> (i32, i32) {
    %c0_i32 = arith.constant 0 : i32
    %c0_i32_0 = arith.constant 0 : i32
    return %arg0, %c0_i32 : i32, i32
  }
  func.func @transform_1(%arg0: i32) -> (i32, i32) {
    %c0_i32 = arith.constant 0 : i32
    %c0_i32_0 = arith.constant 0 : i32
    %c0_i32_1 = arith.constant 0 : i32
    return %c0_i32, %c0_i32_0 : i32, i32
  }
  func.func @transform_2(%arg0: i32) -> (i32, i32) {
    %c0_i32 = arith.constant 0 : i32
    %c0_i32_0 = arith.constant 0 : i32
    %c0_i32_1 = arith.constant 0 : i32
    return %c0_i32, %c0_i32_0 : i32, i32
  }
  func.func @transform_3(%arg0: i32) -> (i32, i32) {
    %c0_i32 = arith.constant 0 : i32
    %c0_i32_0 = arith.constant 0 : i32
    return %arg0, %c0_i32 : i32, i32
  }
  func.func @transform_4(%arg0: i32) -> (i32, i32) {
    %c0_i32 = arith.constant 0 : i32
    %c0_i32_0 = arith.constant 0 : i32
    return %arg0, %c0_i32 : i32, i32
  }
}

module attributes {stable_mosaic.version = 11 : i64} {
  func.func @_conv_mm_kernel(%arg0: i32, %arg1: memref<2x256xbf16, #tpu.memory_space<vmem>>, %arg2: memref<256x512xbf16, #tpu.memory_space<vmem>>, %arg3: memref<1x512xf32, #tpu.memory_space<vmem>>, %arg4: memref<2x512xbf16, #tpu.memory_space<vmem>>) attributes {dimension_semantics = [#tpu.dimension_semantics<parallel>], iteration_bounds = array<i64: 1>, scalar_prefetch = 0 : i64, scratch_operands = 0 : i64, tpu.core_type = #tpu.core_type<tc>, window_params = [{transform_indices = @transform_0, window_bounds = array<i64: 2, 256>}, {pipeline_mode = #tpu.pipeline_mode<synchronous>, transform_indices = @transform_1, window_bounds = array<i64: 256, 512>}, {pipeline_mode = #tpu.pipeline_mode<synchronous>, transform_indices = @transform_2, window_bounds = array<i64: 1, 512>}, {transform_indices = @transform_3, window_bounds = array<i64: 2, 512>}]} {
    %c0 = arith.constant 0 : index
    %c0_0 = arith.constant 0 : index
    %0 = vector.load %arg1[%c0, %c0_0] : memref<2x256xbf16, #tpu.memory_space<vmem>>, vector<2x256xbf16>
    %c0_1 = arith.constant 0 : index
    %c0_2 = arith.constant 0 : index
    %1 = vector.load %arg2[%c0_1, %c0_2] : memref<256x512xbf16, #tpu.memory_space<vmem>>, vector<256x512xbf16>
    %cst = arith.constant dense<0.000000e+00> : vector<2x512xf32>
    %2 = tpu.matmul %0, %1, %cst {dimension_numbers = #tpu.dot_dimension_numbers<[1], [0], [0], [1], [0, 0, 1, 1], [], []>} : vector<2x256xbf16>, vector<256x512xbf16>, vector<2x512xf32> -> vector<2x512xf32>
    %c0_3 = arith.constant 0 : index
    %c0_4 = arith.constant 0 : index
    %3 = vector.load %arg3[%c0_3, %c0_4] : memref<1x512xf32, #tpu.memory_space<vmem>>, vector<1x512xf32>
    %4 = vector.broadcast %3 : vector<1x512xf32> to vector<2x512xf32>
    %5 = arith.addf %2, %4 : vector<2x512xf32>
    %6 = arith.truncf %5 : vector<2x512xf32> to vector<2x512xbf16>
    %c0_5 = arith.constant 0 : index
    %c0_6 = arith.constant 0 : index
    %7 = vector.load %arg4[%c0_5, %c0_6] : memref<2x512xbf16, #tpu.memory_space<vmem>>, vector<2x512xbf16>
    tpu.vector_store %arg4[%c0_5, %c0_6], %6 {strides = array<i32>} : memref<2x512xbf16, #tpu.memory_space<vmem>>, vector<2x512xbf16>,
    return
  }
  func.func @transform_0(%arg0: i32) -> (i32, i32) {
    %c0_i32 = arith.constant 0 : i32
    %c0_i32_0 = arith.constant 0 : i32
    return %arg0, %c0_i32 : i32, i32
  }
  func.func @transform_1(%arg0: i32) -> (i32, i32) {
    %c0_i32 = arith.constant 0 : i32
    %c0_i32_0 = arith.constant 0 : i32
    %c0_i32_1 = arith.constant 0 : i32
    return %c0_i32, %c0_i32_0 : i32, i32
  }
  func.func @transform_2(%arg0: i32) -> (i32, i32) {
    %c0_i32 = arith.constant 0 : i32
    %c0_i32_0 = arith.constant 0 : i32
    %c0_i32_1 = arith.constant 0 : i32
    return %c0_i32, %c0_i32_0 : i32, i32
  }
  func.func @transform_3(%arg0: i32) -> (i32, i32) {
    %c0_i32 = arith.constant 0 : i32
    %c0_i32_0 = arith.constant 0 : i32
    return %arg0, %c0_i32 : i32, i32
  }
}

module attributes {stable_mosaic.version = 11 : i64} {
  func.func @_head_kernel(%arg0: memref<2x1x512xbf16, #tpu.memory_space<vmem>>, %arg1: memref<512x10xf32, #tpu.memory_space<vmem>>, %arg2: memref<1x10xf32, #tpu.memory_space<vmem>>, %arg3: memref<2x10xf32, #tpu.memory_space<vmem>>) attributes {dimension_semantics = [], scalar_prefetch = 0 : i64, scratch_operands = 0 : i64, tpu.core_type = #tpu.core_type<tc>} {
    %c0 = arith.constant 0 : index
    %c0_0 = arith.constant 0 : index
    %c0_1 = arith.constant 0 : index
    %0 = vector.load %arg0[%c0, %c0_0, %c0_1] : memref<2x1x512xbf16, #tpu.memory_space<vmem>>, vector<2x1x512xbf16>
    %1 = arith.extf %0 : vector<2x1x512xbf16> to vector<2x1x512xf32>
    %cst = arith.constant dense<0.000000e+00> : vector<2x512xf32>
    %2 = vector.multi_reduction <add>, %1, %cst [1] : vector<2x1x512xf32> to vector<2x512xf32>
    %cst_2 = arith.constant 1.000000e+00 : f32
    %3 = vector.broadcast %cst_2 : f32 to vector<2x512xf32>
    %4 = arith.divf %2, %3 : vector<2x512xf32>
    %c0_3 = arith.constant 0 : index
    %c0_4 = arith.constant 0 : index
    %5 = vector.load %arg1[%c0_3, %c0_4] : memref<512x10xf32, #tpu.memory_space<vmem>>, vector<512x10xf32>
    %cst_5 = arith.constant dense<0.000000e+00> : vector<2x10xf32>
    %6 = tpu.matmul %4, %5, %cst_5 {dimension_numbers = #tpu.dot_dimension_numbers<[1], [0], [0], [1], [0, 0, 1, 1], [], []>} : vector<2x512xf32>, vector<512x10xf32>, vector<2x10xf32> -> vector<2x10xf32>
    %c0_6 = arith.constant 0 : index
    %c0_7 = arith.constant 0 : index
    %7 = vector.load %arg2[%c0_6, %c0_7] : memref<1x10xf32, #tpu.memory_space<vmem>>, vector<1x10xf32>
    %8 = vector.broadcast %7 : vector<1x10xf32> to vector<2x10xf32>
    %9 = arith.addf %6, %8 : vector<2x10xf32>
    %c0_8 = arith.constant 0 : index
    %c0_9 = arith.constant 0 : index
    %10 = vector.load %arg3[%c0_8, %c0_9] : memref<2x10xf32, #tpu.memory_space<vmem>>, vector<2x10xf32>
    tpu.vector_store %arg3[%c0_8, %c0_9], %9 {strides = array<i32>} : memref<2x10xf32, #tpu.memory_space<vmem>>, vector<2x10xf32>,
    return
  }
}

</mosaic_0001>

<llo_original>
// kernel: _lambda_.19
$region0: #{_lambda_.19}
  #allocation0 [shape = 'u32[]', space=smem, size = 0x4, offset = 0x4, fixed_abs, tag = 'smem constant byte address 0x4 - core index']
  #allocation1 [shape = 'u32[72,128]{1,0:T(1,128)}', space=vmem, size = 0x9000, scoped, tag = 'internal scratch']
  %s0 = inlined_call_operand.vmem [shape: bf16[512,147], index: 0, kind: input, shape index: {}]
  %s1 = inlined_call_operand.vmem [shape: bf16[147,16], index: 1, kind: input, shape index: {}]
  %s2 = inlined_call_operand.vmem [shape: f32[1,16], index: 2, kind: input, shape index: {}]
  %s3 = inlined_call_operand.vmem [shape: bf16[512,16], index: 3, kind: output, shape index: {}]
  %s4 = sld [smem:[#allocation0]]
  $region45: #{_lambda_.19} parent=0
    _
  %s6 = ssub.s32 1, %s4
  %s7 = scalar_select 0, %s6, %s4
  loop: start=0, step=1, limit=4
  $region2: #{_lambda_.19} parent=0 // loop_pre_header
    _
  $region3: #{_lambda_.19} parent=0 // loop_header
    %s9 = sphi 0, %s13
    %p10 = scmp.ge.s32.totalorder %s9, 4
    %s19 = sphi 0, %s21
    %s22 = sphi 0, %s19
    %s23 = sphi 0, %s22
    %s39 = sphi 0, %s23
    %s43 = sphi 0, %s43
    %s45 = sphi 0, %s43
    %s46 = sphi 0, %s45
    %s60 = sphi 0, %s46
    %s64 = sphi 0, %s64
    %s66 = sphi 0, %s64
    %s67 = sphi 0, %s66
    %s81 = sphi 0, %s67
    %s87 = sphi 0, %s89
    %s90 = sphi 0, %s87
    %s91 = sphi 0, %s90
    %s107 = sphi 0, %s91
  $region4: #{_lambda_.19} parent=0 // loop_header_branch
    %12 = sbr.rel (%p10) target = $region8
  $region5: #{_lambda_.19} parent=0 // loop_body
    %s14 = ssub.s32 %s9, 1
    %s15 = ssub.s32 %s9, 2
    %s16 = sadd.s32 %s9, 1
    %s17 = ssub.s32 %s9, %s16
    %p18 = scmp.eq.s32.totalorder %s17, 0
    %s20 = sadd.s32 %s19, 1
    %s21 = scalar_select %p18, %s19, %s20
    %p24 = pneg %p18
    %p25 = scmp.eq.s32.totalorder %s9, 1
    %p26 = por %p24, %p25
    %p27 = scmp.ne.s32.totalorder %s19, %s22
    %p28 = scmp.eq.s32.totalorder %s9, 0
    %p29 = por %p27, %p28
    %p30 = scmp.ne.s32.totalorder %s19, %s22
    %p31 = scmp.eq.s32.totalorder %s14, 1
    %p32 = por %p30, %p31
    %p33 = scmp.ne.s32.totalorder %s22, %s23
    %p34 = scmp.eq.s32.totalorder %s14, 0
    %p35 = por %p33, %p34
    %p36 = scmp.ne.s32.totalorder %s22, %s23
    %p37 = scmp.eq.s32.totalorder %s15, 1
    %p38 = por %p36, %p37
    %p40 = scmp.ne.s32.totalorder %s23, %s39
    %p41 = scmp.eq.s32.totalorder %s15, 0
    %p42 = por %p40, %p41
    %s44 = sadd.s32 %s43, 1
    %p47 = scmp.eq.s32.totalorder %s9, 1
    %p48 = scmp.ne.s32.totalorder %s43, %s45
    %p49 = scmp.eq.s32.totalorder %s9, 0
    %p50 = por %p48, %p49
    %p51 = scmp.ne.s32.totalorder %s43, %s45
    %p52 = scmp.eq.s32.totalorder %s14, 1
    %p53 = por %p51, %p52
    %p54 = scmp.ne.s32.totalorder %s45, %s46
    %p55 = scmp.eq.s32.totalorder %s14, 0
    %p56 = por %p54, %p55
    %p57 = scmp.ne.s32.totalorder %s45, %s46
    %p58 = scmp.eq.s32.totalorder %s15, 1
    %p59 = por %p57, %p58
    %p61 = scmp.ne.s32.totalorder %s46, %s60
    %p62 = scmp.eq.s32.totalorder %s15, 0
    %p63 = por %p61, %p62
    %s65 = sadd.s32 %s64, 1
    %p68 = scmp.eq.s32.totalorder %s9, 1
    %p69 = scmp.ne.s32.totalorder %s64, %s66
    %p70 = scmp.eq.s32.totalorder %s9, 0
    %p71 = por %p69, %p70
    %p72 = scmp.ne.s32.totalorder %s64, %s66
    %p73 = scmp.eq.s32.totalorder %s14, 1
    %p74 = por %p72, %p73
    %p75 = scmp.ne.s32.totalorder %s66, %s67
    %p76 = scmp.eq.s32.totalorder %s14, 0
    %p77 = por %p75, %p76
    %p78 = scmp.ne.s32.totalorder %s66, %s67
    %p79 = scmp.eq.s32.totalorder %s15, 1
    %p80 = por %p78, %p79
    %p82 = scmp.ne.s32.totalorder %s67, %s81
    %p83 = scmp.eq.s32.totalorder %s15, 0
    %p84 = por %p82, %p83
    %s85 = ssub.s32 %s9, %s16
    %p86 = scmp.eq.s32.totalorder %s85, 0
    %s88 = sadd.s32 %s87, 1
    %s89 = scalar_select %p86, %s87, %s88
    %p92 = pneg %p86
    %p93 = scmp.eq.s32.totalorder %s9, 1
    %p94 = por %p92, %p93
    %p95 = scmp.ne.s32.totalorder %s87, %s90
    %p96 = scmp.eq.s32.totalorder %s9, 0
    %p97 = por %p95, %p96
    %p98 = scmp.ne.s32.totalorder %s87, %s90
    %p99 = scmp.eq.s32.totalorder %s14, 1
    %p100 = por %p98, %p99
    %p101 = scmp.ne.s32.totalorder %s90, %s91
    %p102 = scmp.eq.s32.totalorder %s14, 0
    %p103 = por %p101, %p102
    %p104 = scmp.ne.s32.totalorder %s90, %s91
    %p105 = scmp.eq.s32.totalorder %s15, 1
    %p106 = por %p104, %p105
    %p108 = scmp.ne.s32.totalorder %s91, %s107
    %p109 = scmp.eq.s32.totalorder %s15, 0
    %p110 = por %p108, %p109
    %p111 = scmp.le.s32.totalorder 1, %s9
    %p112 = scmp.lt.s32.totalorder %s9, 3
    %p113 = pnand %p111, %p112
    %p114 = pneg %p113
    // Predicated region
    $region9: #{_lambda_.19} parent=5 // pred_check
      _
    $region10: #{_lambda_.19} parent=5 // pred_check_branch
      %116 = sbr.rel (%p113) target = $region12
    $region11: #{_lambda_.19} parent=5 // pred_region
      %s117 = ssub.s32 %s9, 1
      // Predicated region
      $region13: #{_lambda_.19} parent=11 // pred_check
        %p118 = pneg %p56
      $region14: #{_lambda_.19} parent=11 // pred_check_branch
        %120 = sbr.rel (%p118) target = $region16
      $region15: #{_lambda_.19} parent=11 // pred_region
        _
      $region16: #{_lambda_.19} parent=11 // pred_fallthru
        _
      // Predicated region
      $region17: #{_lambda_.19} parent=11 // pred_check
        %p121 = pneg %p77
      $region18: #{_lambda_.19} parent=11 // pred_check_branch
        %123 = sbr.rel (%p121) target = $region20
      $region19: #{_lambda_.19} parent=11 // pred_region
        _
      $region20: #{_lambda_.19} parent=11 // pred_fallthru
        _
    $region12: #{_lambda_.19} parent=5 // pred_fallthru
      _
    %p124 = scmp.lt.s32.totalorder %s9, 2
    // Predicated region
    $region21: #{_lambda_.19} parent=5 // pred_check
      %p125 = pneg %p124
    $region22: #{_lambda_.19} parent=5 // pred_check_branch
      %127 = sbr.rel (%p125) target = $region24
    $region23: #{_lambda_.19} parent=5 // pred_region
      // Predicated region
      $region25: #{_lambda_.19} parent=23 // pred_check
        %p128 = pneg %p29
      $region26: #{_lambda_.19} parent=23 // pred_check_branch
        %130 = sbr.rel (%p128) target = $region28
      $region27: #{_lambda_.19} parent=23 // pred_region
        %s131 = smul.u32 32, %s9
        %p132 = scmp.lt.s32.totalorder %s131, 63
        %s133 = scalar_select %p132, %s131, 63
        %s134 = smul.addr %s133, 2
        %s135 = smul.addr %s134, 4
        %s136 = scalar_lea.vmem %s0, %s135
        %s137 = smul.u32 32, %s9
      $region28: #{_lambda_.19} parent=23 // pred_fallthru
        _
    $region24: #{_lambda_.19} parent=5 // pred_fallthru
      _
    %p138 = scmp.le.s32.totalorder 1, %s9
    %p139 = scmp.lt.s32.totalorder %s9, 3
    %p140 = pnand %p138, %p139
    %p141 = pneg %p140
    // Predicated region
    $region29: #{_lambda_.19} parent=5 // pred_check
      _
    $region30: #{_lambda_.19} parent=5 // pred_check_branch
      %143 = sbr.rel (%p140) target = $region32
    $region31: #{_lambda_.19} parent=5 // pred_region
      %s144 = ssub.s32 %s9, 1
      %s145 = smul.u32 32, %s14
      %p146 = scmp.lt.s32.totalorder %s145, 63
      %s147 = scalar_select %p146, %s145, 63
      %s148 = smul.addr %s147, 2
      %s149 = smul.addr %s148, 4
      %s150 = scalar_lea.vmem %s0, %s149
      %p151 = pneg %p35
      %p152 = pneg %p32
      %p153 = pneg %p56
      %p154 = pneg %p53
      %p155 = pneg %p77
      %p156 = pneg %p74
      %p157 = pneg %p103
      %p158 = pneg %p100
      %s159 = smul.u32 32, %s14
      %p160 = scmp.lt.s32.totalorder %s159, 63
      %s161 = scalar_select %p160, %s159, 63
      %s162 = smul.addr %s161, 4
      %s163 = scalar_lea.vmem %s3, %s162
      %s164 = smul.u32 32, %s14
      %p165 = scmp.lt.s32.totalorder %s164, 63
      %s166 = scalar_select %p165, %s164, 63
      %s167 = smul.addr %s166, 2
      %s168 = smul.addr %s167, 4
      %s169 = scalar_lea.vmem %s0, %s168
      %s170 = smul.u32 32, %s14
      %s171 = smul.u32 32, %s14
      %p172 = scmp.lt.s32.totalorder %s171, 63
      %s173 = scalar_select %p172, %s171, 63
      %s174 = smul.addr %s173, 4
      %s175 = scalar_lea.vmem %s3, %s174
      %s176 = smul.u32 32, %s14
      %v178 = vld [vmem:[%s169] sm:$0xff]
      %v179 = vld [vmem:[%s169 + $0x8] sm:$0xff]
      %v180 = vld [vmem:[%s169 + $0x10] sm:$0xff]
      %v181 = vld [vmem:[%s169 + $0x18] sm:$0xff]
      %v182 = vld [vmem:[%s169 + $0x20] sm:$0xff]
      %v183 = vld [vmem:[%s169 + $0x28] sm:$0xff]
      %v184 = vld [vmem:[%s169 + $0x30] sm:$0xff]
      %v185 = vld [vmem:[%s169 + $0x38] sm:$0xff]
      %v186 = vld [vmem:[%s169 + $0x40] sm:$0xff]
      %v187 = vld [vmem:[%s169 + $0x48] sm:$0xff]
      %v188 = vld [vmem:[%s169 + $0x50] sm:$0xff]
      %v189 = vld [vmem:[%s169 + $0x58] sm:$0xff]
      %v190 = vld [vmem:[%s169 + $0x60] sm:$0xff]
      %v191 = vld [vmem:[%s169 + $0x68] sm:$0xff]
      %v192 = vld [vmem:[%s169 + $0x70] sm:$0xff]
      %v193 = vld [vmem:[%s169 + $0x78] sm:$0xff]
      %v194 = vld [vmem:[%s169 + $0x80] sm:$0xff]
      %v195 = vld [vmem:[%s169 + $0x88] sm:$0xff]
      %v196 = vld [vmem:[%s169 + $0x90] sm:$0xff]
      %v197 = vld [vmem:[%s169 + $0x98] sm:$0xff]
      %v198 = vld [vmem:[%s169 + $0xa0] sm:$0xff]
      %v199 = vld [vmem:[%s169 + $0xa8] sm:$0xff]
      %v200 = vld [vmem:[%s169 + $0xb0] sm:$0xff]
      %v201 = vld [vmem:[%s169 + $0xb8] sm:$0xff]
      %v202 = vld [vmem:[%s169 + $0xc0] sm:$0xff]
      %v203 = vld [vmem:[%s169 + $0xc8] sm:$0xff]
      %v204 = vld [vmem:[%s169 + $0xd0] sm:$0xff]
      %v205 = vld [vmem:[%s169 + $0xd8] sm:$0xff]
      %v206 = vld [vmem:[%s169 + $0xe0] sm:$0xff]
      %v207 = vld [vmem:[%s169 + $0xe8] sm:$0xff]
      %v208 = vld [vmem:[%s169 + $0xf0] sm:$0xff]
      %v209 = vld [vmem:[%s169 + $0xf8] sm:$0xff]
      %v210 = vld [vmem:[%s1] sm:$0xf]
      %v211 = vld [vmem:[%s1 + $0x4] sm:$0xf]
      %v212 = vld [vmem:[%s1 + $0x8] sm:$0xf]
      %v213 = vld [vmem:[%s1 + $0xc] sm:$0xf]
      %v214 = vld [vmem:[%s1 + $0x10] sm:$0xf]
      %v215 = vld [vmem:[%s1 + $0x14] sm:$0xf]
      %v216 = vld [vmem:[%s1 + $0x18] sm:$0xf]
      %v217 = vld [vmem:[%s1 + $0x1c] sm:$0xf]
      %v218 = vld [vmem:[%s1 + $0x20] sm:$0xf]
      %v219 = vld [vmem:[%s1 + $0x24] sm:$0xf]
      %v220 = vld [vmem:[%s1 + $0x28] sm:$0xf]
      %v221 = vld [vmem:[%s1 + $0x2c] sm:$0xf]
      %v222 = vld [vmem:[%s1 + $0x30] sm:$0xf]
      %v223 = vld [vmem:[%s1 + $0x34] sm:$0xf]
      %v224 = vld [vmem:[%s1 + $0x38] sm:$0xf]
      %v225 = vld [vmem:[%s1 + $0x3c] sm:$0xf]
      %v226 = vld [vmem:[%s1 + $0x40] sm:$0xf]
      %v227 = vld [vmem:[%s1 + $0x44] sm:$0xf]
      %v228 = vld [vmem:[%s1 + $0x48] sm:$0x3]
      %v229 = vld [vmem:[%s2] sm:$0x1]
      %v231 = vperm.slane %v229, 0
      %v265 = vunpack.c.l.b16 %v178
      %v266 = vunpack.c.h.b16 %v178
      %v267 = vunpack.c.l.b16 %v179
      %v268 = vunpack.c.h.b16 %v179
      %v269 = vunpack.c.l.b16 %v180
      %v270 = vunpack.c.h.b16 %v180
      %v271 = vunpack.c.l.b16 %v181
      %v272 = vunpack.c.h.b16 %v181
      %v273 = vunpack.c.l.b16 %v182
      %v274 = vunpack.c.h.b16 %v182
      %v275 = vunpack.c.l.b16 %v183
      %v276 = vunpack.c.h.b16 %v183
      %v277 = vunpack.c.l.b16 %v184
      %v278 = vunpack.c.h.b16 %v184
      %v279 = vunpack.c.l.b16 %v185
      %v280 = vunpack.c.h.b16 %v185
      %v281 = vunpack.c.l.b16 %v186
      %v282 = vunpack.c.h.b16 %v186
      %v283 = vunpack.c.l.b16 %v187
      %v284 = vunpack.c.h.b16 %v187
      %v285 = vunpack.c.l.b16 %v188
      %v286 = vunpack.c.h.b16 %v188
      %v287 = vunpack.c.l.b16 %v189
      %v288 = vunpack.c.h.b16 %v189
      %v289 = vunpack.c.l.b16 %v190
      %v290 = vunpack.c.h.b16 %v190
      %v291 = vunpack.c.l.b16 %v191
      %v292 = vunpack.c.h.b16 %v191
      %v293 = vunpack.c.l.b16 %v192
      %v294 = vunpack.c.h.b16 %v192
      %v295 = vunpack.c.l.b16 %v193
      %v296 = vunpack.c.h.b16 %v193
      %v297 = vunpack.c.l.b16 %v194
      %v298 = vunpack.c.h.b16 %v194
      %v299 = vunpack.c.l.b16 %v195
      %v300 = vunpack.c.h.b16 %v195
      %v301 = vunpack.c.l.b16 %v196
      %v302 = vunpack.c.h.b16 %v196
      %v303 = vunpack.c.l.b16 %v197
      %v304 = vunpack.c.h.b16 %v197
      %v305 = vunpack.c.l.b16 %v198
      %v306 = vunpack.c.h.b16 %v198
      %v307 = vunpack.c.l.b16 %v199
      %v308 = vunpack.c.h.b16 %v199
      %v309 = vunpack.c.l.b16 %v200
      %v310 = vunpack.c.h.b16 %v200
      %v311 = vunpack.c.l.b16 %v201
      %v312 = vunpack.c.h.b16 %v201
      %v313 = vunpack.c.l.b16 %v202
      %v314 = vunpack.c.h.b16 %v202
      %v315 = vunpack.c.l.b16 %v203
      %v316 = vunpack.c.h.b16 %v203
      %v317 = vunpack.c.l.b16 %v204
      %v318 = vunpack.c.h.b16 %v204
      %v319 = vunpack.c.l.b16 %v205
      %v320 = vunpack.c.h.b16 %v205
      %v321 = vunpack.c.l.b16 %v206
      %v322 = vunpack.c.h.b16 %v206
      %v323 = vunpack.c.l.b16 %v207
      %v324 = vunpack.c.h.b16 %v207
      %v325 = vunpack.c.l.b16 %v208
      %v326 = vunpack.c.h.b16 %v208
      %v327 = vunpack.c.l.b16 %v209
      %v328 = vunpack.c.h.b16 %v209
      %v329 = vpack.c.b16 %v267, %v265
      %v330 = vpack.c.b16 %v268, %v266
      %v331 = vpack.c.b16 %v271, %v269
      %v332 = vpack.c.b16 %v272, %v270
      %v333 = vpack.c.b16 %v275, %v273
      %v334 = vpack.c.b16 %v276, %v274
      %v335 = vpack.c.b16 %v279, %v277
      %v336 = vpack.c.b16 %v280, %v278
      %v337 = vpack.c.b16 %v283, %v281
      %v338 = vpack.c.b16 %v284, %v282
      %v339 = vpack.c.b16 %v287, %v285
      %v340 = vpack.c.b16 %v288, %v286
      %v341 = vpack.c.b16 %v291, %v289
      %v342 = vpack.c.b16 %v292, %v290
      %v343 = vpack.c.b16 %v295, %v293
      %v344 = vpack.c.b16 %v296, %v294
      %v345 = vpack.c.b16 %v299, %v297
      %v346 = vpack.c.b16 %v300, %v298
      %v347 = vpack.c.b16 %v303, %v301
      %v348 = vpack.c.b16 %v304, %v302
      %v349 = vpack.c.b16 %v307, %v305
      %v350 = vpack.c.b16 %v308, %v306
      %v351 = vpack.c.b16 %v311, %v309
      %v352 = vpack.c.b16 %v312, %v310
      %v353 = vpack.c.b16 %v315, %v313
      %v354 = vpack.c.b16 %v316, %v314
      %v355 = vpack.c.b16 %v319, %v317
      %v356 = vpack.c.b16 %v320, %v318
      %v357 = vpack.c.b16 %v323, %v321
      %v358 = vpack.c.b16 %v324, %v322
      %v359 = vpack.c.b16 %v327, %v325
      %v360 = vpack.c.b16 %v328, %v326
      %v396 = vunpack.c.l.b16 %v210
      %v397 = vunpack.c.l.b16 %v211
      %v398 = vunpack.c.l.b16 %v212
      %v399 = vunpack.c.l.b16 %v213
      %v400 = vunpack.c.l.b16 %v214
      %v401 = vunpack.c.l.b16 %v215
      %v402 = vunpack.c.l.b16 %v216
      %v403 = vunpack.c.l.b16 %v217
      %v404 = vunpack.c.l.b16 %v218
      %v405 = vunpack.c.l.b16 %v219
      %v406 = vunpack.c.l.b16 %v220
      %v407 = vunpack.c.l.b16 %v221
      %v408 = vunpack.c.l.b16 %v222
      %v409 = vunpack.c.l.b16 %v223
      %v410 = vunpack.c.l.b16 %v224
      %v411 = vunpack.c.l.b16 %v225
      %v412 = vunpack.c.l.b16 %v226
      %v413 = vunpack.c.l.b16 %v227
      %v414 = vunpack.c.l.b16 %v228
      %v415 = vpack.c.b16 %v397, %v396
      %v416 = vpack.c.b16 %v399, %v398
      %v417 = vpack.c.b16 %v401, %v400
      %v418 = vpack.c.b16 %v403, %v402
      %v419 = vpack.c.b16 %v405, %v404
      %v420 = vpack.c.b16 %v407, %v406
      %v421 = vpack.c.b16 %v409, %v408
      %v422 = vpack.c.b16 %v411, %v410
      %v423 = vpack.c.b16 %v413, %v412
      %v424 = vpack.c.b16 %v414, %v414
      %vm434 = vcmask 154624
      %v436 = vsel %vm434, %v330, 0
      %v439 = vsel %vm434, %v332, 0
      %v442 = vsel %vm434, %v334, 0
      %v445 = vsel %vm434, %v336, 0
      %v448 = vsel %vm434, %v338, 0
      %v451 = vsel %vm434, %v340, 0
      %v454 = vsel %vm434, %v342, 0
      %v457 = vsel %vm434, %v344, 0
      %v460 = vsel %vm434, %v346, 0
      %v463 = vsel %vm434, %v348, 0
      %v466 = vsel %vm434, %v350, 0
      %v469 = vsel %vm434, %v352, 0
      %v472 = vsel %vm434, %v354, 0
      %v475 = vsel %vm434, %v356, 0
      %v478 = vsel %vm434, %v358, 0
      %v481 = vsel %vm434, %v360, 0
      %vm483 = vcmask 1040384
      %vm484 = vcmask 1041408
      %v485 = vsel %vm483, 4294967295, 65535
      %v486 = vsel %vm484, %v485, 0
      %v488 = vand.u32 %v424, %v486
      %490 = vmatpush.bf16.msra.mxu0 %v422
      %491 = vmatpush.bf16.msra.mxu0 %v421
      %492 = vmatpush.bf16.msra.mxu0 %v420
      %493 = vmatpush.bf16.msra.mxu0 %v419
      %494 = vmatpush.bf16.msra.mxu0 %v418
      %495 = vmatpush.bf16.msra.mxu0 %v417
      %496 = vmatpush.bf16.msra.mxu0 %v416
      %497 = vmatpush.bf16.msra.mxu0 %v415
      %498 = vmatmul.bf16.gmra.mxu0 %v329
      %v499 = vpop.f32.mrf.mxu0
      %v500 = vadd.f32 %v231, %v499
      %v501 = vpop.f32.mrf.mxu0
      %v502 = vadd.f32 %v231, %v501
      %503 = vmatmul.bf16.gmra.mxu0 %v331
      %v504 = vpop.f32.mrf.mxu0
      %v505 = vadd.f32 %v231, %v504
      %v506 = vpop.f32.mrf.mxu0
      %v507 = vadd.f32 %v231, %v506
      %508 = vmatmul.bf16.gmra.mxu0 %v333
      %v509 = vpop.f32.mrf.mxu0
      %v510 = vadd.f32 %v231, %v509
      %v511 = vpop.f32.mrf.mxu0
      %v512 = vadd.f32 %v231, %v511
      %513 = vmatmul.bf16.gmra.mxu0 %v335
      %v514 = vpop.f32.mrf.mxu0
      %v515 = vadd.f32 %v231, %v514
      %v516 = vpop.f32.mrf.mxu0
      %v517 = vadd.f32 %v231, %v516
      %518 = vmatmul.bf16.gmra.mxu0 %v337
      %v519 = vpop.f32.mrf.mxu0
      %v520 = vadd.f32 %v231, %v519
      %v521 = vpop.f32.mrf.mxu0
      %v522 = vadd.f32 %v231, %v521
      %523 = vmatmul.bf16.gmra.mxu0 %v339
      %v524 = vpop.f32.mrf.mxu0
      %v525 = vadd.f32 %v231, %v524
      %v526 = vpop.f32.mrf.mxu0
      %v527 = vadd.f32 %v231, %v526
      %528 = vmatmul.bf16.gmra.mxu0 %v341
      %v529 = vpop.f32.mrf.mxu0
      %v530 = vadd.f32 %v231, %v529
      %v531 = vpop.f32.mrf.mxu0
      %v532 = vadd.f32 %v231, %v531
      %533 = vmatmul.bf16.gmra.mxu0 %v343
      %v534 = vpop.f32.mrf.mxu0
      %v535 = vadd.f32 %v231, %v534
      %v536 = vpop.f32.mrf.mxu0
      %v537 = vadd.f32 %v231, %v536
      %538 = vmatmul.bf16.gmra.mxu0 %v345
      %v539 = vpop.f32.mrf.mxu0
      %v540 = vadd.f32 %v231, %v539
      %v541 = vpop.f32.mrf.mxu0
      %v542 = vadd.f32 %v231, %v541
      %543 = vmatmul.bf16.gmra.mxu0 %v347
      %v544 = vpop.f32.mrf.mxu0
      %v545 = vadd.f32 %v231, %v544
      %v546 = vpop.f32.mrf.mxu0
      %v547 = vadd.f32 %v231, %v546
      %548 = vmatmul.bf16.gmra.mxu0 %v349
      %v549 = vpop.f32.mrf.mxu0
      %v550 = vadd.f32 %v231, %v549
      %v551 = vpop.f32.mrf.mxu0
      %v552 = vadd.f32 %v231, %v551
      %553 = vmatmul.bf16.gmra.mxu0 %v351
      %v554 = vpop.f32.mrf.mxu0
      %v555 = vadd.f32 %v231, %v554
      %v556 = vpop.f32.mrf.mxu0
      %v557 = vadd.f32 %v231, %v556
      %558 = vmatmul.bf16.gmra.mxu0 %v353
      %v559 = vpop.f32.mrf.mxu0
      %v560 = vadd.f32 %v231, %v559
      %v561 = vpop.f32.mrf.mxu0
      %v562 = vadd.f32 %v231, %v561
      %563 = vmatmul.bf16.gmra.mxu0 %v355
      %v564 = vpop.f32.mrf.mxu0
      %v565 = vadd.f32 %v231, %v564
      %v566 = vpop.f32.mrf.mxu0
      %v567 = vadd.f32 %v231, %v566
      %568 = vmatmul.bf16.gmra.mxu0 %v357
      %v569 = vpop.f32.mrf.mxu0
      %v570 = vadd.f32 %v231, %v569
      %v571 = vpop.f32.mrf.mxu0
      %v572 = vadd.f32 %v231, %v571
      %573 = vmatmul.bf16.gmra.mxu0 %v359
      %v574 = vpop.f32.mrf.mxu0
      %v575 = vadd.f32 %v231, %v574
      %v576 = vpop.f32.mrf.mxu0
      %v577 = vadd.f32 %v231, %v576
      %578 = vdwg.mxu0
      %579 = vmatpush.bf16.msra.mxu0 0
      %580 = vmatpush.bf16.msra.mxu0 0
      %581 = vmatpush.bf16.msra.mxu0 0
      %582 = vmatpush.bf16.msra.mxu0 0
      %583 = vmatpush.bf16.msra.mxu0 0
      %584 = vmatpush.bf16.msra.mxu0 0
      %585 = vmatpush.bf16.msra.mxu0 %v488
      %586 = vmatpush.bf16.msra.mxu0 %v423
      %587 = vmatmul.bf16.gmra.mxu0 %v436
      %v588 = vpop.f32.mrf.mxu0
      %v589 = vadd.f32 %v500, %v588
      %v590 = vpop.f32.mrf.mxu0
      %v591 = vadd.f32 %v502, %v590
      %592 = vmatmul.bf16.gmra.mxu0 %v439
      %v593 = vpop.f32.mrf.mxu0
      %v594 = vadd.f32 %v505, %v593
      %v595 = vpop.f32.mrf.mxu0
      %v596 = vadd.f32 %v507, %v595
      %597 = vmatmul.bf16.gmra.mxu0 %v442
      %v598 = vpop.f32.mrf.mxu0
      %v599 = vadd.f32 %v510, %v598
      %v600 = vpop.f32.mrf.mxu0
      %v601 = vadd.f32 %v512, %v600
      %602 = vmatmul.bf16.gmra.mxu0 %v445
      %v603 = vpop.f32.mrf.mxu0
      %v604 = vadd.f32 %v515, %v603
      %v605 = vpop.f32.mrf.mxu0
      %v606 = vadd.f32 %v517, %v605
      %607 = vmatmul.bf16.gmra.mxu0 %v448
      %v608 = vpop.f32.mrf.mxu0
      %v609 = vadd.f32 %v520, %v608
      %v610 = vpop.f32.mrf.mxu0
      %v611 = vadd.f32 %v522, %v610
      %612 = vmatmul.bf16.gmra.mxu0 %v451
      %v613 = vpop.f32.mrf.mxu0
      %v614 = vadd.f32 %v525, %v613
      %v615 = vpop.f32.mrf.mxu0
      %v616 = vadd.f32 %v527, %v615
      %617 = vmatmul.bf16.gmra.mxu0 %v454
      %v618 = vpop.f32.mrf.mxu0
      %v619 = vadd.f32 %v530, %v618
      %v620 = vpop.f32.mrf.mxu0
      %v621 = vadd.f32 %v532, %v620
      %622 = vmatmul.bf16.gmra.mxu0 %v457
      %v623 = vpop.f32.mrf.mxu0
      %v624 = vadd.f32 %v535, %v623
      %v625 = vpop.f32.mrf.mxu0
      %v626 = vadd.f32 %v537, %v625
      %627 = vmatmul.bf16.gmra.mxu0 %v460
      %v628 = vpop.f32.mrf.mxu0
      %v629 = vadd.f32 %v540, %v628
      %v630 = vpop.f32.mrf.mxu0
      %v631 = vadd.f32 %v542, %v630
      %632 = vmatmul.bf16.gmra.mxu0 %v463
      %v633 = vpop.f32.mrf.mxu0
      %v634 = vadd.f32 %v545, %v633
      %v635 = vpop.f32.mrf.mxu0
      %v636 = vadd.f32 %v547, %v635
      %637 = vmatmul.bf16.gmra.mxu0 %v466
      %v638 = vpop.f32.mrf.mxu0
      %v639 = vadd.f32 %v550, %v638
      %v640 = vpop.f32.mrf.mxu0
      %v641 = vadd.f32 %v552, %v640
      %642 = vmatmul.bf16.gmra.mxu0 %v469
      %v643 = vpop.f32.mrf.mxu0
      %v644 = vadd.f32 %v555, %v643
      %v645 = vpop.f32.mrf.mxu0
      %v646 = vadd.f32 %v557, %v645
      %647 = vmatmul.bf16.gmra.mxu0 %v472
      %v648 = vpop.f32.mrf.mxu0
      %v649 = vadd.f32 %v560, %v648
      %v650 = vpop.f32.mrf.mxu0
      %v651 = vadd.f32 %v562, %v650
      %652 = vmatmul.bf16.gmra.mxu0 %v475
      %v653 = vpop.f32.mrf.mxu0
      %v654 = vadd.f32 %v565, %v653
      %v655 = vpop.f32.mrf.mxu0
      %v656 = vadd.f32 %v567, %v655
      %657 = vmatmul.bf16.gmra.mxu0 %v478
      %v658 = vpop.f32.mrf.mxu0
      %v659 = vadd.f32 %v570, %v658
      %v660 = vpop.f32.mrf.mxu0
      %v661 = vadd.f32 %v572, %v660
      %662 = vmatmul.bf16.gmra.mxu0 %v481
      %v663 = vpop.f32.mrf.mxu0
      %v664 = vadd.f32 %v575, %v663
      %v665 = vpop.f32.mrf.mxu0
      %v666 = vadd.f32 %v577, %v665
      %667 = vdwg.mxu0
      %v668 = vmax.f32 %v589, 0.0
      %v669 = vmax.f32 %v591, 0.0
      %v670 = vmax.f32 %v594, 0.0
      %v671 = vmax.f32 %v596, 0.0
      %v672 = vmax.f32 %v599, 0.0
      %v673 = vmax.f32 %v601, 0.0
      %v674 = vmax.f32 %v604, 0.0
      %v675 = vmax.f32 %v606, 0.0
      %v676 = vmax.f32 %v609, 0.0
      %v677 = vmax.f32 %v611, 0.0
      %v678 = vmax.f32 %v614, 0.0
      %v679 = vmax.f32 %v616, 0.0
      %v680 = vmax.f32 %v619, 0.0
      %v681 = vmax.f32 %v621, 0.0
      %v682 = vmax.f32 %v624, 0.0
      %v683 = vmax.f32 %v626, 0.0
      %v684 = vmax.f32 %v629, 0.0
      %v685 = vmax.f32 %v631, 0.0
      %v686 = vmax.f32 %v634, 0.0
      %v687 = vmax.f32 %v636, 0.0
      %v688 = vmax.f32 %v639, 0.0
      %v689 = vmax.f32 %v641, 0.0
      %v690 = vmax.f32 %v644, 0.0
      %v691 = vmax.f32 %v646, 0.0
      %v692 = vmax.f32 %v649, 0.0
      %v693 = vmax.f32 %v651, 0.0
      %v694 = vmax.f32 %v654, 0.0
      %v695 = vmax.f32 %v656, 0.0
      %v696 = vmax.f32 %v659, 0.0
      %v697 = vmax.f32 %v661, 0.0
      %v698 = vmax.f32 %v664, 0.0
      %v699 = vmax.f32 %v666, 0.0
      %v700 = vpack.c.bf16 %v668, %v668
      %v701 = vpack.c.bf16 %v669, %v669
      %v702 = vpack.c.bf16 %v670, %v670
      %v703 = vpack.c.bf16 %v671, %v671
      %v704 = vpack.c.bf16 %v672, %v672
      %v705 = vpack.c.bf16 %v673, %v673
      %v706 = vpack.c.bf16 %v674, %v674
      %v707 = vpack.c.bf16 %v675, %v675
      %v708 = vpack.c.bf16 %v676, %v676
      %v709 = vpack.c.bf16 %v677, %v677
      %v710 = vpack.c.bf16 %v678, %v678
      %v711 = vpack.c.bf16 %v679, %v679
      %v712 = vpack.c.bf16 %v680, %v680
      %v713 = vpack.c.bf16 %v681, %v681
      %v714 = vpack.c.bf16 %v682, %v682
      %v715 = vpack.c.bf16 %v683, %v683
      %v716 = vpack.c.bf16 %v684, %v684
      %v717 = vpack.c.bf16 %v685, %v685
      %v718 = vpack.c.bf16 %v686, %v686
      %v719 = vpack.c.bf16 %v687, %v687
      %v720 = vpack.c.bf16 %v688, %v688
      %v721 = vpack.c.bf16 %v689, %v689
      %v722 = vpack.c.bf16 %v690, %v690
      %v723 = vpack.c.bf16 %v691, %v691
      %v724 = vpack.c.bf16 %v692, %v692
      %v725 = vpack.c.bf16 %v693, %v693
      %v726 = vpack.c.bf16 %v694, %v694
      %v727 = vpack.c.bf16 %v695, %v695
      %v728 = vpack.c.bf16 %v696, %v696
      %v729 = vpack.c.bf16 %v697, %v697
      %v730 = vpack.c.bf16 %v698, %v698
      %v731 = vpack.c.bf16 %v699, %v699
      %vm732 = vcmask 125952
      %733 = vst.msk [vmem:[%s175] sm:$0xf] %vm732, %v700
      %734 = vst.msk [vmem:[%s175 + $0x4] sm:$0xf] %vm732, %v701
      %735 = vst.msk [vmem:[%s175 + $0x8] sm:$0xf] %vm732, %v702
      %736 = vst.msk [vmem:[%s175 + $0xc] sm:$0xf] %vm732, %v703
      %737 = vst.msk [vmem:[%s175 + $0x10] sm:$0xf] %vm732, %v704
      %738 = vst.msk [vmem:[%s175 + $0x14] sm:$0xf] %vm732, %v705
      %739 = vst.msk [vmem:[%s175 + $0x18] sm:$0xf] %vm732, %v706
      %740 = vst.msk [vmem:[%s175 + $0x1c] sm:$0xf] %vm732, %v707
      %741 = vst.msk [vmem:[%s175 + $0x20] sm:$0xf] %vm732, %v708
      %742 = vst.msk [vmem:[%s175 + $0x24] sm:$0xf] %vm732, %v709
      %743 = vst.msk [vmem:[%s175 + $0x28] sm:$0xf] %vm732, %v710
      %744 = vst.msk [vmem:[%s175 + $0x2c] sm:$0xf] %vm732, %v711
      %745 = vst.msk [vmem:[%s175 + $0x30] sm:$0xf] %vm732, %v712
      %746 = vst.msk [vmem:[%s175 + $0x34] sm:$0xf] %vm732, %v713
      %747 = vst.msk [vmem:[%s175 + $0x38] sm:$0xf] %vm732, %v714
      %748 = vst.msk [vmem:[%s175 + $0x3c] sm:$0xf] %vm732, %v715
      %749 = vst.msk [vmem:[%s175 + $0x40] sm:$0xf] %vm732, %v716
      %750 = vst.msk [vmem:[%s175 + $0x44] sm:$0xf] %vm732, %v717
      %751 = vst.msk [vmem:[%s175 + $0x48] sm:$0xf] %vm732, %v718
      %752 = vst.msk [vmem:[%s175 + $0x4c] sm:$0xf] %vm732, %v719
      %753 = vst.msk [vmem:[%s175 + $0x50] sm:$0xf] %vm732, %v720
      %754 = vst.msk [vmem:[%s175 + $0x54] sm:$0xf] %vm732, %v721
      %755 = vst.msk [vmem:[%s175 + $0x58] sm:$0xf] %vm732, %v722
      %756 = vst.msk [vmem:[%s175 + $0x5c] sm:$0xf] %vm732, %v723
      %757 = vst.msk [vmem:[%s175 + $0x60] sm:$0xf] %vm732, %v724
      %758 = vst.msk [vmem:[%s175 + $0x64] sm:$0xf] %vm732, %v725
      %759 = vst.msk [vmem:[%s175 + $0x68] sm:$0xf] %vm732, %v726
      %760 = vst.msk [vmem:[%s175 + $0x6c] sm:$0xf] %vm732, %v727
      %761 = vst.msk [vmem:[%s175 + $0x70] sm:$0xf] %vm732, %v728
      %762 = vst.msk [vmem:[%s175 + $0x74] sm:$0xf] %vm732, %v729
      %763 = vst.msk [vmem:[%s175 + $0x78] sm:$0xf] %vm732, %v730
      %764 = vst.msk [vmem:[%s175 + $0x7c] sm:$0xf] %vm732, %v731
      %s765 = smul.u32 32, %s14
      %p766 = scmp.lt.s32.totalorder %s765, 63
      %s767 = scalar_select %p766, %s765, 63
      %s768 = smul.addr %s767, 4
      %s769 = scalar_lea.vmem %s3, %s768
      // Predicated region
      $region33: #{_lambda_.19} parent=31 // pred_check
        %p770 = pneg %p100
      $region34: #{_lambda_.19} parent=31 // pred_check_branch
        %772 = sbr.rel (%p770) target = $region36
      $region35: #{_lambda_.19} parent=31 // pred_region
        %s773 = smul.u32 32, %s14
      $region36: #{_lambda_.19} parent=31 // pred_fallthru
        _
    $region32: #{_lambda_.19} parent=5 // pred_fallthru
      _
    %p774 = scmp.le.s32.totalorder 2, %s9
    // Predicated region
    $region37: #{_lambda_.19} parent=5 // pred_check
      %p775 = pneg %p774
    $region38: #{_lambda_.19} parent=5 // pred_check_branch
      %777 = sbr.rel (%p775) target = $region40
    $region39: #{_lambda_.19} parent=5 // pred_region
      %s778 = ssub.s32 %s9, 2
      // Predicated region
      $region41: #{_lambda_.19} parent=39 // pred_check
        %p779 = pneg %p106
      $region42: #{_lambda_.19} parent=39 // pred_check_branch
        %781 = sbr.rel (%p779) target = $region44
      $region43: #{_lambda_.19} parent=39 // pred_region
        %s782 = smul.u32 32, %s15
        %p783 = scmp.lt.s32.totalorder %s782, 63
        %s784 = scalar_select %p783, %s782, 63
        %s785 = smul.addr %s784, 4
        %s786 = scalar_lea.vmem %s3, %s785
      $region44: #{_lambda_.19} parent=39 // pred_fallthru
        _
    $region40: #{_lambda_.19} parent=5 // pred_fallthru
      _
  $region6: #{_lambda_.19} parent=0 // loop_footer
    %s13 = sadd.s32 1, %s9
  $region7: #{_lambda_.19} parent=0 // loop_footer_branch
    %8 = sbr.rel target = $region3
  $region8: #{_lambda_.19} parent=0 // loop_exit
    _

// kernel: _lambda_.22
$region0: #{_lambda_.22}
  #allocation0 [shape = 'u32[]', space=smem, size = 0x4, offset = 0x4, fixed_abs, tag = 'smem constant byte address 0x4 - core index']
  #allocation1 [shape = 'u32[72,128]{1,0:T(1,128)}', space=vmem, size = 0x9000, scoped, tag = 'internal scratch']
  %s0 = inlined_call_operand.vmem [shape: bf16[128,16], index: 0, kind: input, shape index: {}]
  %s1 = inlined_call_operand.vmem [shape: bf16[16,32], index: 1, kind: input, shape index: {}]
  %s2 = inlined_call_operand.vmem [shape: f32[1,32], index: 2, kind: input, shape index: {}]
  %s3 = inlined_call_operand.vmem [shape: bf16[128,32], index: 3, kind: output, shape index: {}]
  %s4 = sld [smem:[#allocation0]]
  $region22: #{_lambda_.22} parent=0
    _
  %s6 = ssub.s32 1, %s4
  %s7 = scalar_select 0, %s6, %s4
  // Predicated region
  $region2: #{_lambda_.22} parent=0 // pred_check
    _
  $region3: #{_lambda_.22} parent=0 // pred_check_branch
    %9 = sbr.rel (0) target = $region5
  $region4: #{_lambda_.22} parent=0 // pred_region
    _
  $region5: #{_lambda_.22} parent=0 // pred_fallthru
    _
  // Predicated region
  $region6: #{_lambda_.22} parent=0 // pred_check
    _
  $region7: #{_lambda_.22} parent=0 // pred_check_branch
    %11 = sbr.rel (0) target = $region9
  $region8: #{_lambda_.22} parent=0 // pred_region
    _
  $region9: #{_lambda_.22} parent=0 // pred_fallthru
    _
  // Predicated region
  $region10: #{_lambda_.22} parent=0 // pred_check
    _
  $region11: #{_lambda_.22} parent=0 // pred_check_branch
    %13 = sbr.rel (0) target = $region13
  $region12: #{_lambda_.22} parent=0 // pred_region
    _
  $region13: #{_lambda_.22} parent=0 // pred_fallthru
    _
  %v15 = vld [vmem:[%s0] sm:$0xf]
  %v16 = vld [vmem:[%s0 + $0x4] sm:$0xf]
  %v17 = vld [vmem:[%s0 + $0x8] sm:$0xf]
  %v18 = vld [vmem:[%s0 + $0xc] sm:$0xf]
  %v19 = vld [vmem:[%s0 + $0x10] sm:$0xf]
  %v20 = vld [vmem:[%s0 + $0x14] sm:$0xf]
  %v21 = vld [vmem:[%s0 + $0x18] sm:$0xf]
  %v22 = vld [vmem:[%s0 + $0x1c] sm:$0xf]
  %v23 = vld [vmem:[%s0 + $0x20] sm:$0xf]
  %v24 = vld [vmem:[%s0 + $0x24] sm:$0xf]
  %v25 = vld [vmem:[%s0 + $0x28] sm:$0xf]
  %v26 = vld [vmem:[%s0 + $0x2c] sm:$0xf]
  %v27 = vld [vmem:[%s0 + $0x30] sm:$0xf]
  %v28 = vld [vmem:[%s0 + $0x34] sm:$0xf]
  %v29 = vld [vmem:[%s0 + $0x38] sm:$0xf]
  %v30 = vld [vmem:[%s0 + $0x3c] sm:$0xf]
  %v31 = vld [vmem:[%s1] sm:$0xf]
  %v32 = vld [vmem:[%s1 + $0x4] sm:$0xf]
  %v33 = vld [vmem:[%s2] sm:$0x1]
  %v35 = vperm.slane %v33, 0
  %v53 = vunpack.c.l.b16 %v15
  %v54 = vunpack.c.l.b16 %v16
  %v55 = vunpack.c.l.b16 %v17
  %v56 = vunpack.c.l.b16 %v18
  %v57 = vunpack.c.l.b16 %v19
  %v58 = vunpack.c.l.b16 %v20
  %v59 = vunpack.c.l.b16 %v21
  %v60 = vunpack.c.l.b16 %v22
  %v61 = vunpack.c.l.b16 %v23
  %v62 = vunpack.c.l.b16 %v24
  %v63 = vunpack.c.l.b16 %v25
  %v64 = vunpack.c.l.b16 %v26
  %v65 = vunpack.c.l.b16 %v27
  %v66 = vunpack.c.l.b16 %v28
  %v67 = vunpack.c.l.b16 %v29
  %v68 = vunpack.c.l.b16 %v30
  %v69 = vpack.c.b16 %v54, %v53
  %v70 = vpack.c.b16 %v56, %v55
  %v71 = vpack.c.b16 %v58, %v57
  %v72 = vpack.c.b16 %v60, %v59
  %v73 = vpack.c.b16 %v62, %v61
  %v74 = vpack.c.b16 %v64, %v63
  %v75 = vpack.c.b16 %v66, %v65
  %v76 = vpack.c.b16 %v68, %v67
  %v79 = vunpack.c.l.b16 %v31
  %v80 = vunpack.c.l.b16 %v32
  %v81 = vpack.c.b16 %v80, %v79
  %vm83 = vcmask 130048
  %v85 = vsel %vm83, %v69, 0
  %v88 = vsel %vm83, %v70, 0
  %v91 = vsel %vm83, %v71, 0
  %v94 = vsel %vm83, %v72, 0
  %v97 = vsel %vm83, %v73, 0
  %v100 = vsel %vm83, %v74, 0
  %v103 = vsel %vm83, %v75, 0
  %v106 = vsel %vm83, %v76, 0
  %108 = vmatpush.bf16.msra.mxu0 0
  %109 = vmatpush.bf16.msra.mxu0 0
  %110 = vmatpush.bf16.msra.mxu0 0
  %111 = vmatpush.bf16.msra.mxu0 0
  %112 = vmatpush.bf16.msra.mxu0 0
  %113 = vmatpush.bf16.msra.mxu0 0
  %114 = vmatpush.bf16.msra.mxu0 0
  %115 = vmatpush.bf16.msra.mxu0 %v81
  %116 = vmatmul.bf16.gmra.mxu0 %v85
  %v117 = vpop.f32.mrf.mxu0
  %v118 = vadd.f32 %v35, %v117
  %v119 = vpop.f32.mrf.mxu0
  %v120 = vadd.f32 %v35, %v119
  %121 = vmatmul.bf16.gmra.mxu0 %v88
  %v122 = vpop.f32.mrf.mxu0
  %v123 = vadd.f32 %v35, %v122
  %v124 = vpop.f32.mrf.mxu0
  %v125 = vadd.f32 %v35, %v124
  %126 = vmatmul.bf16.gmra.mxu0 %v91
  %v127 = vpop.f32.mrf.mxu0
  %v128 = vadd.f32 %v35, %v127
  %v129 = vpop.f32.mrf.mxu0
  %v130 = vadd.f32 %v35, %v129
  %131 = vmatmul.bf16.gmra.mxu0 %v94
  %v132 = vpop.f32.mrf.mxu0
  %v133 = vadd.f32 %v35, %v132
  %v134 = vpop.f32.mrf.mxu0
  %v135 = vadd.f32 %v35, %v134
  %136 = vmatmul.bf16.gmra.mxu0 %v97
  %v137 = vpop.f32.mrf.mxu0
  %v138 = vadd.f32 %v35, %v137
  %v139 = vpop.f32.mrf.mxu0
  %v140 = vadd.f32 %v35, %v139
  %141 = vmatmul.bf16.gmra.mxu0 %v100
  %v142 = vpop.f32.mrf.mxu0
  %v143 = vadd.f32 %v35, %v142
  %v144 = vpop.f32.mrf.mxu0
  %v145 = vadd.f32 %v35, %v144
  %146 = vmatmul.bf16.gmra.mxu0 %v103
  %v147 = vpop.f32.mrf.mxu0
  %v148 = vadd.f32 %v35, %v147
  %v149 = vpop.f32.mrf.mxu0
  %v150 = vadd.f32 %v35, %v149
  %151 = vmatmul.bf16.gmra.mxu0 %v106
  %v152 = vpop.f32.mrf.mxu0
  %v153 = vadd.f32 %v35, %v152
  %v154 = vpop.f32.mrf.mxu0
  %v155 = vadd.f32 %v35, %v154
  %156 = vdwg.mxu0
  %v157 = vmax.f32 %v118, 0.0
  %v158 = vmax.f32 %v120, 0.0
  %v159 = vmax.f32 %v123, 0.0
  %v160 = vmax.f32 %v125, 0.0
  %v161 = vmax.f32 %v128, 0.0
  %v162 = vmax.f32 %v130, 0.0
  %v163 = vmax.f32 %v133, 0.0
  %v164 = vmax.f32 %v135, 0.0
  %v165 = vmax.f32 %v138, 0.0
  %v166 = vmax.f32 %v140, 0.0
  %v167 = vmax.f32 %v143, 0.0
  %v168 = vmax.f32 %v145, 0.0
  %v169 = vmax.f32 %v148, 0.0
  %v170 = vmax.f32 %v150, 0.0
  %v171 = vmax.f32 %v153, 0.0
  %v172 = vmax.f32 %v155, 0.0
  %v173 = vpack.c.bf16 %v157, %v157
  %v174 = vpack.c.bf16 %v158, %v158
  %v175 = vpack.c.bf16 %v159, %v159
  %v176 = vpack.c.bf16 %v160, %v160
  %v177 = vpack.c.bf16 %v161, %v161
  %v178 = vpack.c.bf16 %v162, %v162
  %v179 = vpack.c.bf16 %v163, %v163
  %v180 = vpack.c.bf16 %v164, %v164
  %v181 = vpack.c.bf16 %v165, %v165
  %v182 = vpack.c.bf16 %v166, %v166
  %v183 = vpack.c.bf16 %v167, %v167
  %v184 = vpack.c.bf16 %v168, %v168
  %v185 = vpack.c.bf16 %v169, %v169
  %v186 = vpack.c.bf16 %v170, %v170
  %v187 = vpack.c.bf16 %v171, %v171
  %v188 = vpack.c.bf16 %v172, %v172
  %vm189 = vcmask 257024
  %190 = vst.msk [vmem:[%s3] sm:$0xf] %vm189, %v173
  %191 = vst.msk [vmem:[%s3 + $0x4] sm:$0xf] %vm189, %v174
  %192 = vst.msk [vmem:[%s3 + $0x8] sm:$0xf] %vm189, %v175
  %193 = vst.msk [vmem:[%s3 + $0xc] sm:$0xf] %vm189, %v176
  %194 = vst.msk [vmem:[%s3 + $0x10] sm:$0xf] %vm189, %v177
  %195 = vst.msk [vmem:[%s3 + $0x14] sm:$0xf] %vm189, %v178
  %196 = vst.msk [vmem:[%s3 + $0x18] sm:$0xf] %vm189, %v179
  %197 = vst.msk [vmem:[%s3 + $0x1c] sm:$0xf] %vm189, %v180
  %198 = vst.msk [vmem:[%s3 + $0x20] sm:$0xf] %vm189, %v181
  %199 = vst.msk [vmem:[%s3 + $0x24] sm:$0xf] %vm189, %v182
  %200 = vst.msk [vmem:[%s3 + $0x28] sm:$0xf] %vm189, %v183
  %201 = vst.msk [vmem:[%s3 + $0x2c] sm:$0xf] %vm189, %v184
  %202 = vst.msk [vmem:[%s3 + $0x30] sm:$0xf] %vm189, %v185
  %203 = vst.msk [vmem:[%s3 + $0x34] sm:$0xf] %vm189, %v186
  %204 = vst.msk [vmem:[%s3 + $0x38] sm:$0xf] %vm189, %v187
  %205 = vst.msk [vmem:[%s3 + $0x3c] sm:$0xf] %vm189, %v188
  // Predicated region
  $region14: #{_lambda_.22} parent=0 // pred_check
    _
  $region15: #{_lambda_.22} parent=0 // pred_check_branch
    %207 = sbr.rel (0) target = $region17
  $region16: #{_lambda_.22} parent=0 // pred_region
    _
  $region17: #{_lambda_.22} parent=0 // pred_fallthru
    _
  // Predicated region
  $region18: #{_lambda_.22} parent=0 // pred_check
    _
  $region19: #{_lambda_.22} parent=0 // pred_check_branch
    %209 = sbr.rel (0) target = $region21
  $region20: #{_lambda_.22} parent=0 // pred_region
    _
  $region21: #{_lambda_.22} parent=0 // pred_fallthru
    _

// kernel: _lambda_.20
$region0: #{_lambda_.20}
  #allocation0 [shape = 'u32[]', space=smem, size = 0x4, offset = 0x4, fixed_abs, tag = 'smem constant byte address 0x4 - core index']
  #allocation1 [shape = 'u32[72,128]{1,0:T(1,128)}', space=vmem, size = 0x9000, scoped, tag = 'internal scratch']
  %s0 = inlined_call_operand.vmem [shape: bf16[9,128,16], index: 0, kind: input, shape index: {}]
  %s1 = inlined_call_operand.vmem [shape: bf16[128,16], index: 1, kind: output, shape index: {}]
  %s2 = sld [smem:[#allocation0]]
  $region14: #{_lambda_.20} parent=0
    _
  %s4 = ssub.s32 1, %s2
  %s5 = scalar_select 0, %s4, %s2
  // Predicated region
  $region2: #{_lambda_.20} parent=0 // pred_check
    _
  $region3: #{_lambda_.20} parent=0 // pred_check_branch
    %7 = sbr.rel (0) target = $region5
  $region4: #{_lambda_.20} parent=0 // pred_region
    _
  $region5: #{_lambda_.20} parent=0 // pred_fallthru
    _
  %v8 = vld [vmem:[%s0] sm:$0xf]
  %v9 = vld [vmem:[%s0 + $0x4] sm:$0xf]
  %v10 = vld [vmem:[%s0 + $0x8] sm:$0xf]
  %v11 = vld [vmem:[%s0 + $0xc] sm:$0xf]
  %v12 = vld [vmem:[%s0 + $0x10] sm:$0xf]
  %v13 = vld [vmem:[%s0 + $0x14] sm:$0xf]
  %v14 = vld [vmem:[%s0 + $0x18] sm:$0xf]
  %v15 = vld [vmem:[%s0 + $0x1c] sm:$0xf]
  %v16 = vld [vmem:[%s0 + $0x20] sm:$0xf]
  %v17 = vld [vmem:[%s0 + $0x24] sm:$0xf]
  %v18 = vld [vmem:[%s0 + $0x28] sm:$0xf]
  %v19 = vld [vmem:[%s0 + $0x2c] sm:$0xf]
  %v20 = vld [vmem:[%s0 + $0x30] sm:$0xf]
  %v21 = vld [vmem:[%s0 + $0x34] sm:$0xf]
  %v22 = vld [vmem:[%s0 + $0x38] sm:$0xf]
  %v23 = vld [vmem:[%s0 + $0x3c] sm:$0xf]
  %v24 = vld [vmem:[%s0 + $0x40] sm:$0xf]
  %v25 = vld [vmem:[%s0 + $0x44] sm:$0xf]
  %v26 = vld [vmem:[%s0 + $0x48] sm:$0xf]
  %v27 = vld [vmem:[%s0 + $0x4c] sm:$0xf]
  %v28 = vld [vmem:[%s0 + $0x50] sm:$0xf]
  %v29 = vld [vmem:[%s0 + $0x54] sm:$0xf]
  %v30 = vld [vmem:[%s0 + $0x58] sm:$0xf]
  %v31 = vld [vmem:[%s0 + $0x5c] sm:$0xf]
  %v32 = vld [vmem:[%s0 + $0x60] sm:$0xf]
  %v33 = vld [vmem:[%s0 + $0x64] sm:$0xf]
  %v34 = vld [vmem:[%s0 + $0x68] sm:$0xf]
  %v35 = vld [vmem:[%s0 + $0x6c] sm:$0xf]
  %v36 = vld [vmem:[%s0 + $0x70] sm:$0xf]
  %v37 = vld [vmem:[%s0 + $0x74] sm:$0xf]
  %v38 = vld [vmem:[%s0 + $0x78] sm:$0xf]
  %v39 = vld [vmem:[%s0 + $0x7c] sm:$0xf]
  %v40 = vld [vmem:[%s0 + $0x80] sm:$0xf]
  %v41 = vld [vmem:[%s0 + $0x84] sm:$0xf]
  %v42 = vld [vmem:[%s0 + $0x88] sm:$0xf]
  %v43 = vld [vmem:[%s0 + $0x8c] sm:$0xf]
  %v44 = vld [vmem:[%s0 + $0x90] sm:$0xf]
  %v45 = vld [vmem:[%s0 + $0x94] sm:$0xf]
  %v46 = vld [vmem:[%s0 + $0x98] sm:$0xf]
  %v47 = vld [vmem:[%s0 + $0x9c] sm:$0xf]
  %v48 = vld [vmem:[%s0 + $0xa0] sm:$0xf]
  %v49 = vld [vmem:[%s0 + $0xa4] sm:$0xf]
  %v50 = vld [vmem:[%s0 + $0xa8] sm:$0xf]
  %v51 = vld [vmem:[%s0 + $0xac] sm:$0xf]
  %v52 = vld [vmem:[%s0 + $0xb0] sm:$0xf]
  %v53 = vld [vmem:[%s0 + $0xb4] sm:$0xf]
  %v54 = vld [vmem:[%s0 + $0xb8] sm:$0xf]
  %v55 = vld [vmem:[%s0 + $0xbc] sm:$0xf]
  %v56 = vld [vmem:[%s0 + $0xc0] sm:$0xf]
  %v57 = vld [vmem:[%s0 + $0xc4] sm:$0xf]
  %v58 = vld [vmem:[%s0 + $0xc8] sm:$0xf]
  %v59 = vld [vmem:[%s0 + $0xcc] sm:$0xf]
  %v60 = vld [vmem:[%s0 + $0xd0] sm:$0xf]
  %v61 = vld [vmem:[%s0 + $0xd4] sm:$0xf]
  %v62 = vld [vmem:[%s0 + $0xd8] sm:$0xf]
  %v63 = vld [vmem:[%s0 + $0xdc] sm:$0xf]
  %v64 = vld [vmem:[%s0 + $0xe0] sm:$0xf]
  %v65 = vld [vmem:[%s0 + $0xe4] sm:$0xf]
  %v66 = vld [vmem:[%s0 + $0xe8] sm:$0xf]
  %v67 = vld [vmem:[%s0 + $0xec] sm:$0xf]
  %v68 = vld [vmem:[%s0 + $0xf0] sm:$0xf]
  %v69 = vld [vmem:[%s0 + $0xf4] sm:$0xf]
  %v70 = vld [vmem:[%s0 + $0xf8] sm:$0xf]
  %v71 = vld [vmem:[%s0 + $0xfc] sm:$0xf]
  %v72 = vld [vmem:[%s0 + $0x100] sm:$0xf]
  %v73 = vld [vmem:[%s0 + $0x104] sm:$0xf]
  %v74 = vld [vmem:[%s0 + $0x108] sm:$0xf]
  %v75 = vld [vmem:[%s0 + $0x10c] sm:$0xf]
  %v76 = vld [vmem:[%s0 + $0x110] sm:$0xf]
  %v77 = vld [vmem:[%s0 + $0x114] sm:$0xf]
  %v78 = vld [vmem:[%s0 + $0x118] sm:$0xf]
  %v79 = vld [vmem:[%s0 + $0x11c] sm:$0xf]
  %v80 = vld [vmem:[%s0 + $0x120] sm:$0xf]
  %v81 = vld [vmem:[%s0 + $0x124] sm:$0xf]
  %v82 = vld [vmem:[%s0 + $0x128] sm:$0xf]
  %v83 = vld [vmem:[%s0 + $0x12c] sm:$0xf]
  %v84 = vld [vmem:[%s0 + $0x130] sm:$0xf]
  %v85 = vld [vmem:[%s0 + $0x134] sm:$0xf]
  %v86 = vld [vmem:[%s0 + $0x138] sm:$0xf]
  %v87 = vld [vmem:[%s0 + $0x13c] sm:$0xf]
  %v88 = vld [vmem:[%s0 + $0x140] sm:$0xf]
  %v89 = vld [vmem:[%s0 + $0x144] sm:$0xf]
  %v90 = vld [vmem:[%s0 + $0x148] sm:$0xf]
  %v91 = vld [vmem:[%s0 + $0x14c] sm:$0xf]
  %v92 = vld [vmem:[%s0 + $0x150] sm:$0xf]
  %v93 = vld [vmem:[%s0 + $0x154] sm:$0xf]
  %v94 = vld [vmem:[%s0 + $0x158] sm:$0xf]
  %v95 = vld [vmem:[%s0 + $0x15c] sm:$0xf]
  %v96 = vld [vmem:[%s0 + $0x160] sm:$0xf]
  %v97 = vld [vmem:[%s0 + $0x164] sm:$0xf]
  %v98 = vld [vmem:[%s0 + $0x168] sm:$0xf]
  %v99 = vld [vmem:[%s0 + $0x16c] sm:$0xf]
  %v100 = vld [vmem:[%s0 + $0x170] sm:$0xf]
  %v101 = vld [vmem:[%s0 + $0x174] sm:$0xf]
  %v102 = vld [vmem:[%s0 + $0x178] sm:$0xf]
  %v103 = vld [vmem:[%s0 + $0x17c] sm:$0xf]
  %v104 = vld [vmem:[%s0 + $0x180] sm:$0xf]
  %v105 = vld [vmem:[%s0 + $0x184] sm:$0xf]
  %v106 = vld [vmem:[%s0 + $0x188] sm:$0xf]
  %v107 = vld [vmem:[%s0 + $0x18c] sm:$0xf]
  %v108 = vld [vmem:[%s0 + $0x190] sm:$0xf]
  %v109 = vld [vmem:[%s0 + $0x194] sm:$0xf]
  %v110 = vld [vmem:[%s0 + $0x198] sm:$0xf]
  %v111 = vld [vmem:[%s0 + $0x19c] sm:$0xf]
  %v112 = vld [vmem:[%s0 + $0x1a0] sm:$0xf]
  %v113 = vld [vmem:[%s0 + $0x1a4] sm:$0xf]
  %v114 = vld [vmem:[%s0 + $0x1a8] sm:$0xf]
  %v115 = vld [vmem:[%s0 + $0x1ac] sm:$0xf]
  %v116 = vld [vmem:[%s0 + $0x1b0] sm:$0xf]
  %v117 = vld [vmem:[%s0 + $0x1b4] sm:$0xf]
  %v118 = vld [vmem:[%s0 + $0x1b8] sm:$0xf]
  %v119 = vld [vmem:[%s0 + $0x1bc] sm:$0xf]
  %v120 = vld [vmem:[%s0 + $0x1c0] sm:$0xf]
  %v121 = vld [vmem:[%s0 + $0x1c4] sm:$0xf]
  %v122 = vld [vmem:[%s0 + $0x1c8] sm:$0xf]
  %v123 = vld [vmem:[%s0 + $0x1cc] sm:$0xf]
  %v124 = vld [vmem:[%s0 + $0x1d0] sm:$0xf]
  %v125 = vld [vmem:[%s0 + $0x1d4] sm:$0xf]
  %v126 = vld [vmem:[%s0 + $0x1d8] sm:$0xf]
  %v127 = vld [vmem:[%s0 + $0x1dc] sm:$0xf]
  %v128 = vld [vmem:[%s0 + $0x1e0] sm:$0xf]
  %v129 = vld [vmem:[%s0 + $0x1e4] sm:$0xf]
  %v130 = vld [vmem:[%s0 + $0x1e8] sm:$0xf]
  %v131 = vld [vmem:[%s0 + $0x1ec] sm:$0xf]
  %v132 = vld [vmem:[%s0 + $0x1f0] sm:$0xf]
  %v133 = vld [vmem:[%s0 + $0x1f4] sm:$0xf]
  %v134 = vld [vmem:[%s0 + $0x1f8] sm:$0xf]
  %v135 = vld [vmem:[%s0 + $0x1fc] sm:$0xf]
  %v136 = vld [vmem:[%s0 + $0x200] sm:$0xf]
  %v137 = vld [vmem:[%s0 + $0x204] sm:$0xf]
  %v138 = vld [vmem:[%s0 + $0x208] sm:$0xf]
  %v139 = vld [vmem:[%s0 + $0x20c] sm:$0xf]
  %v140 = vld [vmem:[%s0 + $0x210] sm:$0xf]
  %v141 = vld [vmem:[%s0 + $0x214] sm:$0xf]
  %v142 = vld [vmem:[%s0 + $0x218] sm:$0xf]
  %v143 = vld [vmem:[%s0 + $0x21c] sm:$0xf]
  %v144 = vld [vmem:[%s0 + $0x220] sm:$0xf]
  %v145 = vld [vmem:[%s0 + $0x224] sm:$0xf]
  %v146 = vld [vmem:[%s0 + $0x228] sm:$0xf]
  %v147 = vld [vmem:[%s0 + $0x22c] sm:$0xf]
  %v148 = vld [vmem:[%s0 + $0x230] sm:$0xf]
  %v149 = vld [vmem:[%s0 + $0x234] sm:$0xf]
  %v150 = vld [vmem:[%s0 + $0x238] sm:$0xf]
  %v151 = vld [vmem:[%s0 + $0x23c] sm:$0xf]
  %v152 = vunpack.c.l.bf16 %v8
  %v153 = vunpack.c.l.bf16 %v9
  %v154 = vunpack.c.l.bf16 %v10
  %v155 = vunpack.c.l.bf16 %v11
  %v156 = vunpack.c.l.bf16 %v12
  %v157 = vunpack.c.l.bf16 %v13
  %v158 = vunpack.c.l.bf16 %v14
  %v159 = vunpack.c.l.bf16 %v15
  %v160 = vunpack.c.l.bf16 %v16
  %v161 = vunpack.c.l.bf16 %v17
  %v162 = vunpack.c.l.bf16 %v18
  %v163 = vunpack.c.l.bf16 %v19
  %v164 = vunpack.c.l.bf16 %v20
  %v165 = vunpack.c.l.bf16 %v21
  %v166 = vunpack.c.l.bf16 %v22
  %v167 = vunpack.c.l.bf16 %v23
  %v168 = vunpack.c.l.bf16 %v24
  %v169 = vunpack.c.l.bf16 %v25
  %v170 = vunpack.c.l.bf16 %v26
  %v171 = vunpack.c.l.bf16 %v27
  %v172 = vunpack.c.l.bf16 %v28
  %v173 = vunpack.c.l.bf16 %v29
  %v174 = vunpack.c.l.bf16 %v30
  %v175 = vunpack.c.l.bf16 %v31
  %v176 = vunpack.c.l.bf16 %v32
  %v177 = vunpack.c.l.bf16 %v33
  %v178 = vunpack.c.l.bf16 %v34
  %v179 = vunpack.c.l.bf16 %v35
  %v180 = vunpack.c.l.bf16 %v36
  %v181 = vunpack.c.l.bf16 %v37
  %v182 = vunpack.c.l.bf16 %v38
  %v183 = vunpack.c.l.bf16 %v39
  %v184 = vunpack.c.l.bf16 %v40
  %v185 = vunpack.c.l.bf16 %v41
  %v186 = vunpack.c.l.bf16 %v42
  %v187 = vunpack.c.l.bf16 %v43
  %v188 = vunpack.c.l.bf16 %v44
  %v189 = vunpack.c.l.bf16 %v45
  %v190 = vunpack.c.l.bf16 %v46
  %v191 = vunpack.c.l.bf16 %v47
  %v192 = vunpack.c.l.bf16 %v48
  %v193 = vunpack.c.l.bf16 %v49
  %v194 = vunpack.c.l.bf16 %v50
  %v195 = vunpack.c.l.bf16 %v51
  %v196 = vunpack.c.l.bf16 %v52
  %v197 = vunpack.c.l.bf16 %v53
  %v198 = vunpack.c.l.bf16 %v54
  %v199 = vunpack.c.l.bf16 %v55
  %v200 = vunpack.c.l.bf16 %v56
  %v201 = vunpack.c.l.bf16 %v57
  %v202 = vunpack.c.l.bf16 %v58
  %v203 = vunpack.c.l.bf16 %v59
  %v204 = vunpack.c.l.bf16 %v60
  %v205 = vunpack.c.l.bf16 %v61
  %v206 = vunpack.c.l.bf16 %v62
  %v207 = vunpack.c.l.bf16 %v63
  %v208 = vunpack.c.l.bf16 %v64
  %v209 = vunpack.c.l.bf16 %v65
  %v210 = vunpack.c.l.bf16 %v66
  %v211 = vunpack.c.l.bf16 %v67
  %v212 = vunpack.c.l.bf16 %v68
  %v213 = vunpack.c.l.bf16 %v69
  %v214 = vunpack.c.l.bf16 %v70
  %v215 = vunpack.c.l.bf16 %v71
  %v216 = vunpack.c.l.bf16 %v72
  %v217 = vunpack.c.l.bf16 %v73
  %v218 = vunpack.c.l.bf16 %v74
  %v219 = vunpack.c.l.bf16 %v75
  %v220 = vunpack.c.l.bf16 %v76
  %v221 = vunpack.c.l.bf16 %v77
  %v222 = vunpack.c.l.bf16 %v78
  %v223 = vunpack.c.l.bf16 %v79
  %v224 = vunpack.c.l.bf16 %v80
  %v225 = vunpack.c.l.bf16 %v81
  %v226 = vunpack.c.l.bf16 %v82
  %v227 = vunpack.c.l.bf16 %v83
  %v228 = vunpack.c.l.bf16 %v84
  %v229 = vunpack.c.l.bf16 %v85
  %v230 = vunpack.c.l.bf16 %v86
  %v231 = vunpack.c.l.bf16 %v87
  %v232 = vunpack.c.l.bf16 %v88
  %v233 = vunpack.c.l.bf16 %v89
  %v234 = vunpack.c.l.bf16 %v90
  %v235 = vunpack.c.l.bf16 %v91
  %v236 = vunpack.c.l.bf16 %v92
  %v237 = vunpack.c.l.bf16 %v93
  %v238 = vunpack.c.l.bf16 %v94
  %v239 = vunpack.c.l.bf16 %v95
  %v240 = vunpack.c.l.bf16 %v96
  %v241 = vunpack.c.l.bf16 %v97
  %v242 = vunpack.c.l.bf16 %v98
  %v243 = vunpack.c.l.bf16 %v99
  %v244 = vunpack.c.l.bf16 %v100
  %v245 = vunpack.c.l.bf16 %v101
  %v246 = vunpack.c.l.bf16 %v102
  %v247 = vunpack.c.l.bf16 %v103
  %v248 = vunpack.c.l.bf16 %v104
  %v249 = vunpack.c.l.bf16 %v105
  %v250 = vunpack.c.l.bf16 %v106
  %v251 = vunpack.c.l.bf16 %v107
  %v252 = vunpack.c.l.bf16 %v108
  %v253 = vunpack.c.l.bf16 %v109
  %v254 = vunpack.c.l.bf16 %v110
  %v255 = vunpack.c.l.bf16 %v111
  %v256 = vunpack.c.l.bf16 %v112
  %v257 = vunpack.c.l.bf16 %v113
  %v258 = vunpack.c.l.bf16 %v114
  %v259 = vunpack.c.l.bf16 %v115
  %v260 = vunpack.c.l.bf16 %v116
  %v261 = vunpack.c.l.bf16 %v117
  %v262 = vunpack.c.l.bf16 %v118
  %v263 = vunpack.c.l.bf16 %v119
  %v264 = vunpack.c.l.bf16 %v120
  %v265 = vunpack.c.l.bf16 %v121
  %v266 = vunpack.c.l.bf16 %v122
  %v267 = vunpack.c.l.bf16 %v123
  %v268 = vunpack.c.l.bf16 %v124
  %v269 = vunpack.c.l.bf16 %v125
  %v270 = vunpack.c.l.bf16 %v126
  %v271 = vunpack.c.l.bf16 %v127
  %v272 = vunpack.c.l.bf16 %v128
  %v273 = vunpack.c.l.bf16 %v129
  %v274 = vunpack.c.l.bf16 %v130
  %v275 = vunpack.c.l.bf16 %v131
  %v276 = vunpack.c.l.bf16 %v132
  %v277 = vunpack.c.l.bf16 %v133
  %v278 = vunpack.c.l.bf16 %v134
  %v279 = vunpack.c.l.bf16 %v135
  %v280 = vunpack.c.l.bf16 %v136
  %v281 = vunpack.c.l.bf16 %v137
  %v282 = vunpack.c.l.bf16 %v138
  %v283 = vunpack.c.l.bf16 %v139
  %v284 = vunpack.c.l.bf16 %v140
  %v285 = vunpack.c.l.bf16 %v141
  %v286 = vunpack.c.l.bf16 %v142
  %v287 = vunpack.c.l.bf16 %v143
  %v288 = vunpack.c.l.bf16 %v144
  %v289 = vunpack.c.l.bf16 %v145
  %v290 = vunpack.c.l.bf16 %v146
  %v291 = vunpack.c.l.bf16 %v147
  %v292 = vunpack.c.l.bf16 %v148
  %v293 = vunpack.c.l.bf16 %v149
  %v294 = vunpack.c.l.bf16 %v150
  %v295 = vunpack.c.l.bf16 %v151
  %vm296 = vcmask 130048
  %v297 = vsel %vm296, %v152, -inf
  %v298 = vsel %vm296, %v168, -inf
  %v299 = vmax.f32 %v297, %v298
  %v300 = vsel %vm296, %v184, -inf
  %v301 = vmax.f32 %v299, %v300
  %v302 = vsel %vm296, %v200, -inf
  %v303 = vmax.f32 %v301, %v302
  %v304 = vsel %vm296, %v216, -inf
  %v305 = vmax.f32 %v303, %v304
  %v306 = vsel %vm296, %v232, -inf
  %v307 = vmax.f32 %v305, %v306
  %v308 = vsel %vm296, %v248, -inf
  %v309 = vmax.f32 %v307, %v308
  %v310 = vsel %vm296, %v264, -inf
  %v311 = vmax.f32 %v309, %v310
  %v312 = vsel %vm296, %v280, -inf
  %v313 = vmax.f32 %v311, %v312
  %v314 = vsel %vm296, %v153, -inf
  %v315 = vsel %vm296, %v169, -inf
  %v316 = vmax.f32 %v314, %v315
  %v317 = vsel %vm296, %v185, -inf
  %v318 = vmax.f32 %v316, %v317
  %v319 = vsel %vm296, %v201, -inf
  %v320 = vmax.f32 %v318, %v319
  %v321 = vsel %vm296, %v217, -inf
  %v322 = vmax.f32 %v320, %v321
  %v323 = vsel %vm296, %v233, -inf
  %v324 = vmax.f32 %v322, %v323
  %v325 = vsel %vm296, %v249, -inf
  %v326 = vmax.f32 %v324, %v325
  %v327 = vsel %vm296, %v265, -inf
  %v328 = vmax.f32 %v326, %v327
  %v329 = vsel %vm296, %v281, -inf
  %v330 = vmax.f32 %v328, %v329
  %v331 = vsel %vm296, %v154, -inf
  %v332 = vsel %vm296, %v170, -inf
  %v333 = vmax.f32 %v331, %v332
  %v334 = vsel %vm296, %v186, -inf
  %v335 = vmax.f32 %v333, %v334
  %v336 = vsel %vm296, %v202, -inf
  %v337 = vmax.f32 %v335, %v336
  %v338 = vsel %vm296, %v218, -inf
  %v339 = vmax.f32 %v337, %v338
  %v340 = vsel %vm296, %v234, -inf
  %v341 = vmax.f32 %v339, %v340
  %v342 = vsel %vm296, %v250, -inf
  %v343 = vmax.f32 %v341, %v342
  %v344 = vsel %vm296, %v266, -inf
  %v345 = vmax.f32 %v343, %v344
  %v346 = vsel %vm296, %v282, -inf
  %v347 = vmax.f32 %v345, %v346
  %v348 = vsel %vm296, %v155, -inf
  %v349 = vsel %vm296, %v171, -inf
  %v350 = vmax.f32 %v348, %v349
  %v351 = vsel %vm296, %v187, -inf
  %v352 = vmax.f32 %v350, %v351
  %v353 = vsel %vm296, %v203, -inf
  %v354 = vmax.f32 %v352, %v353
  %v355 = vsel %vm296, %v219, -inf
  %v356 = vmax.f32 %v354, %v355
  %v357 = vsel %vm296, %v235, -inf
  %v358 = vmax.f32 %v356, %v357
  %v359 = vsel %vm296, %v251, -inf
  %v360 = vmax.f32 %v358, %v359
  %v361 = vsel %vm296, %v267, -inf
  %v362 = vmax.f32 %v360, %v361
  %v363 = vsel %vm296, %v283, -inf
  %v364 = vmax.f32 %v362, %v363
  %v365 = vsel %vm296, %v156, -inf
  %v366 = vsel %vm296, %v172, -inf
  %v367 = vmax.f32 %v365, %v366
  %v368 = vsel %vm296, %v188, -inf
  %v369 = vmax.f32 %v367, %v368
  %v370 = vsel %vm296, %v204, -inf
  %v371 = vmax.f32 %v369, %v370
  %v372 = vsel %vm296, %v220, -inf
  %v373 = vmax.f32 %v371, %v372
  %v374 = vsel %vm296, %v236, -inf
  %v375 = vmax.f32 %v373, %v374
  %v376 = vsel %vm296, %v252, -inf
  %v377 = vmax.f32 %v375, %v376
  %v378 = vsel %vm296, %v268, -inf
  %v379 = vmax.f32 %v377, %v378
  %v380 = vsel %vm296, %v284, -inf
  %v381 = vmax.f32 %v379, %v380
  %v382 = vsel %vm296, %v157, -inf
  %v383 = vsel %vm296, %v173, -inf
  %v384 = vmax.f32 %v382, %v383
  %v385 = vsel %vm296, %v189, -inf
  %v386 = vmax.f32 %v384, %v385
  %v387 = vsel %vm296, %v205, -inf
  %v388 = vmax.f32 %v386, %v387
  %v389 = vsel %vm296, %v221, -inf
  %v390 = vmax.f32 %v388, %v389
  %v391 = vsel %vm296, %v237, -inf
  %v392 = vmax.f32 %v390, %v391
  %v393 = vsel %vm296, %v253, -inf
  %v394 = vmax.f32 %v392, %v393
  %v395 = vsel %vm296, %v269, -inf
  %v396 = vmax.f32 %v394, %v395
  %v397 = vsel %vm296, %v285, -inf
  %v398 = vmax.f32 %v396, %v397
  %v399 = vsel %vm296, %v158, -inf
  %v400 = vsel %vm296, %v174, -inf
  %v401 = vmax.f32 %v399, %v400
  %v402 = vsel %vm296, %v190, -inf
  %v403 = vmax.f32 %v401, %v402
  %v404 = vsel %vm296, %v206, -inf
  %v405 = vmax.f32 %v403, %v404
  %v406 = vsel %vm296, %v222, -inf
  %v407 = vmax.f32 %v405, %v406
  %v408 = vsel %vm296, %v238, -inf
  %v409 = vmax.f32 %v407, %v408
  %v410 = vsel %vm296, %v254, -inf
  %v411 = vmax.f32 %v409, %v410
  %v412 = vsel %vm296, %v270, -inf
  %v413 = vmax.f32 %v411, %v412
  %v414 = vsel %vm296, %v286, -inf
  %v415 = vmax.f32 %v413, %v414
  %v416 = vsel %vm296, %v159, -inf
  %v417 = vsel %vm296, %v175, -inf
  %v418 = vmax.f32 %v416, %v417
  %v419 = vsel %vm296, %v191, -inf
  %v420 = vmax.f32 %v418, %v419
  %v421 = vsel %vm296, %v207, -inf
  %v422 = vmax.f32 %v420, %v421
  %v423 = vsel %vm296, %v223, -inf
  %v424 = vmax.f32 %v422, %v423
  %v425 = vsel %vm296, %v239, -inf
  %v426 = vmax.f32 %v424, %v425
  %v427 = vsel %vm296, %v255, -inf
  %v428 = vmax.f32 %v426, %v427
  %v429 = vsel %vm296, %v271, -inf
  %v430 = vmax.f32 %v428, %v429
  %v431 = vsel %vm296, %v287, -inf
  %v432 = vmax.f32 %v430, %v431
  %v433 = vsel %vm296, %v160, -inf
  %v434 = vsel %vm296, %v176, -inf
  %v435 = vmax.f32 %v433, %v434
  %v436 = vsel %vm296, %v192, -inf
  %v437 = vmax.f32 %v435, %v436
  %v438 = vsel %vm296, %v208, -inf
  %v439 = vmax.f32 %v437, %v438
  %v440 = vsel %vm296, %v224, -inf
  %v441 = vmax.f32 %v439, %v440
  %v442 = vsel %vm296, %v240, -inf
  %v443 = vmax.f32 %v441, %v442
  %v444 = vsel %vm296, %v256, -inf
  %v445 = vmax.f32 %v443, %v444
  %v446 = vsel %vm296, %v272, -inf
  %v447 = vmax.f32 %v445, %v446
  %v448 = vsel %vm296, %v288, -inf
  %v449 = vmax.f32 %v447, %v448
  %v450 = vsel %vm296, %v161, -inf
  %v451 = vsel %vm296, %v177, -inf
  %v452 = vmax.f32 %v450, %v451
  %v453 = vsel %vm296, %v193, -inf
  %v454 = vmax.f32 %v452, %v453
  %v455 = vsel %vm296, %v209, -inf
  %v456 = vmax.f32 %v454, %v455
  %v457 = vsel %vm296, %v225, -inf
  %v458 = vmax.f32 %v456, %v457
  %v459 = vsel %vm296, %v241, -inf
  %v460 = vmax.f32 %v458, %v459
  %v461 = vsel %vm296, %v257, -inf
  %v462 = vmax.f32 %v460, %v461
  %v463 = vsel %vm296, %v273, -inf
  %v464 = vmax.f32 %v462, %v463
  %v465 = vsel %vm296, %v289, -inf
  %v466 = vmax.f32 %v464, %v465
  %v467 = vsel %vm296, %v162, -inf
  %v468 = vsel %vm296, %v178, -inf
  %v469 = vmax.f32 %v467, %v468
  %v470 = vsel %vm296, %v194, -inf
  %v471 = vmax.f32 %v469, %v470
  %v472 = vsel %vm296, %v210, -inf
  %v473 = vmax.f32 %v471, %v472
  %v474 = vsel %vm296, %v226, -inf
  %v475 = vmax.f32 %v473, %v474
  %v476 = vsel %vm296, %v242, -inf
  %v477 = vmax.f32 %v475, %v476
  %v478 = vsel %vm296, %v258, -inf
  %v479 = vmax.f32 %v477, %v478
  %v480 = vsel %vm296, %v274, -inf
  %v481 = vmax.f32 %v479, %v480
  %v482 = vsel %vm296, %v290, -inf
  %v483 = vmax.f32 %v481, %v482
  %v484 = vsel %vm296, %v163, -inf
  %v485 = vsel %vm296, %v179, -inf
  %v486 = vmax.f32 %v484, %v485
  %v487 = vsel %vm296, %v195, -inf
  %v488 = vmax.f32 %v486, %v487
  %v489 = vsel %vm296, %v211, -inf
  %v490 = vmax.f32 %v488, %v489
  %v491 = vsel %vm296, %v227, -inf
  %v492 = vmax.f32 %v490, %v491
  %v493 = vsel %vm296, %v243, -inf
  %v494 = vmax.f32 %v492, %v493
  %v495 = vsel %vm296, %v259, -inf
  %v496 = vmax.f32 %v494, %v495
  %v497 = vsel %vm296, %v275, -inf
  %v498 = vmax.f32 %v496, %v497
  %v499 = vsel %vm296, %v291, -inf
  %v500 = vmax.f32 %v498, %v499
  %v501 = vsel %vm296, %v164, -inf
  %v502 = vsel %vm296, %v180, -inf
  %v503 = vmax.f32 %v501, %v502
  %v504 = vsel %vm296, %v196, -inf
  %v505 = vmax.f32 %v503, %v504
  %v506 = vsel %vm296, %v212, -inf
  %v507 = vmax.f32 %v505, %v506
  %v508 = vsel %vm296, %v228, -inf
  %v509 = vmax.f32 %v507, %v508
  %v510 = vsel %vm296, %v244, -inf
  %v511 = vmax.f32 %v509, %v510
  %v512 = vsel %vm296, %v260, -inf
  %v513 = vmax.f32 %v511, %v512
  %v514 = vsel %vm296, %v276, -inf
  %v515 = vmax.f32 %v513, %v514
  %v516 = vsel %vm296, %v292, -inf
  %v517 = vmax.f32 %v515, %v516
  %v518 = vsel %vm296, %v165, -inf
  %v519 = vsel %vm296, %v181, -inf
  %v520 = vmax.f32 %v518, %v519
  %v521 = vsel %vm296, %v197, -inf
  %v522 = vmax.f32 %v520, %v521
  %v523 = vsel %vm296, %v213, -inf
  %v524 = vmax.f32 %v522, %v523
  %v525 = vsel %vm296, %v229, -inf
  %v526 = vmax.f32 %v524, %v525
  %v527 = vsel %vm296, %v245, -inf
  %v528 = vmax.f32 %v526, %v527
  %v529 = vsel %vm296, %v261, -inf
  %v530 = vmax.f32 %v528, %v529
  %v531 = vsel %vm296, %v277, -inf
  %v532 = vmax.f32 %v530, %v531
  %v533 = vsel %vm296, %v293, -inf
  %v534 = vmax.f32 %v532, %v533
  %v535 = vsel %vm296, %v166, -inf
  %v536 = vsel %vm296, %v182, -inf
  %v537 = vmax.f32 %v535, %v536
  %v538 = vsel %vm296, %v198, -inf
  %v539 = vmax.f32 %v537, %v538
  %v540 = vsel %vm296, %v214, -inf
  %v541 = vmax.f32 %v539, %v540
  %v542 = vsel %vm296, %v230, -inf
  %v543 = vmax.f32 %v541, %v542
  %v544 = vsel %vm296, %v246, -inf
  %v545 = vmax.f32 %v543, %v544
  %v546 = vsel %vm296, %v262, -inf
  %v547 = vmax.f32 %v545, %v546
  %v548 = vsel %vm296, %v278, -inf
  %v549 = vmax.f32 %v547, %v548
  %v550 = vsel %vm296, %v294, -inf
  %v551 = vmax.f32 %v549, %v550
  %v552 = vsel %vm296, %v167, -inf
  %v553 = vsel %vm296, %v183, -inf
  %v554 = vmax.f32 %v552, %v553
  %v555 = vsel %vm296, %v199, -inf
  %v556 = vmax.f32 %v554, %v555
  %v557 = vsel %vm296, %v215, -inf
  %v558 = vmax.f32 %v556, %v557
  %v559 = vsel %vm296, %v231, -inf
  %v560 = vmax.f32 %v558, %v559
  %v561 = vsel %vm296, %v247, -inf
  %v562 = vmax.f32 %v560, %v561
  %v563 = vsel %vm296, %v263, -inf
  %v564 = vmax.f32 %v562, %v563
  %v565 = vsel %vm296, %v279, -inf
  %v566 = vmax.f32 %v564, %v565
  %v567 = vsel %vm296, %v295, -inf
  %v568 = vmax.f32 %v566, %v567
  %v569 = vpack.c.bf16 %v313, %v313
  %v570 = vpack.c.bf16 %v330, %v330
  %v571 = vpack.c.bf16 %v347, %v347
  %v572 = vpack.c.bf16 %v364, %v364
  %v573 = vpack.c.bf16 %v381, %v381
  %v574 = vpack.c.bf16 %v398, %v398
  %v575 = vpack.c.bf16 %v415, %v415
  %v576 = vpack.c.bf16 %v432, %v432
  %v577 = vpack.c.bf16 %v449, %v449
  %v578 = vpack.c.bf16 %v466, %v466
  %v579 = vpack.c.bf16 %v483, %v483
  %v580 = vpack.c.bf16 %v500, %v500
  %v581 = vpack.c.bf16 %v517, %v517
  %v582 = vpack.c.bf16 %v534, %v534
  %v583 = vpack.c.bf16 %v551, %v551
  %v584 = vpack.c.bf16 %v568, %v568
  %vm585 = vcmask 125952
  %586 = vst.msk [vmem:[%s1] sm:$0xf] %vm585, %v569
  %587 = vst.msk [vmem:[%s1 + $0x4] sm:$0xf] %vm585, %v570
  %588 = vst.msk [vmem:[%s1 + $0x8] sm:$0xf] %vm585, %v571
  %589 = vst.msk [vmem:[%s1 + $0xc] sm:$0xf] %vm585, %v572
  %590 = vst.msk [vmem:[%s1 + $0x10] sm:$0xf] %vm585, %v573
  %591 = vst.msk [vmem:[%s1 + $0x14] sm:$0xf] %vm585, %v574
  %592 = vst.msk [vmem:[%s1 + $0x18] sm:$0xf] %vm585, %v575
  %593 = vst.msk [vmem:[%s1 + $0x1c] sm:$0xf] %vm585, %v576
  %594 = vst.msk [vmem:[%s1 + $0x20] sm:$0xf] %vm585, %v577
  %595 = vst.msk [vmem:[%s1 + $0x24] sm:$0xf] %vm585, %v578
  %596 = vst.msk [vmem:[%s1 + $0x28] sm:$0xf] %vm585, %v579
  %597 = vst.msk [vmem:[%s1 + $0x2c] sm:$0xf] %vm585, %v580
  %598 = vst.msk [vmem:[%s1 + $0x30] sm:$0xf] %vm585, %v581
  %599 = vst.msk [vmem:[%s1 + $0x34] sm:$0xf] %vm585, %v582
  %600 = vst.msk [vmem:[%s1 + $0x38] sm:$0xf] %vm585, %v583
  %601 = vst.msk [vmem:[%s1 + $0x3c] sm:$0xf] %vm585, %v584
  // Predicated region
  $region6: #{_lambda_.20} parent=0 // pred_check
    _
  $region7: #{_lambda_.20} parent=0 // pred_check_branch
    %603 = sbr.rel (0) target = $region9
  $region8: #{_lambda_.20} parent=0 // pred_region
    _
  $region9: #{_lambda_.20} parent=0 // pred_fallthru
    _
  // Predicated region
  $region10: #{_lambda_.20} parent=0 // pred_check
    _
  $region11: #{_lambda_.20} parent=0 // pred_check_branch
    %605 = sbr.rel (0) target = $region13
  $region12: #{_lambda_.20} parent=0 // pred_region
    _
  $region13: #{_lambda_.20} parent=0 // pred_fallthru
    _

// kernel: _lambda_.21
$region0: #{_lambda_.21}
  #allocation0 [shape = 'u32[]', space=smem, size = 0x4, offset = 0x4, fixed_abs, tag = 'smem constant byte address 0x4 - core index']
  #allocation1 [shape = 'u32[72,128]{1,0:T(1,128)}', space=vmem, size = 0x9000, scoped, tag = 'internal scratch']
  %s0 = inlined_call_operand.vmem [shape: bf16[128,16], index: 0, kind: input, shape index: {}]
  %s1 = inlined_call_operand.vmem [shape: bf16[16,64], index: 1, kind: input, shape index: {}]
  %s2 = inlined_call_operand.vmem [shape: f32[1,64], index: 2, kind: input, shape index: {}]
  %s3 = inlined_call_operand.vmem [shape: bf16[128,64], index: 3, kind: output, shape index: {}]
  %s4 = sld [smem:[#allocation0]]
  $region22: #{_lambda_.21} parent=0
    _
  %s6 = ssub.s32 1, %s4
  %s7 = scalar_select 0, %s6, %s4
  // Predicated region
  $region2: #{_lambda_.21} parent=0 // pred_check
    _
  $region3: #{_lambda_.21} parent=0 // pred_check_branch
    %9 = sbr.rel (0) target = $region5
  $region4: #{_lambda_.21} parent=0 // pred_region
    _
  $region5: #{_lambda_.21} parent=0 // pred_fallthru
    _
  // Predicated region
  $region6: #{_lambda_.21} parent=0 // pred_check
    _
  $region7: #{_lambda_.21} parent=0 // pred_check_branch
    %11 = sbr.rel (0) target = $region9
  $region8: #{_lambda_.21} parent=0 // pred_region
    _
  $region9: #{_lambda_.21} parent=0 // pred_fallthru
    _
  // Predicated region
  $region10: #{_lambda_.21} parent=0 // pred_check
    _
  $region11: #{_lambda_.21} parent=0 // pred_check_branch
    %13 = sbr.rel (0) target = $region13
  $region12: #{_lambda_.21} parent=0 // pred_region
    _
  $region13: #{_lambda_.21} parent=0 // pred_fallthru
    _
  %v15 = vld [vmem:[%s0] sm:$0xf]
  %v16 = vld [vmem:[%s0 + $0x4] sm:$0xf]
  %v17 = vld [vmem:[%s0 + $0x8] sm:$0xf]
  %v18 = vld [vmem:[%s0 + $0xc] sm:$0xf]
  %v19 = vld [vmem:[%s0 + $0x10] sm:$0xf]
  %v20 = vld [vmem:[%s0 + $0x14] sm:$0xf]
  %v21 = vld [vmem:[%s0 + $0x18] sm:$0xf]
  %v22 = vld [vmem:[%s0 + $0x1c] sm:$0xf]
  %v23 = vld [vmem:[%s0 + $0x20] sm:$0xf]
  %v24 = vld [vmem:[%s0 + $0x24] sm:$0xf]
  %v25 = vld [vmem:[%s0 + $0x28] sm:$0xf]
  %v26 = vld [vmem:[%s0 + $0x2c] sm:$0xf]
  %v27 = vld [vmem:[%s0 + $0x30] sm:$0xf]
  %v28 = vld [vmem:[%s0 + $0x34] sm:$0xf]
  %v29 = vld [vmem:[%s0 + $0x38] sm:$0xf]
  %v30 = vld [vmem:[%s0 + $0x3c] sm:$0xf]
  %v31 = vld [vmem:[%s1] sm:$0xf]
  %v32 = vld [vmem:[%s1 + $0x4] sm:$0xf]
  %v33 = vld [vmem:[%s2] sm:$0x1]
  %v35 = vperm.slane %v33, 0
  %v53 = vunpack.c.l.b16 %v15
  %v54 = vunpack.c.l.b16 %v16
  %v55 = vunpack.c.l.b16 %v17
  %v56 = vunpack.c.l.b16 %v18
  %v57 = vunpack.c.l.b16 %v19
  %v58 = vunpack.c.l.b16 %v20
  %v59 = vunpack.c.l.b16 %v21
  %v60 = vunpack.c.l.b16 %v22
  %v61 = vunpack.c.l.b16 %v23
  %v62 = vunpack.c.l.b16 %v24
  %v63 = vunpack.c.l.b16 %v25
  %v64 = vunpack.c.l.b16 %v26
  %v65 = vunpack.c.l.b16 %v27
  %v66 = vunpack.c.l.b16 %v28
  %v67 = vunpack.c.l.b16 %v29
  %v68 = vunpack.c.l.b16 %v30
  %v69 = vpack.c.b16 %v54, %v53
  %v70 = vpack.c.b16 %v56, %v55
  %v71 = vpack.c.b16 %v58, %v57
  %v72 = vpack.c.b16 %v60, %v59
  %v73 = vpack.c.b16 %v62, %v61
  %v74 = vpack.c.b16 %v64, %v63
  %v75 = vpack.c.b16 %v66, %v65
  %v76 = vpack.c.b16 %v68, %v67
  %v79 = vunpack.c.l.b16 %v31
  %v80 = vunpack.c.l.b16 %v32
  %v81 = vpack.c.b16 %v80, %v79
  %vm83 = vcmask 130048
  %v85 = vsel %vm83, %v69, 0
  %v88 = vsel %vm83, %v70, 0
  %v91 = vsel %vm83, %v71, 0
  %v94 = vsel %vm83, %v72, 0
  %v97 = vsel %vm83, %v73, 0
  %v100 = vsel %vm83, %v74, 0
  %v103 = vsel %vm83, %v75, 0
  %v106 = vsel %vm83, %v76, 0
  %108 = vmatpush.bf16.msra.mxu0 0
  %109 = vmatpush.bf16.msra.mxu0 0
  %110 = vmatpush.bf16.msra.mxu0 0
  %111 = vmatpush.bf16.msra.mxu0 0
  %112 = vmatpush.bf16.msra.mxu0 0
  %113 = vmatpush.bf16.msra.mxu0 0
  %114 = vmatpush.bf16.msra.mxu0 0
  %115 = vmatpush.bf16.msra.mxu0 %v81
  %116 = vmatmul.bf16.gmra.mxu0 %v85
  %v117 = vpop.f32.mrf.mxu0
  %v118 = vadd.f32 %v35, %v117
  %v119 = vpop.f32.mrf.mxu0
  %v120 = vadd.f32 %v35, %v119
  %121 = vmatmul.bf16.gmra.mxu0 %v88
  %v122 = vpop.f32.mrf.mxu0
  %v123 = vadd.f32 %v35, %v122
  %v124 = vpop.f32.mrf.mxu0
  %v125 = vadd.f32 %v35, %v124
  %126 = vmatmul.bf16.gmra.mxu0 %v91
  %v127 = vpop.f32.mrf.mxu0
  %v128 = vadd.f32 %v35, %v127
  %v129 = vpop.f32.mrf.mxu0
  %v130 = vadd.f32 %v35, %v129
  %131 = vmatmul.bf16.gmra.mxu0 %v94
  %v132 = vpop.f32.mrf.mxu0
  %v133 = vadd.f32 %v35, %v132
  %v134 = vpop.f32.mrf.mxu0
  %v135 = vadd.f32 %v35, %v134
  %136 = vmatmul.bf16.gmra.mxu0 %v97
  %v137 = vpop.f32.mrf.mxu0
  %v138 = vadd.f32 %v35, %v137
  %v139 = vpop.f32.mrf.mxu0
  %v140 = vadd.f32 %v35, %v139
  %141 = vmatmul.bf16.gmra.mxu0 %v100
  %v142 = vpop.f32.mrf.mxu0
  %v143 = vadd.f32 %v35, %v142
  %v144 = vpop.f32.mrf.mxu0
  %v145 = vadd.f32 %v35, %v144
  %146 = vmatmul.bf16.gmra.mxu0 %v103
  %v147 = vpop.f32.mrf.mxu0
  %v148 = vadd.f32 %v35, %v147
  %v149 = vpop.f32.mrf.mxu0
  %v150 = vadd.f32 %v35, %v149
  %151 = vmatmul.bf16.gmra.mxu0 %v106
  %v152 = vpop.f32.mrf.mxu0
  %v153 = vadd.f32 %v35, %v152
  %v154 = vpop.f32.mrf.mxu0
  %v155 = vadd.f32 %v35, %v154
  %156 = vdwg.mxu0
  %v157 = vpack.c.bf16 %v118, %v118
  %v158 = vpack.c.bf16 %v120, %v120
  %v159 = vpack.c.bf16 %v123, %v123
  %v160 = vpack.c.bf16 %v125, %v125
  %v161 = vpack.c.bf16 %v128, %v128
  %v162 = vpack.c.bf16 %v130, %v130
  %v163 = vpack.c.bf16 %v133, %v133
  %v164 = vpack.c.bf16 %v135, %v135
  %v165 = vpack.c.bf16 %v138, %v138
  %v166 = vpack.c.bf16 %v140, %v140
  %v167 = vpack.c.bf16 %v143, %v143
  %v168 = vpack.c.bf16 %v145, %v145
  %v169 = vpack.c.bf16 %v148, %v148
  %v170 = vpack.c.bf16 %v150, %v150
  %v171 = vpack.c.bf16 %v153, %v153
  %v172 = vpack.c.bf16 %v155, %v155
  %vm173 = vcmask 519168
  %174 = vst.msk [vmem:[%s3] sm:$0xf] %vm173, %v157
  %175 = vst.msk [vmem:[%s3 + $0x4] sm:$0xf] %vm173, %v158
  %176 = vst.msk [vmem:[%s3 + $0x8] sm:$0xf] %vm173, %v159
  %177 = vst.msk [vmem:[%s3 + $0xc] sm:$0xf] %vm173, %v160
  %178 = vst.msk [vmem:[%s3 + $0x10] sm:$0xf] %vm173, %v161
  %179 = vst.msk [vmem:[%s3 + $0x14] sm:$0xf] %vm173, %v162
  %180 = vst.msk [vmem:[%s3 + $0x18] sm:$0xf] %vm173, %v163
  %181 = vst.msk [vmem:[%s3 + $0x1c] sm:$0xf] %vm173, %v164
  %182 = vst.msk [vmem:[%s3 + $0x20] sm:$0xf] %vm173, %v165
  %183 = vst.msk [vmem:[%s3 + $0x24] sm:$0xf] %vm173, %v166
  %184 = vst.msk [vmem:[%s3 + $0x28] sm:$0xf] %vm173, %v167
  %185 = vst.msk [vmem:[%s3 + $0x2c] sm:$0xf] %vm173, %v168
  %186 = vst.msk [vmem:[%s3 + $0x30] sm:$0xf] %vm173, %v169
  %187 = vst.msk [vmem:[%s3 + $0x34] sm:$0xf] %vm173, %v170
  %188 = vst.msk [vmem:[%s3 + $0x38] sm:$0xf] %vm173, %v171
  %189 = vst.msk [vmem:[%s3 + $0x3c] sm:$0xf] %vm173, %v172
  // Predicated region
  $region14: #{_lambda_.21} parent=0 // pred_check
    _
  $region15: #{_lambda_.21} parent=0 // pred_check_branch
    %191 = sbr.rel (0) target = $region17
  $region16: #{_lambda_.21} parent=0 // pred_region
    _
  $region17: #{_lambda_.21} parent=0 // pred_fallthru
    _
  // Predicated region
  $region18: #{_lambda_.21} parent=0 // pred_check
    _
  $region19: #{_lambda_.21} parent=0 // pred_check_branch
    %193 = sbr.rel (0) target = $region21
  $region20: #{_lambda_.21} parent=0 // pred_region
    _
  $region21: #{_lambda_.21} parent=0 // pred_fallthru
    _

// kernel: _lambda_.23
$region0: #{_lambda_.23}
  #allocation0 [shape = 'u32[]', space=smem, size = 0x4, offset = 0x4, fixed_abs, tag = 'smem constant byte address 0x4 - core index']
  #allocation1 [shape = 'u32[72,128]{1,0:T(1,128)}', space=vmem, size = 0x9000, scoped, tag = 'internal scratch']
  %s0 = inlined_call_operand.vmem [shape: bf16[128,288], index: 0, kind: input, shape index: {}]
  %s1 = inlined_call_operand.vmem [shape: bf16[288,32], index: 1, kind: input, shape index: {}]
  %s2 = inlined_call_operand.vmem [shape: f32[1,32], index: 2, kind: input, shape index: {}]
  %s3 = inlined_call_operand.vmem [shape: bf16[128,32], index: 3, kind: output, shape index: {}]
  %s4 = sld [smem:[#allocation0]]
  $region22: #{_lambda_.23} parent=0
    _
  %s6 = ssub.s32 1, %s4
  %s7 = scalar_select 0, %s6, %s4
  // Predicated region
  $region2: #{_lambda_.23} parent=0 // pred_check
    _
  $region3: #{_lambda_.23} parent=0 // pred_check_branch
    %9 = sbr.rel (0) target = $region5
  $region4: #{_lambda_.23} parent=0 // pred_region
    _
  $region5: #{_lambda_.23} parent=0 // pred_fallthru
    _
  // Predicated region
  $region6: #{_lambda_.23} parent=0 // pred_check
    _
  $region7: #{_lambda_.23} parent=0 // pred_check_branch
    %11 = sbr.rel (0) target = $region9
  $region8: #{_lambda_.23} parent=0 // pred_region
    _
  $region9: #{_lambda_.23} parent=0 // pred_fallthru
    _
  // Predicated region
  $region10: #{_lambda_.23} parent=0 // pred_check
    _
  $region11: #{_lambda_.23} parent=0 // pred_check_branch
    %13 = sbr.rel (0) target = $region13
  $region12: #{_lambda_.23} parent=0 // pred_region
    _
  $region13: #{_lambda_.23} parent=0 // pred_fallthru
    _
  %v15 = vld [vmem:[%s0] sm:$0xff]
  %v16 = vld [vmem:[%s0 + $0x8] sm:$0xf]
  %v17 = vld [vmem:[%s0 + $0xc] sm:$0xff]
  %v18 = vld [vmem:[%s0 + $0x14] sm:$0xf]
  %v19 = vld [vmem:[%s0 + $0x18] sm:$0xff]
  %v20 = vld [vmem:[%s0 + $0x20] sm:$0xf]
  %v21 = vld [vmem:[%s0 + $0x24] sm:$0xff]
  %v22 = vld [vmem:[%s0 + $0x2c] sm:$0xf]
  %v23 = vld [vmem:[%s0 + $0x30] sm:$0xff]
  %v24 = vld [vmem:[%s0 + $0x38] sm:$0xf]
  %v25 = vld [vmem:[%s0 + $0x3c] sm:$0xff]
  %v26 = vld [vmem:[%s0 + $0x44] sm:$0xf]
  %v27 = vld [vmem:[%s0 + $0x48] sm:$0xff]
  %v28 = vld [vmem:[%s0 + $0x50] sm:$0xf]
  %v29 = vld [vmem:[%s0 + $0x54] sm:$0xff]
  %v30 = vld [vmem:[%s0 + $0x5c] sm:$0xf]
  %v31 = vld [vmem:[%s0 + $0x60] sm:$0xff]
  %v32 = vld [vmem:[%s0 + $0x68] sm:$0xf]
  %v33 = vld [vmem:[%s0 + $0x6c] sm:$0xff]
  %v34 = vld [vmem:[%s0 + $0x74] sm:$0xf]
  %v35 = vld [vmem:[%s0 + $0x78] sm:$0xff]
  %v36 = vld [vmem:[%s0 + $0x80] sm:$0xf]
  %v37 = vld [vmem:[%s0 + $0x84] sm:$0xff]
  %v38 = vld [vmem:[%s0 + $0x8c] sm:$0xf]
  %v39 = vld [vmem:[%s0 + $0x90] sm:$0xff]
  %v40 = vld [vmem:[%s0 + $0x98] sm:$0xf]
  %v41 = vld [vmem:[%s0 + $0x9c] sm:$0xff]
  %v42 = vld [vmem:[%s0 + $0xa4] sm:$0xf]
  %v43 = vld [vmem:[%s0 + $0xa8] sm:$0xff]
  %v44 = vld [vmem:[%s0 + $0xb0] sm:$0xf]
  %v45 = vld [vmem:[%s0 + $0xb4] sm:$0xff]
  %v46 = vld [vmem:[%s0 + $0xbc] sm:$0xf]
  %v47 = vld [vmem:[%s1] sm:$0xf]
  %v48 = vld [vmem:[%s1 + $0x4] sm:$0xf]
  %v49 = vld [vmem:[%s1 + $0x8] sm:$0xf]
  %v50 = vld [vmem:[%s1 + $0xc] sm:$0xf]
  %v51 = vld [vmem:[%s1 + $0x10] sm:$0xf]
  %v52 = vld [vmem:[%s1 + $0x14] sm:$0xf]
  %v53 = vld [vmem:[%s1 + $0x18] sm:$0xf]
  %v54 = vld [vmem:[%s1 + $0x1c] sm:$0xf]
  %v55 = vld [vmem:[%s1 + $0x20] sm:$0xf]
  %v56 = vld [vmem:[%s1 + $0x24] sm:$0xf]
  %v57 = vld [vmem:[%s1 + $0x28] sm:$0xf]
  %v58 = vld [vmem:[%s1 + $0x2c] sm:$0xf]
  %v59 = vld [vmem:[%s1 + $0x30] sm:$0xf]
  %v60 = vld [vmem:[%s1 + $0x34] sm:$0xf]
  %v61 = vld [vmem:[%s1 + $0x38] sm:$0xf]
  %v62 = vld [vmem:[%s1 + $0x3c] sm:$0xf]
  %v63 = vld [vmem:[%s1 + $0x40] sm:$0xf]
  %v64 = vld [vmem:[%s1 + $0x44] sm:$0xf]
  %v65 = vld [vmem:[%s1 + $0x48] sm:$0xf]
  %v66 = vld [vmem:[%s1 + $0x4c] sm:$0xf]
  %v67 = vld [vmem:[%s1 + $0x50] sm:$0xf]
  %v68 = vld [vmem:[%s1 + $0x54] sm:$0xf]
  %v69 = vld [vmem:[%s1 + $0x58] sm:$0xf]
  %v70 = vld [vmem:[%s1 + $0x5c] sm:$0xf]
  %v71 = vld [vmem:[%s1 + $0x60] sm:$0xf]
  %v72 = vld [vmem:[%s1 + $0x64] sm:$0xf]
  %v73 = vld [vmem:[%s1 + $0x68] sm:$0xf]
  %v74 = vld [vmem:[%s1 + $0x6c] sm:$0xf]
  %v75 = vld [vmem:[%s1 + $0x70] sm:$0xf]
  %v76 = vld [vmem:[%s1 + $0x74] sm:$0xf]
  %v77 = vld [vmem:[%s1 + $0x78] sm:$0xf]
  %v78 = vld [vmem:[%s1 + $0x7c] sm:$0xf]
  %v79 = vld [vmem:[%s1 + $0x80] sm:$0xf]
  %v80 = vld [vmem:[%s1 + $0x84] sm:$0xf]
  %v81 = vld [vmem:[%s1 + $0x88] sm:$0xf]
  %v82 = vld [vmem:[%s1 + $0x8c] sm:$0xf]
  %v83 = vld [vmem:[%s2] sm:$0x1]
  %v85 = vperm.slane %v83, 0
  %v119 = vunpack.c.l.b16 %v15
  %v120 = vunpack.c.h.b16 %v15
  %v121 = vunpack.c.l.b16 %v16
  %v122 = vunpack.c.l.b16 %v17
  %v123 = vunpack.c.h.b16 %v17
  %v124 = vunpack.c.l.b16 %v18
  %v125 = vunpack.c.l.b16 %v19
  %v126 = vunpack.c.h.b16 %v19
  %v127 = vunpack.c.l.b16 %v20
  %v128 = vunpack.c.l.b16 %v21
  %v129 = vunpack.c.h.b16 %v21
  %v130 = vunpack.c.l.b16 %v22
  %v131 = vunpack.c.l.b16 %v23
  %v132 = vunpack.c.h.b16 %v23
  %v133 = vunpack.c.l.b16 %v24
  %v134 = vunpack.c.l.b16 %v25
  %v135 = vunpack.c.h.b16 %v25
  %v136 = vunpack.c.l.b16 %v26
  %v137 = vunpack.c.l.b16 %v27
  %v138 = vunpack.c.h.b16 %v27
  %v139 = vunpack.c.l.b16 %v28
  %v140 = vunpack.c.l.b16 %v29
  %v141 = vunpack.c.h.b16 %v29
  %v142 = vunpack.c.l.b16 %v30
  %v143 = vunpack.c.l.b16 %v31
  %v144 = vunpack.c.h.b16 %v31
  %v145 = vunpack.c.l.b16 %v32
  %v146 = vunpack.c.l.b16 %v33
  %v147 = vunpack.c.h.b16 %v33
  %v148 = vunpack.c.l.b16 %v34
  %v149 = vunpack.c.l.b16 %v35
  %v150 = vunpack.c.h.b16 %v35
  %v151 = vunpack.c.l.b16 %v36
  %v152 = vunpack.c.l.b16 %v37
  %v153 = vunpack.c.h.b16 %v37
  %v154 = vunpack.c.l.b16 %v38
  %v155 = vunpack.c.l.b16 %v39
  %v156 = vunpack.c.h.b16 %v39
  %v157 = vunpack.c.l.b16 %v40
  %v158 = vunpack.c.l.b16 %v41
  %v159 = vunpack.c.h.b16 %v41
  %v160 = vunpack.c.l.b16 %v42
  %v161 = vunpack.c.l.b16 %v43
  %v162 = vunpack.c.h.b16 %v43
  %v163 = vunpack.c.l.b16 %v44
  %v164 = vunpack.c.l.b16 %v45
  %v165 = vunpack.c.h.b16 %v45
  %v166 = vunpack.c.l.b16 %v46
  %v167 = vpack.c.b16 %v122, %v119
  %v168 = vpack.c.b16 %v123, %v120
  %v169 = vpack.c.b16 %v124, %v121
  %v170 = vpack.c.b16 %v128, %v125
  %v171 = vpack.c.b16 %v129, %v126
  %v172 = vpack.c.b16 %v130, %v127
  %v173 = vpack.c.b16 %v134, %v131
  %v174 = vpack.c.b16 %v135, %v132
  %v175 = vpack.c.b16 %v136, %v133
  %v176 = vpack.c.b16 %v140, %v137
  %v177 = vpack.c.b16 %v141, %v138
  %v178 = vpack.c.b16 %v142, %v139
  %v179 = vpack.c.b16 %v146, %v143
  %v180 = vpack.c.b16 %v147, %v144
  %v181 = vpack.c.b16 %v148, %v145
  %v182 = vpack.c.b16 %v152, %v149
  %v183 = vpack.c.b16 %v153, %v150
  %v184 = vpack.c.b16 %v154, %v151
  %v185 = vpack.c.b16 %v158, %v155
  %v186 = vpack.c.b16 %v159, %v156
  %v187 = vpack.c.b16 %v160, %v157
  %v188 = vpack.c.b16 %v164, %v161
  %v189 = vpack.c.b16 %v165, %v162
  %v190 = vpack.c.b16 %v166, %v163
  %v243 = vunpack.c.l.b16 %v47
  %v244 = vunpack.c.l.b16 %v48
  %v245 = vunpack.c.l.b16 %v49
  %v246 = vunpack.c.l.b16 %v50
  %v247 = vunpack.c.l.b16 %v51
  %v248 = vunpack.c.l.b16 %v52
  %v249 = vunpack.c.l.b16 %v53
  %v250 = vunpack.c.l.b16 %v54
  %v251 = vunpack.c.l.b16 %v55
  %v252 = vunpack.c.l.b16 %v56
  %v253 = vunpack.c.l.b16 %v57
  %v254 = vunpack.c.l.b16 %v58
  %v255 = vunpack.c.l.b16 %v59
  %v256 = vunpack.c.l.b16 %v60
  %v257 = vunpack.c.l.b16 %v61
  %v258 = vunpack.c.l.b16 %v62
  %v259 = vunpack.c.l.b16 %v63
  %v260 = vunpack.c.l.b16 %v64
  %v261 = vunpack.c.l.b16 %v65
  %v262 = vunpack.c.l.b16 %v66
  %v263 = vunpack.c.l.b16 %v67
  %v264 = vunpack.c.l.b16 %v68
  %v265 = vunpack.c.l.b16 %v69
  %v266 = vunpack.c.l.b16 %v70
  %v267 = vunpack.c.l.b16 %v71
  %v268 = vunpack.c.l.b16 %v72
  %v269 = vunpack.c.l.b16 %v73
  %v270 = vunpack.c.l.b16 %v74
  %v271 = vunpack.c.l.b16 %v75
  %v272 = vunpack.c.l.b16 %v76
  %v273 = vunpack.c.l.b16 %v77
  %v274 = vunpack.c.l.b16 %v78
  %v275 = vunpack.c.l.b16 %v79
  %v276 = vunpack.c.l.b16 %v80
  %v277 = vunpack.c.l.b16 %v81
  %v278 = vunpack.c.l.b16 %v82
  %v279 = vpack.c.b16 %v244, %v243
  %v280 = vpack.c.b16 %v246, %v245
  %v281 = vpack.c.b16 %v248, %v247
  %v282 = vpack.c.b16 %v250, %v249
  %v283 = vpack.c.b16 %v252, %v251
  %v284 = vpack.c.b16 %v254, %v253
  %v285 = vpack.c.b16 %v256, %v255
  %v286 = vpack.c.b16 %v258, %v257
  %v287 = vpack.c.b16 %v260, %v259
  %v288 = vpack.c.b16 %v262, %v261
  %v289 = vpack.c.b16 %v264, %v263
  %v290 = vpack.c.b16 %v266, %v265
  %v291 = vpack.c.b16 %v268, %v267
  %v292 = vpack.c.b16 %v270, %v269
  %v293 = vpack.c.b16 %v272, %v271
  %v294 = vpack.c.b16 %v274, %v273
  %v295 = vpack.c.b16 %v276, %v275
  %v296 = vpack.c.b16 %v278, %v277
  %vm315 = vcmask 261120
  %v317 = vsel %vm315, %v169, 0
  %v320 = vsel %vm315, %v172, 0
  %v323 = vsel %vm315, %v175, 0
  %v326 = vsel %vm315, %v178, 0
  %v329 = vsel %vm315, %v181, 0
  %v332 = vsel %vm315, %v184, 0
  %v335 = vsel %vm315, %v187, 0
  %v338 = vsel %vm315, %v190, 0
  %340 = vmatpush.bf16.msra.mxu0 %v286
  %341 = vmatpush.bf16.msra.mxu0 %v285
  %342 = vmatpush.bf16.msra.mxu0 %v284
  %343 = vmatpush.bf16.msra.mxu0 %v283
  %344 = vmatpush.bf16.msra.mxu0 %v282
  %345 = vmatpush.bf16.msra.mxu0 %v281
  %346 = vmatpush.bf16.msra.mxu0 %v280
  %347 = vmatpush.bf16.msra.mxu0 %v279
  %348 = vmatmul.bf16.gmra.mxu0 %v167
  %v349 = vpop.f32.mrf.mxu0
  %v350 = vadd.f32 %v85, %v349
  %v351 = vpop.f32.mrf.mxu0
  %v352 = vadd.f32 %v85, %v351
  %353 = vmatmul.bf16.gmra.mxu0 %v170
  %v354 = vpop.f32.mrf.mxu0
  %v355 = vadd.f32 %v85, %v354
  %v356 = vpop.f32.mrf.mxu0
  %v357 = vadd.f32 %v85, %v356
  %358 = vmatmul.bf16.gmra.mxu0 %v173
  %v359 = vpop.f32.mrf.mxu0
  %v360 = vadd.f32 %v85, %v359
  %v361 = vpop.f32.mrf.mxu0
  %v362 = vadd.f32 %v85, %v361
  %363 = vmatmul.bf16.gmra.mxu0 %v176
  %v364 = vpop.f32.mrf.mxu0
  %v365 = vadd.f32 %v85, %v364
  %v366 = vpop.f32.mrf.mxu0
  %v367 = vadd.f32 %v85, %v366
  %368 = vmatmul.bf16.gmra.mxu0 %v179
  %v369 = vpop.f32.mrf.mxu0
  %v370 = vadd.f32 %v85, %v369
  %v371 = vpop.f32.mrf.mxu0
  %v372 = vadd.f32 %v85, %v371
  %373 = vmatmul.bf16.gmra.mxu0 %v182
  %v374 = vpop.f32.mrf.mxu0
  %v375 = vadd.f32 %v85, %v374
  %v376 = vpop.f32.mrf.mxu0
  %v377 = vadd.f32 %v85, %v376
  %378 = vmatmul.bf16.gmra.mxu0 %v185
  %v379 = vpop.f32.mrf.mxu0
  %v380 = vadd.f32 %v85, %v379
  %v381 = vpop.f32.mrf.mxu0
  %v382 = vadd.f32 %v85, %v381
  %383 = vmatmul.bf16.gmra.mxu0 %v188
  %v384 = vpop.f32.mrf.mxu0
  %v385 = vadd.f32 %v85, %v384
  %v386 = vpop.f32.mrf.mxu0
  %v387 = vadd.f32 %v85, %v386
  %388 = vdwg.mxu0
  %389 = vmatpush.bf16.msra.mxu0 %v294
  %390 = vmatpush.bf16.msra.mxu0 %v293
  %391 = vmatpush.bf16.msra.mxu0 %v292
  %392 = vmatpush.bf16.msra.mxu0 %v291
  %393 = vmatpush.bf16.msra.mxu0 %v290
  %394 = vmatpush.bf16.msra.mxu0 %v289
  %395 = vmatpush.bf16.msra.mxu0 %v288
  %396 = vmatpush.bf16.msra.mxu0 %v287
  %397 = vmatmul.bf16.gmra.mxu0 %v168
  %v398 = vpop.f32.mrf.mxu0
  %v399 = vadd.f32 %v350, %v398
  %v400 = vpop.f32.mrf.mxu0
  %v401 = vadd.f32 %v352, %v400
  %402 = vmatmul.bf16.gmra.mxu0 %v171
  %v403 = vpop.f32.mrf.mxu0
  %v404 = vadd.f32 %v355, %v403
  %v405 = vpop.f32.mrf.mxu0
  %v406 = vadd.f32 %v357, %v405
  %407 = vmatmul.bf16.gmra.mxu0 %v174
  %v408 = vpop.f32.mrf.mxu0
  %v409 = vadd.f32 %v360, %v408
  %v410 = vpop.f32.mrf.mxu0
  %v411 = vadd.f32 %v362, %v410
  %412 = vmatmul.bf16.gmra.mxu0 %v177
  %v413 = vpop.f32.mrf.mxu0
  %v414 = vadd.f32 %v365, %v413
  %v415 = vpop.f32.mrf.mxu0
  %v416 = vadd.f32 %v367, %v415
  %417 = vmatmul.bf16.gmra.mxu0 %v180
  %v418 = vpop.f32.mrf.mxu0
  %v419 = vadd.f32 %v370, %v418
  %v420 = vpop.f32.mrf.mxu0
  %v421 = vadd.f32 %v372, %v420
  %422 = vmatmul.bf16.gmra.mxu0 %v183
  %v423 = vpop.f32.mrf.mxu0
  %v424 = vadd.f32 %v375, %v423
  %v425 = vpop.f32.mrf.mxu0
  %v426 = vadd.f32 %v377, %v425
  %427 = vmatmul.bf16.gmra.mxu0 %v186
  %v428 = vpop.f32.mrf.mxu0
  %v429 = vadd.f32 %v380, %v428
  %v430 = vpop.f32.mrf.mxu0
  %v431 = vadd.f32 %v382, %v430
  %432 = vmatmul.bf16.gmra.mxu0 %v189
  %v433 = vpop.f32.mrf.mxu0
  %v434 = vadd.f32 %v385, %v433
  %v435 = vpop.f32.mrf.mxu0
  %v436 = vadd.f32 %v387, %v435
  %437 = vdwg.mxu0
  %438 = vmatpush.bf16.msra.mxu0 0
  %439 = vmatpush.bf16.msra.mxu0 0
  %440 = vmatpush.bf16.msra.mxu0 0
  %441 = vmatpush.bf16.msra.mxu0 0
  %442 = vmatpush.bf16.msra.mxu0 0
  %443 = vmatpush.bf16.msra.mxu0 0
  %444 = vmatpush.bf16.msra.mxu0 %v296
  %445 = vmatpush.bf16.msra.mxu0 %v295
  %446 = vmatmul.bf16.gmra.mxu0 %v317
  %v447 = vpop.f32.mrf.mxu0
  %v448 = vadd.f32 %v399, %v447
  %v449 = vpop.f32.mrf.mxu0
  %v450 = vadd.f32 %v401, %v449
  %451 = vmatmul.bf16.gmra.mxu0 %v320
  %v452 = vpop.f32.mrf.mxu0
  %v453 = vadd.f32 %v404, %v452
  %v454 = vpop.f32.mrf.mxu0
  %v455 = vadd.f32 %v406, %v454
  %456 = vmatmul.bf16.gmra.mxu0 %v323
  %v457 = vpop.f32.mrf.mxu0
  %v458 = vadd.f32 %v409, %v457
  %v459 = vpop.f32.mrf.mxu0
  %v460 = vadd.f32 %v411, %v459
  %461 = vmatmul.bf16.gmra.mxu0 %v326
  %v462 = vpop.f32.mrf.mxu0
  %v463 = vadd.f32 %v414, %v462
  %v464 = vpop.f32.mrf.mxu0
  %v465 = vadd.f32 %v416, %v464
  %466 = vmatmul.bf16.gmra.mxu0 %v329
  %v467 = vpop.f32.mrf.mxu0
  %v468 = vadd.f32 %v419, %v467
  %v469 = vpop.f32.mrf.mxu0
  %v470 = vadd.f32 %v421, %v469
  %471 = vmatmul.bf16.gmra.mxu0 %v332
  %v472 = vpop.f32.mrf.mxu0
  %v473 = vadd.f32 %v424, %v472
  %v474 = vpop.f32.mrf.mxu0
  %v475 = vadd.f32 %v426, %v474
  %476 = vmatmul.bf16.gmra.mxu0 %v335
  %v477 = vpop.f32.mrf.mxu0
  %v478 = vadd.f32 %v429, %v477
  %v479 = vpop.f32.mrf.mxu0
  %v480 = vadd.f32 %v431, %v479
  %481 = vmatmul.bf16.gmra.mxu0 %v338
  %v482 = vpop.f32.mrf.mxu0
  %v483 = vadd.f32 %v434, %v482
  %v484 = vpop.f32.mrf.mxu0
  %v485 = vadd.f32 %v436, %v484
  %486 = vdwg.mxu0
  %v487 = vmax.f32 %v448, 0.0
  %v488 = vmax.f32 %v450, 0.0
  %v489 = vmax.f32 %v453, 0.0
  %v490 = vmax.f32 %v455, 0.0
  %v491 = vmax.f32 %v458, 0.0
  %v492 = vmax.f32 %v460, 0.0
  %v493 = vmax.f32 %v463, 0.0
  %v494 = vmax.f32 %v465, 0.0
  %v495 = vmax.f32 %v468, 0.0
  %v496 = vmax.f32 %v470, 0.0
  %v497 = vmax.f32 %v473, 0.0
  %v498 = vmax.f32 %v475, 0.0
  %v499 = vmax.f32 %v478, 0.0
  %v500 = vmax.f32 %v480, 0.0
  %v501 = vmax.f32 %v483, 0.0
  %v502 = vmax.f32 %v485, 0.0
  %v503 = vpack.c.bf16 %v487, %v487
  %v504 = vpack.c.bf16 %v488, %v488
  %v505 = vpack.c.bf16 %v489, %v489
  %v506 = vpack.c.bf16 %v490, %v490
  %v507 = vpack.c.bf16 %v491, %v491
  %v508 = vpack.c.bf16 %v492, %v492
  %v509 = vpack.c.bf16 %v493, %v493
  %v510 = vpack.c.bf16 %v494, %v494
  %v511 = vpack.c.bf16 %v495, %v495
  %v512 = vpack.c.bf16 %v496, %v496
  %v513 = vpack.c.bf16 %v497, %v497
  %v514 = vpack.c.bf16 %v498, %v498
  %v515 = vpack.c.bf16 %v499, %v499
  %v516 = vpack.c.bf16 %v500, %v500
  %v517 = vpack.c.bf16 %v501, %v501
  %v518 = vpack.c.bf16 %v502, %v502
  %vm519 = vcmask 257024
  %520 = vst.msk [vmem:[%s3] sm:$0xf] %vm519, %v503
  %521 = vst.msk [vmem:[%s3 + $0x4] sm:$0xf] %vm519, %v504
  %522 = vst.msk [vmem:[%s3 + $0x8] sm:$0xf] %vm519, %v505
  %523 = vst.msk [vmem:[%s3 + $0xc] sm:$0xf] %vm519, %v506
  %524 = vst.msk [vmem:[%s3 + $0x10] sm:$0xf] %vm519, %v507
  %525 = vst.msk [vmem:[%s3 + $0x14] sm:$0xf] %vm519, %v508
  %526 = vst.msk [vmem:[%s3 + $0x18] sm:$0xf] %vm519, %v509
  %527 = vst.msk [vmem:[%s3 + $0x1c] sm:$0xf] %vm519, %v510
  %528 = vst.msk [vmem:[%s3 + $0x20] sm:$0xf] %vm519, %v511
  %529 = vst.msk [vmem:[%s3 + $0x24] sm:$0xf] %vm519, %v512
  %530 = vst.msk [vmem:[%s3 + $0x28] sm:$0xf] %vm519, %v513
  %531 = vst.msk [vmem:[%s3 + $0x2c] sm:$0xf] %vm519, %v514
  %532 = vst.msk [vmem:[%s3 + $0x30] sm:$0xf] %vm519, %v515
  %533 = vst.msk [vmem:[%s3 + $0x34] sm:$0xf] %vm519, %v516
  %534 = vst.msk [vmem:[%s3 + $0x38] sm:$0xf] %vm519, %v517
  %535 = vst.msk [vmem:[%s3 + $0x3c] sm:$0xf] %vm519, %v518
  // Predicated region
  $region14: #{_lambda_.23} parent=0 // pred_check
    _
  $region15: #{_lambda_.23} parent=0 // pred_check_branch
    %537 = sbr.rel (0) target = $region17
  $region16: #{_lambda_.23} parent=0 // pred_region
    _
  $region17: #{_lambda_.23} parent=0 // pred_fallthru
    _
  // Predicated region
  $region18: #{_lambda_.23} parent=0 // pred_check
    _
  $region19: #{_lambda_.23} parent=0 // pred_check_branch
    %539 = sbr.rel (0) target = $region21
  $region20: #{_lambda_.23} parent=0 // pred_region
    _
  $region21: #{_lambda_.23} parent=0 // pred_fallthru
    _

// kernel: _lambda_.26
$region0: #{_lambda_.26}
  #allocation0 [shape = 'u32[]', space=smem, size = 0x4, offset = 0x4, fixed_abs, tag = 'smem constant byte address 0x4 - core index']
  #allocation1 [shape = 'u32[72,128]{1,0:T(1,128)}', space=vmem, size = 0x9000, scoped, tag = 'internal scratch']
  %s0 = inlined_call_operand.vmem [shape: bf16[128,64], index: 0, kind: input, shape index: {}]
  %s1 = inlined_call_operand.vmem [shape: bf16[64,64], index: 1, kind: input, shape index: {}]
  %s2 = inlined_call_operand.vmem [shape: f32[1,64], index: 2, kind: input, shape index: {}]
  %s3 = inlined_call_operand.vmem [shape: bf16[128,64], index: 3, kind: output, shape index: {}]
  %s4 = sld [smem:[#allocation0]]
  $region22: #{_lambda_.26} parent=0
    _
  %s6 = ssub.s32 1, %s4
  %s7 = scalar_select 0, %s6, %s4
  // Predicated region
  $region2: #{_lambda_.26} parent=0 // pred_check
    _
  $region3: #{_lambda_.26} parent=0 // pred_check_branch
    %9 = sbr.rel (0) target = $region5
  $region4: #{_lambda_.26} parent=0 // pred_region
    _
  $region5: #{_lambda_.26} parent=0 // pred_fallthru
    _
  // Predicated region
  $region6: #{_lambda_.26} parent=0 // pred_check
    _
  $region7: #{_lambda_.26} parent=0 // pred_check_branch
    %11 = sbr.rel (0) target = $region9
  $region8: #{_lambda_.26} parent=0 // pred_region
    _
  $region9: #{_lambda_.26} parent=0 // pred_fallthru
    _
  // Predicated region
  $region10: #{_lambda_.26} parent=0 // pred_check
    _
  $region11: #{_lambda_.26} parent=0 // pred_check_branch
    %13 = sbr.rel (0) target = $region13
  $region12: #{_lambda_.26} parent=0 // pred_region
    _
  $region13: #{_lambda_.26} parent=0 // pred_fallthru
    _
  %v15 = vld [vmem:[%s0] sm:$0xf]
  %v16 = vld [vmem:[%s0 + $0x4] sm:$0xf]
  %v17 = vld [vmem:[%s0 + $0x8] sm:$0xf]
  %v18 = vld [vmem:[%s0 + $0xc] sm:$0xf]
  %v19 = vld [vmem:[%s0 + $0x10] sm:$0xf]
  %v20 = vld [vmem:[%s0 + $0x14] sm:$0xf]
  %v21 = vld [vmem:[%s0 + $0x18] sm:$0xf]
  %v22 = vld [vmem:[%s0 + $0x1c] sm:$0xf]
  %v23 = vld [vmem:[%s0 + $0x20] sm:$0xf]
  %v24 = vld [vmem:[%s0 + $0x24] sm:$0xf]
  %v25 = vld [vmem:[%s0 + $0x28] sm:$0xf]
  %v26 = vld [vmem:[%s0 + $0x2c] sm:$0xf]
  %v27 = vld [vmem:[%s0 + $0x30] sm:$0xf]
  %v28 = vld [vmem:[%s0 + $0x34] sm:$0xf]
  %v29 = vld [vmem:[%s0 + $0x38] sm:$0xf]
  %v30 = vld [vmem:[%s0 + $0x3c] sm:$0xf]
  %v31 = vld [vmem:[%s1] sm:$0xf]
  %v32 = vld [vmem:[%s1 + $0x4] sm:$0xf]
  %v33 = vld [vmem:[%s1 + $0x8] sm:$0xf]
  %v34 = vld [vmem:[%s1 + $0xc] sm:$0xf]
  %v35 = vld [vmem:[%s1 + $0x10] sm:$0xf]
  %v36 = vld [vmem:[%s1 + $0x14] sm:$0xf]
  %v37 = vld [vmem:[%s1 + $0x18] sm:$0xf]
  %v38 = vld [vmem:[%s1 + $0x1c] sm:$0xf]
  %v39 = vld [vmem:[%s2] sm:$0x1]
  %v41 = vperm.slane %v39, 0
  %v59 = vunpack.c.l.b16 %v15
  %v60 = vunpack.c.l.b16 %v16
  %v61 = vunpack.c.l.b16 %v17
  %v62 = vunpack.c.l.b16 %v18
  %v63 = vunpack.c.l.b16 %v19
  %v64 = vunpack.c.l.b16 %v20
  %v65 = vunpack.c.l.b16 %v21
  %v66 = vunpack.c.l.b16 %v22
  %v67 = vunpack.c.l.b16 %v23
  %v68 = vunpack.c.l.b16 %v24
  %v69 = vunpack.c.l.b16 %v25
  %v70 = vunpack.c.l.b16 %v26
  %v71 = vunpack.c.l.b16 %v27
  %v72 = vunpack.c.l.b16 %v28
  %v73 = vunpack.c.l.b16 %v29
  %v74 = vunpack.c.l.b16 %v30
  %v75 = vpack.c.b16 %v60, %v59
  %v76 = vpack.c.b16 %v62, %v61
  %v77 = vpack.c.b16 %v64, %v63
  %v78 = vpack.c.b16 %v66, %v65
  %v79 = vpack.c.b16 %v68, %v67
  %v80 = vpack.c.b16 %v70, %v69
  %v81 = vpack.c.b16 %v72, %v71
  %v82 = vpack.c.b16 %v74, %v73
  %v91 = vunpack.c.l.b16 %v31
  %v92 = vunpack.c.l.b16 %v32
  %v93 = vunpack.c.l.b16 %v33
  %v94 = vunpack.c.l.b16 %v34
  %v95 = vunpack.c.l.b16 %v35
  %v96 = vunpack.c.l.b16 %v36
  %v97 = vunpack.c.l.b16 %v37
  %v98 = vunpack.c.l.b16 %v38
  %v99 = vpack.c.b16 %v92, %v91
  %v100 = vpack.c.b16 %v94, %v93
  %v101 = vpack.c.b16 %v96, %v95
  %v102 = vpack.c.b16 %v98, %v97
  %vm107 = vcmask 523264
  %v109 = vsel %vm107, %v75, 0
  %v112 = vsel %vm107, %v76, 0
  %v115 = vsel %vm107, %v77, 0
  %v118 = vsel %vm107, %v78, 0
  %v121 = vsel %vm107, %v79, 0
  %v124 = vsel %vm107, %v80, 0
  %v127 = vsel %vm107, %v81, 0
  %v130 = vsel %vm107, %v82, 0
  %132 = vmatpush.bf16.msra.mxu0 0
  %133 = vmatpush.bf16.msra.mxu0 0
  %134 = vmatpush.bf16.msra.mxu0 0
  %135 = vmatpush.bf16.msra.mxu0 0
  %136 = vmatpush.bf16.msra.mxu0 %v102
  %137 = vmatpush.bf16.msra.mxu0 %v101
  %138 = vmatpush.bf16.msra.mxu0 %v100
  %139 = vmatpush.bf16.msra.mxu0 %v99
  %140 = vmatmul.bf16.gmra.mxu0 %v109
  %v141 = vpop.f32.mrf.mxu0
  %v142 = vadd.f32 %v41, %v141
  %v143 = vpop.f32.mrf.mxu0
  %v144 = vadd.f32 %v41, %v143
  %145 = vmatmul.bf16.gmra.mxu0 %v112
  %v146 = vpop.f32.mrf.mxu0
  %v147 = vadd.f32 %v41, %v146
  %v148 = vpop.f32.mrf.mxu0
  %v149 = vadd.f32 %v41, %v148
  %150 = vmatmul.bf16.gmra.mxu0 %v115
  %v151 = vpop.f32.mrf.mxu0
  %v152 = vadd.f32 %v41, %v151
  %v153 = vpop.f32.mrf.mxu0
  %v154 = vadd.f32 %v41, %v153
  %155 = vmatmul.bf16.gmra.mxu0 %v118
  %v156 = vpop.f32.mrf.mxu0
  %v157 = vadd.f32 %v41, %v156
  %v158 = vpop.f32.mrf.mxu0
  %v159 = vadd.f32 %v41, %v158
  %160 = vmatmul.bf16.gmra.mxu0 %v121
  %v161 = vpop.f32.mrf.mxu0
  %v162 = vadd.f32 %v41, %v161
  %v163 = vpop.f32.mrf.mxu0
  %v164 = vadd.f32 %v41, %v163
  %165 = vmatmul.bf16.gmra.mxu0 %v124
  %v166 = vpop.f32.mrf.mxu0
  %v167 = vadd.f32 %v41, %v166
  %v168 = vpop.f32.mrf.mxu0
  %v169 = vadd.f32 %v41, %v168
  %170 = vmatmul.bf16.gmra.mxu0 %v127
  %v171 = vpop.f32.mrf.mxu0
  %v172 = vadd.f32 %v41, %v171
  %v173 = vpop.f32.mrf.mxu0
  %v174 = vadd.f32 %v41, %v173
  %175 = vmatmul.bf16.gmra.mxu0 %v130
  %v176 = vpop.f32.mrf.mxu0
  %v177 = vadd.f32 %v41, %v176
  %v178 = vpop.f32.mrf.mxu0
  %v179 = vadd.f32 %v41, %v178
  %180 = vdwg.mxu0
  %v181 = vmax.f32 %v142, 0.0
  %v182 = vmax.f32 %v144, 0.0
  %v183 = vmax.f32 %v147, 0.0
  %v184 = vmax.f32 %v149, 0.0
  %v185 = vmax.f32 %v152, 0.0
  %v186 = vmax.f32 %v154, 0.0
  %v187 = vmax.f32 %v157, 0.0
  %v188 = vmax.f32 %v159, 0.0
  %v189 = vmax.f32 %v162, 0.0
  %v190 = vmax.f32 %v164, 0.0
  %v191 = vmax.f32 %v167, 0.0
  %v192 = vmax.f32 %v169, 0.0
  %v193 = vmax.f32 %v172, 0.0
  %v194 = vmax.f32 %v174, 0.0
  %v195 = vmax.f32 %v177, 0.0
  %v196 = vmax.f32 %v179, 0.0
  %v197 = vpack.c.bf16 %v181, %v181
  %v198 = vpack.c.bf16 %v182, %v182
  %v199 = vpack.c.bf16 %v183, %v183
  %v200 = vpack.c.bf16 %v184, %v184
  %v201 = vpack.c.bf16 %v185, %v185
  %v202 = vpack.c.bf16 %v186, %v186
  %v203 = vpack.c.bf16 %v187, %v187
  %v204 = vpack.c.bf16 %v188, %v188
  %v205 = vpack.c.bf16 %v189, %v189
  %v206 = vpack.c.bf16 %v190, %v190
  %v207 = vpack.c.bf16 %v191, %v191
  %v208 = vpack.c.bf16 %v192, %v192
  %v209 = vpack.c.bf16 %v193, %v193
  %v210 = vpack.c.bf16 %v194, %v194
  %v211 = vpack.c.bf16 %v195, %v195
  %v212 = vpack.c.bf16 %v196, %v196
  %vm213 = vcmask 519168
  %214 = vst.msk [vmem:[%s3] sm:$0xf] %vm213, %v197
  %215 = vst.msk [vmem:[%s3 + $0x4] sm:$0xf] %vm213, %v198
  %216 = vst.msk [vmem:[%s3 + $0x8] sm:$0xf] %vm213, %v199
  %217 = vst.msk [vmem:[%s3 + $0xc] sm:$0xf] %vm213, %v200
  %218 = vst.msk [vmem:[%s3 + $0x10] sm:$0xf] %vm213, %v201
  %219 = vst.msk [vmem:[%s3 + $0x14] sm:$0xf] %vm213, %v202
  %220 = vst.msk [vmem:[%s3 + $0x18] sm:$0xf] %vm213, %v203
  %221 = vst.msk [vmem:[%s3 + $0x1c] sm:$0xf] %vm213, %v204
  %222 = vst.msk [vmem:[%s3 + $0x20] sm:$0xf] %vm213, %v205
  %223 = vst.msk [vmem:[%s3 + $0x24] sm:$0xf] %vm213, %v206
  %224 = vst.msk [vmem:[%s3 + $0x28] sm:$0xf] %vm213, %v207
  %225 = vst.msk [vmem:[%s3 + $0x2c] sm:$0xf] %vm213, %v208
  %226 = vst.msk [vmem:[%s3 + $0x30] sm:$0xf] %vm213, %v209
  %227 = vst.msk [vmem:[%s3 + $0x34] sm:$0xf] %vm213, %v210
  %228 = vst.msk [vmem:[%s3 + $0x38] sm:$0xf] %vm213, %v211
  %229 = vst.msk [vmem:[%s3 + $0x3c] sm:$0xf] %vm213, %v212
  // Predicated region
  $region14: #{_lambda_.26} parent=0 // pred_check
    _
  $region15: #{_lambda_.26} parent=0 // pred_check_branch
    %231 = sbr.rel (0) target = $region17
  $region16: #{_lambda_.26} parent=0 // pred_region
    _
  $region17: #{_lambda_.26} parent=0 // pred_fallthru
    _
  // Predicated region
  $region18: #{_lambda_.26} parent=0 // pred_check
    _
  $region19: #{_lambda_.26} parent=0 // pred_check_branch
    %233 = sbr.rel (0) target = $region21
  $region20: #{_lambda_.26} parent=0 // pred_region
    _
  $region21: #{_lambda_.26} parent=0 // pred_fallthru
    _

// kernel: _lambda_.24
$region0: #{_lambda_.24}
  #allocation0 [shape = 'u32[]', space=smem, size = 0x4, offset = 0x4, fixed_abs, tag = 'smem constant byte address 0x4 - core index']
  #allocation1 [shape = 'u32[72,128]{1,0:T(1,128)}', space=vmem, size = 0x9000, scoped, tag = 'internal scratch']
  %s0 = inlined_call_operand.vmem [shape: bf16[128,32], index: 0, kind: input, shape index: {}]
  %s1 = inlined_call_operand.vmem [shape: bf16[32,64], index: 1, kind: input, shape index: {}]
  %s2 = inlined_call_operand.vmem [shape: f32[1,64], index: 2, kind: input, shape index: {}]
  %s3 = inlined_call_operand.vmem [shape: bf16[128,64], index: 3, kind: input, shape index: {}]
  %s4 = inlined_call_operand.vmem [shape: bf16[128,64], index: 4, kind: output, shape index: {}]
  %s5 = sld [smem:[#allocation0]]
  $region26: #{_lambda_.24} parent=0
    _
  %s7 = ssub.s32 1, %s5
  %s8 = scalar_select 0, %s7, %s5
  // Predicated region
  $region2: #{_lambda_.24} parent=0 // pred_check
    _
  $region3: #{_lambda_.24} parent=0 // pred_check_branch
    %10 = sbr.rel (0) target = $region5
  $region4: #{_lambda_.24} parent=0 // pred_region
    _
  $region5: #{_lambda_.24} parent=0 // pred_fallthru
    _
  // Predicated region
  $region6: #{_lambda_.24} parent=0 // pred_check
    _
  $region7: #{_lambda_.24} parent=0 // pred_check_branch
    %12 = sbr.rel (0) target = $region9
  $region8: #{_lambda_.24} parent=0 // pred_region
    _
  $region9: #{_lambda_.24} parent=0 // pred_fallthru
    _
  // Predicated region
  $region10: #{_lambda_.24} parent=0 // pred_check
    _
  $region11: #{_lambda_.24} parent=0 // pred_check_branch
    %14 = sbr.rel (0) target = $region13
  $region12: #{_lambda_.24} parent=0 // pred_region
    _
  $region13: #{_lambda_.24} parent=0 // pred_fallthru
    _
  // Predicated region
  $region14: #{_lambda_.24} parent=0 // pred_check
    _
  $region15: #{_lambda_.24} parent=0 // pred_check_branch
    %16 = sbr.rel (0) target = $region17
  $region16: #{_lambda_.24} parent=0 // pred_region
    _
  $region17: #{_lambda_.24} parent=0 // pred_fallthru
    _
  %v18 = vld [vmem:[%s0] sm:$0xf]
  %v19 = vld [vmem:[%s0 + $0x4] sm:$0xf]
  %v20 = vld [vmem:[%s0 + $0x8] sm:$0xf]
  %v21 = vld [vmem:[%s0 + $0xc] sm:$0xf]
  %v22 = vld [vmem:[%s0 + $0x10] sm:$0xf]
  %v23 = vld [vmem:[%s0 + $0x14] sm:$0xf]
  %v24 = vld [vmem:[%s0 + $0x18] sm:$0xf]
  %v25 = vld [vmem:[%s0 + $0x1c] sm:$0xf]
  %v26 = vld [vmem:[%s0 + $0x20] sm:$0xf]
  %v27 = vld [vmem:[%s0 + $0x24] sm:$0xf]
  %v28 = vld [vmem:[%s0 + $0x28] sm:$0xf]
  %v29 = vld [vmem:[%s0 + $0x2c] sm:$0xf]
  %v30 = vld [vmem:[%s0 + $0x30] sm:$0xf]
  %v31 = vld [vmem:[%s0 + $0x34] sm:$0xf]
  %v32 = vld [vmem:[%s0 + $0x38] sm:$0xf]
  %v33 = vld [vmem:[%s0 + $0x3c] sm:$0xf]
  %v34 = vld [vmem:[%s1] sm:$0xf]
  %v35 = vld [vmem:[%s1 + $0x4] sm:$0xf]
  %v36 = vld [vmem:[%s1 + $0x8] sm:$0xf]
  %v37 = vld [vmem:[%s1 + $0xc] sm:$0xf]
  %v38 = vld [vmem:[%s2] sm:$0x1]
  %v40 = vperm.slane %v38, 0
  %v58 = vunpack.c.l.b16 %v18
  %v59 = vunpack.c.l.b16 %v19
  %v60 = vunpack.c.l.b16 %v20
  %v61 = vunpack.c.l.b16 %v21
  %v62 = vunpack.c.l.b16 %v22
  %v63 = vunpack.c.l.b16 %v23
  %v64 = vunpack.c.l.b16 %v24
  %v65 = vunpack.c.l.b16 %v25
  %v66 = vunpack.c.l.b16 %v26
  %v67 = vunpack.c.l.b16 %v27
  %v68 = vunpack.c.l.b16 %v28
  %v69 = vunpack.c.l.b16 %v29
  %v70 = vunpack.c.l.b16 %v30
  %v71 = vunpack.c.l.b16 %v31
  %v72 = vunpack.c.l.b16 %v32
  %v73 = vunpack.c.l.b16 %v33
  %v74 = vpack.c.b16 %v59, %v58
  %v75 = vpack.c.b16 %v61, %v60
  %v76 = vpack.c.b16 %v63, %v62
  %v77 = vpack.c.b16 %v65, %v64
  %v78 = vpack.c.b16 %v67, %v66
  %v79 = vpack.c.b16 %v69, %v68
  %v80 = vpack.c.b16 %v71, %v70
  %v81 = vpack.c.b16 %v73, %v72
  %v86 = vunpack.c.l.b16 %v34
  %v87 = vunpack.c.l.b16 %v35
  %v88 = vunpack.c.l.b16 %v36
  %v89 = vunpack.c.l.b16 %v37
  %v90 = vpack.c.b16 %v87, %v86
  %v91 = vpack.c.b16 %v89, %v88
  %vm94 = vcmask 261120
  %v96 = vsel %vm94, %v74, 0
  %v99 = vsel %vm94, %v75, 0
  %v102 = vsel %vm94, %v76, 0
  %v105 = vsel %vm94, %v77, 0
  %v108 = vsel %vm94, %v78, 0
  %v111 = vsel %vm94, %v79, 0
  %v114 = vsel %vm94, %v80, 0
  %v117 = vsel %vm94, %v81, 0
  %119 = vmatpush.bf16.msra.mxu0 0
  %120 = vmatpush.bf16.msra.mxu0 0
  %121 = vmatpush.bf16.msra.mxu0 0
  %122 = vmatpush.bf16.msra.mxu0 0
  %123 = vmatpush.bf16.msra.mxu0 0
  %124 = vmatpush.bf16.msra.mxu0 0
  %125 = vmatpush.bf16.msra.mxu0 %v91
  %126 = vmatpush.bf16.msra.mxu0 %v90
  %127 = vmatmul.bf16.gmra.mxu0 %v96
  %v128 = vpop.f32.mrf.mxu0
  %v129 = vadd.f32 %v40, %v128
  %v130 = vpop.f32.mrf.mxu0
  %v131 = vadd.f32 %v40, %v130
  %132 = vmatmul.bf16.gmra.mxu0 %v99
  %v133 = vpop.f32.mrf.mxu0
  %v134 = vadd.f32 %v40, %v133
  %v135 = vpop.f32.mrf.mxu0
  %v136 = vadd.f32 %v40, %v135
  %137 = vmatmul.bf16.gmra.mxu0 %v102
  %v138 = vpop.f32.mrf.mxu0
  %v139 = vadd.f32 %v40, %v138
  %v140 = vpop.f32.mrf.mxu0
  %v141 = vadd.f32 %v40, %v140
  %142 = vmatmul.bf16.gmra.mxu0 %v105
  %v143 = vpop.f32.mrf.mxu0
  %v144 = vadd.f32 %v40, %v143
  %v145 = vpop.f32.mrf.mxu0
  %v146 = vadd.f32 %v40, %v145
  %147 = vmatmul.bf16.gmra.mxu0 %v108
  %v148 = vpop.f32.mrf.mxu0
  %v149 = vadd.f32 %v40, %v148
  %v150 = vpop.f32.mrf.mxu0
  %v151 = vadd.f32 %v40, %v150
  %152 = vmatmul.bf16.gmra.mxu0 %v111
  %v153 = vpop.f32.mrf.mxu0
  %v154 = vadd.f32 %v40, %v153
  %v155 = vpop.f32.mrf.mxu0
  %v156 = vadd.f32 %v40, %v155
  %157 = vmatmul.bf16.gmra.mxu0 %v114
  %v158 = vpop.f32.mrf.mxu0
  %v159 = vadd.f32 %v40, %v158
  %v160 = vpop.f32.mrf.mxu0
  %v161 = vadd.f32 %v40, %v160
  %162 = vmatmul.bf16.gmra.mxu0 %v117
  %v163 = vpop.f32.mrf.mxu0
  %v164 = vadd.f32 %v40, %v163
  %v165 = vpop.f32.mrf.mxu0
  %v166 = vadd.f32 %v40, %v165
  %167 = vdwg.mxu0
  %v168 = vld [vmem:[%s3] sm:$0xf]
  %v169 = vld [vmem:[%s3 + $0x4] sm:$0xf]
  %v170 = vld [vmem:[%s3 + $0x8] sm:$0xf]
  %v171 = vld [vmem:[%s3 + $0xc] sm:$0xf]
  %v172 = vld [vmem:[%s3 + $0x10] sm:$0xf]
  %v173 = vld [vmem:[%s3 + $0x14] sm:$0xf]
  %v174 = vld [vmem:[%s3 + $0x18] sm:$0xf]
  %v175 = vld [vmem:[%s3 + $0x1c] sm:$0xf]
  %v176 = vld [vmem:[%s3 + $0x20] sm:$0xf]
  %v177 = vld [vmem:[%s3 + $0x24] sm:$0xf]
  %v178 = vld [vmem:[%s3 + $0x28] sm:$0xf]
  %v179 = vld [vmem:[%s3 + $0x2c] sm:$0xf]
  %v180 = vld [vmem:[%s3 + $0x30] sm:$0xf]
  %v181 = vld [vmem:[%s3 + $0x34] sm:$0xf]
  %v182 = vld [vmem:[%s3 + $0x38] sm:$0xf]
  %v183 = vld [vmem:[%s3 + $0x3c] sm:$0xf]
  %v184 = vunpack.c.l.bf16 %v168
  %v185 = vunpack.c.l.bf16 %v169
  %v186 = vunpack.c.l.bf16 %v170
  %v187 = vunpack.c.l.bf16 %v171
  %v188 = vunpack.c.l.bf16 %v172
  %v189 = vunpack.c.l.bf16 %v173
  %v190 = vunpack.c.l.bf16 %v174
  %v191 = vunpack.c.l.bf16 %v175
  %v192 = vunpack.c.l.bf16 %v176
  %v193 = vunpack.c.l.bf16 %v177
  %v194 = vunpack.c.l.bf16 %v178
  %v195 = vunpack.c.l.bf16 %v179
  %v196 = vunpack.c.l.bf16 %v180
  %v197 = vunpack.c.l.bf16 %v181
  %v198 = vunpack.c.l.bf16 %v182
  %v199 = vunpack.c.l.bf16 %v183
  %v200 = vadd.f32 %v129, %v184
  %v201 = vadd.f32 %v131, %v185
  %v202 = vadd.f32 %v134, %v186
  %v203 = vadd.f32 %v136, %v187
  %v204 = vadd.f32 %v139, %v188
  %v205 = vadd.f32 %v141, %v189
  %v206 = vadd.f32 %v144, %v190
  %v207 = vadd.f32 %v146, %v191
  %v208 = vadd.f32 %v149, %v192
  %v209 = vadd.f32 %v151, %v193
  %v210 = vadd.f32 %v154, %v194
  %v211 = vadd.f32 %v156, %v195
  %v212 = vadd.f32 %v159, %v196
  %v213 = vadd.f32 %v161, %v197
  %v214 = vadd.f32 %v164, %v198
  %v215 = vadd.f32 %v166, %v199
  %v216 = vmax.f32 %v200, 0.0
  %v217 = vmax.f32 %v201, 0.0
  %v218 = vmax.f32 %v202, 0.0
  %v219 = vmax.f32 %v203, 0.0
  %v220 = vmax.f32 %v204, 0.0
  %v221 = vmax.f32 %v205, 0.0
  %v222 = vmax.f32 %v206, 0.0
  %v223 = vmax.f32 %v207, 0.0
  %v224 = vmax.f32 %v208, 0.0
  %v225 = vmax.f32 %v209, 0.0
  %v226 = vmax.f32 %v210, 0.0
  %v227 = vmax.f32 %v211, 0.0
  %v228 = vmax.f32 %v212, 0.0
  %v229 = vmax.f32 %v213, 0.0
  %v230 = vmax.f32 %v214, 0.0
  %v231 = vmax.f32 %v215, 0.0
  %v232 = vpack.c.bf16 %v216, %v216
  %v233 = vpack.c.bf16 %v217, %v217
  %v234 = vpack.c.bf16 %v218, %v218
  %v235 = vpack.c.bf16 %v219, %v219
  %v236 = vpack.c.bf16 %v220, %v220
  %v237 = vpack.c.bf16 %v221, %v221
  %v238 = vpack.c.bf16 %v222, %v222
  %v239 = vpack.c.bf16 %v223, %v223
  %v240 = vpack.c.bf16 %v224, %v224
  %v241 = vpack.c.bf16 %v225, %v225
  %v242 = vpack.c.bf16 %v226, %v226
  %v243 = vpack.c.bf16 %v227, %v227
  %v244 = vpack.c.bf16 %v228, %v228
  %v245 = vpack.c.bf16 %v229, %v229
  %v246 = vpack.c.bf16 %v230, %v230
  %v247 = vpack.c.bf16 %v231, %v231
  %vm248 = vcmask 519168
  %249 = vst.msk [vmem:[%s4] sm:$0xf] %vm248, %v232
  %250 = vst.msk [vmem:[%s4 + $0x4] sm:$0xf] %vm248, %v233
  %251 = vst.msk [vmem:[%s4 + $0x8] sm:$0xf] %vm248, %v234
  %252 = vst.msk [vmem:[%s4 + $0xc] sm:$0xf] %vm248, %v235
  %253 = vst.msk [vmem:[%s4 + $0x10] sm:$0xf] %vm248, %v236
  %254 = vst.msk [vmem:[%s4 + $0x14] sm:$0xf] %vm248, %v237
  %255 = vst.msk [vmem:[%s4 + $0x18] sm:$0xf] %vm248, %v238
  %256 = vst.msk [vmem:[%s4 + $0x1c] sm:$0xf] %vm248, %v239
  %257 = vst.msk [vmem:[%s4 + $0x20] sm:$0xf] %vm248, %v240
  %258 = vst.msk [vmem:[%s4 + $0x24] sm:$0xf] %vm248, %v241
  %259 = vst.msk [vmem:[%s4 + $0x28] sm:$0xf] %vm248, %v242
  %260 = vst.msk [vmem:[%s4 + $0x2c] sm:$0xf] %vm248, %v243
  %261 = vst.msk [vmem:[%s4 + $0x30] sm:$0xf] %vm248, %v244
  %262 = vst.msk [vmem:[%s4 + $0x34] sm:$0xf] %vm248, %v245
  %263 = vst.msk [vmem:[%s4 + $0x38] sm:$0xf] %vm248, %v246
  %264 = vst.msk [vmem:[%s4 + $0x3c] sm:$0xf] %vm248, %v247
  // Predicated region
  $region18: #{_lambda_.24} parent=0 // pred_check
    _
  $region19: #{_lambda_.24} parent=0 // pred_check_branch
    %266 = sbr.rel (0) target = $region21
  $region20: #{_lambda_.24} parent=0 // pred_region
    _
  $region21: #{_lambda_.24} parent=0 // pred_fallthru
    _
  // Predicated region
  $region22: #{_lambda_.24} parent=0 // pred_check
    _
  $region23: #{_lambda_.24} parent=0 // pred_check_branch
    %268 = sbr.rel (0) target = $region25
  $region24: #{_lambda_.24} parent=0 // pred_region
    _
  $region25: #{_lambda_.24} parent=0 // pred_fallthru
    _

// kernel: _lambda_.25
$region0: #{_lambda_.25}
  #allocation0 [shape = 'u32[]', space=smem, size = 0x4, offset = 0x4, fixed_abs, tag = 'smem constant byte address 0x4 - core index']
  #allocation1 [shape = 'u32[72,128]{1,0:T(1,128)}', space=vmem, size = 0x9000, scoped, tag = 'internal scratch']
  %s0 = inlined_call_operand.vmem [shape: bf16[32,64], index: 0, kind: input, shape index: {}]
  %s1 = inlined_call_operand.vmem [shape: bf16[64,128], index: 1, kind: input, shape index: {}]
  %s2 = inlined_call_operand.vmem [shape: f32[1,128], index: 2, kind: input, shape index: {}]
  %s3 = inlined_call_operand.vmem [shape: bf16[32,128], index: 3, kind: output, shape index: {}]
  %s4 = sld [smem:[#allocation0]]
  $region22: #{_lambda_.25} parent=0
    _
  %s6 = ssub.s32 1, %s4
  %s7 = scalar_select 0, %s6, %s4
  // Predicated region
  $region2: #{_lambda_.25} parent=0 // pred_check
    _
  $region3: #{_lambda_.25} parent=0 // pred_check_branch
    %9 = sbr.rel (0) target = $region5
  $region4: #{_lambda_.25} parent=0 // pred_region
    _
  $region5: #{_lambda_.25} parent=0 // pred_fallthru
    _
  // Predicated region
  $region6: #{_lambda_.25} parent=0 // pred_check
    _
  $region7: #{_lambda_.25} parent=0 // pred_check_branch
    %11 = sbr.rel (0) target = $region9
  $region8: #{_lambda_.25} parent=0 // pred_region
    _
  $region9: #{_lambda_.25} parent=0 // pred_fallthru
    _
  // Predicated region
  $region10: #{_lambda_.25} parent=0 // pred_check
    _
  $region11: #{_lambda_.25} parent=0 // pred_check_branch
    %13 = sbr.rel (0) target = $region13
  $region12: #{_lambda_.25} parent=0 // pred_region
    _
  $region13: #{_lambda_.25} parent=0 // pred_fallthru
    _
  %v15 = vld [vmem:[%s0] sm:$0xf]
  %v16 = vld [vmem:[%s0 + $0x4] sm:$0xf]
  %v17 = vld [vmem:[%s0 + $0x8] sm:$0xf]
  %v18 = vld [vmem:[%s0 + $0xc] sm:$0xf]
  %v19 = vld [vmem:[%s1] sm:$0xf]
  %v20 = vld [vmem:[%s1 + $0x4] sm:$0xf]
  %v21 = vld [vmem:[%s1 + $0x8] sm:$0xf]
  %v22 = vld [vmem:[%s1 + $0xc] sm:$0xf]
  %v23 = vld [vmem:[%s1 + $0x10] sm:$0xf]
  %v24 = vld [vmem:[%s1 + $0x14] sm:$0xf]
  %v25 = vld [vmem:[%s1 + $0x18] sm:$0xf]
  %v26 = vld [vmem:[%s1 + $0x1c] sm:$0xf]
  %v27 = vld [vmem:[%s2] sm:$0x1]
  %v29 = vperm.slane %v27, 0
  %v35 = vunpack.c.l.b16 %v15
  %v36 = vunpack.c.l.b16 %v16
  %v37 = vunpack.c.l.b16 %v17
  %v38 = vunpack.c.l.b16 %v18
  %v39 = vpack.c.b16 %v36, %v35
  %v40 = vpack.c.b16 %v38, %v37
  %v49 = vunpack.c.l.b16 %v19
  %v50 = vunpack.c.l.b16 %v20
  %v51 = vunpack.c.l.b16 %v21
  %v52 = vunpack.c.l.b16 %v22
  %v53 = vunpack.c.l.b16 %v23
  %v54 = vunpack.c.l.b16 %v24
  %v55 = vunpack.c.l.b16 %v25
  %v56 = vunpack.c.l.b16 %v26
  %v57 = vpack.c.b16 %v50, %v49
  %v58 = vpack.c.b16 %v52, %v51
  %v59 = vpack.c.b16 %v54, %v53
  %v60 = vpack.c.b16 %v56, %v55
  %vm65 = vcmask 523264
  %v67 = vsel %vm65, %v39, 0
  %v70 = vsel %vm65, %v40, 0
  %72 = vmatpush.bf16.msra.mxu0 0
  %73 = vmatpush.bf16.msra.mxu0 0
  %74 = vmatpush.bf16.msra.mxu0 0
  %75 = vmatpush.bf16.msra.mxu0 0
  %76 = vmatpush.bf16.msra.mxu0 %v60
  %77 = vmatpush.bf16.msra.mxu0 %v59
  %78 = vmatpush.bf16.msra.mxu0 %v58
  %79 = vmatpush.bf16.msra.mxu0 %v57
  %80 = vmatmul.bf16.gmra.mxu0 %v67
  %v81 = vpop.f32.mrf.mxu0
  %v82 = vadd.f32 %v29, %v81
  %v83 = vpop.f32.mrf.mxu0
  %v84 = vadd.f32 %v29, %v83
  %85 = vmatmul.bf16.gmra.mxu0 %v70
  %v86 = vpop.f32.mrf.mxu0
  %v87 = vadd.f32 %v29, %v86
  %v88 = vpop.f32.mrf.mxu0
  %v89 = vadd.f32 %v29, %v88
  %90 = vdwg.mxu0
  %v91 = vpack.c.bf16 %v82, %v82
  %v92 = vpack.c.bf16 %v84, %v84
  %v93 = vpack.c.bf16 %v87, %v87
  %v94 = vpack.c.bf16 %v89, %v89
  %95 = vst [vmem:[%s3] sm:$0xf] %v91
  %96 = vst [vmem:[%s3 + $0x4] sm:$0xf] %v92
  %97 = vst [vmem:[%s3 + $0x8] sm:$0xf] %v93
  %98 = vst [vmem:[%s3 + $0xc] sm:$0xf] %v94
  // Predicated region
  $region14: #{_lambda_.25} parent=0 // pred_check
    _
  $region15: #{_lambda_.25} parent=0 // pred_check_branch
    %100 = sbr.rel (0) target = $region17
  $region16: #{_lambda_.25} parent=0 // pred_region
    _
  $region17: #{_lambda_.25} parent=0 // pred_fallthru
    _
  // Predicated region
  $region18: #{_lambda_.25} parent=0 // pred_check
    _
  $region19: #{_lambda_.25} parent=0 // pred_check_branch
    %102 = sbr.rel (0) target = $region21
  $region20: #{_lambda_.25} parent=0 // pred_region
    _
  $region21: #{_lambda_.25} parent=0 // pred_fallthru
    _

// kernel: _lambda_.28
$region0: #{_lambda_.28}
  #allocation0 [shape = 'u32[]', space=smem, size = 0x4, offset = 0x4, fixed_abs, tag = 'smem constant byte address 0x4 - core index']
  #allocation1 [shape = 'u32[72,128]{1,0:T(1,128)}', space=vmem, size = 0x9000, scoped, tag = 'internal scratch']
  %s0 = inlined_call_operand.vmem [shape: bf16[32,64], index: 0, kind: input, shape index: {}]
  %s1 = inlined_call_operand.vmem [shape: bf16[64,128], index: 1, kind: input, shape index: {}]
  %s2 = inlined_call_operand.vmem [shape: f32[1,128], index: 2, kind: input, shape index: {}]
  %s3 = inlined_call_operand.vmem [shape: bf16[32,128], index: 3, kind: input, shape index: {}]
  %s4 = inlined_call_operand.vmem [shape: bf16[32,128], index: 4, kind: output, shape index: {}]
  %s5 = sld [smem:[#allocation0]]
  $region26: #{_lambda_.28} parent=0
    _
  %s7 = ssub.s32 1, %s5
  %s8 = scalar_select 0, %s7, %s5
  // Predicated region
  $region2: #{_lambda_.28} parent=0 // pred_check
    _
  $region3: #{_lambda_.28} parent=0 // pred_check_branch
    %10 = sbr.rel (0) target = $region5
  $region4: #{_lambda_.28} parent=0 // pred_region
    _
  $region5: #{_lambda_.28} parent=0 // pred_fallthru
    _
  // Predicated region
  $region6: #{_lambda_.28} parent=0 // pred_check
    _
  $region7: #{_lambda_.28} parent=0 // pred_check_branch
    %12 = sbr.rel (0) target = $region9
  $region8: #{_lambda_.28} parent=0 // pred_region
    _
  $region9: #{_lambda_.28} parent=0 // pred_fallthru
    _
  // Predicated region
  $region10: #{_lambda_.28} parent=0 // pred_check
    _
  $region11: #{_lambda_.28} parent=0 // pred_check_branch
    %14 = sbr.rel (0) target = $region13
  $region12: #{_lambda_.28} parent=0 // pred_region
    _
  $region13: #{_lambda_.28} parent=0 // pred_fallthru
    _
  // Predicated region
  $region14: #{_lambda_.28} parent=0 // pred_check
    _
  $region15: #{_lambda_.28} parent=0 // pred_check_branch
    %16 = sbr.rel (0) target = $region17
  $region16: #{_lambda_.28} parent=0 // pred_region
    _
  $region17: #{_lambda_.28} parent=0 // pred_fallthru
    _
  %v18 = vld [vmem:[%s0] sm:$0xf]
  %v19 = vld [vmem:[%s0 + $0x4] sm:$0xf]
  %v20 = vld [vmem:[%s0 + $0x8] sm:$0xf]
  %v21 = vld [vmem:[%s0 + $0xc] sm:$0xf]
  %v22 = vld [vmem:[%s1] sm:$0xf]
  %v23 = vld [vmem:[%s1 + $0x4] sm:$0xf]
  %v24 = vld [vmem:[%s1 + $0x8] sm:$0xf]
  %v25 = vld [vmem:[%s1 + $0xc] sm:$0xf]
  %v26 = vld [vmem:[%s1 + $0x10] sm:$0xf]
  %v27 = vld [vmem:[%s1 + $0x14] sm:$0xf]
  %v28 = vld [vmem:[%s1 + $0x18] sm:$0xf]
  %v29 = vld [vmem:[%s1 + $0x1c] sm:$0xf]
  %v30 = vld [vmem:[%s2] sm:$0x1]
  %v32 = vperm.slane %v30, 0
  %v38 = vunpack.c.l.b16 %v18
  %v39 = vunpack.c.l.b16 %v19
  %v40 = vunpack.c.l.b16 %v20
  %v41 = vunpack.c.l.b16 %v21
  %v42 = vpack.c.b16 %v39, %v38
  %v43 = vpack.c.b16 %v41, %v40
  %v52 = vunpack.c.l.b16 %v22
  %v53 = vunpack.c.l.b16 %v23
  %v54 = vunpack.c.l.b16 %v24
  %v55 = vunpack.c.l.b16 %v25
  %v56 = vunpack.c.l.b16 %v26
  %v57 = vunpack.c.l.b16 %v27
  %v58 = vunpack.c.l.b16 %v28
  %v59 = vunpack.c.l.b16 %v29
  %v60 = vpack.c.b16 %v53, %v52
  %v61 = vpack.c.b16 %v55, %v54
  %v62 = vpack.c.b16 %v57, %v56
  %v63 = vpack.c.b16 %v59, %v58
  %vm68 = vcmask 523264
  %v70 = vsel %vm68, %v42, 0
  %v73 = vsel %vm68, %v43, 0
  %75 = vmatpush.bf16.msra.mxu0 0
  %76 = vmatpush.bf16.msra.mxu0 0
  %77 = vmatpush.bf16.msra.mxu0 0
  %78 = vmatpush.bf16.msra.mxu0 0
  %79 = vmatpush.bf16.msra.mxu0 %v63
  %80 = vmatpush.bf16.msra.mxu0 %v62
  %81 = vmatpush.bf16.msra.mxu0 %v61
  %82 = vmatpush.bf16.msra.mxu0 %v60
  %83 = vmatmul.bf16.gmra.mxu0 %v70
  %v84 = vpop.f32.mrf.mxu0
  %v85 = vadd.f32 %v32, %v84
  %v86 = vpop.f32.mrf.mxu0
  %v87 = vadd.f32 %v32, %v86
  %88 = vmatmul.bf16.gmra.mxu0 %v73
  %v89 = vpop.f32.mrf.mxu0
  %v90 = vadd.f32 %v32, %v89
  %v91 = vpop.f32.mrf.mxu0
  %v92 = vadd.f32 %v32, %v91
  %93 = vdwg.mxu0
  %v94 = vld [vmem:[%s3] sm:$0xf]
  %v95 = vld [vmem:[%s3 + $0x4] sm:$0xf]
  %v96 = vld [vmem:[%s3 + $0x8] sm:$0xf]
  %v97 = vld [vmem:[%s3 + $0xc] sm:$0xf]
  %v98 = vunpack.c.l.bf16 %v94
  %v99 = vunpack.c.l.bf16 %v95
  %v100 = vunpack.c.l.bf16 %v96
  %v101 = vunpack.c.l.bf16 %v97
  %v102 = vadd.f32 %v85, %v98
  %v103 = vadd.f32 %v87, %v99
  %v104 = vadd.f32 %v90, %v100
  %v105 = vadd.f32 %v92, %v101
  %v106 = vmax.f32 %v102, 0.0
  %v107 = vmax.f32 %v103, 0.0
  %v108 = vmax.f32 %v104, 0.0
  %v109 = vmax.f32 %v105, 0.0
  %v110 = vpack.c.bf16 %v106, %v106
  %v111 = vpack.c.bf16 %v107, %v107
  %v112 = vpack.c.bf16 %v108, %v108
  %v113 = vpack.c.bf16 %v109, %v109
  %114 = vst [vmem:[%s4] sm:$0xf] %v110
  %115 = vst [vmem:[%s4 + $0x4] sm:$0xf] %v111
  %116 = vst [vmem:[%s4 + $0x8] sm:$0xf] %v112
  %117 = vst [vmem:[%s4 + $0xc] sm:$0xf] %v113
  // Predicated region
  $region18: #{_lambda_.28} parent=0 // pred_check
    _
  $region19: #{_lambda_.28} parent=0 // pred_check_branch
    %119 = sbr.rel (0) target = $region21
  $region20: #{_lambda_.28} parent=0 // pred_region
    _
  $region21: #{_lambda_.28} parent=0 // pred_fallthru
    _
  // Predicated region
  $region22: #{_lambda_.28} parent=0 // pred_check
    _
  $region23: #{_lambda_.28} parent=0 // pred_check_branch
    %121 = sbr.rel (0) target = $region25
  $region24: #{_lambda_.28} parent=0 // pred_region
    _
  $region25: #{_lambda_.28} parent=0 // pred_fallthru
    _

// kernel: _lambda_.30
$region0: #{_lambda_.30}
  #allocation0 [shape = 'u32[]', space=smem, size = 0x4, offset = 0x4, fixed_abs, tag = 'smem constant byte address 0x4 - core index']
  #allocation1 [shape = 'u32[72,128]{1,0:T(1,128)}', space=vmem, size = 0x9000, scoped, tag = 'internal scratch']
  %s0 = inlined_call_operand.vmem [shape: bf16[32,128], index: 0, kind: input, shape index: {}]
  %s1 = inlined_call_operand.vmem [shape: bf16[128,128], index: 1, kind: input, shape index: {}]
  %s2 = inlined_call_operand.vmem [shape: f32[1,128], index: 2, kind: input, shape index: {}]
  %s3 = inlined_call_operand.vmem [shape: bf16[32,128], index: 3, kind: output, shape index: {}]
  %s4 = sld [smem:[#allocation0]]
  $region22: #{_lambda_.30} parent=0
    _
  %s6 = ssub.s32 1, %s4
  %s7 = scalar_select 0, %s6, %s4
  // Predicated region
  $region2: #{_lambda_.30} parent=0 // pred_check
    _
  $region3: #{_lambda_.30} parent=0 // pred_check_branch
    %9 = sbr.rel (0) target = $region5
  $region4: #{_lambda_.30} parent=0 // pred_region
    _
  $region5: #{_lambda_.30} parent=0 // pred_fallthru
    _
  // Predicated region
  $region6: #{_lambda_.30} parent=0 // pred_check
    _
  $region7: #{_lambda_.30} parent=0 // pred_check_branch
    %11 = sbr.rel (0) target = $region9
  $region8: #{_lambda_.30} parent=0 // pred_region
    _
  $region9: #{_lambda_.30} parent=0 // pred_fallthru
    _
  // Predicated region
  $region10: #{_lambda_.30} parent=0 // pred_check
    _
  $region11: #{_lambda_.30} parent=0 // pred_check_branch
    %13 = sbr.rel (0) target = $region13
  $region12: #{_lambda_.30} parent=0 // pred_region
    _
  $region13: #{_lambda_.30} parent=0 // pred_fallthru
    _
  %v14 = vld [vmem:[%s0] sm:$0xf]
  %v15 = vld [vmem:[%s0 + $0x4] sm:$0xf]
  %v16 = vld [vmem:[%s0 + $0x8] sm:$0xf]
  %v17 = vld [vmem:[%s0 + $0xc] sm:$0xf]
  %v18 = vld [vmem:[%s1] sm:$0xf]
  %v19 = vld [vmem:[%s1 + $0x4] sm:$0xf]
  %v20 = vld [vmem:[%s1 + $0x8] sm:$0xf]
  %v21 = vld [vmem:[%s1 + $0xc] sm:$0xf]
  %v22 = vld [vmem:[%s1 + $0x10] sm:$0xf]
  %v23 = vld [vmem:[%s1 + $0x14] sm:$0xf]
  %v24 = vld [vmem:[%s1 + $0x18] sm:$0xf]
  %v25 = vld [vmem:[%s1 + $0x1c] sm:$0xf]
  %v26 = vld [vmem:[%s1 + $0x20] sm:$0xf]
  %v27 = vld [vmem:[%s1 + $0x24] sm:$0xf]
  %v28 = vld [vmem:[%s1 + $0x28] sm:$0xf]
  %v29 = vld [vmem:[%s1 + $0x2c] sm:$0xf]
  %v30 = vld [vmem:[%s1 + $0x30] sm:$0xf]
  %v31 = vld [vmem:[%s1 + $0x34] sm:$0xf]
  %v32 = vld [vmem:[%s1 + $0x38] sm:$0xf]
  %v33 = vld [vmem:[%s1 + $0x3c] sm:$0xf]
  %v34 = vld [vmem:[%s2] sm:$0x1]
  %v36 = vperm.slane %v34, 0
  %v42 = vunpack.c.l.b16 %v14
  %v43 = vunpack.c.l.b16 %v15
  %v44 = vunpack.c.l.b16 %v16
  %v45 = vunpack.c.l.b16 %v17
  %v46 = vpack.c.b16 %v43, %v42
  %v47 = vpack.c.b16 %v45, %v44
  %v66 = vunpack.c.l.b16 %v18
  %v67 = vunpack.c.l.b16 %v19
  %v68 = vunpack.c.l.b16 %v20
  %v69 = vunpack.c.l.b16 %v21
  %v70 = vunpack.c.l.b16 %v22
  %v71 = vunpack.c.l.b16 %v23
  %v72 = vunpack.c.l.b16 %v24
  %v73 = vunpack.c.l.b16 %v25
  %v74 = vunpack.c.l.b16 %v26
  %v75 = vunpack.c.l.b16 %v27
  %v76 = vunpack.c.l.b16 %v28
  %v77 = vunpack.c.l.b16 %v29
  %v78 = vunpack.c.l.b16 %v30
  %v79 = vunpack.c.l.b16 %v31
  %v80 = vunpack.c.l.b16 %v32
  %v81 = vunpack.c.l.b16 %v33
  %v82 = vpack.c.b16 %v67, %v66
  %v83 = vpack.c.b16 %v69, %v68
  %v84 = vpack.c.b16 %v71, %v70
  %v85 = vpack.c.b16 %v73, %v72
  %v86 = vpack.c.b16 %v75, %v74
  %v87 = vpack.c.b16 %v77, %v76
  %v88 = vpack.c.b16 %v79, %v78
  %v89 = vpack.c.b16 %v81, %v80
  %98 = vmatpush.bf16.msra.mxu0 %v89
  %99 = vmatpush.bf16.msra.mxu0 %v88
  %100 = vmatpush.bf16.msra.mxu0 %v87
  %101 = vmatpush.bf16.msra.mxu0 %v86
  %102 = vmatpush.bf16.msra.mxu0 %v85
  %103 = vmatpush.bf16.msra.mxu0 %v84
  %104 = vmatpush.bf16.msra.mxu0 %v83
  %105 = vmatpush.bf16.msra.mxu0 %v82
  %106 = vmatmul.bf16.gmra.mxu0 %v46
  %v107 = vpop.f32.mrf.mxu0
  %v108 = vadd.f32 %v36, %v107
  %v109 = vpop.f32.mrf.mxu0
  %v110 = vadd.f32 %v36, %v109
  %111 = vmatmul.bf16.gmra.mxu0 %v47
  %v112 = vpop.f32.mrf.mxu0
  %v113 = vadd.f32 %v36, %v112
  %v114 = vpop.f32.mrf.mxu0
  %v115 = vadd.f32 %v36, %v114
  %116 = vdwg.mxu0
  %v117 = vmax.f32 %v108, 0.0
  %v118 = vmax.f32 %v110, 0.0
  %v119 = vmax.f32 %v113, 0.0
  %v120 = vmax.f32 %v115, 0.0
  %v121 = vpack.c.bf16 %v117, %v117
  %v122 = vpack.c.bf16 %v118, %v118
  %v123 = vpack.c.bf16 %v119, %v119
  %v124 = vpack.c.bf16 %v120, %v120
  %125 = vst [vmem:[%s3] sm:$0xf] %v121
  %126 = vst [vmem:[%s3 + $0x4] sm:$0xf] %v122
  %127 = vst [vmem:[%s3 + $0x8] sm:$0xf] %v123
  %128 = vst [vmem:[%s3 + $0xc] sm:$0xf] %v124
  // Predicated region
  $region14: #{_lambda_.30} parent=0 // pred_check
    _
  $region15: #{_lambda_.30} parent=0 // pred_check_branch
    %130 = sbr.rel (0) target = $region17
  $region16: #{_lambda_.30} parent=0 // pred_region
    _
  $region17: #{_lambda_.30} parent=0 // pred_fallthru
    _
  // Predicated region
  $region18: #{_lambda_.30} parent=0 // pred_check
    _
  $region19: #{_lambda_.30} parent=0 // pred_check_branch
    %132 = sbr.rel (0) target = $region21
  $region20: #{_lambda_.30} parent=0 // pred_region
    _
  $region21: #{_lambda_.30} parent=0 // pred_fallthru
    _

// kernel: _lambda_.27
$region0: #{_lambda_.27}
  #allocation0 [shape = 'u32[]', space=smem, size = 0x4, offset = 0x4, fixed_abs, tag = 'smem constant byte address 0x4 - core index']
  #allocation1 [shape = 'u32[72,128]{1,0:T(1,128)}', space=vmem, size = 0x9000, scoped, tag = 'internal scratch']
  %s0 = inlined_call_operand.vmem [shape: bf16[32,576], index: 0, kind: input, shape index: {}]
  %s1 = inlined_call_operand.vmem [shape: bf16[576,64], index: 1, kind: input, shape index: {}]
  %s2 = inlined_call_operand.vmem [shape: f32[1,64], index: 2, kind: input, shape index: {}]
  %s3 = inlined_call_operand.vmem [shape: bf16[32,64], index: 3, kind: output, shape index: {}]
  %s4 = sld [smem:[#allocation0]]
  $region22: #{_lambda_.27} parent=0
    _
  %s6 = ssub.s32 1, %s4
  %s7 = scalar_select 0, %s6, %s4
  // Predicated region
  $region2: #{_lambda_.27} parent=0 // pred_check
    _
  $region3: #{_lambda_.27} parent=0 // pred_check_branch
    %9 = sbr.rel (0) target = $region5
  $region4: #{_lambda_.27} parent=0 // pred_region
    _
  $region5: #{_lambda_.27} parent=0 // pred_fallthru
    _
  // Predicated region
  $region6: #{_lambda_.27} parent=0 // pred_check
    _
  $region7: #{_lambda_.27} parent=0 // pred_check_branch
    %11 = sbr.rel (0) target = $region9
  $region8: #{_lambda_.27} parent=0 // pred_region
    _
  $region9: #{_lambda_.27} parent=0 // pred_fallthru
    _
  // Predicated region
  $region10: #{_lambda_.27} parent=0 // pred_check
    _
  $region11: #{_lambda_.27} parent=0 // pred_check_branch
    %13 = sbr.rel (0) target = $region13
  $region12: #{_lambda_.27} parent=0 // pred_region
    _
  $region13: #{_lambda_.27} parent=0 // pred_fallthru
    _
  %v15 = vld [vmem:[%s0] sm:$0xff]
  %v16 = vld [vmem:[%s0 + $0x8] sm:$0xff]
  %v17 = vld [vmem:[%s0 + $0x10] sm:$0xf]
  %v18 = vld [vmem:[%s0 + $0x14] sm:$0xff]
  %v19 = vld [vmem:[%s0 + $0x1c] sm:$0xff]
  %v20 = vld [vmem:[%s0 + $0x24] sm:$0xf]
  %v21 = vld [vmem:[%s0 + $0x28] sm:$0xff]
  %v22 = vld [vmem:[%s0 + $0x30] sm:$0xff]
  %v23 = vld [vmem:[%s0 + $0x38] sm:$0xf]
  %v24 = vld [vmem:[%s0 + $0x3c] sm:$0xff]
  %v25 = vld [vmem:[%s0 + $0x44] sm:$0xff]
  %v26 = vld [vmem:[%s0 + $0x4c] sm:$0xf]
  %v27 = vld [vmem:[%s1] sm:$0xf]
  %v28 = vld [vmem:[%s1 + $0x4] sm:$0xf]
  %v29 = vld [vmem:[%s1 + $0x8] sm:$0xf]
  %v30 = vld [vmem:[%s1 + $0xc] sm:$0xf]
  %v31 = vld [vmem:[%s1 + $0x10] sm:$0xf]
  %v32 = vld [vmem:[%s1 + $0x14] sm:$0xf]
  %v33 = vld [vmem:[%s1 + $0x18] sm:$0xf]
  %v34 = vld [vmem:[%s1 + $0x1c] sm:$0xf]
  %v35 = vld [vmem:[%s1 + $0x20] sm:$0xf]
  %v36 = vld [vmem:[%s1 + $0x24] sm:$0xf]
  %v37 = vld [vmem:[%s1 + $0x28] sm:$0xf]
  %v38 = vld [vmem:[%s1 + $0x2c] sm:$0xf]
  %v39 = vld [vmem:[%s1 + $0x30] sm:$0xf]
  %v40 = vld [vmem:[%s1 + $0x34] sm:$0xf]
  %v41 = vld [vmem:[%s1 + $0x38] sm:$0xf]
  %v42 = vld [vmem:[%s1 + $0x3c] sm:$0xf]
  %v43 = vld [vmem:[%s1 + $0x40] sm:$0xf]
  %v44 = vld [vmem:[%s1 + $0x44] sm:$0xf]
  %v45 = vld [vmem:[%s1 + $0x48] sm:$0xf]
  %v46 = vld [vmem:[%s1 + $0x4c] sm:$0xf]
  %v47 = vld [vmem:[%s1 + $0x50] sm:$0xf]
  %v48 = vld [vmem:[%s1 + $0x54] sm:$0xf]
  %v49 = vld [vmem:[%s1 + $0x58] sm:$0xf]
  %v50 = vld [vmem:[%s1 + $0x5c] sm:$0xf]
  %v51 = vld [vmem:[%s1 + $0x60] sm:$0xf]
  %v52 = vld [vmem:[%s1 + $0x64] sm:$0xf]
  %v53 = vld [vmem:[%s1 + $0x68] sm:$0xf]
  %v54 = vld [vmem:[%s1 + $0x6c] sm:$0xf]
  %v55 = vld [vmem:[%s1 + $0x70] sm:$0xf]
  %v56 = vld [vmem:[%s1 + $0x74] sm:$0xf]
  %v57 = vld [vmem:[%s1 + $0x78] sm:$0xf]
  %v58 = vld [vmem:[%s1 + $0x7c] sm:$0xf]
  %v59 = vld [vmem:[%s1 + $0x80] sm:$0xf]
  %v60 = vld [vmem:[%s1 + $0x84] sm:$0xf]
  %v61 = vld [vmem:[%s1 + $0x88] sm:$0xf]
  %v62 = vld [vmem:[%s1 + $0x8c] sm:$0xf]
  %v63 = vld [vmem:[%s1 + $0x90] sm:$0xf]
  %v64 = vld [vmem:[%s1 + $0x94] sm:$0xf]
  %v65 = vld [vmem:[%s1 + $0x98] sm:$0xf]
  %v66 = vld [vmem:[%s1 + $0x9c] sm:$0xf]
  %v67 = vld [vmem:[%s1 + $0xa0] sm:$0xf]
  %v68 = vld [vmem:[%s1 + $0xa4] sm:$0xf]
  %v69 = vld [vmem:[%s1 + $0xa8] sm:$0xf]
  %v70 = vld [vmem:[%s1 + $0xac] sm:$0xf]
  %v71 = vld [vmem:[%s1 + $0xb0] sm:$0xf]
  %v72 = vld [vmem:[%s1 + $0xb4] sm:$0xf]
  %v73 = vld [vmem:[%s1 + $0xb8] sm:$0xf]
  %v74 = vld [vmem:[%s1 + $0xbc] sm:$0xf]
  %v75 = vld [vmem:[%s1 + $0xc0] sm:$0xf]
  %v76 = vld [vmem:[%s1 + $0xc4] sm:$0xf]
  %v77 = vld [vmem:[%s1 + $0xc8] sm:$0xf]
  %v78 = vld [vmem:[%s1 + $0xcc] sm:$0xf]
  %v79 = vld [vmem:[%s1 + $0xd0] sm:$0xf]
  %v80 = vld [vmem:[%s1 + $0xd4] sm:$0xf]
  %v81 = vld [vmem:[%s1 + $0xd8] sm:$0xf]
  %v82 = vld [vmem:[%s1 + $0xdc] sm:$0xf]
  %v83 = vld [vmem:[%s1 + $0xe0] sm:$0xf]
  %v84 = vld [vmem:[%s1 + $0xe4] sm:$0xf]
  %v85 = vld [vmem:[%s1 + $0xe8] sm:$0xf]
  %v86 = vld [vmem:[%s1 + $0xec] sm:$0xf]
  %v87 = vld [vmem:[%s1 + $0xf0] sm:$0xf]
  %v88 = vld [vmem:[%s1 + $0xf4] sm:$0xf]
  %v89 = vld [vmem:[%s1 + $0xf8] sm:$0xf]
  %v90 = vld [vmem:[%s1 + $0xfc] sm:$0xf]
  %v91 = vld [vmem:[%s1 + $0x100] sm:$0xf]
  %v92 = vld [vmem:[%s1 + $0x104] sm:$0xf]
  %v93 = vld [vmem:[%s1 + $0x108] sm:$0xf]
  %v94 = vld [vmem:[%s1 + $0x10c] sm:$0xf]
  %v95 = vld [vmem:[%s1 + $0x110] sm:$0xf]
  %v96 = vld [vmem:[%s1 + $0x114] sm:$0xf]
  %v97 = vld [vmem:[%s1 + $0x118] sm:$0xf]
  %v98 = vld [vmem:[%s1 + $0x11c] sm:$0xf]
  %v99 = vld [vmem:[%s2] sm:$0x1]
  %v101 = vperm.slane %v99, 0
  %v115 = vunpack.c.l.b16 %v15
  %v116 = vunpack.c.h.b16 %v15
  %v117 = vunpack.c.l.b16 %v16
  %v118 = vunpack.c.h.b16 %v16
  %v119 = vunpack.c.l.b16 %v17
  %v120 = vunpack.c.l.b16 %v18
  %v121 = vunpack.c.h.b16 %v18
  %v122 = vunpack.c.l.b16 %v19
  %v123 = vunpack.c.h.b16 %v19
  %v124 = vunpack.c.l.b16 %v20
  %v125 = vunpack.c.l.b16 %v21
  %v126 = vunpack.c.h.b16 %v21
  %v127 = vunpack.c.l.b16 %v22
  %v128 = vunpack.c.h.b16 %v22
  %v129 = vunpack.c.l.b16 %v23
  %v130 = vunpack.c.l.b16 %v24
  %v131 = vunpack.c.h.b16 %v24
  %v132 = vunpack.c.l.b16 %v25
  %v133 = vunpack.c.h.b16 %v25
  %v134 = vunpack.c.l.b16 %v26
  %v135 = vpack.c.b16 %v120, %v115
  %v136 = vpack.c.b16 %v121, %v116
  %v137 = vpack.c.b16 %v122, %v117
  %v138 = vpack.c.b16 %v123, %v118
  %v139 = vpack.c.b16 %v124, %v119
  %v140 = vpack.c.b16 %v130, %v125
  %v141 = vpack.c.b16 %v131, %v126
  %v142 = vpack.c.b16 %v132, %v127
  %v143 = vpack.c.b16 %v133, %v128
  %v144 = vpack.c.b16 %v134, %v129
  %v225 = vunpack.c.l.b16 %v27
  %v226 = vunpack.c.l.b16 %v28
  %v227 = vunpack.c.l.b16 %v29
  %v228 = vunpack.c.l.b16 %v30
  %v229 = vunpack.c.l.b16 %v31
  %v230 = vunpack.c.l.b16 %v32
  %v231 = vunpack.c.l.b16 %v33
  %v232 = vunpack.c.l.b16 %v34
  %v233 = vunpack.c.l.b16 %v35
  %v234 = vunpack.c.l.b16 %v36
  %v235 = vunpack.c.l.b16 %v37
  %v236 = vunpack.c.l.b16 %v38
  %v237 = vunpack.c.l.b16 %v39
  %v238 = vunpack.c.l.b16 %v40
  %v239 = vunpack.c.l.b16 %v41
  %v240 = vunpack.c.l.b16 %v42
  %v241 = vunpack.c.l.b16 %v43
  %v242 = vunpack.c.l.b16 %v44
  %v243 = vunpack.c.l.b16 %v45
  %v244 = vunpack.c.l.b16 %v46
  %v245 = vunpack.c.l.b16 %v47
  %v246 = vunpack.c.l.b16 %v48
  %v247 = vunpack.c.l.b16 %v49
  %v248 = vunpack.c.l.b16 %v50
  %v249 = vunpack.c.l.b16 %v51
  %v250 = vunpack.c.l.b16 %v52
  %v251 = vunpack.c.l.b16 %v53
  %v252 = vunpack.c.l.b16 %v54
  %v253 = vunpack.c.l.b16 %v55
  %v254 = vunpack.c.l.b16 %v56
  %v255 = vunpack.c.l.b16 %v57
  %v256 = vunpack.c.l.b16 %v58
  %v257 = vunpack.c.l.b16 %v59
  %v258 = vunpack.c.l.b16 %v60
  %v259 = vunpack.c.l.b16 %v61
  %v260 = vunpack.c.l.b16 %v62
  %v261 = vunpack.c.l.b16 %v63
  %v262 = vunpack.c.l.b16 %v64
  %v263 = vunpack.c.l.b16 %v65
  %v264 = vunpack.c.l.b16 %v66
  %v265 = vunpack.c.l.b16 %v67
  %v266 = vunpack.c.l.b16 %v68
  %v267 = vunpack.c.l.b16 %v69
  %v268 = vunpack.c.l.b16 %v70
  %v269 = vunpack.c.l.b16 %v71
  %v270 = vunpack.c.l.b16 %v72
  %v271 = vunpack.c.l.b16 %v73
  %v272 = vunpack.c.l.b16 %v74
  %v273 = vunpack.c.l.b16 %v75
  %v274 = vunpack.c.l.b16 %v76
  %v275 = vunpack.c.l.b16 %v77
  %v276 = vunpack.c.l.b16 %v78
  %v277 = vunpack.c.l.b16 %v79
  %v278 = vunpack.c.l.b16 %v80
  %v279 = vunpack.c.l.b16 %v81
  %v280 = vunpack.c.l.b16 %v82
  %v281 = vunpack.c.l.b16 %v83
  %v282 = vunpack.c.l.b16 %v84
  %v283 = vunpack.c.l.b16 %v85
  %v284 = vunpack.c.l.b16 %v86
  %v285 = vunpack.c.l.b16 %v87
  %v286 = vunpack.c.l.b16 %v88
  %v287 = vunpack.c.l.b16 %v89
  %v288 = vunpack.c.l.b16 %v90
  %v289 = vunpack.c.l.b16 %v91
  %v290 = vunpack.c.l.b16 %v92
  %v291 = vunpack.c.l.b16 %v93
  %v292 = vunpack.c.l.b16 %v94
  %v293 = vunpack.c.l.b16 %v95
  %v294 = vunpack.c.l.b16 %v96
  %v295 = vunpack.c.l.b16 %v97
  %v296 = vunpack.c.l.b16 %v98
  %v297 = vpack.c.b16 %v226, %v225
  %v298 = vpack.c.b16 %v228, %v227
  %v299 = vpack.c.b16 %v230, %v229
  %v300 = vpack.c.b16 %v232, %v231
  %v301 = vpack.c.b16 %v234, %v233
  %v302 = vpack.c.b16 %v236, %v235
  %v303 = vpack.c.b16 %v238, %v237
  %v304 = vpack.c.b16 %v240, %v239
  %v305 = vpack.c.b16 %v242, %v241
  %v306 = vpack.c.b16 %v244, %v243
  %v307 = vpack.c.b16 %v246, %v245
  %v308 = vpack.c.b16 %v248, %v247
  %v309 = vpack.c.b16 %v250, %v249
  %v310 = vpack.c.b16 %v252, %v251
  %v311 = vpack.c.b16 %v254, %v253
  %v312 = vpack.c.b16 %v256, %v255
  %v313 = vpack.c.b16 %v258, %v257
  %v314 = vpack.c.b16 %v260, %v259
  %v315 = vpack.c.b16 %v262, %v261
  %v316 = vpack.c.b16 %v264, %v263
  %v317 = vpack.c.b16 %v266, %v265
  %v318 = vpack.c.b16 %v268, %v267
  %v319 = vpack.c.b16 %v270, %v269
  %v320 = vpack.c.b16 %v272, %v271
  %v321 = vpack.c.b16 %v274, %v273
  %v322 = vpack.c.b16 %v276, %v275
  %v323 = vpack.c.b16 %v278, %v277
  %v324 = vpack.c.b16 %v280, %v279
  %v325 = vpack.c.b16 %v282, %v281
  %v326 = vpack.c.b16 %v284, %v283
  %v327 = vpack.c.b16 %v286, %v285
  %v328 = vpack.c.b16 %v288, %v287
  %v329 = vpack.c.b16 %v290, %v289
  %v330 = vpack.c.b16 %v292, %v291
  %v331 = vpack.c.b16 %v294, %v293
  %v332 = vpack.c.b16 %v296, %v295
  %vm369 = vcmask 523264
  %v371 = vsel %vm369, %v139, 0
  %v374 = vsel %vm369, %v144, 0
  %376 = vmatpush.bf16.msra.mxu0 %v304
  %377 = vmatpush.bf16.msra.mxu0 %v303
  %378 = vmatpush.bf16.msra.mxu0 %v302
  %379 = vmatpush.bf16.msra.mxu0 %v301
  %380 = vmatpush.bf16.msra.mxu0 %v300
  %381 = vmatpush.bf16.msra.mxu0 %v299
  %382 = vmatpush.bf16.msra.mxu0 %v298
  %383 = vmatpush.bf16.msra.mxu0 %v297
  %384 = vmatmul.bf16.gmra.mxu0 %v135
  %v385 = vpop.f32.mrf.mxu0
  %v386 = vadd.f32 %v101, %v385
  %v387 = vpop.f32.mrf.mxu0
  %v388 = vadd.f32 %v101, %v387
  %389 = vmatmul.bf16.gmra.mxu0 %v140
  %v390 = vpop.f32.mrf.mxu0
  %v391 = vadd.f32 %v101, %v390
  %v392 = vpop.f32.mrf.mxu0
  %v393 = vadd.f32 %v101, %v392
  %394 = vdwg.mxu0
  %395 = vmatpush.bf16.msra.mxu0 %v312
  %396 = vmatpush.bf16.msra.mxu0 %v311
  %397 = vmatpush.bf16.msra.mxu0 %v310
  %398 = vmatpush.bf16.msra.mxu0 %v309
  %399 = vmatpush.bf16.msra.mxu0 %v308
  %400 = vmatpush.bf16.msra.mxu0 %v307
  %401 = vmatpush.bf16.msra.mxu0 %v306
  %402 = vmatpush.bf16.msra.mxu0 %v305
  %403 = vmatmul.bf16.gmra.mxu0 %v136
  %v404 = vpop.f32.mrf.mxu0
  %v405 = vadd.f32 %v386, %v404
  %v406 = vpop.f32.mrf.mxu0
  %v407 = vadd.f32 %v388, %v406
  %408 = vmatmul.bf16.gmra.mxu0 %v141
  %v409 = vpop.f32.mrf.mxu0
  %v410 = vadd.f32 %v391, %v409
  %v411 = vpop.f32.mrf.mxu0
  %v412 = vadd.f32 %v393, %v411
  %413 = vdwg.mxu0
  %414 = vmatpush.bf16.msra.mxu0 %v320
  %415 = vmatpush.bf16.msra.mxu0 %v319
  %416 = vmatpush.bf16.msra.mxu0 %v318
  %417 = vmatpush.bf16.msra.mxu0 %v317
  %418 = vmatpush.bf16.msra.mxu0 %v316
  %419 = vmatpush.bf16.msra.mxu0 %v315
  %420 = vmatpush.bf16.msra.mxu0 %v314
  %421 = vmatpush.bf16.msra.mxu0 %v313
  %422 = vmatmul.bf16.gmra.mxu0 %v137
  %v423 = vpop.f32.mrf.mxu0
  %v424 = vadd.f32 %v405, %v423
  %v425 = vpop.f32.mrf.mxu0
  %v426 = vadd.f32 %v407, %v425
  %427 = vmatmul.bf16.gmra.mxu0 %v142
  %v428 = vpop.f32.mrf.mxu0
  %v429 = vadd.f32 %v410, %v428
  %v430 = vpop.f32.mrf.mxu0
  %v431 = vadd.f32 %v412, %v430
  %432 = vdwg.mxu0
  %433 = vmatpush.bf16.msra.mxu0 %v328
  %434 = vmatpush.bf16.msra.mxu0 %v327
  %435 = vmatpush.bf16.msra.mxu0 %v326
  %436 = vmatpush.bf16.msra.mxu0 %v325
  %437 = vmatpush.bf16.msra.mxu0 %v324
  %438 = vmatpush.bf16.msra.mxu0 %v323
  %439 = vmatpush.bf16.msra.mxu0 %v322
  %440 = vmatpush.bf16.msra.mxu0 %v321
  %441 = vmatmul.bf16.gmra.mxu0 %v138
  %v442 = vpop.f32.mrf.mxu0
  %v443 = vadd.f32 %v424, %v442
  %v444 = vpop.f32.mrf.mxu0
  %v445 = vadd.f32 %v426, %v444
  %446 = vmatmul.bf16.gmra.mxu0 %v143
  %v447 = vpop.f32.mrf.mxu0
  %v448 = vadd.f32 %v429, %v447
  %v449 = vpop.f32.mrf.mxu0
  %v450 = vadd.f32 %v431, %v449
  %451 = vdwg.mxu0
  %452 = vmatpush.bf16.msra.mxu0 0
  %453 = vmatpush.bf16.msra.mxu0 0
  %454 = vmatpush.bf16.msra.mxu0 0
  %455 = vmatpush.bf16.msra.mxu0 0
  %456 = vmatpush.bf16.msra.mxu0 %v332
  %457 = vmatpush.bf16.msra.mxu0 %v331
  %458 = vmatpush.bf16.msra.mxu0 %v330
  %459 = vmatpush.bf16.msra.mxu0 %v329
  %460 = vmatmul.bf16.gmra.mxu0 %v371
  %v461 = vpop.f32.mrf.mxu0
  %v462 = vadd.f32 %v443, %v461
  %v463 = vpop.f32.mrf.mxu0
  %v464 = vadd.f32 %v445, %v463
  %465 = vmatmul.bf16.gmra.mxu0 %v374
  %v466 = vpop.f32.mrf.mxu0
  %v467 = vadd.f32 %v448, %v466
  %v468 = vpop.f32.mrf.mxu0
  %v469 = vadd.f32 %v450, %v468
  %470 = vdwg.mxu0
  %v471 = vmax.f32 %v462, 0.0
  %v472 = vmax.f32 %v464, 0.0
  %v473 = vmax.f32 %v467, 0.0
  %v474 = vmax.f32 %v469, 0.0
  %v475 = vpack.c.bf16 %v471, %v471
  %v476 = vpack.c.bf16 %v472, %v472
  %v477 = vpack.c.bf16 %v473, %v473
  %v478 = vpack.c.bf16 %v474, %v474
  %vm479 = vcmask 519168
  %480 = vst.msk [vmem:[%s3] sm:$0xf] %vm479, %v475
  %481 = vst.msk [vmem:[%s3 + $0x4] sm:$0xf] %vm479, %v476
  %482 = vst.msk [vmem:[%s3 + $0x8] sm:$0xf] %vm479, %v477
  %483 = vst.msk [vmem:[%s3 + $0xc] sm:$0xf] %vm479, %v478
  // Predicated region
  $region14: #{_lambda_.27} parent=0 // pred_check
    _
  $region15: #{_lambda_.27} parent=0 // pred_check_branch
    %485 = sbr.rel (0) target = $region17
  $region16: #{_lambda_.27} parent=0 // pred_region
    _
  $region17: #{_lambda_.27} parent=0 // pred_fallthru
    _
  // Predicated region
  $region18: #{_lambda_.27} parent=0 // pred_check
    _
  $region19: #{_lambda_.27} parent=0 // pred_check_branch
    %487 = sbr.rel (0) target = $region21
  $region20: #{_lambda_.27} parent=0 // pred_region
    _
  $region21: #{_lambda_.27} parent=0 // pred_fallthru
    _

// kernel: _lambda_.29
$region0: #{_lambda_.29}
  #allocation0 [shape = 'u32[]', space=smem, size = 0x4, offset = 0x4, fixed_abs, tag = 'smem constant byte address 0x4 - core index']
  #allocation1 [shape = 'u32[72,128]{1,0:T(1,128)}', space=vmem, size = 0x9000, scoped, tag = 'internal scratch']
  %s0 = inlined_call_operand.vmem [shape: bf16[8,128], index: 0, kind: input, shape index: {}]
  %s1 = inlined_call_operand.vmem [shape: bf16[128,256], index: 1, kind: input, shape index: {}]
  %s2 = inlined_call_operand.vmem [shape: f32[1,256], index: 2, kind: input, shape index: {}]
  %s3 = inlined_call_operand.vmem [shape: bf16[8,256], index: 3, kind: output, shape index: {}]
  %s4 = sld [smem:[#allocation0]]
  $region22: #{_lambda_.29} parent=0
    _
  %s6 = ssub.s32 1, %s4
  %s7 = scalar_select 0, %s6, %s4
  // Predicated region
  $region2: #{_lambda_.29} parent=0 // pred_check
    _
  $region3: #{_lambda_.29} parent=0 // pred_check_branch
    %9 = sbr.rel (0) target = $region5
  $region4: #{_lambda_.29} parent=0 // pred_region
    _
  $region5: #{_lambda_.29} parent=0 // pred_fallthru
    _
  // Predicated region
  $region6: #{_lambda_.29} parent=0 // pred_check
    _
  $region7: #{_lambda_.29} parent=0 // pred_check_branch
    %11 = sbr.rel (0) target = $region9
  $region8: #{_lambda_.29} parent=0 // pred_region
    _
  $region9: #{_lambda_.29} parent=0 // pred_fallthru
    _
  // Predicated region
  $region10: #{_lambda_.29} parent=0 // pred_check
    _
  $region11: #{_lambda_.29} parent=0 // pred_check_branch
    %13 = sbr.rel (0) target = $region13
  $region12: #{_lambda_.29} parent=0 // pred_region
    _
  $region13: #{_lambda_.29} parent=0 // pred_fallthru
    _
  %v14 = vld [vmem:[%s0] sm:$0xf]
  %v15 = vld [vmem:[%s1] sm:$0xff]
  %v16 = vld [vmem:[%s1 + $0x8] sm:$0xff]
  %v17 = vld [vmem:[%s1 + $0x10] sm:$0xff]
  %v18 = vld [vmem:[%s1 + $0x18] sm:$0xff]
  %v19 = vld [vmem:[%s1 + $0x20] sm:$0xff]
  %v20 = vld [vmem:[%s1 + $0x28] sm:$0xff]
  %v21 = vld [vmem:[%s1 + $0x30] sm:$0xff]
  %v22 = vld [vmem:[%s1 + $0x38] sm:$0xff]
  %v23 = vld [vmem:[%s1 + $0x40] sm:$0xff]
  %v24 = vld [vmem:[%s1 + $0x48] sm:$0xff]
  %v25 = vld [vmem:[%s1 + $0x50] sm:$0xff]
  %v26 = vld [vmem:[%s1 + $0x58] sm:$0xff]
  %v27 = vld [vmem:[%s1 + $0x60] sm:$0xff]
  %v28 = vld [vmem:[%s1 + $0x68] sm:$0xff]
  %v29 = vld [vmem:[%s1 + $0x70] sm:$0xff]
  %v30 = vld [vmem:[%s1 + $0x78] sm:$0xff]
  %v31 = vld [vmem:[%s2] sm:$0x3]
  %v33 = vperm.slane %v31, 0
  %v34 = vperm.slane %v31, 1
  %v53 = vunpack.c.l.b16 %v15
  %v54 = vunpack.c.h.b16 %v15
  %v55 = vunpack.c.l.b16 %v16
  %v56 = vunpack.c.h.b16 %v16
  %v57 = vunpack.c.l.b16 %v17
  %v58 = vunpack.c.h.b16 %v17
  %v59 = vunpack.c.l.b16 %v18
  %v60 = vunpack.c.h.b16 %v18
  %v61 = vunpack.c.l.b16 %v19
  %v62 = vunpack.c.h.b16 %v19
  %v63 = vunpack.c.l.b16 %v20
  %v64 = vunpack.c.h.b16 %v20
  %v65 = vunpack.c.l.b16 %v21
  %v66 = vunpack.c.h.b16 %v21
  %v67 = vunpack.c.l.b16 %v22
  %v68 = vunpack.c.h.b16 %v22
  %v69 = vunpack.c.l.b16 %v23
  %v70 = vunpack.c.h.b16 %v23
  %v71 = vunpack.c.l.b16 %v24
  %v72 = vunpack.c.h.b16 %v24
  %v73 = vunpack.c.l.b16 %v25
  %v74 = vunpack.c.h.b16 %v25
  %v75 = vunpack.c.l.b16 %v26
  %v76 = vunpack.c.h.b16 %v26
  %v77 = vunpack.c.l.b16 %v27
  %v78 = vunpack.c.h.b16 %v27
  %v79 = vunpack.c.l.b16 %v28
  %v80 = vunpack.c.h.b16 %v28
  %v81 = vunpack.c.l.b16 %v29
  %v82 = vunpack.c.h.b16 %v29
  %v83 = vunpack.c.l.b16 %v30
  %v84 = vunpack.c.h.b16 %v30
  %v85 = vpack.c.b16 %v55, %v53
  %v86 = vpack.c.b16 %v56, %v54
  %v87 = vpack.c.b16 %v59, %v57
  %v88 = vpack.c.b16 %v60, %v58
  %v89 = vpack.c.b16 %v63, %v61
  %v90 = vpack.c.b16 %v64, %v62
  %v91 = vpack.c.b16 %v67, %v65
  %v92 = vpack.c.b16 %v68, %v66
  %v93 = vpack.c.b16 %v71, %v69
  %v94 = vpack.c.b16 %v72, %v70
  %v95 = vpack.c.b16 %v75, %v73
  %v96 = vpack.c.b16 %v76, %v74
  %v97 = vpack.c.b16 %v79, %v77
  %v98 = vpack.c.b16 %v80, %v78
  %v99 = vpack.c.b16 %v83, %v81
  %v100 = vpack.c.b16 %v84, %v82
  %117 = vmatpush.bf16.msra.mxu0 %v99
  %118 = vmatpush.bf16.msra.mxu0 %v97
  %119 = vmatpush.bf16.msra.mxu0 %v95
  %120 = vmatpush.bf16.msra.mxu0 %v93
  %121 = vmatpush.bf16.msra.mxu0 %v91
  %122 = vmatpush.bf16.msra.mxu0 %v89
  %123 = vmatpush.bf16.msra.mxu0 %v87
  %124 = vmatpush.bf16.msra.mxu0 %v85
  %125 = vmatmul.bf16.gmra.mxu0 %v14
  %v126 = vpop.f32.mrf.mxu0
  %v127 = vadd.f32 %v33, %v126
  %v128 = vpop.f32.mrf.mxu0
  %129 = vdwg.mxu0
  %130 = vmatpush.bf16.msra.mxu0 %v100
  %131 = vmatpush.bf16.msra.mxu0 %v98
  %132 = vmatpush.bf16.msra.mxu0 %v96
  %133 = vmatpush.bf16.msra.mxu0 %v94
  %134 = vmatpush.bf16.msra.mxu0 %v92
  %135 = vmatpush.bf16.msra.mxu0 %v90
  %136 = vmatpush.bf16.msra.mxu0 %v88
  %137 = vmatpush.bf16.msra.mxu0 %v86
  %138 = vmatmul.bf16.gmra.mxu0 %v14
  %v139 = vpop.f32.mrf.mxu0
  %v140 = vadd.f32 %v34, %v139
  %v141 = vpop.f32.mrf.mxu0
  %142 = vdwg.mxu0
  %v143 = vpack.c.bf16 %v140, %v127
  %144 = vst [vmem:[%s3] sm:$0xff] %v143
  // Predicated region
  $region14: #{_lambda_.29} parent=0 // pred_check
    _
  $region15: #{_lambda_.29} parent=0 // pred_check_branch
    %146 = sbr.rel (0) target = $region17
  $region16: #{_lambda_.29} parent=0 // pred_region
    _
  $region17: #{_lambda_.29} parent=0 // pred_fallthru
    _
  // Predicated region
  $region18: #{_lambda_.29} parent=0 // pred_check
    _
  $region19: #{_lambda_.29} parent=0 // pred_check_branch
    %148 = sbr.rel (0) target = $region21
  $region20: #{_lambda_.29} parent=0 // pred_region
    _
  $region21: #{_lambda_.29} parent=0 // pred_fallthru
    _

// kernel: _lambda_.32
$region0: #{_lambda_.32}
  #allocation0 [shape = 'u32[]', space=smem, size = 0x4, offset = 0x4, fixed_abs, tag = 'smem constant byte address 0x4 - core index']
  #allocation1 [shape = 'u32[72,128]{1,0:T(1,128)}', space=vmem, size = 0x9000, scoped, tag = 'internal scratch']
  %s0 = inlined_call_operand.vmem [shape: bf16[8,128], index: 0, kind: input, shape index: {}]
  %s1 = inlined_call_operand.vmem [shape: bf16[128,256], index: 1, kind: input, shape index: {}]
  %s2 = inlined_call_operand.vmem [shape: f32[1,256], index: 2, kind: input, shape index: {}]
  %s3 = inlined_call_operand.vmem [shape: bf16[8,256], index: 3, kind: input, shape index: {}]
  %s4 = inlined_call_operand.vmem [shape: bf16[8,256], index: 4, kind: output, shape index: {}]
  %s5 = sld [smem:[#allocation0]]
  $region26: #{_lambda_.32} parent=0
    _
  %s7 = ssub.s32 1, %s5
  %s8 = scalar_select 0, %s7, %s5
  // Predicated region
  $region2: #{_lambda_.32} parent=0 // pred_check
    _
  $region3: #{_lambda_.32} parent=0 // pred_check_branch
    %10 = sbr.rel (0) target = $region5
  $region4: #{_lambda_.32} parent=0 // pred_region
    _
  $region5: #{_lambda_.32} parent=0 // pred_fallthru
    _
  // Predicated region
  $region6: #{_lambda_.32} parent=0 // pred_check
    _
  $region7: #{_lambda_.32} parent=0 // pred_check_branch
    %12 = sbr.rel (0) target = $region9
  $region8: #{_lambda_.32} parent=0 // pred_region
    _
  $region9: #{_lambda_.32} parent=0 // pred_fallthru
    _
  // Predicated region
  $region10: #{_lambda_.32} parent=0 // pred_check
    _
  $region11: #{_lambda_.32} parent=0 // pred_check_branch
    %14 = sbr.rel (0) target = $region13
  $region12: #{_lambda_.32} parent=0 // pred_region
    _
  $region13: #{_lambda_.32} parent=0 // pred_fallthru
    _
  // Predicated region
  $region14: #{_lambda_.32} parent=0 // pred_check
    _
  $region15: #{_lambda_.32} parent=0 // pred_check_branch
    %16 = sbr.rel (0) target = $region17
  $region16: #{_lambda_.32} parent=0 // pred_region
    _
  $region17: #{_lambda_.32} parent=0 // pred_fallthru
    _
  %v17 = vld [vmem:[%s0] sm:$0xf]
  %v18 = vld [vmem:[%s1] sm:$0xff]
  %v19 = vld [vmem:[%s1 + $0x8] sm:$0xff]
  %v20 = vld [vmem:[%s1 + $0x10] sm:$0xff]
  %v21 = vld [vmem:[%s1 + $0x18] sm:$0xff]
  %v22 = vld [vmem:[%s1 + $0x20] sm:$0xff]
  %v23 = vld [vmem:[%s1 + $0x28] sm:$0xff]
  %v24 = vld [vmem:[%s1 + $0x30] sm:$0xff]
  %v25 = vld [vmem:[%s1 + $0x38] sm:$0xff]
  %v26 = vld [vmem:[%s1 + $0x40] sm:$0xff]
  %v27 = vld [vmem:[%s1 + $0x48] sm:$0xff]
  %v28 = vld [vmem:[%s1 + $0x50] sm:$0xff]
  %v29 = vld [vmem:[%s1 + $0x58] sm:$0xff]
  %v30 = vld [vmem:[%s1 + $0x60] sm:$0xff]
  %v31 = vld [vmem:[%s1 + $0x68] sm:$0xff]
  %v32 = vld [vmem:[%s1 + $0x70] sm:$0xff]
  %v33 = vld [vmem:[%s1 + $0x78] sm:$0xff]
  %v34 = vld [vmem:[%s2] sm:$0x3]
  %v36 = vperm.slane %v34, 0
  %v37 = vperm.slane %v34, 1
  %v56 = vunpack.c.l.b16 %v18
  %v57 = vunpack.c.h.b16 %v18
  %v58 = vunpack.c.l.b16 %v19
  %v59 = vunpack.c.h.b16 %v19
  %v60 = vunpack.c.l.b16 %v20
  %v61 = vunpack.c.h.b16 %v20
  %v62 = vunpack.c.l.b16 %v21
  %v63 = vunpack.c.h.b16 %v21
  %v64 = vunpack.c.l.b16 %v22
  %v65 = vunpack.c.h.b16 %v22
  %v66 = vunpack.c.l.b16 %v23
  %v67 = vunpack.c.h.b16 %v23
  %v68 = vunpack.c.l.b16 %v24
  %v69 = vunpack.c.h.b16 %v24
  %v70 = vunpack.c.l.b16 %v25
  %v71 = vunpack.c.h.b16 %v25
  %v72 = vunpack.c.l.b16 %v26
  %v73 = vunpack.c.h.b16 %v26
  %v74 = vunpack.c.l.b16 %v27
  %v75 = vunpack.c.h.b16 %v27
  %v76 = vunpack.c.l.b16 %v28
  %v77 = vunpack.c.h.b16 %v28
  %v78 = vunpack.c.l.b16 %v29
  %v79 = vunpack.c.h.b16 %v29
  %v80 = vunpack.c.l.b16 %v30
  %v81 = vunpack.c.h.b16 %v30
  %v82 = vunpack.c.l.b16 %v31
  %v83 = vunpack.c.h.b16 %v31
  %v84 = vunpack.c.l.b16 %v32
  %v85 = vunpack.c.h.b16 %v32
  %v86 = vunpack.c.l.b16 %v33
  %v87 = vunpack.c.h.b16 %v33
  %v88 = vpack.c.b16 %v58, %v56
  %v89 = vpack.c.b16 %v59, %v57
  %v90 = vpack.c.b16 %v62, %v60
  %v91 = vpack.c.b16 %v63, %v61
  %v92 = vpack.c.b16 %v66, %v64
  %v93 = vpack.c.b16 %v67, %v65
  %v94 = vpack.c.b16 %v70, %v68
  %v95 = vpack.c.b16 %v71, %v69
  %v96 = vpack.c.b16 %v74, %v72
  %v97 = vpack.c.b16 %v75, %v73
  %v98 = vpack.c.b16 %v78, %v76
  %v99 = vpack.c.b16 %v79, %v77
  %v100 = vpack.c.b16 %v82, %v80
  %v101 = vpack.c.b16 %v83, %v81
  %v102 = vpack.c.b16 %v86, %v84
  %v103 = vpack.c.b16 %v87, %v85
  %120 = vmatpush.bf16.msra.mxu0 %v102
  %121 = vmatpush.bf16.msra.mxu0 %v100
  %122 = vmatpush.bf16.msra.mxu0 %v98
  %123 = vmatpush.bf16.msra.mxu0 %v96
  %124 = vmatpush.bf16.msra.mxu0 %v94
  %125 = vmatpush.bf16.msra.mxu0 %v92
  %126 = vmatpush.bf16.msra.mxu0 %v90
  %127 = vmatpush.bf16.msra.mxu0 %v88
  %128 = vmatmul.bf16.gmra.mxu0 %v17
  %v129 = vpop.f32.mrf.mxu0
  %v130 = vadd.f32 %v36, %v129
  %v131 = vpop.f32.mrf.mxu0
  %132 = vdwg.mxu0
  %133 = vmatpush.bf16.msra.mxu0 %v103
  %134 = vmatpush.bf16.msra.mxu0 %v101
  %135 = vmatpush.bf16.msra.mxu0 %v99
  %136 = vmatpush.bf16.msra.mxu0 %v97
  %137 = vmatpush.bf16.msra.mxu0 %v95
  %138 = vmatpush.bf16.msra.mxu0 %v93
  %139 = vmatpush.bf16.msra.mxu0 %v91
  %140 = vmatpush.bf16.msra.mxu0 %v89
  %141 = vmatmul.bf16.gmra.mxu0 %v17
  %v142 = vpop.f32.mrf.mxu0
  %v143 = vadd.f32 %v37, %v142
  %v144 = vpop.f32.mrf.mxu0
  %145 = vdwg.mxu0
  %v146 = vld [vmem:[%s3] sm:$0xff]
  %v147 = vunpack.c.l.bf16 %v146
  %v148 = vunpack.c.h.bf16 %v146
  %v149 = vadd.f32 %v130, %v147
  %v150 = vadd.f32 %v143, %v148
  %v151 = vmax.f32 %v149, 0.0
  %v152 = vmax.f32 %v150, 0.0
  %v153 = vpack.c.bf16 %v152, %v151
  %154 = vst [vmem:[%s4] sm:$0xff] %v153
  // Predicated region
  $region18: #{_lambda_.32} parent=0 // pred_check
    _
  $region19: #{_lambda_.32} parent=0 // pred_check_branch
    %156 = sbr.rel (0) target = $region21
  $region20: #{_lambda_.32} parent=0 // pred_region
    _
  $region21: #{_lambda_.32} parent=0 // pred_fallthru
    _
  // Predicated region
  $region22: #{_lambda_.32} parent=0 // pred_check
    _
  $region23: #{_lambda_.32} parent=0 // pred_check_branch
    %158 = sbr.rel (0) target = $region25
  $region24: #{_lambda_.32} parent=0 // pred_region
    _
  $region25: #{_lambda_.32} parent=0 // pred_fallthru
    _

// kernel: _lambda_.34
$region0: #{_lambda_.34}
  #allocation0 [shape = 'u32[]', space=smem, size = 0x4, offset = 0x4, fixed_abs, tag = 'smem constant byte address 0x4 - core index']
  #allocation1 [shape = 'u32[72,128]{1,0:T(1,128)}', space=vmem, size = 0x9000, scoped, tag = 'internal scratch']
  %s0 = inlined_call_operand.vmem [shape: bf16[8,256], index: 0, kind: input, shape index: {}]
  %s1 = inlined_call_operand.vmem [shape: bf16[256,256], index: 1, kind: input, shape index: {}]
  %s2 = inlined_call_operand.vmem [shape: f32[1,256], index: 2, kind: input, shape index: {}]
  %s3 = inlined_call_operand.vmem [shape: bf16[8,256], index: 3, kind: output, shape index: {}]
  %s4 = sld [smem:[#allocation0]]
  $region22: #{_lambda_.34} parent=0
    _
  %s6 = ssub.s32 1, %s4
  %s7 = scalar_select 0, %s6, %s4
  // Predicated region
  $region2: #{_lambda_.34} parent=0 // pred_check
    _
  $region3: #{_lambda_.34} parent=0 // pred_check_branch
    %9 = sbr.rel (0) target = $region5
  $region4: #{_lambda_.34} parent=0 // pred_region
    _
  $region5: #{_lambda_.34} parent=0 // pred_fallthru
    _
  // Predicated region
  $region6: #{_lambda_.34} parent=0 // pred_check
    _
  $region7: #{_lambda_.34} parent=0 // pred_check_branch
    %11 = sbr.rel (0) target = $region9
  $region8: #{_lambda_.34} parent=0 // pred_region
    _
  $region9: #{_lambda_.34} parent=0 // pred_fallthru
    _
  // Predicated region
  $region10: #{_lambda_.34} parent=0 // pred_check
    _
  $region11: #{_lambda_.34} parent=0 // pred_check_branch
    %13 = sbr.rel (0) target = $region13
  $region12: #{_lambda_.34} parent=0 // pred_region
    _
  $region13: #{_lambda_.34} parent=0 // pred_fallthru
    _
  %v14 = vld [vmem:[%s0] sm:$0xff]
  %v15 = vld [vmem:[%s1] sm:$0xff]
  %v16 = vld [vmem:[%s1 + $0x8] sm:$0xff]
  %v17 = vld [vmem:[%s1 + $0x10] sm:$0xff]
  %v18 = vld [vmem:[%s1 + $0x18] sm:$0xff]
  %v19 = vld [vmem:[%s1 + $0x20] sm:$0xff]
  %v20 = vld [vmem:[%s1 + $0x28] sm:$0xff]
  %v21 = vld [vmem:[%s1 + $0x30] sm:$0xff]
  %v22 = vld [vmem:[%s1 + $0x38] sm:$0xff]
  %v23 = vld [vmem:[%s1 + $0x40] sm:$0xff]
  %v24 = vld [vmem:[%s1 + $0x48] sm:$0xff]
  %v25 = vld [vmem:[%s1 + $0x50] sm:$0xff]
  %v26 = vld [vmem:[%s1 + $0x58] sm:$0xff]
  %v27 = vld [vmem:[%s1 + $0x60] sm:$0xff]
  %v28 = vld [vmem:[%s1 + $0x68] sm:$0xff]
  %v29 = vld [vmem:[%s1 + $0x70] sm:$0xff]
  %v30 = vld [vmem:[%s1 + $0x78] sm:$0xff]
  %v31 = vld [vmem:[%s1 + $0x80] sm:$0xff]
  %v32 = vld [vmem:[%s1 + $0x88] sm:$0xff]
  %v33 = vld [vmem:[%s1 + $0x90] sm:$0xff]
  %v34 = vld [vmem:[%s1 + $0x98] sm:$0xff]
  %v35 = vld [vmem:[%s1 + $0xa0] sm:$0xff]
  %v36 = vld [vmem:[%s1 + $0xa8] sm:$0xff]
  %v37 = vld [vmem:[%s1 + $0xb0] sm:$0xff]
  %v38 = vld [vmem:[%s1 + $0xb8] sm:$0xff]
  %v39 = vld [vmem:[%s1 + $0xc0] sm:$0xff]
  %v40 = vld [vmem:[%s1 + $0xc8] sm:$0xff]
  %v41 = vld [vmem:[%s1 + $0xd0] sm:$0xff]
  %v42 = vld [vmem:[%s1 + $0xd8] sm:$0xff]
  %v43 = vld [vmem:[%s1 + $0xe0] sm:$0xff]
  %v44 = vld [vmem:[%s1 + $0xe8] sm:$0xff]
  %v45 = vld [vmem:[%s1 + $0xf0] sm:$0xff]
  %v46 = vld [vmem:[%s1 + $0xf8] sm:$0xff]
  %v47 = vld [vmem:[%s2] sm:$0x3]
  %v49 = vperm.slane %v47, 0
  %v50 = vperm.slane %v47, 1
  %v54 = vunpack.c.l.b16 %v14
  %v55 = vunpack.c.h.b16 %v14
  %v56 = vpack.c.b16 %v54, %v54
  %v57 = vpack.c.b16 %v55, %v55
  %v92 = vunpack.c.l.b16 %v15
  %v93 = vunpack.c.h.b16 %v15
  %v94 = vunpack.c.l.b16 %v16
  %v95 = vunpack.c.h.b16 %v16
  %v96 = vunpack.c.l.b16 %v17
  %v97 = vunpack.c.h.b16 %v17
  %v98 = vunpack.c.l.b16 %v18
  %v99 = vunpack.c.h.b16 %v18
  %v100 = vunpack.c.l.b16 %v19
  %v101 = vunpack.c.h.b16 %v19
  %v102 = vunpack.c.l.b16 %v20
  %v103 = vunpack.c.h.b16 %v20
  %v104 = vunpack.c.l.b16 %v21
  %v105 = vunpack.c.h.b16 %v21
  %v106 = vunpack.c.l.b16 %v22
  %v107 = vunpack.c.h.b16 %v22
  %v108 = vunpack.c.l.b16 %v23
  %v109 = vunpack.c.h.b16 %v23
  %v110 = vunpack.c.l.b16 %v24
  %v111 = vunpack.c.h.b16 %v24
  %v112 = vunpack.c.l.b16 %v25
  %v113 = vunpack.c.h.b16 %v25
  %v114 = vunpack.c.l.b16 %v26
  %v115 = vunpack.c.h.b16 %v26
  %v116 = vunpack.c.l.b16 %v27
  %v117 = vunpack.c.h.b16 %v27
  %v118 = vunpack.c.l.b16 %v28
  %v119 = vunpack.c.h.b16 %v28
  %v120 = vunpack.c.l.b16 %v29
  %v121 = vunpack.c.h.b16 %v29
  %v122 = vunpack.c.l.b16 %v30
  %v123 = vunpack.c.h.b16 %v30
  %v124 = vunpack.c.l.b16 %v31
  %v125 = vunpack.c.h.b16 %v31
  %v126 = vunpack.c.l.b16 %v32
  %v127 = vunpack.c.h.b16 %v32
  %v128 = vunpack.c.l.b16 %v33
  %v129 = vunpack.c.h.b16 %v33
  %v130 = vunpack.c.l.b16 %v34
  %v131 = vunpack.c.h.b16 %v34
  %v132 = vunpack.c.l.b16 %v35
  %v133 = vunpack.c.h.b16 %v35
  %v134 = vunpack.c.l.b16 %v36
  %v135 = vunpack.c.h.b16 %v36
  %v136 = vunpack.c.l.b16 %v37
  %v137 = vunpack.c.h.b16 %v37
  %v138 = vunpack.c.l.b16 %v38
  %v139 = vunpack.c.h.b16 %v38
  %v140 = vunpack.c.l.b16 %v39
  %v141 = vunpack.c.h.b16 %v39
  %v142 = vunpack.c.l.b16 %v40
  %v143 = vunpack.c.h.b16 %v40
  %v144 = vunpack.c.l.b16 %v41
  %v145 = vunpack.c.h.b16 %v41
  %v146 = vunpack.c.l.b16 %v42
  %v147 = vunpack.c.h.b16 %v42
  %v148 = vunpack.c.l.b16 %v43
  %v149 = vunpack.c.h.b16 %v43
  %v150 = vunpack.c.l.b16 %v44
  %v151 = vunpack.c.h.b16 %v44
  %v152 = vunpack.c.l.b16 %v45
  %v153 = vunpack.c.h.b16 %v45
  %v154 = vunpack.c.l.b16 %v46
  %v155 = vunpack.c.h.b16 %v46
  %v156 = vpack.c.b16 %v94, %v92
  %v157 = vpack.c.b16 %v95, %v93
  %v158 = vpack.c.b16 %v98, %v96
  %v159 = vpack.c.b16 %v99, %v97
  %v160 = vpack.c.b16 %v102, %v100
  %v161 = vpack.c.b16 %v103, %v101
  %v162 = vpack.c.b16 %v106, %v104
  %v163 = vpack.c.b16 %v107, %v105
  %v164 = vpack.c.b16 %v110, %v108
  %v165 = vpack.c.b16 %v111, %v109
  %v166 = vpack.c.b16 %v114, %v112
  %v167 = vpack.c.b16 %v115, %v113
  %v168 = vpack.c.b16 %v118, %v116
  %v169 = vpack.c.b16 %v119, %v117
  %v170 = vpack.c.b16 %v122, %v120
  %v171 = vpack.c.b16 %v123, %v121
  %v172 = vpack.c.b16 %v126, %v124
  %v173 = vpack.c.b16 %v127, %v125
  %v174 = vpack.c.b16 %v130, %v128
  %v175 = vpack.c.b16 %v131, %v129
  %v176 = vpack.c.b16 %v134, %v132
  %v177 = vpack.c.b16 %v135, %v133
  %v178 = vpack.c.b16 %v138, %v136
  %v179 = vpack.c.b16 %v139, %v137
  %v180 = vpack.c.b16 %v142, %v140
  %v181 = vpack.c.b16 %v143, %v141
  %v182 = vpack.c.b16 %v146, %v144
  %v183 = vpack.c.b16 %v147, %v145
  %v184 = vpack.c.b16 %v150, %v148
  %v185 = vpack.c.b16 %v151, %v149
  %v186 = vpack.c.b16 %v154, %v152
  %v187 = vpack.c.b16 %v155, %v153
  %220 = vmatpush.bf16.msra.mxu0 %v170
  %221 = vmatpush.bf16.msra.mxu0 %v168
  %222 = vmatpush.bf16.msra.mxu0 %v166
  %223 = vmatpush.bf16.msra.mxu0 %v164
  %224 = vmatpush.bf16.msra.mxu0 %v162
  %225 = vmatpush.bf16.msra.mxu0 %v160
  %226 = vmatpush.bf16.msra.mxu0 %v158
  %227 = vmatpush.bf16.msra.mxu0 %v156
  %228 = vmatmul.bf16.gmra.mxu0 %v56
  %v229 = vpop.f32.mrf.mxu0
  %v230 = vadd.f32 %v49, %v229
  %v231 = vpop.f32.mrf.mxu0
  %232 = vdwg.mxu0
  %233 = vmatpush.bf16.msra.mxu0 %v186
  %234 = vmatpush.bf16.msra.mxu0 %v184
  %235 = vmatpush.bf16.msra.mxu0 %v182
  %236 = vmatpush.bf16.msra.mxu0 %v180
  %237 = vmatpush.bf16.msra.mxu0 %v178
  %238 = vmatpush.bf16.msra.mxu0 %v176
  %239 = vmatpush.bf16.msra.mxu0 %v174
  %240 = vmatpush.bf16.msra.mxu0 %v172
  %241 = vmatmul.bf16.gmra.mxu0 %v57
  %v242 = vpop.f32.mrf.mxu0
  %v243 = vadd.f32 %v230, %v242
  %v244 = vpop.f32.mrf.mxu0
  %245 = vdwg.mxu0
  %246 = vmatpush.bf16.msra.mxu0 %v171
  %247 = vmatpush.bf16.msra.mxu0 %v169
  %248 = vmatpush.bf16.msra.mxu0 %v167
  %249 = vmatpush.bf16.msra.mxu0 %v165
  %250 = vmatpush.bf16.msra.mxu0 %v163
  %251 = vmatpush.bf16.msra.mxu0 %v161
  %252 = vmatpush.bf16.msra.mxu0 %v159
  %253 = vmatpush.bf16.msra.mxu0 %v157
  %254 = vmatmul.bf16.gmra.mxu0 %v56
  %v255 = vpop.f32.mrf.mxu0
  %v256 = vadd.f32 %v50, %v255
  %v257 = vpop.f32.mrf.mxu0
  %258 = vdwg.mxu0
  %259 = vmatpush.bf16.msra.mxu0 %v187
  %260 = vmatpush.bf16.msra.mxu0 %v185
  %261 = vmatpush.bf16.msra.mxu0 %v183
  %262 = vmatpush.bf16.msra.mxu0 %v181
  %263 = vmatpush.bf16.msra.mxu0 %v179
  %264 = vmatpush.bf16.msra.mxu0 %v177
  %265 = vmatpush.bf16.msra.mxu0 %v175
  %266 = vmatpush.bf16.msra.mxu0 %v173
  %267 = vmatmul.bf16.gmra.mxu0 %v57
  %v268 = vpop.f32.mrf.mxu0
  %v269 = vadd.f32 %v256, %v268
  %v270 = vpop.f32.mrf.mxu0
  %271 = vdwg.mxu0
  %v272 = vmax.f32 %v243, 0.0
  %v273 = vmax.f32 %v269, 0.0
  %v274 = vpack.c.bf16 %v273, %v272
  %275 = vst [vmem:[%s3] sm:$0xff] %v274
  // Predicated region
  $region14: #{_lambda_.34} parent=0 // pred_check
    _
  $region15: #{_lambda_.34} parent=0 // pred_check_branch
    %277 = sbr.rel (0) target = $region17
  $region16: #{_lambda_.34} parent=0 // pred_region
    _
  $region17: #{_lambda_.34} parent=0 // pred_fallthru
    _
  // Predicated region
  $region18: #{_lambda_.34} parent=0 // pred_check
    _
  $region19: #{_lambda_.34} parent=0 // pred_check_branch
    %279 = sbr.rel (0) target = $region21
  $region20: #{_lambda_.34} parent=0 // pred_region
    _
  $region21: #{_lambda_.34} parent=0 // pred_fallthru
    _

// kernel: _lambda_.31
$region0: #{_lambda_.31}
  #allocation0 [shape = 'u32[]', space=smem, size = 0x4, offset = 0x4, fixed_abs, tag = 'smem constant byte address 0x4 - core index']
  #allocation1 [shape = 'u32[72,128]{1,0:T(1,128)}', space=vmem, size = 0x9000, scoped, tag = 'internal scratch']
  %s0 = inlined_call_operand.vmem [shape: bf16[8,1152], index: 0, kind: input, shape index: {}]
  %s1 = inlined_call_operand.vmem [shape: bf16[1152,128], index: 1, kind: input, shape index: {}]
  %s2 = inlined_call_operand.vmem [shape: f32[1,128], index: 2, kind: input, shape index: {}]
  %s3 = inlined_call_operand.vmem [shape: bf16[8,128], index: 3, kind: output, shape index: {}]
  %s4 = sld [smem:[#allocation0]]
  $region22: #{_lambda_.31} parent=0
    _
  %s6 = ssub.s32 1, %s4
  %s7 = scalar_select 0, %s6, %s4
  // Predicated region
  $region2: #{_lambda_.31} parent=0 // pred_check
    _
  $region3: #{_lambda_.31} parent=0 // pred_check_branch
    %9 = sbr.rel (0) target = $region5
  $region4: #{_lambda_.31} parent=0 // pred_region
    _
  $region5: #{_lambda_.31} parent=0 // pred_fallthru
    _
  // Predicated region
  $region6: #{_lambda_.31} parent=0 // pred_check
    _
  $region7: #{_lambda_.31} parent=0 // pred_check_branch
    %11 = sbr.rel (0) target = $region9
  $region8: #{_lambda_.31} parent=0 // pred_region
    _
  $region9: #{_lambda_.31} parent=0 // pred_fallthru
    _
  // Predicated region
  $region10: #{_lambda_.31} parent=0 // pred_check
    _
  $region11: #{_lambda_.31} parent=0 // pred_check_branch
    %13 = sbr.rel (0) target = $region13
  $region12: #{_lambda_.31} parent=0 // pred_region
    _
  $region13: #{_lambda_.31} parent=0 // pred_fallthru
    _
  %v14 = vld [vmem:[%s0] sm:$0xff]
  %v15 = vld [vmem:[%s0 + $0x8] sm:$0xff]
  %v16 = vld [vmem:[%s0 + $0x10] sm:$0xff]
  %v17 = vld [vmem:[%s0 + $0x18] sm:$0xff]
  %v18 = vld [vmem:[%s0 + $0x20] sm:$0xf]
  %v19 = vld [vmem:[%s1] sm:$0xf]
  %v20 = vld [vmem:[%s1 + $0x4] sm:$0xf]
  %v21 = vld [vmem:[%s1 + $0x8] sm:$0xf]
  %v22 = vld [vmem:[%s1 + $0xc] sm:$0xf]
  %v23 = vld [vmem:[%s1 + $0x10] sm:$0xf]
  %v24 = vld [vmem:[%s1 + $0x14] sm:$0xf]
  %v25 = vld [vmem:[%s1 + $0x18] sm:$0xf]
  %v26 = vld [vmem:[%s1 + $0x1c] sm:$0xf]
  %v27 = vld [vmem:[%s1 + $0x20] sm:$0xf]
  %v28 = vld [vmem:[%s1 + $0x24] sm:$0xf]
  %v29 = vld [vmem:[%s1 + $0x28] sm:$0xf]
  %v30 = vld [vmem:[%s1 + $0x2c] sm:$0xf]
  %v31 = vld [vmem:[%s1 + $0x30] sm:$0xf]
  %v32 = vld [vmem:[%s1 + $0x34] sm:$0xf]
  %v33 = vld [vmem:[%s1 + $0x38] sm:$0xf]
  %v34 = vld [vmem:[%s1 + $0x3c] sm:$0xf]
  %v35 = vld [vmem:[%s1 + $0x40] sm:$0xf]
  %v36 = vld [vmem:[%s1 + $0x44] sm:$0xf]
  %v37 = vld [vmem:[%s1 + $0x48] sm:$0xf]
  %v38 = vld [vmem:[%s1 + $0x4c] sm:$0xf]
  %v39 = vld [vmem:[%s1 + $0x50] sm:$0xf]
  %v40 = vld [vmem:[%s1 + $0x54] sm:$0xf]
  %v41 = vld [vmem:[%s1 + $0x58] sm:$0xf]
  %v42 = vld [vmem:[%s1 + $0x5c] sm:$0xf]
  %v43 = vld [vmem:[%s1 + $0x60] sm:$0xf]
  %v44 = vld [vmem:[%s1 + $0x64] sm:$0xf]
  %v45 = vld [vmem:[%s1 + $0x68] sm:$0xf]
  %v46 = vld [vmem:[%s1 + $0x6c] sm:$0xf]
  %v47 = vld [vmem:[%s1 + $0x70] sm:$0xf]
  %v48 = vld [vmem:[%s1 + $0x74] sm:$0xf]
  %v49 = vld [vmem:[%s1 + $0x78] sm:$0xf]
  %v50 = vld [vmem:[%s1 + $0x7c] sm:$0xf]
  %v51 = vld [vmem:[%s1 + $0x80] sm:$0xf]
  %v52 = vld [vmem:[%s1 + $0x84] sm:$0xf]
  %v53 = vld [vmem:[%s1 + $0x88] sm:$0xf]
  %v54 = vld [vmem:[%s1 + $0x8c] sm:$0xf]
  %v55 = vld [vmem:[%s1 + $0x90] sm:$0xf]
  %v56 = vld [vmem:[%s1 + $0x94] sm:$0xf]
  %v57 = vld [vmem:[%s1 + $0x98] sm:$0xf]
  %v58 = vld [vmem:[%s1 + $0x9c] sm:$0xf]
  %v59 = vld [vmem:[%s1 + $0xa0] sm:$0xf]
  %v60 = vld [vmem:[%s1 + $0xa4] sm:$0xf]
  %v61 = vld [vmem:[%s1 + $0xa8] sm:$0xf]
  %v62 = vld [vmem:[%s1 + $0xac] sm:$0xf]
  %v63 = vld [vmem:[%s1 + $0xb0] sm:$0xf]
  %v64 = vld [vmem:[%s1 + $0xb4] sm:$0xf]
  %v65 = vld [vmem:[%s1 + $0xb8] sm:$0xf]
  %v66 = vld [vmem:[%s1 + $0xbc] sm:$0xf]
  %v67 = vld [vmem:[%s1 + $0xc0] sm:$0xf]
  %v68 = vld [vmem:[%s1 + $0xc4] sm:$0xf]
  %v69 = vld [vmem:[%s1 + $0xc8] sm:$0xf]
  %v70 = vld [vmem:[%s1 + $0xcc] sm:$0xf]
  %v71 = vld [vmem:[%s1 + $0xd0] sm:$0xf]
  %v72 = vld [vmem:[%s1 + $0xd4] sm:$0xf]
  %v73 = vld [vmem:[%s1 + $0xd8] sm:$0xf]
  %v74 = vld [vmem:[%s1 + $0xdc] sm:$0xf]
  %v75 = vld [vmem:[%s1 + $0xe0] sm:$0xf]
  %v76 = vld [vmem:[%s1 + $0xe4] sm:$0xf]
  %v77 = vld [vmem:[%s1 + $0xe8] sm:$0xf]
  %v78 = vld [vmem:[%s1 + $0xec] sm:$0xf]
  %v79 = vld [vmem:[%s1 + $0xf0] sm:$0xf]
  %v80 = vld [vmem:[%s1 + $0xf4] sm:$0xf]
  %v81 = vld [vmem:[%s1 + $0xf8] sm:$0xf]
  %v82 = vld [vmem:[%s1 + $0xfc] sm:$0xf]
  %v83 = vld [vmem:[%s1 + $0x100] sm:$0xf]
  %v84 = vld [vmem:[%s1 + $0x104] sm:$0xf]
  %v85 = vld [vmem:[%s1 + $0x108] sm:$0xf]
  %v86 = vld [vmem:[%s1 + $0x10c] sm:$0xf]
  %v87 = vld [vmem:[%s1 + $0x110] sm:$0xf]
  %v88 = vld [vmem:[%s1 + $0x114] sm:$0xf]
  %v89 = vld [vmem:[%s1 + $0x118] sm:$0xf]
  %v90 = vld [vmem:[%s1 + $0x11c] sm:$0xf]
  %v91 = vld [vmem:[%s1 + $0x120] sm:$0xf]
  %v92 = vld [vmem:[%s1 + $0x124] sm:$0xf]
  %v93 = vld [vmem:[%s1 + $0x128] sm:$0xf]
  %v94 = vld [vmem:[%s1 + $0x12c] sm:$0xf]
  %v95 = vld [vmem:[%s1 + $0x130] sm:$0xf]
  %v96 = vld [vmem:[%s1 + $0x134] sm:$0xf]
  %v97 = vld [vmem:[%s1 + $0x138] sm:$0xf]
  %v98 = vld [vmem:[%s1 + $0x13c] sm:$0xf]
  %v99 = vld [vmem:[%s1 + $0x140] sm:$0xf]
  %v100 = vld [vmem:[%s1 + $0x144] sm:$0xf]
  %v101 = vld [vmem:[%s1 + $0x148] sm:$0xf]
  %v102 = vld [vmem:[%s1 + $0x14c] sm:$0xf]
  %v103 = vld [vmem:[%s1 + $0x150] sm:$0xf]
  %v104 = vld [vmem:[%s1 + $0x154] sm:$0xf]
  %v105 = vld [vmem:[%s1 + $0x158] sm:$0xf]
  %v106 = vld [vmem:[%s1 + $0x15c] sm:$0xf]
  %v107 = vld [vmem:[%s1 + $0x160] sm:$0xf]
  %v108 = vld [vmem:[%s1 + $0x164] sm:$0xf]
  %v109 = vld [vmem:[%s1 + $0x168] sm:$0xf]
  %v110 = vld [vmem:[%s1 + $0x16c] sm:$0xf]
  %v111 = vld [vmem:[%s1 + $0x170] sm:$0xf]
  %v112 = vld [vmem:[%s1 + $0x174] sm:$0xf]
  %v113 = vld [vmem:[%s1 + $0x178] sm:$0xf]
  %v114 = vld [vmem:[%s1 + $0x17c] sm:$0xf]
  %v115 = vld [vmem:[%s1 + $0x180] sm:$0xf]
  %v116 = vld [vmem:[%s1 + $0x184] sm:$0xf]
  %v117 = vld [vmem:[%s1 + $0x188] sm:$0xf]
  %v118 = vld [vmem:[%s1 + $0x18c] sm:$0xf]
  %v119 = vld [vmem:[%s1 + $0x190] sm:$0xf]
  %v120 = vld [vmem:[%s1 + $0x194] sm:$0xf]
  %v121 = vld [vmem:[%s1 + $0x198] sm:$0xf]
  %v122 = vld [vmem:[%s1 + $0x19c] sm:$0xf]
  %v123 = vld [vmem:[%s1 + $0x1a0] sm:$0xf]
  %v124 = vld [vmem:[%s1 + $0x1a4] sm:$0xf]
  %v125 = vld [vmem:[%s1 + $0x1a8] sm:$0xf]
  %v126 = vld [vmem:[%s1 + $0x1ac] sm:$0xf]
  %v127 = vld [vmem:[%s1 + $0x1b0] sm:$0xf]
  %v128 = vld [vmem:[%s1 + $0x1b4] sm:$0xf]
  %v129 = vld [vmem:[%s1 + $0x1b8] sm:$0xf]
  %v130 = vld [vmem:[%s1 + $0x1bc] sm:$0xf]
  %v131 = vld [vmem:[%s1 + $0x1c0] sm:$0xf]
  %v132 = vld [vmem:[%s1 + $0x1c4] sm:$0xf]
  %v133 = vld [vmem:[%s1 + $0x1c8] sm:$0xf]
  %v134 = vld [vmem:[%s1 + $0x1cc] sm:$0xf]
  %v135 = vld [vmem:[%s1 + $0x1d0] sm:$0xf]
  %v136 = vld [vmem:[%s1 + $0x1d4] sm:$0xf]
  %v137 = vld [vmem:[%s1 + $0x1d8] sm:$0xf]
  %v138 = vld [vmem:[%s1 + $0x1dc] sm:$0xf]
  %v139 = vld [vmem:[%s1 + $0x1e0] sm:$0xf]
  %v140 = vld [vmem:[%s1 + $0x1e4] sm:$0xf]
  %v141 = vld [vmem:[%s1 + $0x1e8] sm:$0xf]
  %v142 = vld [vmem:[%s1 + $0x1ec] sm:$0xf]
  %v143 = vld [vmem:[%s1 + $0x1f0] sm:$0xf]
  %v144 = vld [vmem:[%s1 + $0x1f4] sm:$0xf]
  %v145 = vld [vmem:[%s1 + $0x1f8] sm:$0xf]
  %v146 = vld [vmem:[%s1 + $0x1fc] sm:$0xf]
  %v147 = vld [vmem:[%s1 + $0x200] sm:$0xf]
  %v148 = vld [vmem:[%s1 + $0x204] sm:$0xf]
  %v149 = vld [vmem:[%s1 + $0x208] sm:$0xf]
  %v150 = vld [vmem:[%s1 + $0x20c] sm:$0xf]
  %v151 = vld [vmem:[%s1 + $0x210] sm:$0xf]
  %v152 = vld [vmem:[%s1 + $0x214] sm:$0xf]
  %v153 = vld [vmem:[%s1 + $0x218] sm:$0xf]
  %v154 = vld [vmem:[%s1 + $0x21c] sm:$0xf]
  %v155 = vld [vmem:[%s1 + $0x220] sm:$0xf]
  %v156 = vld [vmem:[%s1 + $0x224] sm:$0xf]
  %v157 = vld [vmem:[%s1 + $0x228] sm:$0xf]
  %v158 = vld [vmem:[%s1 + $0x22c] sm:$0xf]
  %v159 = vld [vmem:[%s1 + $0x230] sm:$0xf]
  %v160 = vld [vmem:[%s1 + $0x234] sm:$0xf]
  %v161 = vld [vmem:[%s1 + $0x238] sm:$0xf]
  %v162 = vld [vmem:[%s1 + $0x23c] sm:$0xf]
  %v163 = vld [vmem:[%s2] sm:$0x1]
  %v165 = vperm.slane %v163, 0
  %v172 = vunpack.c.l.b16 %v14
  %v173 = vunpack.c.h.b16 %v14
  %v174 = vunpack.c.l.b16 %v15
  %v175 = vunpack.c.h.b16 %v15
  %v176 = vunpack.c.l.b16 %v16
  %v177 = vunpack.c.h.b16 %v16
  %v178 = vunpack.c.l.b16 %v17
  %v179 = vunpack.c.h.b16 %v17
  %v180 = vunpack.c.l.b16 %v18
  %v181 = vpack.c.b16 %v172, %v172
  %v182 = vpack.c.b16 %v173, %v173
  %v183 = vpack.c.b16 %v174, %v174
  %v184 = vpack.c.b16 %v175, %v175
  %v185 = vpack.c.b16 %v176, %v176
  %v186 = vpack.c.b16 %v177, %v177
  %v187 = vpack.c.b16 %v178, %v178
  %v188 = vpack.c.b16 %v179, %v179
  %v189 = vpack.c.b16 %v180, %v180
  %v343 = vunpack.c.l.b16 %v19
  %v344 = vunpack.c.l.b16 %v20
  %v345 = vunpack.c.l.b16 %v21
  %v346 = vunpack.c.l.b16 %v22
  %v347 = vunpack.c.l.b16 %v23
  %v348 = vunpack.c.l.b16 %v24
  %v349 = vunpack.c.l.b16 %v25
  %v350 = vunpack.c.l.b16 %v26
  %v351 = vunpack.c.l.b16 %v27
  %v352 = vunpack.c.l.b16 %v28
  %v353 = vunpack.c.l.b16 %v29
  %v354 = vunpack.c.l.b16 %v30
  %v355 = vunpack.c.l.b16 %v31
  %v356 = vunpack.c.l.b16 %v32
  %v357 = vunpack.c.l.b16 %v33
  %v358 = vunpack.c.l.b16 %v34
  %v359 = vunpack.c.l.b16 %v35
  %v360 = vunpack.c.l.b16 %v36
  %v361 = vunpack.c.l.b16 %v37
  %v362 = vunpack.c.l.b16 %v38
  %v363 = vunpack.c.l.b16 %v39
  %v364 = vunpack.c.l.b16 %v40
  %v365 = vunpack.c.l.b16 %v41
  %v366 = vunpack.c.l.b16 %v42
  %v367 = vunpack.c.l.b16 %v43
  %v368 = vunpack.c.l.b16 %v44
  %v369 = vunpack.c.l.b16 %v45
  %v370 = vunpack.c.l.b16 %v46
  %v371 = vunpack.c.l.b16 %v47
  %v372 = vunpack.c.l.b16 %v48
  %v373 = vunpack.c.l.b16 %v49
  %v374 = vunpack.c.l.b16 %v50
  %v375 = vunpack.c.l.b16 %v51
  %v376 = vunpack.c.l.b16 %v52
  %v377 = vunpack.c.l.b16 %v53
  %v378 = vunpack.c.l.b16 %v54
  %v379 = vunpack.c.l.b16 %v55
  %v380 = vunpack.c.l.b16 %v56
  %v381 = vunpack.c.l.b16 %v57
  %v382 = vunpack.c.l.b16 %v58
  %v383 = vunpack.c.l.b16 %v59
  %v384 = vunpack.c.l.b16 %v60
  %v385 = vunpack.c.l.b16 %v61
  %v386 = vunpack.c.l.b16 %v62
  %v387 = vunpack.c.l.b16 %v63
  %v388 = vunpack.c.l.b16 %v64
  %v389 = vunpack.c.l.b16 %v65
  %v390 = vunpack.c.l.b16 %v66
  %v391 = vunpack.c.l.b16 %v67
  %v392 = vunpack.c.l.b16 %v68
  %v393 = vunpack.c.l.b16 %v69
  %v394 = vunpack.c.l.b16 %v70
  %v395 = vunpack.c.l.b16 %v71
  %v396 = vunpack.c.l.b16 %v72
  %v397 = vunpack.c.l.b16 %v73
  %v398 = vunpack.c.l.b16 %v74
  %v399 = vunpack.c.l.b16 %v75
  %v400 = vunpack.c.l.b16 %v76
  %v401 = vunpack.c.l.b16 %v77
  %v402 = vunpack.c.l.b16 %v78
  %v403 = vunpack.c.l.b16 %v79
  %v404 = vunpack.c.l.b16 %v80
  %v405 = vunpack.c.l.b16 %v81
  %v406 = vunpack.c.l.b16 %v82
  %v407 = vunpack.c.l.b16 %v83
  %v408 = vunpack.c.l.b16 %v84
  %v409 = vunpack.c.l.b16 %v85
  %v410 = vunpack.c.l.b16 %v86
  %v411 = vunpack.c.l.b16 %v87
  %v412 = vunpack.c.l.b16 %v88
  %v413 = vunpack.c.l.b16 %v89
  %v414 = vunpack.c.l.b16 %v90
  %v415 = vunpack.c.l.b16 %v91
  %v416 = vunpack.c.l.b16 %v92
  %v417 = vunpack.c.l.b16 %v93
  %v418 = vunpack.c.l.b16 %v94
  %v419 = vunpack.c.l.b16 %v95
  %v420 = vunpack.c.l.b16 %v96
  %v421 = vunpack.c.l.b16 %v97
  %v422 = vunpack.c.l.b16 %v98
  %v423 = vunpack.c.l.b16 %v99
  %v424 = vunpack.c.l.b16 %v100
  %v425 = vunpack.c.l.b16 %v101
  %v426 = vunpack.c.l.b16 %v102
  %v427 = vunpack.c.l.b16 %v103
  %v428 = vunpack.c.l.b16 %v104
  %v429 = vunpack.c.l.b16 %v105
  %v430 = vunpack.c.l.b16 %v106
  %v431 = vunpack.c.l.b16 %v107
  %v432 = vunpack.c.l.b16 %v108
  %v433 = vunpack.c.l.b16 %v109
  %v434 = vunpack.c.l.b16 %v110
  %v435 = vunpack.c.l.b16 %v111
  %v436 = vunpack.c.l.b16 %v112
  %v437 = vunpack.c.l.b16 %v113
  %v438 = vunpack.c.l.b16 %v114
  %v439 = vunpack.c.l.b16 %v115
  %v440 = vunpack.c.l.b16 %v116
  %v441 = vunpack.c.l.b16 %v117
  %v442 = vunpack.c.l.b16 %v118
  %v443 = vunpack.c.l.b16 %v119
  %v444 = vunpack.c.l.b16 %v120
  %v445 = vunpack.c.l.b16 %v121
  %v446 = vunpack.c.l.b16 %v122
  %v447 = vunpack.c.l.b16 %v123
  %v448 = vunpack.c.l.b16 %v124
  %v449 = vunpack.c.l.b16 %v125
  %v450 = vunpack.c.l.b16 %v126
  %v451 = vunpack.c.l.b16 %v127
  %v452 = vunpack.c.l.b16 %v128
  %v453 = vunpack.c.l.b16 %v129
  %v454 = vunpack.c.l.b16 %v130
  %v455 = vunpack.c.l.b16 %v131
  %v456 = vunpack.c.l.b16 %v132
  %v457 = vunpack.c.l.b16 %v133
  %v458 = vunpack.c.l.b16 %v134
  %v459 = vunpack.c.l.b16 %v135
  %v460 = vunpack.c.l.b16 %v136
  %v461 = vunpack.c.l.b16 %v137
  %v462 = vunpack.c.l.b16 %v138
  %v463 = vunpack.c.l.b16 %v139
  %v464 = vunpack.c.l.b16 %v140
  %v465 = vunpack.c.l.b16 %v141
  %v466 = vunpack.c.l.b16 %v142
  %v467 = vunpack.c.l.b16 %v143
  %v468 = vunpack.c.l.b16 %v144
  %v469 = vunpack.c.l.b16 %v145
  %v470 = vunpack.c.l.b16 %v146
  %v471 = vunpack.c.l.b16 %v147
  %v472 = vunpack.c.l.b16 %v148
  %v473 = vunpack.c.l.b16 %v149
  %v474 = vunpack.c.l.b16 %v150
  %v475 = vunpack.c.l.b16 %v151
  %v476 = vunpack.c.l.b16 %v152
  %v477 = vunpack.c.l.b16 %v153
  %v478 = vunpack.c.l.b16 %v154
  %v479 = vunpack.c.l.b16 %v155
  %v480 = vunpack.c.l.b16 %v156
  %v481 = vunpack.c.l.b16 %v157
  %v482 = vunpack.c.l.b16 %v158
  %v483 = vunpack.c.l.b16 %v159
  %v484 = vunpack.c.l.b16 %v160
  %v485 = vunpack.c.l.b16 %v161
  %v486 = vunpack.c.l.b16 %v162
  %v487 = vpack.c.b16 %v344, %v343
  %v488 = vpack.c.b16 %v346, %v345
  %v489 = vpack.c.b16 %v348, %v347
  %v490 = vpack.c.b16 %v350, %v349
  %v491 = vpack.c.b16 %v352, %v351
  %v492 = vpack.c.b16 %v354, %v353
  %v493 = vpack.c.b16 %v356, %v355
  %v494 = vpack.c.b16 %v358, %v357
  %v495 = vpack.c.b16 %v360, %v359
  %v496 = vpack.c.b16 %v362, %v361
  %v497 = vpack.c.b16 %v364, %v363
  %v498 = vpack.c.b16 %v366, %v365
  %v499 = vpack.c.b16 %v368, %v367
  %v500 = vpack.c.b16 %v370, %v369
  %v501 = vpack.c.b16 %v372, %v371
  %v502 = vpack.c.b16 %v374, %v373
  %v503 = vpack.c.b16 %v376, %v375
  %v504 = vpack.c.b16 %v378, %v377
  %v505 = vpack.c.b16 %v380, %v379
  %v506 = vpack.c.b16 %v382, %v381
  %v507 = vpack.c.b16 %v384, %v383
  %v508 = vpack.c.b16 %v386, %v385
  %v509 = vpack.c.b16 %v388, %v387
  %v510 = vpack.c.b16 %v390, %v389
  %v511 = vpack.c.b16 %v392, %v391
  %v512 = vpack.c.b16 %v394, %v393
  %v513 = vpack.c.b16 %v396, %v395
  %v514 = vpack.c.b16 %v398, %v397
  %v515 = vpack.c.b16 %v400, %v399
  %v516 = vpack.c.b16 %v402, %v401
  %v517 = vpack.c.b16 %v404, %v403
  %v518 = vpack.c.b16 %v406, %v405
  %v519 = vpack.c.b16 %v408, %v407
  %v520 = vpack.c.b16 %v410, %v409
  %v521 = vpack.c.b16 %v412, %v411
  %v522 = vpack.c.b16 %v414, %v413
  %v523 = vpack.c.b16 %v416, %v415
  %v524 = vpack.c.b16 %v418, %v417
  %v525 = vpack.c.b16 %v420, %v419
  %v526 = vpack.c.b16 %v422, %v421
  %v527 = vpack.c.b16 %v424, %v423
  %v528 = vpack.c.b16 %v426, %v425
  %v529 = vpack.c.b16 %v428, %v427
  %v530 = vpack.c.b16 %v430, %v429
  %v531 = vpack.c.b16 %v432, %v431
  %v532 = vpack.c.b16 %v434, %v433
  %v533 = vpack.c.b16 %v436, %v435
  %v534 = vpack.c.b16 %v438, %v437
  %v535 = vpack.c.b16 %v440, %v439
  %v536 = vpack.c.b16 %v442, %v441
  %v537 = vpack.c.b16 %v444, %v443
  %v538 = vpack.c.b16 %v446, %v445
  %v539 = vpack.c.b16 %v448, %v447
  %v540 = vpack.c.b16 %v450, %v449
  %v541 = vpack.c.b16 %v452, %v451
  %v542 = vpack.c.b16 %v454, %v453
  %v543 = vpack.c.b16 %v456, %v455
  %v544 = vpack.c.b16 %v458, %v457
  %v545 = vpack.c.b16 %v460, %v459
  %v546 = vpack.c.b16 %v462, %v461
  %v547 = vpack.c.b16 %v464, %v463
  %v548 = vpack.c.b16 %v466, %v465
  %v549 = vpack.c.b16 %v468, %v467
  %v550 = vpack.c.b16 %v470, %v469
  %v551 = vpack.c.b16 %v472, %v471
  %v552 = vpack.c.b16 %v474, %v473
  %v553 = vpack.c.b16 %v476, %v475
  %v554 = vpack.c.b16 %v478, %v477
  %v555 = vpack.c.b16 %v480, %v479
  %v556 = vpack.c.b16 %v482, %v481
  %v557 = vpack.c.b16 %v484, %v483
  %v558 = vpack.c.b16 %v486, %v485
  %631 = vmatpush.bf16.msra.mxu0 %v494
  %632 = vmatpush.bf16.msra.mxu0 %v493
  %633 = vmatpush.bf16.msra.mxu0 %v492
  %634 = vmatpush.bf16.msra.mxu0 %v491
  %635 = vmatpush.bf16.msra.mxu0 %v490
  %636 = vmatpush.bf16.msra.mxu0 %v489
  %637 = vmatpush.bf16.msra.mxu0 %v488
  %638 = vmatpush.bf16.msra.mxu0 %v487
  %639 = vmatmul.bf16.gmra.mxu0 %v181
  %v640 = vpop.f32.mrf.mxu0
  %v641 = vadd.f32 %v165, %v640
  %v642 = vpop.f32.mrf.mxu0
  %643 = vdwg.mxu0
  %644 = vmatpush.bf16.msra.mxu0 %v502
  %645 = vmatpush.bf16.msra.mxu0 %v501
  %646 = vmatpush.bf16.msra.mxu0 %v500
  %647 = vmatpush.bf16.msra.mxu0 %v499
  %648 = vmatpush.bf16.msra.mxu0 %v498
  %649 = vmatpush.bf16.msra.mxu0 %v497
  %650 = vmatpush.bf16.msra.mxu0 %v496
  %651 = vmatpush.bf16.msra.mxu0 %v495
  %652 = vmatmul.bf16.gmra.mxu0 %v182
  %v653 = vpop.f32.mrf.mxu0
  %v654 = vadd.f32 %v641, %v653
  %v655 = vpop.f32.mrf.mxu0
  %656 = vdwg.mxu0
  %657 = vmatpush.bf16.msra.mxu0 %v510
  %658 = vmatpush.bf16.msra.mxu0 %v509
  %659 = vmatpush.bf16.msra.mxu0 %v508
  %660 = vmatpush.bf16.msra.mxu0 %v507
  %661 = vmatpush.bf16.msra.mxu0 %v506
  %662 = vmatpush.bf16.msra.mxu0 %v505
  %663 = vmatpush.bf16.msra.mxu0 %v504
  %664 = vmatpush.bf16.msra.mxu0 %v503
  %665 = vmatmul.bf16.gmra.mxu0 %v183
  %v666 = vpop.f32.mrf.mxu0
  %v667 = vadd.f32 %v654, %v666
  %v668 = vpop.f32.mrf.mxu0
  %669 = vdwg.mxu0
  %670 = vmatpush.bf16.msra.mxu0 %v518
  %671 = vmatpush.bf16.msra.mxu0 %v517
  %672 = vmatpush.bf16.msra.mxu0 %v516
  %673 = vmatpush.bf16.msra.mxu0 %v515
  %674 = vmatpush.bf16.msra.mxu0 %v514
  %675 = vmatpush.bf16.msra.mxu0 %v513
  %676 = vmatpush.bf16.msra.mxu0 %v512
  %677 = vmatpush.bf16.msra.mxu0 %v511
  %678 = vmatmul.bf16.gmra.mxu0 %v184
  %v679 = vpop.f32.mrf.mxu0
  %v680 = vadd.f32 %v667, %v679
  %v681 = vpop.f32.mrf.mxu0
  %682 = vdwg.mxu0
  %683 = vmatpush.bf16.msra.mxu0 %v526
  %684 = vmatpush.bf16.msra.mxu0 %v525
  %685 = vmatpush.bf16.msra.mxu0 %v524
  %686 = vmatpush.bf16.msra.mxu0 %v523
  %687 = vmatpush.bf16.msra.mxu0 %v522
  %688 = vmatpush.bf16.msra.mxu0 %v521
  %689 = vmatpush.bf16.msra.mxu0 %v520
  %690 = vmatpush.bf16.msra.mxu0 %v519
  %691 = vmatmul.bf16.gmra.mxu0 %v185
  %v692 = vpop.f32.mrf.mxu0
  %v693 = vadd.f32 %v680, %v692
  %v694 = vpop.f32.mrf.mxu0
  %695 = vdwg.mxu0
  %696 = vmatpush.bf16.msra.mxu0 %v534
  %697 = vmatpush.bf16.msra.mxu0 %v533
  %698 = vmatpush.bf16.msra.mxu0 %v532
  %699 = vmatpush.bf16.msra.mxu0 %v531
  %700 = vmatpush.bf16.msra.mxu0 %v530
  %701 = vmatpush.bf16.msra.mxu0 %v529
  %702 = vmatpush.bf16.msra.mxu0 %v528
  %703 = vmatpush.bf16.msra.mxu0 %v527
  %704 = vmatmul.bf16.gmra.mxu0 %v186
  %v705 = vpop.f32.mrf.mxu0
  %v706 = vadd.f32 %v693, %v705
  %v707 = vpop.f32.mrf.mxu0
  %708 = vdwg.mxu0
  %709 = vmatpush.bf16.msra.mxu0 %v542
  %710 = vmatpush.bf16.msra.mxu0 %v541
  %711 = vmatpush.bf16.msra.mxu0 %v540
  %712 = vmatpush.bf16.msra.mxu0 %v539
  %713 = vmatpush.bf16.msra.mxu0 %v538
  %714 = vmatpush.bf16.msra.mxu0 %v537
  %715 = vmatpush.bf16.msra.mxu0 %v536
  %716 = vmatpush.bf16.msra.mxu0 %v535
  %717 = vmatmul.bf16.gmra.mxu0 %v187
  %v718 = vpop.f32.mrf.mxu0
  %v719 = vadd.f32 %v706, %v718
  %v720 = vpop.f32.mrf.mxu0
  %721 = vdwg.mxu0
  %722 = vmatpush.bf16.msra.mxu0 %v550
  %723 = vmatpush.bf16.msra.mxu0 %v549
  %724 = vmatpush.bf16.msra.mxu0 %v548
  %725 = vmatpush.bf16.msra.mxu0 %v547
  %726 = vmatpush.bf16.msra.mxu0 %v546
  %727 = vmatpush.bf16.msra.mxu0 %v545
  %728 = vmatpush.bf16.msra.mxu0 %v544
  %729 = vmatpush.bf16.msra.mxu0 %v543
  %730 = vmatmul.bf16.gmra.mxu0 %v188
  %v731 = vpop.f32.mrf.mxu0
  %v732 = vadd.f32 %v719, %v731
  %v733 = vpop.f32.mrf.mxu0
  %734 = vdwg.mxu0
  %735 = vmatpush.bf16.msra.mxu0 %v558
  %736 = vmatpush.bf16.msra.mxu0 %v557
  %737 = vmatpush.bf16.msra.mxu0 %v556
  %738 = vmatpush.bf16.msra.mxu0 %v555
  %739 = vmatpush.bf16.msra.mxu0 %v554
  %740 = vmatpush.bf16.msra.mxu0 %v553
  %741 = vmatpush.bf16.msra.mxu0 %v552
  %742 = vmatpush.bf16.msra.mxu0 %v551
  %743 = vmatmul.bf16.gmra.mxu0 %v189
  %v744 = vpop.f32.mrf.mxu0
  %v745 = vadd.f32 %v732, %v744
  %v746 = vpop.f32.mrf.mxu0
  %747 = vdwg.mxu0
  %v748 = vmax.f32 %v745, 0.0
  %v749 = vpack.c.bf16 %v748, %v748
  %750 = vst [vmem:[%s3] sm:$0xf] %v749
  // Predicated region
  $region14: #{_lambda_.31} parent=0 // pred_check
    _
  $region15: #{_lambda_.31} parent=0 // pred_check_branch
    %752 = sbr.rel (0) target = $region17
  $region16: #{_lambda_.31} parent=0 // pred_region
    _
  $region17: #{_lambda_.31} parent=0 // pred_fallthru
    _
  // Predicated region
  $region18: #{_lambda_.31} parent=0 // pred_check
    _
  $region19: #{_lambda_.31} parent=0 // pred_check_branch
    %754 = sbr.rel (0) target = $region21
  $region20: #{_lambda_.31} parent=0 // pred_region
    _
  $region21: #{_lambda_.31} parent=0 // pred_fallthru
    _

// kernel: _lambda_.37
$region0: #{_lambda_.37}
  #allocation0 [shape = 'u32[]', space=smem, size = 0x4, offset = 0x4, fixed_abs, tag = 'smem constant byte address 0x4 - core index']
  #allocation1 [shape = 'u32[72,128]{1,0:T(1,128)}', space=vmem, size = 0x9000, scoped, tag = 'internal scratch']
  %s0 = inlined_call_operand.vmem [shape: bf16[2,1,512], index: 0, kind: input, shape index: {}]
  %s1 = inlined_call_operand.vmem [shape: f32[512,10], index: 1, kind: input, shape index: {}]
  %s2 = inlined_call_operand.vmem [shape: f32[1,10], index: 2, kind: input, shape index: {}]
  %s3 = inlined_call_operand.hbm [shape: f32[2,10], index: 3, kind: output, shape index: {}]
  %s4 = sld [smem:[#allocation0]]
  $region22: #{_lambda_.37} parent=0
    _
  %s6 = ssub.s32 1, %s4
  %s7 = scalar_select 0, %s6, %s4
  $region1: #{_lambda_.37} parent=0
    #allocation2 [shape = 'u8[1024]{0}', space=vmem, size = 0x400, scoped, tag = 'output window, operand 0, single buffered']
    #allocation3 [shape = 's32[1]{0}', space=sflag, size = 0x4, scoped, tag = 'scoped memory for _lambda_.37']
    %8 = vsyncpa [#allocation3], 0
    // Predicated region
    $region2: #{_lambda_.37} parent=1 // pred_check
      _
    $region3: #{_lambda_.37} parent=1 // pred_check_branch
      %10 = sbr.rel (0) target = $region5
    $region4: #{_lambda_.37} parent=1 // pred_region
      _
    $region5: #{_lambda_.37} parent=1 // pred_fallthru
      _
    // Predicated region
    $region6: #{_lambda_.37} parent=1 // pred_check
      _
    $region7: #{_lambda_.37} parent=1 // pred_check_branch
      %12 = sbr.rel (0) target = $region9
    $region8: #{_lambda_.37} parent=1 // pred_region
      _
    $region9: #{_lambda_.37} parent=1 // pred_fallthru
      _
    // Predicated region
    $region10: #{_lambda_.37} parent=1 // pred_check
      _
    $region11: #{_lambda_.37} parent=1 // pred_check_branch
      %14 = sbr.rel (0) target = $region13
    $region12: #{_lambda_.37} parent=1 // pred_region
      _
    $region13: #{_lambda_.37} parent=1 // pred_fallthru
      _
    %v15 = vld [vmem:[%s0] sm:$0xf]
    %v16 = vld [vmem:[%s0 + $0x4] sm:$0xf]
    %v17 = vunpack.c.l.bf16 %v15
    %v18 = vunpack.c.l.bf16 %v16
    %v19 = vadd.f32 %v17, 0.0
    %v20 = vadd.f32 %v18, 0.0
    %v21 = vld [vmem:[%s1] sm:$0xff]
    %v22 = vld [vmem:[%s1 + $0x8] sm:$0xff]
    %v23 = vld [vmem:[%s1 + $0x10] sm:$0xff]
    %v24 = vld [vmem:[%s1 + $0x18] sm:$0xff]
    %v25 = vld [vmem:[%s1 + $0x20] sm:$0xff]
    %v26 = vld [vmem:[%s1 + $0x28] sm:$0xff]
    %v27 = vld [vmem:[%s1 + $0x30] sm:$0xff]
    %v28 = vld [vmem:[%s1 + $0x38] sm:$0xff]
    %v29 = vld [vmem:[%s1 + $0x40] sm:$0xff]
    %v30 = vld [vmem:[%s1 + $0x48] sm:$0xff]
    %v31 = vld [vmem:[%s1 + $0x50] sm:$0xff]
    %v32 = vld [vmem:[%s1 + $0x58] sm:$0xff]
    %v33 = vld [vmem:[%s1 + $0x60] sm:$0xff]
    %v34 = vld [vmem:[%s1 + $0x68] sm:$0xff]
    %v35 = vld [vmem:[%s1 + $0x70] sm:$0xff]
    %v36 = vld [vmem:[%s1 + $0x78] sm:$0xff]
    %v37 = vld [vmem:[%s1 + $0x80] sm:$0xff]
    %v38 = vld [vmem:[%s1 + $0x88] sm:$0xff]
    %v39 = vld [vmem:[%s1 + $0x90] sm:$0xff]
    %v40 = vld [vmem:[%s1 + $0x98] sm:$0xff]
    %v41 = vld [vmem:[%s1 + $0xa0] sm:$0xff]
    %v42 = vld [vmem:[%s1 + $0xa8] sm:$0xff]
    %v43 = vld [vmem:[%s1 + $0xb0] sm:$0xff]
    %v44 = vld [vmem:[%s1 + $0xb8] sm:$0xff]
    %v45 = vld [vmem:[%s1 + $0xc0] sm:$0xff]
    %v46 = vld [vmem:[%s1 + $0xc8] sm:$0xff]
    %v47 = vld [vmem:[%s1 + $0xd0] sm:$0xff]
    %v48 = vld [vmem:[%s1 + $0xd8] sm:$0xff]
    %v49 = vld [vmem:[%s1 + $0xe0] sm:$0xff]
    %v50 = vld [vmem:[%s1 + $0xe8] sm:$0xff]
    %v51 = vld [vmem:[%s1 + $0xf0] sm:$0xff]
    %v52 = vld [vmem:[%s1 + $0xf8] sm:$0xff]
    %v53 = vld [vmem:[%s1 + $0x100] sm:$0xff]
    %v54 = vld [vmem:[%s1 + $0x108] sm:$0xff]
    %v55 = vld [vmem:[%s1 + $0x110] sm:$0xff]
    %v56 = vld [vmem:[%s1 + $0x118] sm:$0xff]
    %v57 = vld [vmem:[%s1 + $0x120] sm:$0xff]
    %v58 = vld [vmem:[%s1 + $0x128] sm:$0xff]
    %v59 = vld [vmem:[%s1 + $0x130] sm:$0xff]
    %v60 = vld [vmem:[%s1 + $0x138] sm:$0xff]
    %v61 = vld [vmem:[%s1 + $0x140] sm:$0xff]
    %v62 = vld [vmem:[%s1 + $0x148] sm:$0xff]
    %v63 = vld [vmem:[%s1 + $0x150] sm:$0xff]
    %v64 = vld [vmem:[%s1 + $0x158] sm:$0xff]
    %v65 = vld [vmem:[%s1 + $0x160] sm:$0xff]
    %v66 = vld [vmem:[%s1 + $0x168] sm:$0xff]
    %v67 = vld [vmem:[%s1 + $0x170] sm:$0xff]
    %v68 = vld [vmem:[%s1 + $0x178] sm:$0xff]
    %v69 = vld [vmem:[%s1 + $0x180] sm:$0xff]
    %v70 = vld [vmem:[%s1 + $0x188] sm:$0xff]
    %v71 = vld [vmem:[%s1 + $0x190] sm:$0xff]
    %v72 = vld [vmem:[%s1 + $0x198] sm:$0xff]
    %v73 = vld [vmem:[%s1 + $0x1a0] sm:$0xff]
    %v74 = vld [vmem:[%s1 + $0x1a8] sm:$0xff]
    %v75 = vld [vmem:[%s1 + $0x1b0] sm:$0xff]
    %v76 = vld [vmem:[%s1 + $0x1b8] sm:$0xff]
    %v77 = vld [vmem:[%s1 + $0x1c0] sm:$0xff]
    %v78 = vld [vmem:[%s1 + $0x1c8] sm:$0xff]
    %v79 = vld [vmem:[%s1 + $0x1d0] sm:$0xff]
    %v80 = vld [vmem:[%s1 + $0x1d8] sm:$0xff]
    %v81 = vld [vmem:[%s1 + $0x1e0] sm:$0xff]
    %v82 = vld [vmem:[%s1 + $0x1e8] sm:$0xff]
    %v83 = vld [vmem:[%s1 + $0x1f0] sm:$0xff]
    %v84 = vld [vmem:[%s1 + $0x1f8] sm:$0xff]
    %v85 = vld [vmem:[%s2] sm:$0x1]
    %v87 = vperm.slane %v85, 0
    %v91 = vperm.slane %v19, 0
    %v92 = vperm.slane %v19, 2
    %v93 = vperm.slane %v19, 4
    %v94 = vperm.slane %v19, 6
    %v95 = vperm.slane %v20, 0
    %v96 = vperm.slane %v20, 2
    %v97 = vperm.slane %v20, 4
    %v98 = vperm.slane %v20, 6
    %vm99 = vcmask 1041409
    %v100 = vsel %vm99, %v95, %v91
    %v101 = vsel %vm99, %v96, %v92
    %v102 = vsel %vm99, %v97, %v93
    %v103 = vsel %vm99, %v98, %v94
    %108 = vmatpush.msra.mxu0 %v36
    %109 = vmatpush.msra.mxu0 %v35
    %110 = vmatpush.msra.mxu0 %v34
    %111 = vmatpush.msra.mxu0 %v33
    %112 = vmatpush.msra.mxu0 %v32
    %113 = vmatpush.msra.mxu0 %v31
    %114 = vmatpush.msra.mxu0 %v30
    %115 = vmatpush.msra.mxu0 %v29
    %116 = vmatpush.msra.mxu0 %v28
    %117 = vmatpush.msra.mxu0 %v27
    %118 = vmatpush.msra.mxu0 %v26
    %119 = vmatpush.msra.mxu0 %v25
    %120 = vmatpush.msra.mxu0 %v24
    %121 = vmatpush.msra.mxu0 %v23
    %122 = vmatpush.msra.mxu0 %v22
    %123 = vmatpush.msra.mxu0 %v21
    %124 = vmatmul.f32.gmra.mxu0 %v100
    %v125 = vpop.f32.mrf.mxu0
    %v126 = vadd.f32 %v87, %v125
    %127 = vdwg.mxu0
    %128 = vmatpush.msra.mxu0 %v52
    %129 = vmatpush.msra.mxu0 %v51
    %130 = vmatpush.msra.mxu0 %v50
    %131 = vmatpush.msra.mxu0 %v49
    %132 = vmatpush.msra.mxu0 %v48
    %133 = vmatpush.msra.mxu0 %v47
    %134 = vmatpush.msra.mxu0 %v46
    %135 = vmatpush.msra.mxu0 %v45
    %136 = vmatpush.msra.mxu0 %v44
    %137 = vmatpush.msra.mxu0 %v43
    %138 = vmatpush.msra.mxu0 %v42
    %139 = vmatpush.msra.mxu0 %v41
    %140 = vmatpush.msra.mxu0 %v40
    %141 = vmatpush.msra.mxu0 %v39
    %142 = vmatpush.msra.mxu0 %v38
    %143 = vmatpush.msra.mxu0 %v37
    %144 = vmatmul.f32.gmra.mxu0 %v101
    %v145 = vpop.f32.mrf.mxu0
    %v146 = vadd.f32 %v126, %v145
    %147 = vdwg.mxu0
    %148 = vmatpush.msra.mxu0 %v68
    %149 = vmatpush.msra.mxu0 %v67
    %150 = vmatpush.msra.mxu0 %v66
    %151 = vmatpush.msra.mxu0 %v65
    %152 = vmatpush.msra.mxu0 %v64
    %153 = vmatpush.msra.mxu0 %v63
    %154 = vmatpush.msra.mxu0 %v62
    %155 = vmatpush.msra.mxu0 %v61
    %156 = vmatpush.msra.mxu0 %v60
    %157 = vmatpush.msra.mxu0 %v59
    %158 = vmatpush.msra.mxu0 %v58
    %159 = vmatpush.msra.mxu0 %v57
    %160 = vmatpush.msra.mxu0 %v56
    %161 = vmatpush.msra.mxu0 %v55
    %162 = vmatpush.msra.mxu0 %v54
    %163 = vmatpush.msra.mxu0 %v53
    %164 = vmatmul.f32.gmra.mxu0 %v102
    %v165 = vpop.f32.mrf.mxu0
    %v166 = vadd.f32 %v146, %v165
    %167 = vdwg.mxu0
    %168 = vmatpush.msra.mxu0 %v84
    %169 = vmatpush.msra.mxu0 %v83
    %170 = vmatpush.msra.mxu0 %v82
    %171 = vmatpush.msra.mxu0 %v81
    %172 = vmatpush.msra.mxu0 %v80
    %173 = vmatpush.msra.mxu0 %v79
    %174 = vmatpush.msra.mxu0 %v78
    %175 = vmatpush.msra.mxu0 %v77
    %176 = vmatpush.msra.mxu0 %v76
    %177 = vmatpush.msra.mxu0 %v75
    %178 = vmatpush.msra.mxu0 %v74
    %179 = vmatpush.msra.mxu0 %v73
    %180 = vmatpush.msra.mxu0 %v72
    %181 = vmatpush.msra.mxu0 %v71
    %182 = vmatpush.msra.mxu0 %v70
    %183 = vmatpush.msra.mxu0 %v69
    %184 = vmatmul.f32.gmra.mxu0 %v103
    %v185 = vpop.f32.mrf.mxu0
    %v186 = vadd.f32 %v166, %v185
    %187 = vdwg.mxu0
    %vm188 = vcmask 74752
    %189 = vst.msk [vmem:[#allocation2] sm:$0x3] %vm188, %v186
    // Predicated region
    $region14: #{_lambda_.37} parent=1 // pred_check
      _
    $region15: #{_lambda_.37} parent=1 // pred_check_branch
      %191 = sbr.rel (0) target = $region17
    $region16: #{_lambda_.37} parent=1 // pred_region
      %193 = vsyncadd [#allocation3], 0
      %s195 = sshll.u32 [#allocation2], 4
      %s196 = int_to_ptr.vmem [resolvable:$true] %s195
      %s197 = sshll.u32 %s3, 4
      %s198 = int_to_ptr.hbm [resolvable:$true] %s197
      %200 = dma.vmem_to_hbm [thread:$0]  %s196, 32, %s198, [#allocation3]
    $region17: #{_lambda_.37} parent=1 // pred_fallthru
      _
    // Predicated region
    $region18: #{_lambda_.37} parent=1 // pred_check
      _
    $region19: #{_lambda_.37} parent=1 // pred_check_branch
      %202 = sbr.rel (0) target = $region21
    $region20: #{_lambda_.37} parent=1 // pred_region
      %204 = dma.done [#allocation3], 32
    $region21: #{_lambda_.37} parent=1 // pred_fallthru
      _
    %205 = vsyncpa [#allocation3], 1

// kernel: _lambda_.33
$region0: #{_lambda_.33}
  #allocation0 [shape = 'u32[]', space=smem, size = 0x4, offset = 0x4, fixed_abs, tag = 'smem constant byte address 0x4 - core index']
  #allocation1 [shape = 'u32[72,128]{1,0:T(1,128)}', space=vmem, size = 0x9000, scoped, tag = 'internal scratch']
  %s0 = inlined_call_operand.vmem [shape: bf16[2,256], index: 0, kind: input, shape index: {}]
  %s1 = inlined_call_operand.vmem [shape: bf16[256,512], index: 1, kind: input, shape index: {}]
  %s2 = inlined_call_operand.vmem [shape: f32[1,512], index: 2, kind: input, shape index: {}]
  %s3 = inlined_call_operand.vmem [shape: bf16[2,512], index: 3, kind: output, shape index: {}]
  %s4 = sld [smem:[#allocation0]]
  $region22: #{_lambda_.33} parent=0
    _
  %s6 = ssub.s32 1, %s4
  %s7 = scalar_select 0, %s6, %s4
  // Predicated region
  $region2: #{_lambda_.33} parent=0 // pred_check
    _
  $region3: #{_lambda_.33} parent=0 // pred_check_branch
    %9 = sbr.rel (0) target = $region5
  $region4: #{_lambda_.33} parent=0 // pred_region
    _
  $region5: #{_lambda_.33} parent=0 // pred_fallthru
    _
  // Predicated region
  $region6: #{_lambda_.33} parent=0 // pred_check
    _
  $region7: #{_lambda_.33} parent=0 // pred_check_branch
    %11 = sbr.rel (0) target = $region9
  $region8: #{_lambda_.33} parent=0 // pred_region
    _
  $region9: #{_lambda_.33} parent=0 // pred_fallthru
    _
  // Predicated region
  $region10: #{_lambda_.33} parent=0 // pred_check
    _
  $region11: #{_lambda_.33} parent=0 // pred_check_branch
    %13 = sbr.rel (0) target = $region13
  $region12: #{_lambda_.33} parent=0 // pred_region
    _
  $region13: #{_lambda_.33} parent=0 // pred_fallthru
    _
  %v14 = vld [vmem:[%s0] sm:$0x3]
  %v15 = vld [vmem:[%s1] sm:$0xff]
  %v16 = vld [vmem:[%s1 + $0x8] sm:$0xff]
  %v17 = vld [vmem:[%s1 + $0x10] sm:$0xff]
  %v18 = vld [vmem:[%s1 + $0x18] sm:$0xff]
  %v19 = vld [vmem:[%s1 + $0x20] sm:$0xff]
  %v20 = vld [vmem:[%s1 + $0x28] sm:$0xff]
  %v21 = vld [vmem:[%s1 + $0x30] sm:$0xff]
  %v22 = vld [vmem:[%s1 + $0x38] sm:$0xff]
  %v23 = vld [vmem:[%s1 + $0x40] sm:$0xff]
  %v24 = vld [vmem:[%s1 + $0x48] sm:$0xff]
  %v25 = vld [vmem:[%s1 + $0x50] sm:$0xff]
  %v26 = vld [vmem:[%s1 + $0x58] sm:$0xff]
  %v27 = vld [vmem:[%s1 + $0x60] sm:$0xff]
  %v28 = vld [vmem:[%s1 + $0x68] sm:$0xff]
  %v29 = vld [vmem:[%s1 + $0x70] sm:$0xff]
  %v30 = vld [vmem:[%s1 + $0x78] sm:$0xff]
  %v31 = vld [vmem:[%s1 + $0x80] sm:$0xff]
  %v32 = vld [vmem:[%s1 + $0x88] sm:$0xff]
  %v33 = vld [vmem:[%s1 + $0x90] sm:$0xff]
  %v34 = vld [vmem:[%s1 + $0x98] sm:$0xff]
  %v35 = vld [vmem:[%s1 + $0xa0] sm:$0xff]
  %v36 = vld [vmem:[%s1 + $0xa8] sm:$0xff]
  %v37 = vld [vmem:[%s1 + $0xb0] sm:$0xff]
  %v38 = vld [vmem:[%s1 + $0xb8] sm:$0xff]
  %v39 = vld [vmem:[%s1 + $0xc0] sm:$0xff]
  %v40 = vld [vmem:[%s1 + $0xc8] sm:$0xff]
  %v41 = vld [vmem:[%s1 + $0xd0] sm:$0xff]
  %v42 = vld [vmem:[%s1 + $0xd8] sm:$0xff]
  %v43 = vld [vmem:[%s1 + $0xe0] sm:$0xff]
  %v44 = vld [vmem:[%s1 + $0xe8] sm:$0xff]
  %v45 = vld [vmem:[%s1 + $0xf0] sm:$0xff]
  %v46 = vld [vmem:[%s1 + $0xf8] sm:$0xff]
  %v47 = vld [vmem:[%s1 + $0x100] sm:$0xff]
  %v48 = vld [vmem:[%s1 + $0x108] sm:$0xff]
  %v49 = vld [vmem:[%s1 + $0x110] sm:$0xff]
  %v50 = vld [vmem:[%s1 + $0x118] sm:$0xff]
  %v51 = vld [vmem:[%s1 + $0x120] sm:$0xff]
  %v52 = vld [vmem:[%s1 + $0x128] sm:$0xff]
  %v53 = vld [vmem:[%s1 + $0x130] sm:$0xff]
  %v54 = vld [vmem:[%s1 + $0x138] sm:$0xff]
  %v55 = vld [vmem:[%s1 + $0x140] sm:$0xff]
  %v56 = vld [vmem:[%s1 + $0x148] sm:$0xff]
  %v57 = vld [vmem:[%s1 + $0x150] sm:$0xff]
  %v58 = vld [vmem:[%s1 + $0x158] sm:$0xff]
  %v59 = vld [vmem:[%s1 + $0x160] sm:$0xff]
  %v60 = vld [vmem:[%s1 + $0x168] sm:$0xff]
  %v61 = vld [vmem:[%s1 + $0x170] sm:$0xff]
  %v62 = vld [vmem:[%s1 + $0x178] sm:$0xff]
  %v63 = vld [vmem:[%s1 + $0x180] sm:$0xff]
  %v64 = vld [vmem:[%s1 + $0x188] sm:$0xff]
  %v65 = vld [vmem:[%s1 + $0x190] sm:$0xff]
  %v66 = vld [vmem:[%s1 + $0x198] sm:$0xff]
  %v67 = vld [vmem:[%s1 + $0x1a0] sm:$0xff]
  %v68 = vld [vmem:[%s1 + $0x1a8] sm:$0xff]
  %v69 = vld [vmem:[%s1 + $0x1b0] sm:$0xff]
  %v70 = vld [vmem:[%s1 + $0x1b8] sm:$0xff]
  %v71 = vld [vmem:[%s1 + $0x1c0] sm:$0xff]
  %v72 = vld [vmem:[%s1 + $0x1c8] sm:$0xff]
  %v73 = vld [vmem:[%s1 + $0x1d0] sm:$0xff]
  %v74 = vld [vmem:[%s1 + $0x1d8] sm:$0xff]
  %v75 = vld [vmem:[%s1 + $0x1e0] sm:$0xff]
  %v76 = vld [vmem:[%s1 + $0x1e8] sm:$0xff]
  %v77 = vld [vmem:[%s1 + $0x1f0] sm:$0xff]
  %v78 = vld [vmem:[%s1 + $0x1f8] sm:$0xff]
  %v79 = vld [vmem:[%s2] sm:$0xf]
  %v81 = vperm.slane %v79, 0
  %v82 = vperm.slane %v79, 1
  %v83 = vperm.slane %v79, 2
  %v84 = vperm.slane %v79, 3
  %90 = vst [vmem:[#allocation1] ss:$9 sm:$0xff] %v14
  %v91 = vld [vmem:[#allocation1] sm:$0xff]
  %v92 = vld [vmem:[#allocation1 + $0x9] sm:$0xff]
  %v159 = vunpack.c.l.b16 %v15
  %v160 = vunpack.c.h.b16 %v15
  %v161 = vunpack.c.l.b16 %v16
  %v162 = vunpack.c.h.b16 %v16
  %v163 = vunpack.c.l.b16 %v17
  %v164 = vunpack.c.h.b16 %v17
  %v165 = vunpack.c.l.b16 %v18
  %v166 = vunpack.c.h.b16 %v18
  %v167 = vunpack.c.l.b16 %v19
  %v168 = vunpack.c.h.b16 %v19
  %v169 = vunpack.c.l.b16 %v20
  %v170 = vunpack.c.h.b16 %v20
  %v171 = vunpack.c.l.b16 %v21
  %v172 = vunpack.c.h.b16 %v21
  %v173 = vunpack.c.l.b16 %v22
  %v174 = vunpack.c.h.b16 %v22
  %v175 = vunpack.c.l.b16 %v23
  %v176 = vunpack.c.h.b16 %v23
  %v177 = vunpack.c.l.b16 %v24
  %v178 = vunpack.c.h.b16 %v24
  %v179 = vunpack.c.l.b16 %v25
  %v180 = vunpack.c.h.b16 %v25
  %v181 = vunpack.c.l.b16 %v26
  %v182 = vunpack.c.h.b16 %v26
  %v183 = vunpack.c.l.b16 %v27
  %v184 = vunpack.c.h.b16 %v27
  %v185 = vunpack.c.l.b16 %v28
  %v186 = vunpack.c.h.b16 %v28
  %v187 = vunpack.c.l.b16 %v29
  %v188 = vunpack.c.h.b16 %v29
  %v189 = vunpack.c.l.b16 %v30
  %v190 = vunpack.c.h.b16 %v30
  %v191 = vunpack.c.l.b16 %v31
  %v192 = vunpack.c.h.b16 %v31
  %v193 = vunpack.c.l.b16 %v32
  %v194 = vunpack.c.h.b16 %v32
  %v195 = vunpack.c.l.b16 %v33
  %v196 = vunpack.c.h.b16 %v33
  %v197 = vunpack.c.l.b16 %v34
  %v198 = vunpack.c.h.b16 %v34
  %v199 = vunpack.c.l.b16 %v35
  %v200 = vunpack.c.h.b16 %v35
  %v201 = vunpack.c.l.b16 %v36
  %v202 = vunpack.c.h.b16 %v36
  %v203 = vunpack.c.l.b16 %v37
  %v204 = vunpack.c.h.b16 %v37
  %v205 = vunpack.c.l.b16 %v38
  %v206 = vunpack.c.h.b16 %v38
  %v207 = vunpack.c.l.b16 %v39
  %v208 = vunpack.c.h.b16 %v39
  %v209 = vunpack.c.l.b16 %v40
  %v210 = vunpack.c.h.b16 %v40
  %v211 = vunpack.c.l.b16 %v41
  %v212 = vunpack.c.h.b16 %v41
  %v213 = vunpack.c.l.b16 %v42
  %v214 = vunpack.c.h.b16 %v42
  %v215 = vunpack.c.l.b16 %v43
  %v216 = vunpack.c.h.b16 %v43
  %v217 = vunpack.c.l.b16 %v44
  %v218 = vunpack.c.h.b16 %v44
  %v219 = vunpack.c.l.b16 %v45
  %v220 = vunpack.c.h.b16 %v45
  %v221 = vunpack.c.l.b16 %v46
  %v222 = vunpack.c.h.b16 %v46
  %v223 = vunpack.c.l.b16 %v47
  %v224 = vunpack.c.h.b16 %v47
  %v225 = vunpack.c.l.b16 %v48
  %v226 = vunpack.c.h.b16 %v48
  %v227 = vunpack.c.l.b16 %v49
  %v228 = vunpack.c.h.b16 %v49
  %v229 = vunpack.c.l.b16 %v50
  %v230 = vunpack.c.h.b16 %v50
  %v231 = vunpack.c.l.b16 %v51
  %v232 = vunpack.c.h.b16 %v51
  %v233 = vunpack.c.l.b16 %v52
  %v234 = vunpack.c.h.b16 %v52
  %v235 = vunpack.c.l.b16 %v53
  %v236 = vunpack.c.h.b16 %v53
  %v237 = vunpack.c.l.b16 %v54
  %v238 = vunpack.c.h.b16 %v54
  %v239 = vunpack.c.l.b16 %v55
  %v240 = vunpack.c.h.b16 %v55
  %v241 = vunpack.c.l.b16 %v56
  %v242 = vunpack.c.h.b16 %v56
  %v243 = vunpack.c.l.b16 %v57
  %v244 = vunpack.c.h.b16 %v57
  %v245 = vunpack.c.l.b16 %v58
  %v246 = vunpack.c.h.b16 %v58
  %v247 = vunpack.c.l.b16 %v59
  %v248 = vunpack.c.h.b16 %v59
  %v249 = vunpack.c.l.b16 %v60
  %v250 = vunpack.c.h.b16 %v60
  %v251 = vunpack.c.l.b16 %v61
  %v252 = vunpack.c.h.b16 %v61
  %v253 = vunpack.c.l.b16 %v62
  %v254 = vunpack.c.h.b16 %v62
  %v255 = vunpack.c.l.b16 %v63
  %v256 = vunpack.c.h.b16 %v63
  %v257 = vunpack.c.l.b16 %v64
  %v258 = vunpack.c.h.b16 %v64
  %v259 = vunpack.c.l.b16 %v65
  %v260 = vunpack.c.h.b16 %v65
  %v261 = vunpack.c.l.b16 %v66
  %v262 = vunpack.c.h.b16 %v66
  %v263 = vunpack.c.l.b16 %v67
  %v264 = vunpack.c.h.b16 %v67
  %v265 = vunpack.c.l.b16 %v68
  %v266 = vunpack.c.h.b16 %v68
  %v267 = vunpack.c.l.b16 %v69
  %v268 = vunpack.c.h.b16 %v69
  %v269 = vunpack.c.l.b16 %v70
  %v270 = vunpack.c.h.b16 %v70
  %v271 = vunpack.c.l.b16 %v71
  %v272 = vunpack.c.h.b16 %v71
  %v273 = vunpack.c.l.b16 %v72
  %v274 = vunpack.c.h.b16 %v72
  %v275 = vunpack.c.l.b16 %v73
  %v276 = vunpack.c.h.b16 %v73
  %v277 = vunpack.c.l.b16 %v74
  %v278 = vunpack.c.h.b16 %v74
  %v279 = vunpack.c.l.b16 %v75
  %v280 = vunpack.c.h.b16 %v75
  %v281 = vunpack.c.l.b16 %v76
  %v282 = vunpack.c.h.b16 %v76
  %v283 = vunpack.c.l.b16 %v77
  %v284 = vunpack.c.h.b16 %v77
  %v285 = vunpack.c.l.b16 %v78
  %v286 = vunpack.c.h.b16 %v78
  %v287 = vpack.c.b16 %v163, %v159
  %v288 = vpack.c.b16 %v164, %v160
  %v289 = vpack.c.b16 %v165, %v161
  %v290 = vpack.c.b16 %v166, %v162
  %v291 = vpack.c.b16 %v171, %v167
  %v292 = vpack.c.b16 %v172, %v168
  %v293 = vpack.c.b16 %v173, %v169
  %v294 = vpack.c.b16 %v174, %v170
  %v295 = vpack.c.b16 %v179, %v175
  %v296 = vpack.c.b16 %v180, %v176
  %v297 = vpack.c.b16 %v181, %v177
  %v298 = vpack.c.b16 %v182, %v178
  %v299 = vpack.c.b16 %v187, %v183
  %v300 = vpack.c.b16 %v188, %v184
  %v301 = vpack.c.b16 %v189, %v185
  %v302 = vpack.c.b16 %v190, %v186
  %v303 = vpack.c.b16 %v195, %v191
  %v304 = vpack.c.b16 %v196, %v192
  %v305 = vpack.c.b16 %v197, %v193
  %v306 = vpack.c.b16 %v198, %v194
  %v307 = vpack.c.b16 %v203, %v199
  %v308 = vpack.c.b16 %v204, %v200
  %v309 = vpack.c.b16 %v205, %v201
  %v310 = vpack.c.b16 %v206, %v202
  %v311 = vpack.c.b16 %v211, %v207
  %v312 = vpack.c.b16 %v212, %v208
  %v313 = vpack.c.b16 %v213, %v209
  %v314 = vpack.c.b16 %v214, %v210
  %v315 = vpack.c.b16 %v219, %v215
  %v316 = vpack.c.b16 %v220, %v216
  %v317 = vpack.c.b16 %v221, %v217
  %v318 = vpack.c.b16 %v222, %v218
  %v319 = vpack.c.b16 %v227, %v223
  %v320 = vpack.c.b16 %v228, %v224
  %v321 = vpack.c.b16 %v229, %v225
  %v322 = vpack.c.b16 %v230, %v226
  %v323 = vpack.c.b16 %v235, %v231
  %v324 = vpack.c.b16 %v236, %v232
  %v325 = vpack.c.b16 %v237, %v233
  %v326 = vpack.c.b16 %v238, %v234
  %v327 = vpack.c.b16 %v243, %v239
  %v328 = vpack.c.b16 %v244, %v240
  %v329 = vpack.c.b16 %v245, %v241
  %v330 = vpack.c.b16 %v246, %v242
  %v331 = vpack.c.b16 %v251, %v247
  %v332 = vpack.c.b16 %v252, %v248
  %v333 = vpack.c.b16 %v253, %v249
  %v334 = vpack.c.b16 %v254, %v250
  %v335 = vpack.c.b16 %v259, %v255
  %v336 = vpack.c.b16 %v260, %v256
  %v337 = vpack.c.b16 %v261, %v257
  %v338 = vpack.c.b16 %v262, %v258
  %v339 = vpack.c.b16 %v267, %v263
  %v340 = vpack.c.b16 %v268, %v264
  %v341 = vpack.c.b16 %v269, %v265
  %v342 = vpack.c.b16 %v270, %v266
  %v343 = vpack.c.b16 %v275, %v271
  %v344 = vpack.c.b16 %v276, %v272
  %v345 = vpack.c.b16 %v277, %v273
  %v346 = vpack.c.b16 %v278, %v274
  %v347 = vpack.c.b16 %v283, %v279
  %v348 = vpack.c.b16 %v284, %v280
  %v349 = vpack.c.b16 %v285, %v281
  %v350 = vpack.c.b16 %v286, %v282
  %415 = vmatpush.bf16.msra.mxu0 %v315
  %416 = vmatpush.bf16.msra.mxu0 %v311
  %417 = vmatpush.bf16.msra.mxu0 %v307
  %418 = vmatpush.bf16.msra.mxu0 %v303
  %419 = vmatpush.bf16.msra.mxu0 %v299
  %420 = vmatpush.bf16.msra.mxu0 %v295
  %421 = vmatpush.bf16.msra.mxu0 %v291
  %422 = vmatpush.bf16.msra.mxu0 %v287
  %423 = vmatmul.bf16.gmra.mxu0 %v91
  %v424 = vpop.f32.mrf.mxu0
  %v425 = vadd.f32 %v81, %v424
  %v426 = vpop.f32.mrf.mxu0
  %427 = vdwg.mxu0
  %428 = vmatpush.bf16.msra.mxu0 %v347
  %429 = vmatpush.bf16.msra.mxu0 %v343
  %430 = vmatpush.bf16.msra.mxu0 %v339
  %431 = vmatpush.bf16.msra.mxu0 %v335
  %432 = vmatpush.bf16.msra.mxu0 %v331
  %433 = vmatpush.bf16.msra.mxu0 %v327
  %434 = vmatpush.bf16.msra.mxu0 %v323
  %435 = vmatpush.bf16.msra.mxu0 %v319
  %436 = vmatmul.bf16.gmra.mxu0 %v92
  %v437 = vpop.f32.mrf.mxu0
  %v438 = vadd.f32 %v425, %v437
  %v439 = vpop.f32.mrf.mxu0
  %440 = vdwg.mxu0
  %441 = vmatpush.bf16.msra.mxu0 %v316
  %442 = vmatpush.bf16.msra.mxu0 %v312
  %443 = vmatpush.bf16.msra.mxu0 %v308
  %444 = vmatpush.bf16.msra.mxu0 %v304
  %445 = vmatpush.bf16.msra.mxu0 %v300
  %446 = vmatpush.bf16.msra.mxu0 %v296
  %447 = vmatpush.bf16.msra.mxu0 %v292
  %448 = vmatpush.bf16.msra.mxu0 %v288
  %449 = vmatmul.bf16.gmra.mxu0 %v91
  %v450 = vpop.f32.mrf.mxu0
  %v451 = vadd.f32 %v82, %v450
  %v452 = vpop.f32.mrf.mxu0
  %453 = vdwg.mxu0
  %454 = vmatpush.bf16.msra.mxu0 %v348
  %455 = vmatpush.bf16.msra.mxu0 %v344
  %456 = vmatpush.bf16.msra.mxu0 %v340
  %457 = vmatpush.bf16.msra.mxu0 %v336
  %458 = vmatpush.bf16.msra.mxu0 %v332
  %459 = vmatpush.bf16.msra.mxu0 %v328
  %460 = vmatpush.bf16.msra.mxu0 %v324
  %461 = vmatpush.bf16.msra.mxu0 %v320
  %462 = vmatmul.bf16.gmra.mxu0 %v92
  %v463 = vpop.f32.mrf.mxu0
  %v464 = vadd.f32 %v451, %v463
  %v465 = vpop.f32.mrf.mxu0
  %466 = vdwg.mxu0
  %467 = vmatpush.bf16.msra.mxu0 %v317
  %468 = vmatpush.bf16.msra.mxu0 %v313
  %469 = vmatpush.bf16.msra.mxu0 %v309
  %470 = vmatpush.bf16.msra.mxu0 %v305
  %471 = vmatpush.bf16.msra.mxu0 %v301
  %472 = vmatpush.bf16.msra.mxu0 %v297
  %473 = vmatpush.bf16.msra.mxu0 %v293
  %474 = vmatpush.bf16.msra.mxu0 %v289
  %475 = vmatmul.bf16.gmra.mxu0 %v91
  %v476 = vpop.f32.mrf.mxu0
  %v477 = vadd.f32 %v83, %v476
  %v478 = vpop.f32.mrf.mxu0
  %479 = vdwg.mxu0
  %480 = vmatpush.bf16.msra.mxu0 %v349
  %481 = vmatpush.bf16.msra.mxu0 %v345
  %482 = vmatpush.bf16.msra.mxu0 %v341
  %483 = vmatpush.bf16.msra.mxu0 %v337
  %484 = vmatpush.bf16.msra.mxu0 %v333
  %485 = vmatpush.bf16.msra.mxu0 %v329
  %486 = vmatpush.bf16.msra.mxu0 %v325
  %487 = vmatpush.bf16.msra.mxu0 %v321
  %488 = vmatmul.bf16.gmra.mxu0 %v92
  %v489 = vpop.f32.mrf.mxu0
  %v490 = vadd.f32 %v477, %v489
  %v491 = vpop.f32.mrf.mxu0
  %492 = vdwg.mxu0
  %493 = vmatpush.bf16.msra.mxu0 %v318
  %494 = vmatpush.bf16.msra.mxu0 %v314
  %495 = vmatpush.bf16.msra.mxu0 %v310
  %496 = vmatpush.bf16.msra.mxu0 %v306
  %497 = vmatpush.bf16.msra.mxu0 %v302
  %498 = vmatpush.bf16.msra.mxu0 %v298
  %499 = vmatpush.bf16.msra.mxu0 %v294
  %500 = vmatpush.bf16.msra.mxu0 %v290
  %501 = vmatmul.bf16.gmra.mxu0 %v91
  %v502 = vpop.f32.mrf.mxu0
  %v503 = vadd.f32 %v84, %v502
  %v504 = vpop.f32.mrf.mxu0
  %505 = vdwg.mxu0
  %506 = vmatpush.bf16.msra.mxu0 %v350
  %507 = vmatpush.bf16.msra.mxu0 %v346
  %508 = vmatpush.bf16.msra.mxu0 %v342
  %509 = vmatpush.bf16.msra.mxu0 %v338
  %510 = vmatpush.bf16.msra.mxu0 %v334
  %511 = vmatpush.bf16.msra.mxu0 %v330
  %512 = vmatpush.bf16.msra.mxu0 %v326
  %513 = vmatpush.bf16.msra.mxu0 %v322
  %514 = vmatmul.bf16.gmra.mxu0 %v92
  %v515 = vpop.f32.mrf.mxu0
  %v516 = vadd.f32 %v503, %v515
  %v517 = vpop.f32.mrf.mxu0
  %518 = vdwg.mxu0
  %v519 = vpack.c.bf16 %v464, %v438
  %v520 = vpack.c.bf16 %v516, %v490
  %v523 = vrot.slane %v519, 3
  %v524 = vrot.slane %v520, 6
  %v525 = vrot.slane %v520, 1
  %vm526 = vcmask 1040384
  %v529 = vsel %vm526, %v519, %v523
  %vm530 = vcmask 1042434
  %v533 = vsel %vm530, %v524, %v525
  %vm534 = vcmask 1041408
  %v535 = vsel %vm534, %v529, %v533
  %537 = vst [vmem:[%s3] sm:$0xf] %v535
  // Predicated region
  $region14: #{_lambda_.33} parent=0 // pred_check
    _
  $region15: #{_lambda_.33} parent=0 // pred_check_branch
    %539 = sbr.rel (0) target = $region17
  $region16: #{_lambda_.33} parent=0 // pred_region
    _
  $region17: #{_lambda_.33} parent=0 // pred_fallthru
    _
  // Predicated region
  $region18: #{_lambda_.33} parent=0 // pred_check
    _
  $region19: #{_lambda_.33} parent=0 // pred_check_branch
    %541 = sbr.rel (0) target = $region21
  $region20: #{_lambda_.33} parent=0 // pred_region
    _
  $region21: #{_lambda_.33} parent=0 // pred_fallthru
    _

// kernel: _lambda_.36
$region0: #{_lambda_.36}
  #allocation0 [shape = 'u32[]', space=smem, size = 0x4, offset = 0x4, fixed_abs, tag = 'smem constant byte address 0x4 - core index']
  #allocation1 [shape = 'u32[72,128]{1,0:T(1,128)}', space=vmem, size = 0x9000, scoped, tag = 'internal scratch']
  %s0 = inlined_call_operand.vmem [shape: bf16[2,256], index: 0, kind: input, shape index: {}]
  %s1 = inlined_call_operand.vmem [shape: bf16[256,512], index: 1, kind: input, shape index: {}]
  %s2 = inlined_call_operand.vmem [shape: f32[1,512], index: 2, kind: input, shape index: {}]
  %s3 = inlined_call_operand.vmem [shape: bf16[2,512], index: 3, kind: input, shape index: {}]
  %s4 = inlined_call_operand.vmem [shape: bf16[2,512], index: 4, kind: output, shape index: {}]
  %s5 = sld [smem:[#allocation0]]
  $region26: #{_lambda_.36} parent=0
    _
  %s7 = ssub.s32 1, %s5
  %s8 = scalar_select 0, %s7, %s5
  // Predicated region
  $region2: #{_lambda_.36} parent=0 // pred_check
    _
  $region3: #{_lambda_.36} parent=0 // pred_check_branch
    %10 = sbr.rel (0) target = $region5
  $region4: #{_lambda_.36} parent=0 // pred_region
    _
  $region5: #{_lambda_.36} parent=0 // pred_fallthru
    _
  // Predicated region
  $region6: #{_lambda_.36} parent=0 // pred_check
    _
  $region7: #{_lambda_.36} parent=0 // pred_check_branch
    %12 = sbr.rel (0) target = $region9
  $region8: #{_lambda_.36} parent=0 // pred_region
    _
  $region9: #{_lambda_.36} parent=0 // pred_fallthru
    _
  // Predicated region
  $region10: #{_lambda_.36} parent=0 // pred_check
    _
  $region11: #{_lambda_.36} parent=0 // pred_check_branch
    %14 = sbr.rel (0) target = $region13
  $region12: #{_lambda_.36} parent=0 // pred_region
    _
  $region13: #{_lambda_.36} parent=0 // pred_fallthru
    _
  // Predicated region
  $region14: #{_lambda_.36} parent=0 // pred_check
    _
  $region15: #{_lambda_.36} parent=0 // pred_check_branch
    %16 = sbr.rel (0) target = $region17
  $region16: #{_lambda_.36} parent=0 // pred_region
    _
  $region17: #{_lambda_.36} parent=0 // pred_fallthru
    _
  %v17 = vld [vmem:[%s0] sm:$0x3]
  %v18 = vld [vmem:[%s1] sm:$0xff]
  %v19 = vld [vmem:[%s1 + $0x8] sm:$0xff]
  %v20 = vld [vmem:[%s1 + $0x10] sm:$0xff]
  %v21 = vld [vmem:[%s1 + $0x18] sm:$0xff]
  %v22 = vld [vmem:[%s1 + $0x20] sm:$0xff]
  %v23 = vld [vmem:[%s1 + $0x28] sm:$0xff]
  %v24 = vld [vmem:[%s1 + $0x30] sm:$0xff]
  %v25 = vld [vmem:[%s1 + $0x38] sm:$0xff]
  %v26 = vld [vmem:[%s1 + $0x40] sm:$0xff]
  %v27 = vld [vmem:[%s1 + $0x48] sm:$0xff]
  %v28 = vld [vmem:[%s1 + $0x50] sm:$0xff]
  %v29 = vld [vmem:[%s1 + $0x58] sm:$0xff]
  %v30 = vld [vmem:[%s1 + $0x60] sm:$0xff]
  %v31 = vld [vmem:[%s1 + $0x68] sm:$0xff]
  %v32 = vld [vmem:[%s1 + $0x70] sm:$0xff]
  %v33 = vld [vmem:[%s1 + $0x78] sm:$0xff]
  %v34 = vld [vmem:[%s1 + $0x80] sm:$0xff]
  %v35 = vld [vmem:[%s1 + $0x88] sm:$0xff]
  %v36 = vld [vmem:[%s1 + $0x90] sm:$0xff]
  %v37 = vld [vmem:[%s1 + $0x98] sm:$0xff]
  %v38 = vld [vmem:[%s1 + $0xa0] sm:$0xff]
  %v39 = vld [vmem:[%s1 + $0xa8] sm:$0xff]
  %v40 = vld [vmem:[%s1 + $0xb0] sm:$0xff]
  %v41 = vld [vmem:[%s1 + $0xb8] sm:$0xff]
  %v42 = vld [vmem:[%s1 + $0xc0] sm:$0xff]
  %v43 = vld [vmem:[%s1 + $0xc8] sm:$0xff]
  %v44 = vld [vmem:[%s1 + $0xd0] sm:$0xff]
  %v45 = vld [vmem:[%s1 + $0xd8] sm:$0xff]
  %v46 = vld [vmem:[%s1 + $0xe0] sm:$0xff]
  %v47 = vld [vmem:[%s1 + $0xe8] sm:$0xff]
  %v48 = vld [vmem:[%s1 + $0xf0] sm:$0xff]
  %v49 = vld [vmem:[%s1 + $0xf8] sm:$0xff]
  %v50 = vld [vmem:[%s1 + $0x100] sm:$0xff]
  %v51 = vld [vmem:[%s1 + $0x108] sm:$0xff]
  %v52 = vld [vmem:[%s1 + $0x110] sm:$0xff]
  %v53 = vld [vmem:[%s1 + $0x118] sm:$0xff]
  %v54 = vld [vmem:[%s1 + $0x120] sm:$0xff]
  %v55 = vld [vmem:[%s1 + $0x128] sm:$0xff]
  %v56 = vld [vmem:[%s1 + $0x130] sm:$0xff]
  %v57 = vld [vmem:[%s1 + $0x138] sm:$0xff]
  %v58 = vld [vmem:[%s1 + $0x140] sm:$0xff]
  %v59 = vld [vmem:[%s1 + $0x148] sm:$0xff]
  %v60 = vld [vmem:[%s1 + $0x150] sm:$0xff]
  %v61 = vld [vmem:[%s1 + $0x158] sm:$0xff]
  %v62 = vld [vmem:[%s1 + $0x160] sm:$0xff]
  %v63 = vld [vmem:[%s1 + $0x168] sm:$0xff]
  %v64 = vld [vmem:[%s1 + $0x170] sm:$0xff]
  %v65 = vld [vmem:[%s1 + $0x178] sm:$0xff]
  %v66 = vld [vmem:[%s1 + $0x180] sm:$0xff]
  %v67 = vld [vmem:[%s1 + $0x188] sm:$0xff]
  %v68 = vld [vmem:[%s1 + $0x190] sm:$0xff]
  %v69 = vld [vmem:[%s1 + $0x198] sm:$0xff]
  %v70 = vld [vmem:[%s1 + $0x1a0] sm:$0xff]
  %v71 = vld [vmem:[%s1 + $0x1a8] sm:$0xff]
  %v72 = vld [vmem:[%s1 + $0x1b0] sm:$0xff]
  %v73 = vld [vmem:[%s1 + $0x1b8] sm:$0xff]
  %v74 = vld [vmem:[%s1 + $0x1c0] sm:$0xff]
  %v75 = vld [vmem:[%s1 + $0x1c8] sm:$0xff]
  %v76 = vld [vmem:[%s1 + $0x1d0] sm:$0xff]
  %v77 = vld [vmem:[%s1 + $0x1d8] sm:$0xff]
  %v78 = vld [vmem:[%s1 + $0x1e0] sm:$0xff]
  %v79 = vld [vmem:[%s1 + $0x1e8] sm:$0xff]
  %v80 = vld [vmem:[%s1 + $0x1f0] sm:$0xff]
  %v81 = vld [vmem:[%s1 + $0x1f8] sm:$0xff]
  %v82 = vld [vmem:[%s2] sm:$0xf]
  %v84 = vperm.slane %v82, 0
  %v85 = vperm.slane %v82, 1
  %v86 = vperm.slane %v82, 2
  %v87 = vperm.slane %v82, 3
  %93 = vst [vmem:[#allocation1] ss:$9 sm:$0xff] %v17
  %v94 = vld [vmem:[#allocation1] sm:$0xff]
  %v95 = vld [vmem:[#allocation1 + $0x9] sm:$0xff]
  %v162 = vunpack.c.l.b16 %v18
  %v163 = vunpack.c.h.b16 %v18
  %v164 = vunpack.c.l.b16 %v19
  %v165 = vunpack.c.h.b16 %v19
  %v166 = vunpack.c.l.b16 %v20
  %v167 = vunpack.c.h.b16 %v20
  %v168 = vunpack.c.l.b16 %v21
  %v169 = vunpack.c.h.b16 %v21
  %v170 = vunpack.c.l.b16 %v22
  %v171 = vunpack.c.h.b16 %v22
  %v172 = vunpack.c.l.b16 %v23
  %v173 = vunpack.c.h.b16 %v23
  %v174 = vunpack.c.l.b16 %v24
  %v175 = vunpack.c.h.b16 %v24
  %v176 = vunpack.c.l.b16 %v25
  %v177 = vunpack.c.h.b16 %v25
  %v178 = vunpack.c.l.b16 %v26
  %v179 = vunpack.c.h.b16 %v26
  %v180 = vunpack.c.l.b16 %v27
  %v181 = vunpack.c.h.b16 %v27
  %v182 = vunpack.c.l.b16 %v28
  %v183 = vunpack.c.h.b16 %v28
  %v184 = vunpack.c.l.b16 %v29
  %v185 = vunpack.c.h.b16 %v29
  %v186 = vunpack.c.l.b16 %v30
  %v187 = vunpack.c.h.b16 %v30
  %v188 = vunpack.c.l.b16 %v31
  %v189 = vunpack.c.h.b16 %v31
  %v190 = vunpack.c.l.b16 %v32
  %v191 = vunpack.c.h.b16 %v32
  %v192 = vunpack.c.l.b16 %v33
  %v193 = vunpack.c.h.b16 %v33
  %v194 = vunpack.c.l.b16 %v34
  %v195 = vunpack.c.h.b16 %v34
  %v196 = vunpack.c.l.b16 %v35
  %v197 = vunpack.c.h.b16 %v35
  %v198 = vunpack.c.l.b16 %v36
  %v199 = vunpack.c.h.b16 %v36
  %v200 = vunpack.c.l.b16 %v37
  %v201 = vunpack.c.h.b16 %v37
  %v202 = vunpack.c.l.b16 %v38
  %v203 = vunpack.c.h.b16 %v38
  %v204 = vunpack.c.l.b16 %v39
  %v205 = vunpack.c.h.b16 %v39
  %v206 = vunpack.c.l.b16 %v40
  %v207 = vunpack.c.h.b16 %v40
  %v208 = vunpack.c.l.b16 %v41
  %v209 = vunpack.c.h.b16 %v41
  %v210 = vunpack.c.l.b16 %v42
  %v211 = vunpack.c.h.b16 %v42
  %v212 = vunpack.c.l.b16 %v43
  %v213 = vunpack.c.h.b16 %v43
  %v214 = vunpack.c.l.b16 %v44
  %v215 = vunpack.c.h.b16 %v44
  %v216 = vunpack.c.l.b16 %v45
  %v217 = vunpack.c.h.b16 %v45
  %v218 = vunpack.c.l.b16 %v46
  %v219 = vunpack.c.h.b16 %v46
  %v220 = vunpack.c.l.b16 %v47
  %v221 = vunpack.c.h.b16 %v47
  %v222 = vunpack.c.l.b16 %v48
  %v223 = vunpack.c.h.b16 %v48
  %v224 = vunpack.c.l.b16 %v49
  %v225 = vunpack.c.h.b16 %v49
  %v226 = vunpack.c.l.b16 %v50
  %v227 = vunpack.c.h.b16 %v50
  %v228 = vunpack.c.l.b16 %v51
  %v229 = vunpack.c.h.b16 %v51
  %v230 = vunpack.c.l.b16 %v52
  %v231 = vunpack.c.h.b16 %v52
  %v232 = vunpack.c.l.b16 %v53
  %v233 = vunpack.c.h.b16 %v53
  %v234 = vunpack.c.l.b16 %v54
  %v235 = vunpack.c.h.b16 %v54
  %v236 = vunpack.c.l.b16 %v55
  %v237 = vunpack.c.h.b16 %v55
  %v238 = vunpack.c.l.b16 %v56
  %v239 = vunpack.c.h.b16 %v56
  %v240 = vunpack.c.l.b16 %v57
  %v241 = vunpack.c.h.b16 %v57
  %v242 = vunpack.c.l.b16 %v58
  %v243 = vunpack.c.h.b16 %v58
  %v244 = vunpack.c.l.b16 %v59
  %v245 = vunpack.c.h.b16 %v59
  %v246 = vunpack.c.l.b16 %v60
  %v247 = vunpack.c.h.b16 %v60
  %v248 = vunpack.c.l.b16 %v61
  %v249 = vunpack.c.h.b16 %v61
  %v250 = vunpack.c.l.b16 %v62
  %v251 = vunpack.c.h.b16 %v62
  %v252 = vunpack.c.l.b16 %v63
  %v253 = vunpack.c.h.b16 %v63
  %v254 = vunpack.c.l.b16 %v64
  %v255 = vunpack.c.h.b16 %v64
  %v256 = vunpack.c.l.b16 %v65
  %v257 = vunpack.c.h.b16 %v65
  %v258 = vunpack.c.l.b16 %v66
  %v259 = vunpack.c.h.b16 %v66
  %v260 = vunpack.c.l.b16 %v67
  %v261 = vunpack.c.h.b16 %v67
  %v262 = vunpack.c.l.b16 %v68
  %v263 = vunpack.c.h.b16 %v68
  %v264 = vunpack.c.l.b16 %v69
  %v265 = vunpack.c.h.b16 %v69
  %v266 = vunpack.c.l.b16 %v70
  %v267 = vunpack.c.h.b16 %v70
  %v268 = vunpack.c.l.b16 %v71
  %v269 = vunpack.c.h.b16 %v71
  %v270 = vunpack.c.l.b16 %v72
  %v271 = vunpack.c.h.b16 %v72
  %v272 = vunpack.c.l.b16 %v73
  %v273 = vunpack.c.h.b16 %v73
  %v274 = vunpack.c.l.b16 %v74
  %v275 = vunpack.c.h.b16 %v74
  %v276 = vunpack.c.l.b16 %v75
  %v277 = vunpack.c.h.b16 %v75
  %v278 = vunpack.c.l.b16 %v76
  %v279 = vunpack.c.h.b16 %v76
  %v280 = vunpack.c.l.b16 %v77
  %v281 = vunpack.c.h.b16 %v77
  %v282 = vunpack.c.l.b16 %v78
  %v283 = vunpack.c.h.b16 %v78
  %v284 = vunpack.c.l.b16 %v79
  %v285 = vunpack.c.h.b16 %v79
  %v286 = vunpack.c.l.b16 %v80
  %v287 = vunpack.c.h.b16 %v80
  %v288 = vunpack.c.l.b16 %v81
  %v289 = vunpack.c.h.b16 %v81
  %v290 = vpack.c.b16 %v166, %v162
  %v291 = vpack.c.b16 %v167, %v163
  %v292 = vpack.c.b16 %v168, %v164
  %v293 = vpack.c.b16 %v169, %v165
  %v294 = vpack.c.b16 %v174, %v170
  %v295 = vpack.c.b16 %v175, %v171
  %v296 = vpack.c.b16 %v176, %v172
  %v297 = vpack.c.b16 %v177, %v173
  %v298 = vpack.c.b16 %v182, %v178
  %v299 = vpack.c.b16 %v183, %v179
  %v300 = vpack.c.b16 %v184, %v180
  %v301 = vpack.c.b16 %v185, %v181
  %v302 = vpack.c.b16 %v190, %v186
  %v303 = vpack.c.b16 %v191, %v187
  %v304 = vpack.c.b16 %v192, %v188
  %v305 = vpack.c.b16 %v193, %v189
  %v306 = vpack.c.b16 %v198, %v194
  %v307 = vpack.c.b16 %v199, %v195
  %v308 = vpack.c.b16 %v200, %v196
  %v309 = vpack.c.b16 %v201, %v197
  %v310 = vpack.c.b16 %v206, %v202
  %v311 = vpack.c.b16 %v207, %v203
  %v312 = vpack.c.b16 %v208, %v204
  %v313 = vpack.c.b16 %v209, %v205
  %v314 = vpack.c.b16 %v214, %v210
  %v315 = vpack.c.b16 %v215, %v211
  %v316 = vpack.c.b16 %v216, %v212
  %v317 = vpack.c.b16 %v217, %v213
  %v318 = vpack.c.b16 %v222, %v218
  %v319 = vpack.c.b16 %v223, %v219
  %v320 = vpack.c.b16 %v224, %v220
  %v321 = vpack.c.b16 %v225, %v221
  %v322 = vpack.c.b16 %v230, %v226
  %v323 = vpack.c.b16 %v231, %v227
  %v324 = vpack.c.b16 %v232, %v228
  %v325 = vpack.c.b16 %v233, %v229
  %v326 = vpack.c.b16 %v238, %v234
  %v327 = vpack.c.b16 %v239, %v235
  %v328 = vpack.c.b16 %v240, %v236
  %v329 = vpack.c.b16 %v241, %v237
  %v330 = vpack.c.b16 %v246, %v242
  %v331 = vpack.c.b16 %v247, %v243
  %v332 = vpack.c.b16 %v248, %v244
  %v333 = vpack.c.b16 %v249, %v245
  %v334 = vpack.c.b16 %v254, %v250
  %v335 = vpack.c.b16 %v255, %v251
  %v336 = vpack.c.b16 %v256, %v252
  %v337 = vpack.c.b16 %v257, %v253
  %v338 = vpack.c.b16 %v262, %v258
  %v339 = vpack.c.b16 %v263, %v259
  %v340 = vpack.c.b16 %v264, %v260
  %v341 = vpack.c.b16 %v265, %v261
  %v342 = vpack.c.b16 %v270, %v266
  %v343 = vpack.c.b16 %v271, %v267
  %v344 = vpack.c.b16 %v272, %v268
  %v345 = vpack.c.b16 %v273, %v269
  %v346 = vpack.c.b16 %v278, %v274
  %v347 = vpack.c.b16 %v279, %v275
  %v348 = vpack.c.b16 %v280, %v276
  %v349 = vpack.c.b16 %v281, %v277
  %v350 = vpack.c.b16 %v286, %v282
  %v351 = vpack.c.b16 %v287, %v283
  %v352 = vpack.c.b16 %v288, %v284
  %v353 = vpack.c.b16 %v289, %v285
  %418 = vmatpush.bf16.msra.mxu0 %v318
  %419 = vmatpush.bf16.msra.mxu0 %v314
  %420 = vmatpush.bf16.msra.mxu0 %v310
  %421 = vmatpush.bf16.msra.mxu0 %v306
  %422 = vmatpush.bf16.msra.mxu0 %v302
  %423 = vmatpush.bf16.msra.mxu0 %v298
  %424 = vmatpush.bf16.msra.mxu0 %v294
  %425 = vmatpush.bf16.msra.mxu0 %v290
  %426 = vmatmul.bf16.gmra.mxu0 %v94
  %v427 = vpop.f32.mrf.mxu0
  %v428 = vadd.f32 %v84, %v427
  %v429 = vpop.f32.mrf.mxu0
  %430 = vdwg.mxu0
  %431 = vmatpush.bf16.msra.mxu0 %v350
  %432 = vmatpush.bf16.msra.mxu0 %v346
  %433 = vmatpush.bf16.msra.mxu0 %v342
  %434 = vmatpush.bf16.msra.mxu0 %v338
  %435 = vmatpush.bf16.msra.mxu0 %v334
  %436 = vmatpush.bf16.msra.mxu0 %v330
  %437 = vmatpush.bf16.msra.mxu0 %v326
  %438 = vmatpush.bf16.msra.mxu0 %v322
  %439 = vmatmul.bf16.gmra.mxu0 %v95
  %v440 = vpop.f32.mrf.mxu0
  %v441 = vadd.f32 %v428, %v440
  %v442 = vpop.f32.mrf.mxu0
  %443 = vdwg.mxu0
  %444 = vmatpush.bf16.msra.mxu0 %v319
  %445 = vmatpush.bf16.msra.mxu0 %v315
  %446 = vmatpush.bf16.msra.mxu0 %v311
  %447 = vmatpush.bf16.msra.mxu0 %v307
  %448 = vmatpush.bf16.msra.mxu0 %v303
  %449 = vmatpush.bf16.msra.mxu0 %v299
  %450 = vmatpush.bf16.msra.mxu0 %v295
  %451 = vmatpush.bf16.msra.mxu0 %v291
  %452 = vmatmul.bf16.gmra.mxu0 %v94
  %v453 = vpop.f32.mrf.mxu0
  %v454 = vadd.f32 %v85, %v453
  %v455 = vpop.f32.mrf.mxu0
  %456 = vdwg.mxu0
  %457 = vmatpush.bf16.msra.mxu0 %v351
  %458 = vmatpush.bf16.msra.mxu0 %v347
  %459 = vmatpush.bf16.msra.mxu0 %v343
  %460 = vmatpush.bf16.msra.mxu0 %v339
  %461 = vmatpush.bf16.msra.mxu0 %v335
  %462 = vmatpush.bf16.msra.mxu0 %v331
  %463 = vmatpush.bf16.msra.mxu0 %v327
  %464 = vmatpush.bf16.msra.mxu0 %v323
  %465 = vmatmul.bf16.gmra.mxu0 %v95
  %v466 = vpop.f32.mrf.mxu0
  %v467 = vadd.f32 %v454, %v466
  %v468 = vpop.f32.mrf.mxu0
  %469 = vdwg.mxu0
  %470 = vmatpush.bf16.msra.mxu0 %v320
  %471 = vmatpush.bf16.msra.mxu0 %v316
  %472 = vmatpush.bf16.msra.mxu0 %v312
  %473 = vmatpush.bf16.msra.mxu0 %v308
  %474 = vmatpush.bf16.msra.mxu0 %v304
  %475 = vmatpush.bf16.msra.mxu0 %v300
  %476 = vmatpush.bf16.msra.mxu0 %v296
  %477 = vmatpush.bf16.msra.mxu0 %v292
  %478 = vmatmul.bf16.gmra.mxu0 %v94
  %v479 = vpop.f32.mrf.mxu0
  %v480 = vadd.f32 %v86, %v479
  %v481 = vpop.f32.mrf.mxu0
  %482 = vdwg.mxu0
  %483 = vmatpush.bf16.msra.mxu0 %v352
  %484 = vmatpush.bf16.msra.mxu0 %v348
  %485 = vmatpush.bf16.msra.mxu0 %v344
  %486 = vmatpush.bf16.msra.mxu0 %v340
  %487 = vmatpush.bf16.msra.mxu0 %v336
  %488 = vmatpush.bf16.msra.mxu0 %v332
  %489 = vmatpush.bf16.msra.mxu0 %v328
  %490 = vmatpush.bf16.msra.mxu0 %v324
  %491 = vmatmul.bf16.gmra.mxu0 %v95
  %v492 = vpop.f32.mrf.mxu0
  %v493 = vadd.f32 %v480, %v492
  %v494 = vpop.f32.mrf.mxu0
  %495 = vdwg.mxu0
  %496 = vmatpush.bf16.msra.mxu0 %v321
  %497 = vmatpush.bf16.msra.mxu0 %v317
  %498 = vmatpush.bf16.msra.mxu0 %v313
  %499 = vmatpush.bf16.msra.mxu0 %v309
  %500 = vmatpush.bf16.msra.mxu0 %v305
  %501 = vmatpush.bf16.msra.mxu0 %v301
  %502 = vmatpush.bf16.msra.mxu0 %v297
  %503 = vmatpush.bf16.msra.mxu0 %v293
  %504 = vmatmul.bf16.gmra.mxu0 %v94
  %v505 = vpop.f32.mrf.mxu0
  %v506 = vadd.f32 %v87, %v505
  %v507 = vpop.f32.mrf.mxu0
  %508 = vdwg.mxu0
  %509 = vmatpush.bf16.msra.mxu0 %v353
  %510 = vmatpush.bf16.msra.mxu0 %v349
  %511 = vmatpush.bf16.msra.mxu0 %v345
  %512 = vmatpush.bf16.msra.mxu0 %v341
  %513 = vmatpush.bf16.msra.mxu0 %v337
  %514 = vmatpush.bf16.msra.mxu0 %v333
  %515 = vmatpush.bf16.msra.mxu0 %v329
  %516 = vmatpush.bf16.msra.mxu0 %v325
  %517 = vmatmul.bf16.gmra.mxu0 %v95
  %v518 = vpop.f32.mrf.mxu0
  %v519 = vadd.f32 %v506, %v518
  %v520 = vpop.f32.mrf.mxu0
  %521 = vdwg.mxu0
  %v522 = vld [vmem:[%s3] sm:$0xf]
  %v523 = vunpack.c.l.bf16 %v522
  %525 = vst [vmem:[#allocation1] ss:$4 sm:$0xff] %v523
  %v526 = vld.sshfl [vmem:[#allocation1] sm:$0xff pattern:$0x73625140]
  %v527 = vld.sshfl [vmem:[#allocation1 + $0x8] sm:$0xff pattern:$0x73625140]
  %v528 = vld.sshfl [vmem:[#allocation1 + $0x10] sm:$0xff pattern:$0x73625140]
  %v529 = vld.sshfl [vmem:[#allocation1 + $0x18] sm:$0xff pattern:$0x73625140]
  %v534 = vadd.f32 %v441, %v526
  %v535 = vadd.f32 %v467, %v527
  %v536 = vadd.f32 %v493, %v528
  %v537 = vadd.f32 %v519, %v529
  %v538 = vmax.f32 %v534, 0.0
  %v539 = vmax.f32 %v535, 0.0
  %v540 = vmax.f32 %v536, 0.0
  %v541 = vmax.f32 %v537, 0.0
  %v542 = vpack.c.bf16 %v539, %v538
  %v543 = vpack.c.bf16 %v541, %v540
  %v546 = vrot.slane %v542, 3
  %v547 = vrot.slane %v543, 6
  %v548 = vrot.slane %v543, 1
  %vm549 = vcmask 1040384
  %v552 = vsel %vm549, %v542, %v546
  %vm553 = vcmask 1042434
  %v556 = vsel %vm553, %v547, %v548
  %vm557 = vcmask 1041408
  %v558 = vsel %vm557, %v552, %v556
  %560 = vst [vmem:[%s4] sm:$0xf] %v558
  // Predicated region
  $region18: #{_lambda_.36} parent=0 // pred_check
    _
  $region19: #{_lambda_.36} parent=0 // pred_check_branch
    %562 = sbr.rel (0) target = $region21
  $region20: #{_lambda_.36} parent=0 // pred_region
    _
  $region21: #{_lambda_.36} parent=0 // pred_fallthru
    _
  // Predicated region
  $region22: #{_lambda_.36} parent=0 // pred_check
    _
  $region23: #{_lambda_.36} parent=0 // pred_check_branch
    %564 = sbr.rel (0) target = $region25
  $region24: #{_lambda_.36} parent=0 // pred_region
    _
  $region25: #{_lambda_.36} parent=0 // pred_fallthru
    _

// kernel: _lambda_.35
$region0: #{_lambda_.35}
  #allocation0 [shape = 'u32[]', space=smem, size = 0x4, offset = 0x4, fixed_abs, tag = 'smem constant byte address 0x4 - core index']
  #allocation1 [shape = 'u32[72,128]{1,0:T(1,128)}', space=vmem, size = 0x9000, scoped, tag = 'internal scratch']
  %s0 = inlined_call_operand.vmem [shape: bf16[2,2304], index: 0, kind: input, shape index: {}]
  %s1 = inlined_call_operand.vmem [shape: bf16[2304,256], index: 1, kind: input, shape index: {}]
  %s2 = inlined_call_operand.vmem [shape: f32[1,256], index: 2, kind: input, shape index: {}]
  %s3 = inlined_call_operand.vmem [shape: bf16[2,256], index: 3, kind: output, shape index: {}]
  %s4 = sld [smem:[#allocation0]]
  $region22: #{_lambda_.35} parent=0
    _
  %s6 = ssub.s32 1, %s4
  %s7 = scalar_select 0, %s6, %s4
  // Predicated region
  $region2: #{_lambda_.35} parent=0 // pred_check
    _
  $region3: #{_lambda_.35} parent=0 // pred_check_branch
    %9 = sbr.rel (0) target = $region5
  $region4: #{_lambda_.35} parent=0 // pred_region
    _
  $region5: #{_lambda_.35} parent=0 // pred_fallthru
    _
  // Predicated region
  $region6: #{_lambda_.35} parent=0 // pred_check
    _
  $region7: #{_lambda_.35} parent=0 // pred_check_branch
    %11 = sbr.rel (0) target = $region9
  $region8: #{_lambda_.35} parent=0 // pred_region
    _
  $region9: #{_lambda_.35} parent=0 // pred_fallthru
    _
  // Predicated region
  $region10: #{_lambda_.35} parent=0 // pred_check
    _
  $region11: #{_lambda_.35} parent=0 // pred_check_branch
    %13 = sbr.rel (0) target = $region13
  $region12: #{_lambda_.35} parent=0 // pred_region
    _
  $region13: #{_lambda_.35} parent=0 // pred_fallthru
    _
  %v14 = vld [vmem:[%s0] sm:$0xff]
  %v15 = vld [vmem:[%s0 + $0x8] sm:$0xff]
  %v16 = vld [vmem:[%s0 + $0x10] sm:$0x3]
  %v17 = vld [vmem:[%s1] sm:$0xff]
  %v18 = vld [vmem:[%s1 + $0x8] sm:$0xff]
  %v19 = vld [vmem:[%s1 + $0x10] sm:$0xff]
  %v20 = vld [vmem:[%s1 + $0x18] sm:$0xff]
  %v21 = vld [vmem:[%s1 + $0x20] sm:$0xff]
  %v22 = vld [vmem:[%s1 + $0x28] sm:$0xff]
  %v23 = vld [vmem:[%s1 + $0x30] sm:$0xff]
  %v24 = vld [vmem:[%s1 + $0x38] sm:$0xff]
  %v25 = vld [vmem:[%s1 + $0x40] sm:$0xff]
  %v26 = vld [vmem:[%s1 + $0x48] sm:$0xff]
  %v27 = vld [vmem:[%s1 + $0x50] sm:$0xff]
  %v28 = vld [vmem:[%s1 + $0x58] sm:$0xff]
  %v29 = vld [vmem:[%s1 + $0x60] sm:$0xff]
  %v30 = vld [vmem:[%s1 + $0x68] sm:$0xff]
  %v31 = vld [vmem:[%s1 + $0x70] sm:$0xff]
  %v32 = vld [vmem:[%s1 + $0x78] sm:$0xff]
  %v33 = vld [vmem:[%s1 + $0x80] sm:$0xff]
  %v34 = vld [vmem:[%s1 + $0x88] sm:$0xff]
  %v35 = vld [vmem:[%s1 + $0x90] sm:$0xff]
  %v36 = vld [vmem:[%s1 + $0x98] sm:$0xff]
  %v37 = vld [vmem:[%s1 + $0xa0] sm:$0xff]
  %v38 = vld [vmem:[%s1 + $0xa8] sm:$0xff]
  %v39 = vld [vmem:[%s1 + $0xb0] sm:$0xff]
  %v40 = vld [vmem:[%s1 + $0xb8] sm:$0xff]
  %v41 = vld [vmem:[%s1 + $0xc0] sm:$0xff]
  %v42 = vld [vmem:[%s1 + $0xc8] sm:$0xff]
  %v43 = vld [vmem:[%s1 + $0xd0] sm:$0xff]
  %v44 = vld [vmem:[%s1 + $0xd8] sm:$0xff]
  %v45 = vld [vmem:[%s1 + $0xe0] sm:$0xff]
  %v46 = vld [vmem:[%s1 + $0xe8] sm:$0xff]
  %v47 = vld [vmem:[%s1 + $0xf0] sm:$0xff]
  %v48 = vld [vmem:[%s1 + $0xf8] sm:$0xff]
  %v49 = vld [vmem:[%s1 + $0x100] sm:$0xff]
  %v50 = vld [vmem:[%s1 + $0x108] sm:$0xff]
  %v51 = vld [vmem:[%s1 + $0x110] sm:$0xff]
  %v52 = vld [vmem:[%s1 + $0x118] sm:$0xff]
  %v53 = vld [vmem:[%s1 + $0x120] sm:$0xff]
  %v54 = vld [vmem:[%s1 + $0x128] sm:$0xff]
  %v55 = vld [vmem:[%s1 + $0x130] sm:$0xff]
  %v56 = vld [vmem:[%s1 + $0x138] sm:$0xff]
  %v57 = vld [vmem:[%s1 + $0x140] sm:$0xff]
  %v58 = vld [vmem:[%s1 + $0x148] sm:$0xff]
  %v59 = vld [vmem:[%s1 + $0x150] sm:$0xff]
  %v60 = vld [vmem:[%s1 + $0x158] sm:$0xff]
  %v61 = vld [vmem:[%s1 + $0x160] sm:$0xff]
  %v62 = vld [vmem:[%s1 + $0x168] sm:$0xff]
  %v63 = vld [vmem:[%s1 + $0x170] sm:$0xff]
  %v64 = vld [vmem:[%s1 + $0x178] sm:$0xff]
  %v65 = vld [vmem:[%s1 + $0x180] sm:$0xff]
  %v66 = vld [vmem:[%s1 + $0x188] sm:$0xff]
  %v67 = vld [vmem:[%s1 + $0x190] sm:$0xff]
  %v68 = vld [vmem:[%s1 + $0x198] sm:$0xff]
  %v69 = vld [vmem:[%s1 + $0x1a0] sm:$0xff]
  %v70 = vld [vmem:[%s1 + $0x1a8] sm:$0xff]
  %v71 = vld [vmem:[%s1 + $0x1b0] sm:$0xff]
  %v72 = vld [vmem:[%s1 + $0x1b8] sm:$0xff]
  %v73 = vld [vmem:[%s1 + $0x1c0] sm:$0xff]
  %v74 = vld [vmem:[%s1 + $0x1c8] sm:$0xff]
  %v75 = vld [vmem:[%s1 + $0x1d0] sm:$0xff]
  %v76 = vld [vmem:[%s1 + $0x1d8] sm:$0xff]
  %v77 = vld [vmem:[%s1 + $0x1e0] sm:$0xff]
  %v78 = vld [vmem:[%s1 + $0x1e8] sm:$0xff]
  %v79 = vld [vmem:[%s1 + $0x1f0] sm:$0xff]
  %v80 = vld [vmem:[%s1 + $0x1f8] sm:$0xff]
  %v81 = vld [vmem:[%s1 + $0x200] sm:$0xff]
  %v82 = vld [vmem:[%s1 + $0x208] sm:$0xff]
  %v83 = vld [vmem:[%s1 + $0x210] sm:$0xff]
  %v84 = vld [vmem:[%s1 + $0x218] sm:$0xff]
  %v85 = vld [vmem:[%s1 + $0x220] sm:$0xff]
  %v86 = vld [vmem:[%s1 + $0x228] sm:$0xff]
  %v87 = vld [vmem:[%s1 + $0x230] sm:$0xff]
  %v88 = vld [vmem:[%s1 + $0x238] sm:$0xff]
  %v89 = vld [vmem:[%s1 + $0x240] sm:$0xff]
  %v90 = vld [vmem:[%s1 + $0x248] sm:$0xff]
  %v91 = vld [vmem:[%s1 + $0x250] sm:$0xff]
  %v92 = vld [vmem:[%s1 + $0x258] sm:$0xff]
  %v93 = vld [vmem:[%s1 + $0x260] sm:$0xff]
  %v94 = vld [vmem:[%s1 + $0x268] sm:$0xff]
  %v95 = vld [vmem:[%s1 + $0x270] sm:$0xff]
  %v96 = vld [vmem:[%s1 + $0x278] sm:$0xff]
  %v97 = vld [vmem:[%s1 + $0x280] sm:$0xff]
  %v98 = vld [vmem:[%s1 + $0x288] sm:$0xff]
  %v99 = vld [vmem:[%s1 + $0x290] sm:$0xff]
  %v100 = vld [vmem:[%s1 + $0x298] sm:$0xff]
  %v101 = vld [vmem:[%s1 + $0x2a0] sm:$0xff]
  %v102 = vld [vmem:[%s1 + $0x2a8] sm:$0xff]
  %v103 = vld [vmem:[%s1 + $0x2b0] sm:$0xff]
  %v104 = vld [vmem:[%s1 + $0x2b8] sm:$0xff]
  %v105 = vld [vmem:[%s1 + $0x2c0] sm:$0xff]
  %v106 = vld [vmem:[%s1 + $0x2c8] sm:$0xff]
  %v107 = vld [vmem:[%s1 + $0x2d0] sm:$0xff]
  %v108 = vld [vmem:[%s1 + $0x2d8] sm:$0xff]
  %v109 = vld [vmem:[%s1 + $0x2e0] sm:$0xff]
  %v110 = vld [vmem:[%s1 + $0x2e8] sm:$0xff]
  %v111 = vld [vmem:[%s1 + $0x2f0] sm:$0xff]
  %v112 = vld [vmem:[%s1 + $0x2f8] sm:$0xff]
  %v113 = vld [vmem:[%s1 + $0x300] sm:$0xff]
  %v114 = vld [vmem:[%s1 + $0x308] sm:$0xff]
  %v115 = vld [vmem:[%s1 + $0x310] sm:$0xff]
  %v116 = vld [vmem:[%s1 + $0x318] sm:$0xff]
  %v117 = vld [vmem:[%s1 + $0x320] sm:$0xff]
  %v118 = vld [vmem:[%s1 + $0x328] sm:$0xff]
  %v119 = vld [vmem:[%s1 + $0x330] sm:$0xff]
  %v120 = vld [vmem:[%s1 + $0x338] sm:$0xff]
  %v121 = vld [vmem:[%s1 + $0x340] sm:$0xff]
  %v122 = vld [vmem:[%s1 + $0x348] sm:$0xff]
  %v123 = vld [vmem:[%s1 + $0x350] sm:$0xff]
  %v124 = vld [vmem:[%s1 + $0x358] sm:$0xff]
  %v125 = vld [vmem:[%s1 + $0x360] sm:$0xff]
  %v126 = vld [vmem:[%s1 + $0x368] sm:$0xff]
  %v127 = vld [vmem:[%s1 + $0x370] sm:$0xff]
  %v128 = vld [vmem:[%s1 + $0x378] sm:$0xff]
  %v129 = vld [vmem:[%s1 + $0x380] sm:$0xff]
  %v130 = vld [vmem:[%s1 + $0x388] sm:$0xff]
  %v131 = vld [vmem:[%s1 + $0x390] sm:$0xff]
  %v132 = vld [vmem:[%s1 + $0x398] sm:$0xff]
  %v133 = vld [vmem:[%s1 + $0x3a0] sm:$0xff]
  %v134 = vld [vmem:[%s1 + $0x3a8] sm:$0xff]
  %v135 = vld [vmem:[%s1 + $0x3b0] sm:$0xff]
  %v136 = vld [vmem:[%s1 + $0x3b8] sm:$0xff]
  %v137 = vld [vmem:[%s1 + $0x3c0] sm:$0xff]
  %v138 = vld [vmem:[%s1 + $0x3c8] sm:$0xff]
  %v139 = vld [vmem:[%s1 + $0x3d0] sm:$0xff]
  %v140 = vld [vmem:[%s1 + $0x3d8] sm:$0xff]
  %v141 = vld [vmem:[%s1 + $0x3e0] sm:$0xff]
  %v142 = vld [vmem:[%s1 + $0x3e8] sm:$0xff]
  %v143 = vld [vmem:[%s1 + $0x3f0] sm:$0xff]
  %v144 = vld [vmem:[%s1 + $0x3f8] sm:$0xff]
  %v145 = vld [vmem:[%s1 + $0x400] sm:$0xff]
  %v146 = vld [vmem:[%s1 + $0x408] sm:$0xff]
  %v147 = vld [vmem:[%s1 + $0x410] sm:$0xff]
  %v148 = vld [vmem:[%s1 + $0x418] sm:$0xff]
  %v149 = vld [vmem:[%s1 + $0x420] sm:$0xff]
  %v150 = vld [vmem:[%s1 + $0x428] sm:$0xff]
  %v151 = vld [vmem:[%s1 + $0x430] sm:$0xff]
  %v152 = vld [vmem:[%s1 + $0x438] sm:$0xff]
  %v153 = vld [vmem:[%s1 + $0x440] sm:$0xff]
  %v154 = vld [vmem:[%s1 + $0x448] sm:$0xff]
  %v155 = vld [vmem:[%s1 + $0x450] sm:$0xff]
  %v156 = vld [vmem:[%s1 + $0x458] sm:$0xff]
  %v157 = vld [vmem:[%s1 + $0x460] sm:$0xff]
  %v158 = vld [vmem:[%s1 + $0x468] sm:$0xff]
  %v159 = vld [vmem:[%s1 + $0x470] sm:$0xff]
  %v160 = vld [vmem:[%s1 + $0x478] sm:$0xff]
  %v161 = vld [vmem:[%s1 + $0x480] sm:$0xff]
  %v162 = vld [vmem:[%s1 + $0x488] sm:$0xff]
  %v163 = vld [vmem:[%s1 + $0x490] sm:$0xff]
  %v164 = vld [vmem:[%s1 + $0x498] sm:$0xff]
  %v165 = vld [vmem:[%s1 + $0x4a0] sm:$0xff]
  %v166 = vld [vmem:[%s1 + $0x4a8] sm:$0xff]
  %v167 = vld [vmem:[%s1 + $0x4b0] sm:$0xff]
  %v168 = vld [vmem:[%s1 + $0x4b8] sm:$0xff]
  %v169 = vld [vmem:[%s1 + $0x4c0] sm:$0xff]
  %v170 = vld [vmem:[%s1 + $0x4c8] sm:$0xff]
  %v171 = vld [vmem:[%s1 + $0x4d0] sm:$0xff]
  %v172 = vld [vmem:[%s1 + $0x4d8] sm:$0xff]
  %v173 = vld [vmem:[%s1 + $0x4e0] sm:$0xff]
  %v174 = vld [vmem:[%s1 + $0x4e8] sm:$0xff]
  %v175 = vld [vmem:[%s1 + $0x4f0] sm:$0xff]
  %v176 = vld [vmem:[%s1 + $0x4f8] sm:$0xff]
  %v177 = vld [vmem:[%s1 + $0x500] sm:$0xff]
  %v178 = vld [vmem:[%s1 + $0x508] sm:$0xff]
  %v179 = vld [vmem:[%s1 + $0x510] sm:$0xff]
  %v180 = vld [vmem:[%s1 + $0x518] sm:$0xff]
  %v181 = vld [vmem:[%s1 + $0x520] sm:$0xff]
  %v182 = vld [vmem:[%s1 + $0x528] sm:$0xff]
  %v183 = vld [vmem:[%s1 + $0x530] sm:$0xff]
  %v184 = vld [vmem:[%s1 + $0x538] sm:$0xff]
  %v185 = vld [vmem:[%s1 + $0x540] sm:$0xff]
  %v186 = vld [vmem:[%s1 + $0x548] sm:$0xff]
  %v187 = vld [vmem:[%s1 + $0x550] sm:$0xff]
  %v188 = vld [vmem:[%s1 + $0x558] sm:$0xff]
  %v189 = vld [vmem:[%s1 + $0x560] sm:$0xff]
  %v190 = vld [vmem:[%s1 + $0x568] sm:$0xff]
  %v191 = vld [vmem:[%s1 + $0x570] sm:$0xff]
  %v192 = vld [vmem:[%s1 + $0x578] sm:$0xff]
  %v193 = vld [vmem:[%s1 + $0x580] sm:$0xff]
  %v194 = vld [vmem:[%s1 + $0x588] sm:$0xff]
  %v195 = vld [vmem:[%s1 + $0x590] sm:$0xff]
  %v196 = vld [vmem:[%s1 + $0x598] sm:$0xff]
  %v197 = vld [vmem:[%s1 + $0x5a0] sm:$0xff]
  %v198 = vld [vmem:[%s1 + $0x5a8] sm:$0xff]
  %v199 = vld [vmem:[%s1 + $0x5b0] sm:$0xff]
  %v200 = vld [vmem:[%s1 + $0x5b8] sm:$0xff]
  %v201 = vld [vmem:[%s1 + $0x5c0] sm:$0xff]
  %v202 = vld [vmem:[%s1 + $0x5c8] sm:$0xff]
  %v203 = vld [vmem:[%s1 + $0x5d0] sm:$0xff]
  %v204 = vld [vmem:[%s1 + $0x5d8] sm:$0xff]
  %v205 = vld [vmem:[%s1 + $0x5e0] sm:$0xff]
  %v206 = vld [vmem:[%s1 + $0x5e8] sm:$0xff]
  %v207 = vld [vmem:[%s1 + $0x5f0] sm:$0xff]
  %v208 = vld [vmem:[%s1 + $0x5f8] sm:$0xff]
  %v209 = vld [vmem:[%s1 + $0x600] sm:$0xff]
  %v210 = vld [vmem:[%s1 + $0x608] sm:$0xff]
  %v211 = vld [vmem:[%s1 + $0x610] sm:$0xff]
  %v212 = vld [vmem:[%s1 + $0x618] sm:$0xff]
  %v213 = vld [vmem:[%s1 + $0x620] sm:$0xff]
  %v214 = vld [vmem:[%s1 + $0x628] sm:$0xff]
  %v215 = vld [vmem:[%s1 + $0x630] sm:$0xff]
  %v216 = vld [vmem:[%s1 + $0x638] sm:$0xff]
  %v217 = vld [vmem:[%s1 + $0x640] sm:$0xff]
  %v218 = vld [vmem:[%s1 + $0x648] sm:$0xff]
  %v219 = vld [vmem:[%s1 + $0x650] sm:$0xff]
  %v220 = vld [vmem:[%s1 + $0x658] sm:$0xff]
  %v221 = vld [vmem:[%s1 + $0x660] sm:$0xff]
  %v222 = vld [vmem:[%s1 + $0x668] sm:$0xff]
  %v223 = vld [vmem:[%s1 + $0x670] sm:$0xff]
  %v224 = vld [vmem:[%s1 + $0x678] sm:$0xff]
  %v225 = vld [vmem:[%s1 + $0x680] sm:$0xff]
  %v226 = vld [vmem:[%s1 + $0x688] sm:$0xff]
  %v227 = vld [vmem:[%s1 + $0x690] sm:$0xff]
  %v228 = vld [vmem:[%s1 + $0x698] sm:$0xff]
  %v229 = vld [vmem:[%s1 + $0x6a0] sm:$0xff]
  %v230 = vld [vmem:[%s1 + $0x6a8] sm:$0xff]
  %v231 = vld [vmem:[%s1 + $0x6b0] sm:$0xff]
  %v232 = vld [vmem:[%s1 + $0x6b8] sm:$0xff]
  %v233 = vld [vmem:[%s1 + $0x6c0] sm:$0xff]
  %v234 = vld [vmem:[%s1 + $0x6c8] sm:$0xff]
  %v235 = vld [vmem:[%s1 + $0x6d0] sm:$0xff]
  %v236 = vld [vmem:[%s1 + $0x6d8] sm:$0xff]
  %v237 = vld [vmem:[%s1 + $0x6e0] sm:$0xff]
  %v238 = vld [vmem:[%s1 + $0x6e8] sm:$0xff]
  %v239 = vld [vmem:[%s1 + $0x6f0] sm:$0xff]
  %v240 = vld [vmem:[%s1 + $0x6f8] sm:$0xff]
  %v241 = vld [vmem:[%s1 + $0x700] sm:$0xff]
  %v242 = vld [vmem:[%s1 + $0x708] sm:$0xff]
  %v243 = vld [vmem:[%s1 + $0x710] sm:$0xff]
  %v244 = vld [vmem:[%s1 + $0x718] sm:$0xff]
  %v245 = vld [vmem:[%s1 + $0x720] sm:$0xff]
  %v246 = vld [vmem:[%s1 + $0x728] sm:$0xff]
  %v247 = vld [vmem:[%s1 + $0x730] sm:$0xff]
  %v248 = vld [vmem:[%s1 + $0x738] sm:$0xff]
  %v249 = vld [vmem:[%s1 + $0x740] sm:$0xff]
  %v250 = vld [vmem:[%s1 + $0x748] sm:$0xff]
  %v251 = vld [vmem:[%s1 + $0x750] sm:$0xff]
  %v252 = vld [vmem:[%s1 + $0x758] sm:$0xff]
  %v253 = vld [vmem:[%s1 + $0x760] sm:$0xff]
  %v254 = vld [vmem:[%s1 + $0x768] sm:$0xff]
  %v255 = vld [vmem:[%s1 + $0x770] sm:$0xff]
  %v256 = vld [vmem:[%s1 + $0x778] sm:$0xff]
  %v257 = vld [vmem:[%s1 + $0x780] sm:$0xff]
  %v258 = vld [vmem:[%s1 + $0x788] sm:$0xff]
  %v259 = vld [vmem:[%s1 + $0x790] sm:$0xff]
  %v260 = vld [vmem:[%s1 + $0x798] sm:$0xff]
  %v261 = vld [vmem:[%s1 + $0x7a0] sm:$0xff]
  %v262 = vld [vmem:[%s1 + $0x7a8] sm:$0xff]
  %v263 = vld [vmem:[%s1 + $0x7b0] sm:$0xff]
  %v264 = vld [vmem:[%s1 + $0x7b8] sm:$0xff]
  %v265 = vld [vmem:[%s1 + $0x7c0] sm:$0xff]
  %v266 = vld [vmem:[%s1 + $0x7c8] sm:$0xff]
  %v267 = vld [vmem:[%s1 + $0x7d0] sm:$0xff]
  %v268 = vld [vmem:[%s1 + $0x7d8] sm:$0xff]
  %v269 = vld [vmem:[%s1 + $0x7e0] sm:$0xff]
  %v270 = vld [vmem:[%s1 + $0x7e8] sm:$0xff]
  %v271 = vld [vmem:[%s1 + $0x7f0] sm:$0xff]
  %v272 = vld [vmem:[%s1 + $0x7f8] sm:$0xff]
  %v273 = vld [vmem:[%s1 + $0x800] sm:$0xff]
  %v274 = vld [vmem:[%s1 + $0x808] sm:$0xff]
  %v275 = vld [vmem:[%s1 + $0x810] sm:$0xff]
  %v276 = vld [vmem:[%s1 + $0x818] sm:$0xff]
  %v277 = vld [vmem:[%s1 + $0x820] sm:$0xff]
  %v278 = vld [vmem:[%s1 + $0x828] sm:$0xff]
  %v279 = vld [vmem:[%s1 + $0x830] sm:$0xff]
  %v280 = vld [vmem:[%s1 + $0x838] sm:$0xff]
  %v281 = vld [vmem:[%s1 + $0x840] sm:$0xff]
  %v282 = vld [vmem:[%s1 + $0x848] sm:$0xff]
  %v283 = vld [vmem:[%s1 + $0x850] sm:$0xff]
  %v284 = vld [vmem:[%s1 + $0x858] sm:$0xff]
  %v285 = vld [vmem:[%s1 + $0x860] sm:$0xff]
  %v286 = vld [vmem:[%s1 + $0x868] sm:$0xff]
  %v287 = vld [vmem:[%s1 + $0x870] sm:$0xff]
  %v288 = vld [vmem:[%s1 + $0x878] sm:$0xff]
  %v289 = vld [vmem:[%s1 + $0x880] sm:$0xff]
  %v290 = vld [vmem:[%s1 + $0x888] sm:$0xff]
  %v291 = vld [vmem:[%s1 + $0x890] sm:$0xff]
  %v292 = vld [vmem:[%s1 + $0x898] sm:$0xff]
  %v293 = vld [vmem:[%s1 + $0x8a0] sm:$0xff]
  %v294 = vld [vmem:[%s1 + $0x8a8] sm:$0xff]
  %v295 = vld [vmem:[%s1 + $0x8b0] sm:$0xff]
  %v296 = vld [vmem:[%s1 + $0x8b8] sm:$0xff]
  %v297 = vld [vmem:[%s1 + $0x8c0] sm:$0xff]
  %v298 = vld [vmem:[%s1 + $0x8c8] sm:$0xff]
  %v299 = vld [vmem:[%s1 + $0x8d0] sm:$0xff]
  %v300 = vld [vmem:[%s1 + $0x8d8] sm:$0xff]
  %v301 = vld [vmem:[%s1 + $0x8e0] sm:$0xff]
  %v302 = vld [vmem:[%s1 + $0x8e8] sm:$0xff]
  %v303 = vld [vmem:[%s1 + $0x8f0] sm:$0xff]
  %v304 = vld [vmem:[%s1 + $0x8f8] sm:$0xff]
  %v305 = vld [vmem:[%s2] sm:$0x3]
  %v307 = vperm.slane %v305, 0
  %v308 = vperm.slane %v305, 1
  %312 = vst [vmem:[#allocation1] ss:$9 sm:$0xff] %v14
  %v313 = vld [vmem:[#allocation1] sm:$0xff]
  %v314 = vld [vmem:[#allocation1 + $0x9] sm:$0xff]
  %v315 = vld [vmem:[#allocation1 + $0x12] sm:$0xff]
  %v316 = vld [vmem:[#allocation1 + $0x1b] sm:$0xff]
  %v317 = vld [vmem:[#allocation1 + $0x24] sm:$0xff]
  %v318 = vld [vmem:[#allocation1 + $0x2d] sm:$0xff]
  %v319 = vld [vmem:[#allocation1 + $0x36] sm:$0xff]
  %v320 = vld [vmem:[#allocation1 + $0x3f] sm:$0xff]
  %322 = vst [vmem:[#allocation1] ss:$9 sm:$0xff] %v15
  %v323 = vld [vmem:[#allocation1] sm:$0xff]
  %v324 = vld [vmem:[#allocation1 + $0x9] sm:$0xff]
  %v325 = vld [vmem:[#allocation1 + $0x12] sm:$0xff]
  %v326 = vld [vmem:[#allocation1 + $0x1b] sm:$0xff]
  %v327 = vld [vmem:[#allocation1 + $0x24] sm:$0xff]
  %v328 = vld [vmem:[#allocation1 + $0x2d] sm:$0xff]
  %v329 = vld [vmem:[#allocation1 + $0x36] sm:$0xff]
  %v330 = vld [vmem:[#allocation1 + $0x3f] sm:$0xff]
  %332 = vst [vmem:[#allocation1] ss:$9 sm:$0xff] %v16
  %v333 = vld [vmem:[#allocation1] sm:$0xff]
  %v334 = vld [vmem:[#allocation1 + $0x9] sm:$0xff]
  %v641 = vunpack.c.l.b16 %v17
  %v642 = vunpack.c.h.b16 %v17
  %v643 = vunpack.c.l.b16 %v18
  %v644 = vunpack.c.h.b16 %v18
  %v645 = vunpack.c.l.b16 %v19
  %v646 = vunpack.c.h.b16 %v19
  %v647 = vunpack.c.l.b16 %v20
  %v648 = vunpack.c.h.b16 %v20
  %v649 = vunpack.c.l.b16 %v21
  %v650 = vunpack.c.h.b16 %v21
  %v651 = vunpack.c.l.b16 %v22
  %v652 = vunpack.c.h.b16 %v22
  %v653 = vunpack.c.l.b16 %v23
  %v654 = vunpack.c.h.b16 %v23
  %v655 = vunpack.c.l.b16 %v24
  %v656 = vunpack.c.h.b16 %v24
  %v657 = vunpack.c.l.b16 %v25
  %v658 = vunpack.c.h.b16 %v25
  %v659 = vunpack.c.l.b16 %v26
  %v660 = vunpack.c.h.b16 %v26
  %v661 = vunpack.c.l.b16 %v27
  %v662 = vunpack.c.h.b16 %v27
  %v663 = vunpack.c.l.b16 %v28
  %v664 = vunpack.c.h.b16 %v28
  %v665 = vunpack.c.l.b16 %v29
  %v666 = vunpack.c.h.b16 %v29
  %v667 = vunpack.c.l.b16 %v30
  %v668 = vunpack.c.h.b16 %v30
  %v669 = vunpack.c.l.b16 %v31
  %v670 = vunpack.c.h.b16 %v31
  %v671 = vunpack.c.l.b16 %v32
  %v672 = vunpack.c.h.b16 %v32
  %v673 = vunpack.c.l.b16 %v33
  %v674 = vunpack.c.h.b16 %v33
  %v675 = vunpack.c.l.b16 %v34
  %v676 = vunpack.c.h.b16 %v34
  %v677 = vunpack.c.l.b16 %v35
  %v678 = vunpack.c.h.b16 %v35
  %v679 = vunpack.c.l.b16 %v36
  %v680 = vunpack.c.h.b16 %v36
  %v681 = vunpack.c.l.b16 %v37
  %v682 = vunpack.c.h.b16 %v37
  %v683 = vunpack.c.l.b16 %v38
  %v684 = vunpack.c.h.b16 %v38
  %v685 = vunpack.c.l.b16 %v39
  %v686 = vunpack.c.h.b16 %v39
  %v687 = vunpack.c.l.b16 %v40
  %v688 = vunpack.c.h.b16 %v40
  %v689 = vunpack.c.l.b16 %v41
  %v690 = vunpack.c.h.b16 %v41
  %v691 = vunpack.c.l.b16 %v42
  %v692 = vunpack.c.h.b16 %v42
  %v693 = vunpack.c.l.b16 %v43
  %v694 = vunpack.c.h.b16 %v43
  %v695 = vunpack.c.l.b16 %v44
  %v696 = vunpack.c.h.b16 %v44
  %v697 = vunpack.c.l.b16 %v45
  %v698 = vunpack.c.h.b16 %v45
  %v699 = vunpack.c.l.b16 %v46
  %v700 = vunpack.c.h.b16 %v46
  %v701 = vunpack.c.l.b16 %v47
  %v702 = vunpack.c.h.b16 %v47
  %v703 = vunpack.c.l.b16 %v48
  %v704 = vunpack.c.h.b16 %v48
  %v705 = vunpack.c.l.b16 %v49
  %v706 = vunpack.c.h.b16 %v49
  %v707 = vunpack.c.l.b16 %v50
  %v708 = vunpack.c.h.b16 %v50
  %v709 = vunpack.c.l.b16 %v51
  %v710 = vunpack.c.h.b16 %v51
  %v711 = vunpack.c.l.b16 %v52
  %v712 = vunpack.c.h.b16 %v52
  %v713 = vunpack.c.l.b16 %v53
  %v714 = vunpack.c.h.b16 %v53
  %v715 = vunpack.c.l.b16 %v54
  %v716 = vunpack.c.h.b16 %v54
  %v717 = vunpack.c.l.b16 %v55
  %v718 = vunpack.c.h.b16 %v55
  %v719 = vunpack.c.l.b16 %v56
  %v720 = vunpack.c.h.b16 %v56
  %v721 = vunpack.c.l.b16 %v57
  %v722 = vunpack.c.h.b16 %v57
  %v723 = vunpack.c.l.b16 %v58
  %v724 = vunpack.c.h.b16 %v58
  %v725 = vunpack.c.l.b16 %v59
  %v726 = vunpack.c.h.b16 %v59
  %v727 = vunpack.c.l.b16 %v60
  %v728 = vunpack.c.h.b16 %v60
  %v729 = vunpack.c.l.b16 %v61
  %v730 = vunpack.c.h.b16 %v61
  %v731 = vunpack.c.l.b16 %v62
  %v732 = vunpack.c.h.b16 %v62
  %v733 = vunpack.c.l.b16 %v63
  %v734 = vunpack.c.h.b16 %v63
  %v735 = vunpack.c.l.b16 %v64
  %v736 = vunpack.c.h.b16 %v64
  %v737 = vunpack.c.l.b16 %v65
  %v738 = vunpack.c.h.b16 %v65
  %v739 = vunpack.c.l.b16 %v66
  %v740 = vunpack.c.h.b16 %v66
  %v741 = vunpack.c.l.b16 %v67
  %v742 = vunpack.c.h.b16 %v67
  %v743 = vunpack.c.l.b16 %v68
  %v744 = vunpack.c.h.b16 %v68
  %v745 = vunpack.c.l.b16 %v69
  %v746 = vunpack.c.h.b16 %v69
  %v747 = vunpack.c.l.b16 %v70
  %v748 = vunpack.c.h.b16 %v70
  %v749 = vunpack.c.l.b16 %v71
  %v750 = vunpack.c.h.b16 %v71
  %v751 = vunpack.c.l.b16 %v72
  %v752 = vunpack.c.h.b16 %v72
  %v753 = vunpack.c.l.b16 %v73
  %v754 = vunpack.c.h.b16 %v73
  %v755 = vunpack.c.l.b16 %v74
  %v756 = vunpack.c.h.b16 %v74
  %v757 = vunpack.c.l.b16 %v75
  %v758 = vunpack.c.h.b16 %v75
  %v759 = vunpack.c.l.b16 %v76
  %v760 = vunpack.c.h.b16 %v76
  %v761 = vunpack.c.l.b16 %v77
  %v762 = vunpack.c.h.b16 %v77
  %v763 = vunpack.c.l.b16 %v78
  %v764 = vunpack.c.h.b16 %v78
  %v765 = vunpack.c.l.b16 %v79
  %v766 = vunpack.c.h.b16 %v79
  %v767 = vunpack.c.l.b16 %v80
  %v768 = vunpack.c.h.b16 %v80
  %v769 = vunpack.c.l.b16 %v81
  %v770 = vunpack.c.h.b16 %v81
  %v771 = vunpack.c.l.b16 %v82
  %v772 = vunpack.c.h.b16 %v82
  %v773 = vunpack.c.l.b16 %v83
  %v774 = vunpack.c.h.b16 %v83
  %v775 = vunpack.c.l.b16 %v84
  %v776 = vunpack.c.h.b16 %v84
  %v777 = vunpack.c.l.b16 %v85
  %v778 = vunpack.c.h.b16 %v85
  %v779 = vunpack.c.l.b16 %v86
  %v780 = vunpack.c.h.b16 %v86
  %v781 = vunpack.c.l.b16 %v87
  %v782 = vunpack.c.h.b16 %v87
  %v783 = vunpack.c.l.b16 %v88
  %v784 = vunpack.c.h.b16 %v88
  %v785 = vunpack.c.l.b16 %v89
  %v786 = vunpack.c.h.b16 %v89
  %v787 = vunpack.c.l.b16 %v90
  %v788 = vunpack.c.h.b16 %v90
  %v789 = vunpack.c.l.b16 %v91
  %v790 = vunpack.c.h.b16 %v91
  %v791 = vunpack.c.l.b16 %v92
  %v792 = vunpack.c.h.b16 %v92
  %v793 = vunpack.c.l.b16 %v93
  %v794 = vunpack.c.h.b16 %v93
  %v795 = vunpack.c.l.b16 %v94
  %v796 = vunpack.c.h.b16 %v94
  %v797 = vunpack.c.l.b16 %v95
  %v798 = vunpack.c.h.b16 %v95
  %v799 = vunpack.c.l.b16 %v96
  %v800 = vunpack.c.h.b16 %v96
  %v801 = vunpack.c.l.b16 %v97
  %v802 = vunpack.c.h.b16 %v97
  %v803 = vunpack.c.l.b16 %v98
  %v804 = vunpack.c.h.b16 %v98
  %v805 = vunpack.c.l.b16 %v99
  %v806 = vunpack.c.h.b16 %v99
  %v807 = vunpack.c.l.b16 %v100
  %v808 = vunpack.c.h.b16 %v100
  %v809 = vunpack.c.l.b16 %v101
  %v810 = vunpack.c.h.b16 %v101
  %v811 = vunpack.c.l.b16 %v102
  %v812 = vunpack.c.h.b16 %v102
  %v813 = vunpack.c.l.b16 %v103
  %v814 = vunpack.c.h.b16 %v103
  %v815 = vunpack.c.l.b16 %v104
  %v816 = vunpack.c.h.b16 %v104
  %v817 = vunpack.c.l.b16 %v105
  %v818 = vunpack.c.h.b16 %v105
  %v819 = vunpack.c.l.b16 %v106
  %v820 = vunpack.c.h.b16 %v106
  %v821 = vunpack.c.l.b16 %v107
  %v822 = vunpack.c.h.b16 %v107
  %v823 = vunpack.c.l.b16 %v108
  %v824 = vunpack.c.h.b16 %v108
  %v825 = vunpack.c.l.b16 %v109
  %v826 = vunpack.c.h.b16 %v109
  %v827 = vunpack.c.l.b16 %v110
  %v828 = vunpack.c.h.b16 %v110
  %v829 = vunpack.c.l.b16 %v111
  %v830 = vunpack.c.h.b16 %v111
  %v831 = vunpack.c.l.b16 %v112
  %v832 = vunpack.c.h.b16 %v112
  %v833 = vunpack.c.l.b16 %v113
  %v834 = vunpack.c.h.b16 %v113
  %v835 = vunpack.c.l.b16 %v114
  %v836 = vunpack.c.h.b16 %v114
  %v837 = vunpack.c.l.b16 %v115
  %v838 = vunpack.c.h.b16 %v115
  %v839 = vunpack.c.l.b16 %v116
  %v840 = vunpack.c.h.b16 %v116
  %v841 = vunpack.c.l.b16 %v117
  %v842 = vunpack.c.h.b16 %v117
  %v843 = vunpack.c.l.b16 %v118
  %v844 = vunpack.c.h.b16 %v118
  %v845 = vunpack.c.l.b16 %v119
  %v846 = vunpack.c.h.b16 %v119
  %v847 = vunpack.c.l.b16 %v120
  %v848 = vunpack.c.h.b16 %v120
  %v849 = vunpack.c.l.b16 %v121
  %v850 = vunpack.c.h.b16 %v121
  %v851 = vunpack.c.l.b16 %v122
  %v852 = vunpack.c.h.b16 %v122
  %v853 = vunpack.c.l.b16 %v123
  %v854 = vunpack.c.h.b16 %v123
  %v855 = vunpack.c.l.b16 %v124
  %v856 = vunpack.c.h.b16 %v124
  %v857 = vunpack.c.l.b16 %v125
  %v858 = vunpack.c.h.b16 %v125
  %v859 = vunpack.c.l.b16 %v126
  %v860 = vunpack.c.h.b16 %v126
  %v861 = vunpack.c.l.b16 %v127
  %v862 = vunpack.c.h.b16 %v127
  %v863 = vunpack.c.l.b16 %v128
  %v864 = vunpack.c.h.b16 %v128
  %v865 = vunpack.c.l.b16 %v129
  %v866 = vunpack.c.h.b16 %v129
  %v867 = vunpack.c.l.b16 %v130
  %v868 = vunpack.c.h.b16 %v130
  %v869 = vunpack.c.l.b16 %v131
  %v870 = vunpack.c.h.b16 %v131
  %v871 = vunpack.c.l.b16 %v132
  %v872 = vunpack.c.h.b16 %v132
  %v873 = vunpack.c.l.b16 %v133
  %v874 = vunpack.c.h.b16 %v133
  %v875 = vunpack.c.l.b16 %v134
  %v876 = vunpack.c.h.b16 %v134
  %v877 = vunpack.c.l.b16 %v135
  %v878 = vunpack.c.h.b16 %v135
  %v879 = vunpack.c.l.b16 %v136
  %v880 = vunpack.c.h.b16 %v136
  %v881 = vunpack.c.l.b16 %v137
  %v882 = vunpack.c.h.b16 %v137
  %v883 = vunpack.c.l.b16 %v138
  %v884 = vunpack.c.h.b16 %v138
  %v885 = vunpack.c.l.b16 %v139
  %v886 = vunpack.c.h.b16 %v139
  %v887 = vunpack.c.l.b16 %v140
  %v888 = vunpack.c.h.b16 %v140
  %v889 = vunpack.c.l.b16 %v141
  %v890 = vunpack.c.h.b16 %v141
  %v891 = vunpack.c.l.b16 %v142
  %v892 = vunpack.c.h.b16 %v142
  %v893 = vunpack.c.l.b16 %v143
  %v894 = vunpack.c.h.b16 %v143
  %v895 = vunpack.c.l.b16 %v144
  %v896 = vunpack.c.h.b16 %v144
  %v897 = vunpack.c.l.b16 %v145
  %v898 = vunpack.c.h.b16 %v145
  %v899 = vunpack.c.l.b16 %v146
  %v900 = vunpack.c.h.b16 %v146
  %v901 = vunpack.c.l.b16 %v147
  %v902 = vunpack.c.h.b16 %v147
  %v903 = vunpack.c.l.b16 %v148
  %v904 = vunpack.c.h.b16 %v148
  %v905 = vunpack.c.l.b16 %v149
  %v906 = vunpack.c.h.b16 %v149
  %v907 = vunpack.c.l.b16 %v150
  %v908 = vunpack.c.h.b16 %v150
  %v909 = vunpack.c.l.b16 %v151
  %v910 = vunpack.c.h.b16 %v151
  %v911 = vunpack.c.l.b16 %v152
  %v912 = vunpack.c.h.b16 %v152
  %v913 = vunpack.c.l.b16 %v153
  %v914 = vunpack.c.h.b16 %v153
  %v915 = vunpack.c.l.b16 %v154
  %v916 = vunpack.c.h.b16 %v154
  %v917 = vunpack.c.l.b16 %v155
  %v918 = vunpack.c.h.b16 %v155
  %v919 = vunpack.c.l.b16 %v156
  %v920 = vunpack.c.h.b16 %v156
  %v921 = vunpack.c.l.b16 %v157
  %v922 = vunpack.c.h.b16 %v157
  %v923 = vunpack.c.l.b16 %v158
  %v924 = vunpack.c.h.b16 %v158
  %v925 = vunpack.c.l.b16 %v159
  %v926 = vunpack.c.h.b16 %v159
  %v927 = vunpack.c.l.b16 %v160
  %v928 = vunpack.c.h.b16 %v160
  %v929 = vunpack.c.l.b16 %v161
  %v930 = vunpack.c.h.b16 %v161
  %v931 = vunpack.c.l.b16 %v162
  %v932 = vunpack.c.h.b16 %v162
  %v933 = vunpack.c.l.b16 %v163
  %v934 = vunpack.c.h.b16 %v163
  %v935 = vunpack.c.l.b16 %v164
  %v936 = vunpack.c.h.b16 %v164
  %v937 = vunpack.c.l.b16 %v165
  %v938 = vunpack.c.h.b16 %v165
  %v939 = vunpack.c.l.b16 %v166
  %v940 = vunpack.c.h.b16 %v166
  %v941 = vunpack.c.l.b16 %v167
  %v942 = vunpack.c.h.b16 %v167
  %v943 = vunpack.c.l.b16 %v168
  %v944 = vunpack.c.h.b16 %v168
  %v945 = vunpack.c.l.b16 %v169
  %v946 = vunpack.c.h.b16 %v169
  %v947 = vunpack.c.l.b16 %v170
  %v948 = vunpack.c.h.b16 %v170
  %v949 = vunpack.c.l.b16 %v171
  %v950 = vunpack.c.h.b16 %v171
  %v951 = vunpack.c.l.b16 %v172
  %v952 = vunpack.c.h.b16 %v172
  %v953 = vunpack.c.l.b16 %v173
  %v954 = vunpack.c.h.b16 %v173
  %v955 = vunpack.c.l.b16 %v174
  %v956 = vunpack.c.h.b16 %v174
  %v957 = vunpack.c.l.b16 %v175
  %v958 = vunpack.c.h.b16 %v175
  %v959 = vunpack.c.l.b16 %v176
  %v960 = vunpack.c.h.b16 %v176
  %v961 = vunpack.c.l.b16 %v177
  %v962 = vunpack.c.h.b16 %v177
  %v963 = vunpack.c.l.b16 %v178
  %v964 = vunpack.c.h.b16 %v178
  %v965 = vunpack.c.l.b16 %v179
  %v966 = vunpack.c.h.b16 %v179
  %v967 = vunpack.c.l.b16 %v180
  %v968 = vunpack.c.h.b16 %v180
  %v969 = vunpack.c.l.b16 %v181
  %v970 = vunpack.c.h.b16 %v181
  %v971 = vunpack.c.l.b16 %v182
  %v972 = vunpack.c.h.b16 %v182
  %v973 = vunpack.c.l.b16 %v183
  %v974 = vunpack.c.h.b16 %v183
  %v975 = vunpack.c.l.b16 %v184
  %v976 = vunpack.c.h.b16 %v184
  %v977 = vunpack.c.l.b16 %v185
  %v978 = vunpack.c.h.b16 %v185
  %v979 = vunpack.c.l.b16 %v186
  %v980 = vunpack.c.h.b16 %v186
  %v981 = vunpack.c.l.b16 %v187
  %v982 = vunpack.c.h.b16 %v187
  %v983 = vunpack.c.l.b16 %v188
  %v984 = vunpack.c.h.b16 %v188
  %v985 = vunpack.c.l.b16 %v189
  %v986 = vunpack.c.h.b16 %v189
  %v987 = vunpack.c.l.b16 %v190
  %v988 = vunpack.c.h.b16 %v190
  %v989 = vunpack.c.l.b16 %v191
  %v990 = vunpack.c.h.b16 %v191
  %v991 = vunpack.c.l.b16 %v192
  %v992 = vunpack.c.h.b16 %v192
  %v993 = vunpack.c.l.b16 %v193
  %v994 = vunpack.c.h.b16 %v193
  %v995 = vunpack.c.l.b16 %v194
  %v996 = vunpack.c.h.b16 %v194
  %v997 = vunpack.c.l.b16 %v195
  %v998 = vunpack.c.h.b16 %v195
  %v999 = vunpack.c.l.b16 %v196
  %v1000 = vunpack.c.h.b16 %v196
  %v1001 = vunpack.c.l.b16 %v197
  %v1002 = vunpack.c.h.b16 %v197
  %v1003 = vunpack.c.l.b16 %v198
  %v1004 = vunpack.c.h.b16 %v198
  %v1005 = vunpack.c.l.b16 %v199
  %v1006 = vunpack.c.h.b16 %v199
  %v1007 = vunpack.c.l.b16 %v200
  %v1008 = vunpack.c.h.b16 %v200
  %v1009 = vunpack.c.l.b16 %v201
  %v1010 = vunpack.c.h.b16 %v201
  %v1011 = vunpack.c.l.b16 %v202
  %v1012 = vunpack.c.h.b16 %v202
  %v1013 = vunpack.c.l.b16 %v203
  %v1014 = vunpack.c.h.b16 %v203
  %v1015 = vunpack.c.l.b16 %v204
  %v1016 = vunpack.c.h.b16 %v204
  %v1017 = vunpack.c.l.b16 %v205
  %v1018 = vunpack.c.h.b16 %v205
  %v1019 = vunpack.c.l.b16 %v206
  %v1020 = vunpack.c.h.b16 %v206
  %v1021 = vunpack.c.l.b16 %v207
  %v1022 = vunpack.c.h.b16 %v207
  %v1023 = vunpack.c.l.b16 %v208
  %v1024 = vunpack.c.h.b16 %v208
  %v1025 = vunpack.c.l.b16 %v209
  %v1026 = vunpack.c.h.b16 %v209
  %v1027 = vunpack.c.l.b16 %v210
  %v1028 = vunpack.c.h.b16 %v210
  %v1029 = vunpack.c.l.b16 %v211
  %v1030 = vunpack.c.h.b16 %v211
  %v1031 = vunpack.c.l.b16 %v212
  %v1032 = vunpack.c.h.b16 %v212
  %v1033 = vunpack.c.l.b16 %v213
  %v1034 = vunpack.c.h.b16 %v213
  %v1035 = vunpack.c.l.b16 %v214
  %v1036 = vunpack.c.h.b16 %v214
  %v1037 = vunpack.c.l.b16 %v215
  %v1038 = vunpack.c.h.b16 %v215
  %v1039 = vunpack.c.l.b16 %v216
  %v1040 = vunpack.c.h.b16 %v216
  %v1041 = vunpack.c.l.b16 %v217
  %v1042 = vunpack.c.h.b16 %v217
  %v1043 = vunpack.c.l.b16 %v218
  %v1044 = vunpack.c.h.b16 %v218
  %v1045 = vunpack.c.l.b16 %v219
  %v1046 = vunpack.c.h.b16 %v219
  %v1047 = vunpack.c.l.b16 %v220
  %v1048 = vunpack.c.h.b16 %v220
  %v1049 = vunpack.c.l.b16 %v221
  %v1050 = vunpack.c.h.b16 %v221
  %v1051 = vunpack.c.l.b16 %v222
  %v1052 = vunpack.c.h.b16 %v222
  %v1053 = vunpack.c.l.b16 %v223
  %v1054 = vunpack.c.h.b16 %v223
  %v1055 = vunpack.c.l.b16 %v224
  %v1056 = vunpack.c.h.b16 %v224
  %v1057 = vunpack.c.l.b16 %v225
  %v1058 = vunpack.c.h.b16 %v225
  %v1059 = vunpack.c.l.b16 %v226
  %v1060 = vunpack.c.h.b16 %v226
  %v1061 = vunpack.c.l.b16 %v227
  %v1062 = vunpack.c.h.b16 %v227
  %v1063 = vunpack.c.l.b16 %v228
  %v1064 = vunpack.c.h.b16 %v228
  %v1065 = vunpack.c.l.b16 %v229
  %v1066 = vunpack.c.h.b16 %v229
  %v1067 = vunpack.c.l.b16 %v230
  %v1068 = vunpack.c.h.b16 %v230
  %v1069 = vunpack.c.l.b16 %v231
  %v1070 = vunpack.c.h.b16 %v231
  %v1071 = vunpack.c.l.b16 %v232
  %v1072 = vunpack.c.h.b16 %v232
  %v1073 = vunpack.c.l.b16 %v233
  %v1074 = vunpack.c.h.b16 %v233
  %v1075 = vunpack.c.l.b16 %v234
  %v1076 = vunpack.c.h.b16 %v234
  %v1077 = vunpack.c.l.b16 %v235
  %v1078 = vunpack.c.h.b16 %v235
  %v1079 = vunpack.c.l.b16 %v236
  %v1080 = vunpack.c.h.b16 %v236
  %v1081 = vunpack.c.l.b16 %v237
  %v1082 = vunpack.c.h.b16 %v237
  %v1083 = vunpack.c.l.b16 %v238
  %v1084 = vunpack.c.h.b16 %v238
  %v1085 = vunpack.c.l.b16 %v239
  %v1086 = vunpack.c.h.b16 %v239
  %v1087 = vunpack.c.l.b16 %v240
  %v1088 = vunpack.c.h.b16 %v240
  %v1089 = vunpack.c.l.b16 %v241
  %v1090 = vunpack.c.h.b16 %v241
  %v1091 = vunpack.c.l.b16 %v242
  %v1092 = vunpack.c.h.b16 %v242
  %v1093 = vunpack.c.l.b16 %v243
  %v1094 = vunpack.c.h.b16 %v243
  %v1095 = vunpack.c.l.b16 %v244
  %v1096 = vunpack.c.h.b16 %v244
  %v1097 = vunpack.c.l.b16 %v245
  %v1098 = vunpack.c.h.b16 %v245
  %v1099 = vunpack.c.l.b16 %v246
  %v1100 = vunpack.c.h.b16 %v246
  %v1101 = vunpack.c.l.b16 %v247
  %v1102 = vunpack.c.h.b16 %v247
  %v1103 = vunpack.c.l.b16 %v248
  %v1104 = vunpack.c.h.b16 %v248
  %v1105 = vunpack.c.l.b16 %v249
  %v1106 = vunpack.c.h.b16 %v249
  %v1107 = vunpack.c.l.b16 %v250
  %v1108 = vunpack.c.h.b16 %v250
  %v1109 = vunpack.c.l.b16 %v251
  %v1110 = vunpack.c.h.b16 %v251
  %v1111 = vunpack.c.l.b16 %v252
  %v1112 = vunpack.c.h.b16 %v252
  %v1113 = vunpack.c.l.b16 %v253
  %v1114 = vunpack.c.h.b16 %v253
  %v1115 = vunpack.c.l.b16 %v254
  %v1116 = vunpack.c.h.b16 %v254
  %v1117 = vunpack.c.l.b16 %v255
  %v1118 = vunpack.c.h.b16 %v255
  %v1119 = vunpack.c.l.b16 %v256
  %v1120 = vunpack.c.h.b16 %v256
  %v1121 = vunpack.c.l.b16 %v257
  %v1122 = vunpack.c.h.b16 %v257
  %v1123 = vunpack.c.l.b16 %v258
  %v1124 = vunpack.c.h.b16 %v258
  %v1125 = vunpack.c.l.b16 %v259
  %v1126 = vunpack.c.h.b16 %v259
  %v1127 = vunpack.c.l.b16 %v260
  %v1128 = vunpack.c.h.b16 %v260
  %v1129 = vunpack.c.l.b16 %v261
  %v1130 = vunpack.c.h.b16 %v261
  %v1131 = vunpack.c.l.b16 %v262
  %v1132 = vunpack.c.h.b16 %v262
  %v1133 = vunpack.c.l.b16 %v263
  %v1134 = vunpack.c.h.b16 %v263
  %v1135 = vunpack.c.l.b16 %v264
  %v1136 = vunpack.c.h.b16 %v264
  %v1137 = vunpack.c.l.b16 %v265
  %v1138 = vunpack.c.h.b16 %v265
  %v1139 = vunpack.c.l.b16 %v266
  %v1140 = vunpack.c.h.b16 %v266
  %v1141 = vunpack.c.l.b16 %v267
  %v1142 = vunpack.c.h.b16 %v267
  %v1143 = vunpack.c.l.b16 %v268
  %v1144 = vunpack.c.h.b16 %v268
  %v1145 = vunpack.c.l.b16 %v269
  %v1146 = vunpack.c.h.b16 %v269
  %v1147 = vunpack.c.l.b16 %v270
  %v1148 = vunpack.c.h.b16 %v270
  %v1149 = vunpack.c.l.b16 %v271
  %v1150 = vunpack.c.h.b16 %v271
  %v1151 = vunpack.c.l.b16 %v272
  %v1152 = vunpack.c.h.b16 %v272
  %v1153 = vunpack.c.l.b16 %v273
  %v1154 = vunpack.c.h.b16 %v273
  %v1155 = vunpack.c.l.b16 %v274
  %v1156 = vunpack.c.h.b16 %v274
  %v1157 = vunpack.c.l.b16 %v275
  %v1158 = vunpack.c.h.b16 %v275
  %v1159 = vunpack.c.l.b16 %v276
  %v1160 = vunpack.c.h.b16 %v276
  %v1161 = vunpack.c.l.b16 %v277
  %v1162 = vunpack.c.h.b16 %v277
  %v1163 = vunpack.c.l.b16 %v278
  %v1164 = vunpack.c.h.b16 %v278
  %v1165 = vunpack.c.l.b16 %v279
  %v1166 = vunpack.c.h.b16 %v279
  %v1167 = vunpack.c.l.b16 %v280
  %v1168 = vunpack.c.h.b16 %v280
  %v1169 = vunpack.c.l.b16 %v281
  %v1170 = vunpack.c.h.b16 %v281
  %v1171 = vunpack.c.l.b16 %v282
  %v1172 = vunpack.c.h.b16 %v282
  %v1173 = vunpack.c.l.b16 %v283
  %v1174 = vunpack.c.h.b16 %v283
  %v1175 = vunpack.c.l.b16 %v284
  %v1176 = vunpack.c.h.b16 %v284
  %v1177 = vunpack.c.l.b16 %v285
  %v1178 = vunpack.c.h.b16 %v285
  %v1179 = vunpack.c.l.b16 %v286
  %v1180 = vunpack.c.h.b16 %v286
  %v1181 = vunpack.c.l.b16 %v287
  %v1182 = vunpack.c.h.b16 %v287
  %v1183 = vunpack.c.l.b16 %v288
  %v1184 = vunpack.c.h.b16 %v288
  %v1185 = vunpack.c.l.b16 %v289
  %v1186 = vunpack.c.h.b16 %v289
  %v1187 = vunpack.c.l.b16 %v290
  %v1188 = vunpack.c.h.b16 %v290
  %v1189 = vunpack.c.l.b16 %v291
  %v1190 = vunpack.c.h.b16 %v291
  %v1191 = vunpack.c.l.b16 %v292
  %v1192 = vunpack.c.h.b16 %v292
  %v1193 = vunpack.c.l.b16 %v293
  %v1194 = vunpack.c.h.b16 %v293
  %v1195 = vunpack.c.l.b16 %v294
  %v1196 = vunpack.c.h.b16 %v294
  %v1197 = vunpack.c.l.b16 %v295
  %v1198 = vunpack.c.h.b16 %v295
  %v1199 = vunpack.c.l.b16 %v296
  %v1200 = vunpack.c.h.b16 %v296
  %v1201 = vunpack.c.l.b16 %v297
  %v1202 = vunpack.c.h.b16 %v297
  %v1203 = vunpack.c.l.b16 %v298
  %v1204 = vunpack.c.h.b16 %v298
  %v1205 = vunpack.c.l.b16 %v299
  %v1206 = vunpack.c.h.b16 %v299
  %v1207 = vunpack.c.l.b16 %v300
  %v1208 = vunpack.c.h.b16 %v300
  %v1209 = vunpack.c.l.b16 %v301
  %v1210 = vunpack.c.h.b16 %v301
  %v1211 = vunpack.c.l.b16 %v302
  %v1212 = vunpack.c.h.b16 %v302
  %v1213 = vunpack.c.l.b16 %v303
  %v1214 = vunpack.c.h.b16 %v303
  %v1215 = vunpack.c.l.b16 %v304
  %v1216 = vunpack.c.h.b16 %v304
  %v1217 = vpack.c.b16 %v643, %v641
  %v1218 = vpack.c.b16 %v644, %v642
  %v1219 = vpack.c.b16 %v647, %v645
  %v1220 = vpack.c.b16 %v648, %v646
  %v1221 = vpack.c.b16 %v651, %v649
  %v1222 = vpack.c.b16 %v652, %v650
  %v1223 = vpack.c.b16 %v655, %v653
  %v1224 = vpack.c.b16 %v656, %v654
  %v1225 = vpack.c.b16 %v659, %v657
  %v1226 = vpack.c.b16 %v660, %v658
  %v1227 = vpack.c.b16 %v663, %v661
  %v1228 = vpack.c.b16 %v664, %v662
  %v1229 = vpack.c.b16 %v667, %v665
  %v1230 = vpack.c.b16 %v668, %v666
  %v1231 = vpack.c.b16 %v671, %v669
  %v1232 = vpack.c.b16 %v672, %v670
  %v1233 = vpack.c.b16 %v675, %v673
  %v1234 = vpack.c.b16 %v676, %v674
  %v1235 = vpack.c.b16 %v679, %v677
  %v1236 = vpack.c.b16 %v680, %v678
  %v1237 = vpack.c.b16 %v683, %v681
  %v1238 = vpack.c.b16 %v684, %v682
  %v1239 = vpack.c.b16 %v687, %v685
  %v1240 = vpack.c.b16 %v688, %v686
  %v1241 = vpack.c.b16 %v691, %v689
  %v1242 = vpack.c.b16 %v692, %v690
  %v1243 = vpack.c.b16 %v695, %v693
  %v1244 = vpack.c.b16 %v696, %v694
  %v1245 = vpack.c.b16 %v699, %v697
  %v1246 = vpack.c.b16 %v700, %v698
  %v1247 = vpack.c.b16 %v703, %v701
  %v1248 = vpack.c.b16 %v704, %v702
  %v1249 = vpack.c.b16 %v707, %v705
  %v1250 = vpack.c.b16 %v708, %v706
  %v1251 = vpack.c.b16 %v711, %v709
  %v1252 = vpack.c.b16 %v712, %v710
  %v1253 = vpack.c.b16 %v715, %v713
  %v1254 = vpack.c.b16 %v716, %v714
  %v1255 = vpack.c.b16 %v719, %v717
  %v1256 = vpack.c.b16 %v720, %v718
  %v1257 = vpack.c.b16 %v723, %v721
  %v1258 = vpack.c.b16 %v724, %v722
  %v1259 = vpack.c.b16 %v727, %v725
  %v1260 = vpack.c.b16 %v728, %v726
  %v1261 = vpack.c.b16 %v731, %v729
  %v1262 = vpack.c.b16 %v732, %v730
  %v1263 = vpack.c.b16 %v735, %v733
  %v1264 = vpack.c.b16 %v736, %v734
  %v1265 = vpack.c.b16 %v739, %v737
  %v1266 = vpack.c.b16 %v740, %v738
  %v1267 = vpack.c.b16 %v743, %v741
  %v1268 = vpack.c.b16 %v744, %v742
  %v1269 = vpack.c.b16 %v747, %v745
  %v1270 = vpack.c.b16 %v748, %v746
  %v1271 = vpack.c.b16 %v751, %v749
  %v1272 = vpack.c.b16 %v752, %v750
  %v1273 = vpack.c.b16 %v755, %v753
  %v1274 = vpack.c.b16 %v756, %v754
  %v1275 = vpack.c.b16 %v759, %v757
  %v1276 = vpack.c.b16 %v760, %v758
  %v1277 = vpack.c.b16 %v763, %v761
  %v1278 = vpack.c.b16 %v764, %v762
  %v1279 = vpack.c.b16 %v767, %v765
  %v1280 = vpack.c.b16 %v768, %v766
  %v1281 = vpack.c.b16 %v771, %v769
  %v1282 = vpack.c.b16 %v772, %v770
  %v1283 = vpack.c.b16 %v775, %v773
  %v1284 = vpack.c.b16 %v776, %v774
  %v1285 = vpack.c.b16 %v779, %v777
  %v1286 = vpack.c.b16 %v780, %v778
  %v1287 = vpack.c.b16 %v783, %v781
  %v1288 = vpack.c.b16 %v784, %v782
  %v1289 = vpack.c.b16 %v787, %v785
  %v1290 = vpack.c.b16 %v788, %v786
  %v1291 = vpack.c.b16 %v791, %v789
  %v1292 = vpack.c.b16 %v792, %v790
  %v1293 = vpack.c.b16 %v795, %v793
  %v1294 = vpack.c.b16 %v796, %v794
  %v1295 = vpack.c.b16 %v799, %v797
  %v1296 = vpack.c.b16 %v800, %v798
  %v1297 = vpack.c.b16 %v803, %v801
  %v1298 = vpack.c.b16 %v804, %v802
  %v1299 = vpack.c.b16 %v807, %v805
  %v1300 = vpack.c.b16 %v808, %v806
  %v1301 = vpack.c.b16 %v811, %v809
  %v1302 = vpack.c.b16 %v812, %v810
  %v1303 = vpack.c.b16 %v815, %v813
  %v1304 = vpack.c.b16 %v816, %v814
  %v1305 = vpack.c.b16 %v819, %v817
  %v1306 = vpack.c.b16 %v820, %v818
  %v1307 = vpack.c.b16 %v823, %v821
  %v1308 = vpack.c.b16 %v824, %v822
  %v1309 = vpack.c.b16 %v827, %v825
  %v1310 = vpack.c.b16 %v828, %v826
  %v1311 = vpack.c.b16 %v831, %v829
  %v1312 = vpack.c.b16 %v832, %v830
  %v1313 = vpack.c.b16 %v835, %v833
  %v1314 = vpack.c.b16 %v836, %v834
  %v1315 = vpack.c.b16 %v839, %v837
  %v1316 = vpack.c.b16 %v840, %v838
  %v1317 = vpack.c.b16 %v843, %v841
  %v1318 = vpack.c.b16 %v844, %v842
  %v1319 = vpack.c.b16 %v847, %v845
  %v1320 = vpack.c.b16 %v848, %v846
  %v1321 = vpack.c.b16 %v851, %v849
  %v1322 = vpack.c.b16 %v852, %v850
  %v1323 = vpack.c.b16 %v855, %v853
  %v1324 = vpack.c.b16 %v856, %v854
  %v1325 = vpack.c.b16 %v859, %v857
  %v1326 = vpack.c.b16 %v860, %v858
  %v1327 = vpack.c.b16 %v863, %v861
  %v1328 = vpack.c.b16 %v864, %v862
  %v1329 = vpack.c.b16 %v867, %v865
  %v1330 = vpack.c.b16 %v868, %v866
  %v1331 = vpack.c.b16 %v871, %v869
  %v1332 = vpack.c.b16 %v872, %v870
  %v1333 = vpack.c.b16 %v875, %v873
  %v1334 = vpack.c.b16 %v876, %v874
  %v1335 = vpack.c.b16 %v879, %v877
  %v1336 = vpack.c.b16 %v880, %v878
  %v1337 = vpack.c.b16 %v883, %v881
  %v1338 = vpack.c.b16 %v884, %v882
  %v1339 = vpack.c.b16 %v887, %v885
  %v1340 = vpack.c.b16 %v888, %v886
  %v1341 = vpack.c.b16 %v891, %v889
  %v1342 = vpack.c.b16 %v892, %v890
  %v1343 = vpack.c.b16 %v895, %v893
  %v1344 = vpack.c.b16 %v896, %v894
  %v1345 = vpack.c.b16 %v899, %v897
  %v1346 = vpack.c.b16 %v900, %v898
  %v1347 = vpack.c.b16 %v903, %v901
  %v1348 = vpack.c.b16 %v904, %v902
  %v1349 = vpack.c.b16 %v907, %v905
  %v1350 = vpack.c.b16 %v908, %v906
  %v1351 = vpack.c.b16 %v911, %v909
  %v1352 = vpack.c.b16 %v912, %v910
  %v1353 = vpack.c.b16 %v915, %v913
  %v1354 = vpack.c.b16 %v916, %v914
  %v1355 = vpack.c.b16 %v919, %v917
  %v1356 = vpack.c.b16 %v920, %v918
  %v1357 = vpack.c.b16 %v923, %v921
  %v1358 = vpack.c.b16 %v924, %v922
  %v1359 = vpack.c.b16 %v927, %v925
  %v1360 = vpack.c.b16 %v928, %v926
  %v1361 = vpack.c.b16 %v931, %v929
  %v1362 = vpack.c.b16 %v932, %v930
  %v1363 = vpack.c.b16 %v935, %v933
  %v1364 = vpack.c.b16 %v936, %v934
  %v1365 = vpack.c.b16 %v939, %v937
  %v1366 = vpack.c.b16 %v940, %v938
  %v1367 = vpack.c.b16 %v943, %v941
  %v1368 = vpack.c.b16 %v944, %v942
  %v1369 = vpack.c.b16 %v947, %v945
  %v1370 = vpack.c.b16 %v948, %v946
  %v1371 = vpack.c.b16 %v951, %v949
  %v1372 = vpack.c.b16 %v952, %v950
  %v1373 = vpack.c.b16 %v955, %v953
  %v1374 = vpack.c.b16 %v956, %v954
  %v1375 = vpack.c.b16 %v959, %v957
  %v1376 = vpack.c.b16 %v960, %v958
  %v1377 = vpack.c.b16 %v963, %v961
  %v1378 = vpack.c.b16 %v964, %v962
  %v1379 = vpack.c.b16 %v967, %v965
  %v1380 = vpack.c.b16 %v968, %v966
  %v1381 = vpack.c.b16 %v971, %v969
  %v1382 = vpack.c.b16 %v972, %v970
  %v1383 = vpack.c.b16 %v975, %v973
  %v1384 = vpack.c.b16 %v976, %v974
  %v1385 = vpack.c.b16 %v979, %v977
  %v1386 = vpack.c.b16 %v980, %v978
  %v1387 = vpack.c.b16 %v983, %v981
  %v1388 = vpack.c.b16 %v984, %v982
  %v1389 = vpack.c.b16 %v987, %v985
  %v1390 = vpack.c.b16 %v988, %v986
  %v1391 = vpack.c.b16 %v991, %v989
  %v1392 = vpack.c.b16 %v992, %v990
  %v1393 = vpack.c.b16 %v995, %v993
  %v1394 = vpack.c.b16 %v996, %v994
  %v1395 = vpack.c.b16 %v999, %v997
  %v1396 = vpack.c.b16 %v1000, %v998
  %v1397 = vpack.c.b16 %v1003, %v1001
  %v1398 = vpack.c.b16 %v1004, %v1002
  %v1399 = vpack.c.b16 %v1007, %v1005
  %v1400 = vpack.c.b16 %v1008, %v1006
  %v1401 = vpack.c.b16 %v1011, %v1009
  %v1402 = vpack.c.b16 %v1012, %v1010
  %v1403 = vpack.c.b16 %v1015, %v1013
  %v1404 = vpack.c.b16 %v1016, %v1014
  %v1405 = vpack.c.b16 %v1019, %v1017
  %v1406 = vpack.c.b16 %v1020, %v1018
  %v1407 = vpack.c.b16 %v1023, %v1021
  %v1408 = vpack.c.b16 %v1024, %v1022
  %v1409 = vpack.c.b16 %v1027, %v1025
  %v1410 = vpack.c.b16 %v1028, %v1026
  %v1411 = vpack.c.b16 %v1031, %v1029
  %v1412 = vpack.c.b16 %v1032, %v1030
  %v1413 = vpack.c.b16 %v1035, %v1033
  %v1414 = vpack.c.b16 %v1036, %v1034
  %v1415 = vpack.c.b16 %v1039, %v1037
  %v1416 = vpack.c.b16 %v1040, %v1038
  %v1417 = vpack.c.b16 %v1043, %v1041
  %v1418 = vpack.c.b16 %v1044, %v1042
  %v1419 = vpack.c.b16 %v1047, %v1045
  %v1420 = vpack.c.b16 %v1048, %v1046
  %v1421 = vpack.c.b16 %v1051, %v1049
  %v1422 = vpack.c.b16 %v1052, %v1050
  %v1423 = vpack.c.b16 %v1055, %v1053
  %v1424 = vpack.c.b16 %v1056, %v1054
  %v1425 = vpack.c.b16 %v1059, %v1057
  %v1426 = vpack.c.b16 %v1060, %v1058
  %v1427 = vpack.c.b16 %v1063, %v1061
  %v1428 = vpack.c.b16 %v1064, %v1062
  %v1429 = vpack.c.b16 %v1067, %v1065
  %v1430 = vpack.c.b16 %v1068, %v1066
  %v1431 = vpack.c.b16 %v1071, %v1069
  %v1432 = vpack.c.b16 %v1072, %v1070
  %v1433 = vpack.c.b16 %v1075, %v1073
  %v1434 = vpack.c.b16 %v1076, %v1074
  %v1435 = vpack.c.b16 %v1079, %v1077
  %v1436 = vpack.c.b16 %v1080, %v1078
  %v1437 = vpack.c.b16 %v1083, %v1081
  %v1438 = vpack.c.b16 %v1084, %v1082
  %v1439 = vpack.c.b16 %v1087, %v1085
  %v1440 = vpack.c.b16 %v1088, %v1086
  %v1441 = vpack.c.b16 %v1091, %v1089
  %v1442 = vpack.c.b16 %v1092, %v1090
  %v1443 = vpack.c.b16 %v1095, %v1093
  %v1444 = vpack.c.b16 %v1096, %v1094
  %v1445 = vpack.c.b16 %v1099, %v1097
  %v1446 = vpack.c.b16 %v1100, %v1098
  %v1447 = vpack.c.b16 %v1103, %v1101
  %v1448 = vpack.c.b16 %v1104, %v1102
  %v1449 = vpack.c.b16 %v1107, %v1105
  %v1450 = vpack.c.b16 %v1108, %v1106
  %v1451 = vpack.c.b16 %v1111, %v1109
  %v1452 = vpack.c.b16 %v1112, %v1110
  %v1453 = vpack.c.b16 %v1115, %v1113
  %v1454 = vpack.c.b16 %v1116, %v1114
  %v1455 = vpack.c.b16 %v1119, %v1117
  %v1456 = vpack.c.b16 %v1120, %v1118
  %v1457 = vpack.c.b16 %v1123, %v1121
  %v1458 = vpack.c.b16 %v1124, %v1122
  %v1459 = vpack.c.b16 %v1127, %v1125
  %v1460 = vpack.c.b16 %v1128, %v1126
  %v1461 = vpack.c.b16 %v1131, %v1129
  %v1462 = vpack.c.b16 %v1132, %v1130
  %v1463 = vpack.c.b16 %v1135, %v1133
  %v1464 = vpack.c.b16 %v1136, %v1134
  %v1465 = vpack.c.b16 %v1139, %v1137
  %v1466 = vpack.c.b16 %v1140, %v1138
  %v1467 = vpack.c.b16 %v1143, %v1141
  %v1468 = vpack.c.b16 %v1144, %v1142
  %v1469 = vpack.c.b16 %v1147, %v1145
  %v1470 = vpack.c.b16 %v1148, %v1146
  %v1471 = vpack.c.b16 %v1151, %v1149
  %v1472 = vpack.c.b16 %v1152, %v1150
  %v1473 = vpack.c.b16 %v1155, %v1153
  %v1474 = vpack.c.b16 %v1156, %v1154
  %v1475 = vpack.c.b16 %v1159, %v1157
  %v1476 = vpack.c.b16 %v1160, %v1158
  %v1477 = vpack.c.b16 %v1163, %v1161
  %v1478 = vpack.c.b16 %v1164, %v1162
  %v1479 = vpack.c.b16 %v1167, %v1165
  %v1480 = vpack.c.b16 %v1168, %v1166
  %v1481 = vpack.c.b16 %v1171, %v1169
  %v1482 = vpack.c.b16 %v1172, %v1170
  %v1483 = vpack.c.b16 %v1175, %v1173
  %v1484 = vpack.c.b16 %v1176, %v1174
  %v1485 = vpack.c.b16 %v1179, %v1177
  %v1486 = vpack.c.b16 %v1180, %v1178
  %v1487 = vpack.c.b16 %v1183, %v1181
  %v1488 = vpack.c.b16 %v1184, %v1182
  %v1489 = vpack.c.b16 %v1187, %v1185
  %v1490 = vpack.c.b16 %v1188, %v1186
  %v1491 = vpack.c.b16 %v1191, %v1189
  %v1492 = vpack.c.b16 %v1192, %v1190
  %v1493 = vpack.c.b16 %v1195, %v1193
  %v1494 = vpack.c.b16 %v1196, %v1194
  %v1495 = vpack.c.b16 %v1199, %v1197
  %v1496 = vpack.c.b16 %v1200, %v1198
  %v1497 = vpack.c.b16 %v1203, %v1201
  %v1498 = vpack.c.b16 %v1204, %v1202
  %v1499 = vpack.c.b16 %v1207, %v1205
  %v1500 = vpack.c.b16 %v1208, %v1206
  %v1501 = vpack.c.b16 %v1211, %v1209
  %v1502 = vpack.c.b16 %v1212, %v1210
  %v1503 = vpack.c.b16 %v1215, %v1213
  %v1504 = vpack.c.b16 %v1216, %v1214
  %1793 = vmatpush.bf16.msra.mxu0 %v1231
  %1794 = vmatpush.bf16.msra.mxu0 %v1229
  %1795 = vmatpush.bf16.msra.mxu0 %v1227
  %1796 = vmatpush.bf16.msra.mxu0 %v1225
  %1797 = vmatpush.bf16.msra.mxu0 %v1223
  %1798 = vmatpush.bf16.msra.mxu0 %v1221
  %1799 = vmatpush.bf16.msra.mxu0 %v1219
  %1800 = vmatpush.bf16.msra.mxu0 %v1217
  %1801 = vmatmul.bf16.gmra.mxu0 %v313
  %v1802 = vpop.f32.mrf.mxu0
  %v1803 = vadd.f32 %v307, %v1802
  %v1804 = vpop.f32.mrf.mxu0
  %1805 = vdwg.mxu0
  %1806 = vmatpush.bf16.msra.mxu0 %v1247
  %1807 = vmatpush.bf16.msra.mxu0 %v1245
  %1808 = vmatpush.bf16.msra.mxu0 %v1243
  %1809 = vmatpush.bf16.msra.mxu0 %v1241
  %1810 = vmatpush.bf16.msra.mxu0 %v1239
  %1811 = vmatpush.bf16.msra.mxu0 %v1237
  %1812 = vmatpush.bf16.msra.mxu0 %v1235
  %1813 = vmatpush.bf16.msra.mxu0 %v1233
  %1814 = vmatmul.bf16.gmra.mxu0 %v314
  %v1815 = vpop.f32.mrf.mxu0
  %v1816 = vadd.f32 %v1803, %v1815
  %v1817 = vpop.f32.mrf.mxu0
  %1818 = vdwg.mxu0
  %1819 = vmatpush.bf16.msra.mxu0 %v1263
  %1820 = vmatpush.bf16.msra.mxu0 %v1261
  %1821 = vmatpush.bf16.msra.mxu0 %v1259
  %1822 = vmatpush.bf16.msra.mxu0 %v1257
  %1823 = vmatpush.bf16.msra.mxu0 %v1255
  %1824 = vmatpush.bf16.msra.mxu0 %v1253
  %1825 = vmatpush.bf16.msra.mxu0 %v1251
  %1826 = vmatpush.bf16.msra.mxu0 %v1249
  %1827 = vmatmul.bf16.gmra.mxu0 %v315
  %v1828 = vpop.f32.mrf.mxu0
  %v1829 = vadd.f32 %v1816, %v1828
  %v1830 = vpop.f32.mrf.mxu0
  %1831 = vdwg.mxu0
  %1832 = vmatpush.bf16.msra.mxu0 %v1279
  %1833 = vmatpush.bf16.msra.mxu0 %v1277
  %1834 = vmatpush.bf16.msra.mxu0 %v1275
  %1835 = vmatpush.bf16.msra.mxu0 %v1273
  %1836 = vmatpush.bf16.msra.mxu0 %v1271
  %1837 = vmatpush.bf16.msra.mxu0 %v1269
  %1838 = vmatpush.bf16.msra.mxu0 %v1267
  %1839 = vmatpush.bf16.msra.mxu0 %v1265
  %1840 = vmatmul.bf16.gmra.mxu0 %v316
  %v1841 = vpop.f32.mrf.mxu0
  %v1842 = vadd.f32 %v1829, %v1841
  %v1843 = vpop.f32.mrf.mxu0
  %1844 = vdwg.mxu0
  %1845 = vmatpush.bf16.msra.mxu0 %v1295
  %1846 = vmatpush.bf16.msra.mxu0 %v1293
  %1847 = vmatpush.bf16.msra.mxu0 %v1291
  %1848 = vmatpush.bf16.msra.mxu0 %v1289
  %1849 = vmatpush.bf16.msra.mxu0 %v1287
  %1850 = vmatpush.bf16.msra.mxu0 %v1285
  %1851 = vmatpush.bf16.msra.mxu0 %v1283
  %1852 = vmatpush.bf16.msra.mxu0 %v1281
  %1853 = vmatmul.bf16.gmra.mxu0 %v317
  %v1854 = vpop.f32.mrf.mxu0
  %v1855 = vadd.f32 %v1842, %v1854
  %v1856 = vpop.f32.mrf.mxu0
  %1857 = vdwg.mxu0
  %1858 = vmatpush.bf16.msra.mxu0 %v1311
  %1859 = vmatpush.bf16.msra.mxu0 %v1309
  %1860 = vmatpush.bf16.msra.mxu0 %v1307
  %1861 = vmatpush.bf16.msra.mxu0 %v1305
  %1862 = vmatpush.bf16.msra.mxu0 %v1303
  %1863 = vmatpush.bf16.msra.mxu0 %v1301
  %1864 = vmatpush.bf16.msra.mxu0 %v1299
  %1865 = vmatpush.bf16.msra.mxu0 %v1297
  %1866 = vmatmul.bf16.gmra.mxu0 %v318
  %v1867 = vpop.f32.mrf.mxu0
  %v1868 = vadd.f32 %v1855, %v1867
  %v1869 = vpop.f32.mrf.mxu0
  %1870 = vdwg.mxu0
  %1871 = vmatpush.bf16.msra.mxu0 %v1327
  %1872 = vmatpush.bf16.msra.mxu0 %v1325
  %1873 = vmatpush.bf16.msra.mxu0 %v1323
  %1874 = vmatpush.bf16.msra.mxu0 %v1321
  %1875 = vmatpush.bf16.msra.mxu0 %v1319
  %1876 = vmatpush.bf16.msra.mxu0 %v1317
  %1877 = vmatpush.bf16.msra.mxu0 %v1315
  %1878 = vmatpush.bf16.msra.mxu0 %v1313
  %1879 = vmatmul.bf16.gmra.mxu0 %v319
  %v1880 = vpop.f32.mrf.mxu0
  %v1881 = vadd.f32 %v1868, %v1880
  %v1882 = vpop.f32.mrf.mxu0
  %1883 = vdwg.mxu0
  %1884 = vmatpush.bf16.msra.mxu0 %v1343
  %1885 = vmatpush.bf16.msra.mxu0 %v1341
  %1886 = vmatpush.bf16.msra.mxu0 %v1339
  %1887 = vmatpush.bf16.msra.mxu0 %v1337
  %1888 = vmatpush.bf16.msra.mxu0 %v1335
  %1889 = vmatpush.bf16.msra.mxu0 %v1333
  %1890 = vmatpush.bf16.msra.mxu0 %v1331
  %1891 = vmatpush.bf16.msra.mxu0 %v1329
  %1892 = vmatmul.bf16.gmra.mxu0 %v320
  %v1893 = vpop.f32.mrf.mxu0
  %v1894 = vadd.f32 %v1881, %v1893
  %v1895 = vpop.f32.mrf.mxu0
  %1896 = vdwg.mxu0
  %1897 = vmatpush.bf16.msra.mxu0 %v1359
  %1898 = vmatpush.bf16.msra.mxu0 %v1357
  %1899 = vmatpush.bf16.msra.mxu0 %v1355
  %1900 = vmatpush.bf16.msra.mxu0 %v1353
  %1901 = vmatpush.bf16.msra.mxu0 %v1351
  %1902 = vmatpush.bf16.msra.mxu0 %v1349
  %1903 = vmatpush.bf16.msra.mxu0 %v1347
  %1904 = vmatpush.bf16.msra.mxu0 %v1345
  %1905 = vmatmul.bf16.gmra.mxu0 %v323
  %v1906 = vpop.f32.mrf.mxu0
  %v1907 = vadd.f32 %v1894, %v1906
  %v1908 = vpop.f32.mrf.mxu0
  %1909 = vdwg.mxu0
  %1910 = vmatpush.bf16.msra.mxu0 %v1375
  %1911 = vmatpush.bf16.msra.mxu0 %v1373
  %1912 = vmatpush.bf16.msra.mxu0 %v1371
  %1913 = vmatpush.bf16.msra.mxu0 %v1369
  %1914 = vmatpush.bf16.msra.mxu0 %v1367
  %1915 = vmatpush.bf16.msra.mxu0 %v1365
  %1916 = vmatpush.bf16.msra.mxu0 %v1363
  %1917 = vmatpush.bf16.msra.mxu0 %v1361
  %1918 = vmatmul.bf16.gmra.mxu0 %v324
  %v1919 = vpop.f32.mrf.mxu0
  %v1920 = vadd.f32 %v1907, %v1919
  %v1921 = vpop.f32.mrf.mxu0
  %1922 = vdwg.mxu0
  %1923 = vmatpush.bf16.msra.mxu0 %v1391
  %1924 = vmatpush.bf16.msra.mxu0 %v1389
  %1925 = vmatpush.bf16.msra.mxu0 %v1387
  %1926 = vmatpush.bf16.msra.mxu0 %v1385
  %1927 = vmatpush.bf16.msra.mxu0 %v1383
  %1928 = vmatpush.bf16.msra.mxu0 %v1381
  %1929 = vmatpush.bf16.msra.mxu0 %v1379
  %1930 = vmatpush.bf16.msra.mxu0 %v1377
  %1931 = vmatmul.bf16.gmra.mxu0 %v325
  %v1932 = vpop.f32.mrf.mxu0
  %v1933 = vadd.f32 %v1920, %v1932
  %v1934 = vpop.f32.mrf.mxu0
  %1935 = vdwg.mxu0
  %1936 = vmatpush.bf16.msra.mxu0 %v1407
  %1937 = vmatpush.bf16.msra.mxu0 %v1405
  %1938 = vmatpush.bf16.msra.mxu0 %v1403
  %1939 = vmatpush.bf16.msra.mxu0 %v1401
  %1940 = vmatpush.bf16.msra.mxu0 %v1399
  %1941 = vmatpush.bf16.msra.mxu0 %v1397
  %1942 = vmatpush.bf16.msra.mxu0 %v1395
  %1943 = vmatpush.bf16.msra.mxu0 %v1393
  %1944 = vmatmul.bf16.gmra.mxu0 %v326
  %v1945 = vpop.f32.mrf.mxu0
  %v1946 = vadd.f32 %v1933, %v1945
  %v1947 = vpop.f32.mrf.mxu0
  %1948 = vdwg.mxu0
  %1949 = vmatpush.bf16.msra.mxu0 %v1423
  %1950 = vmatpush.bf16.msra.mxu0 %v1421
  %1951 = vmatpush.bf16.msra.mxu0 %v1419
  %1952 = vmatpush.bf16.msra.mxu0 %v1417
  %1953 = vmatpush.bf16.msra.mxu0 %v1415
  %1954 = vmatpush.bf16.msra.mxu0 %v1413
  %1955 = vmatpush.bf16.msra.mxu0 %v1411
  %1956 = vmatpush.bf16.msra.mxu0 %v1409
  %1957 = vmatmul.bf16.gmra.mxu0 %v327
  %v1958 = vpop.f32.mrf.mxu0
  %v1959 = vadd.f32 %v1946, %v1958
  %v1960 = vpop.f32.mrf.mxu0
  %1961 = vdwg.mxu0
  %1962 = vmatpush.bf16.msra.mxu0 %v1439
  %1963 = vmatpush.bf16.msra.mxu0 %v1437
  %1964 = vmatpush.bf16.msra.mxu0 %v1435
  %1965 = vmatpush.bf16.msra.mxu0 %v1433
  %1966 = vmatpush.bf16.msra.mxu0 %v1431
  %1967 = vmatpush.bf16.msra.mxu0 %v1429
  %1968 = vmatpush.bf16.msra.mxu0 %v1427
  %1969 = vmatpush.bf16.msra.mxu0 %v1425
  %1970 = vmatmul.bf16.gmra.mxu0 %v328
  %v1971 = vpop.f32.mrf.mxu0
  %v1972 = vadd.f32 %v1959, %v1971
  %v1973 = vpop.f32.mrf.mxu0
  %1974 = vdwg.mxu0
  %1975 = vmatpush.bf16.msra.mxu0 %v1455
  %1976 = vmatpush.bf16.msra.mxu0 %v1453
  %1977 = vmatpush.bf16.msra.mxu0 %v1451
  %1978 = vmatpush.bf16.msra.mxu0 %v1449
  %1979 = vmatpush.bf16.msra.mxu0 %v1447
  %1980 = vmatpush.bf16.msra.mxu0 %v1445
  %1981 = vmatpush.bf16.msra.mxu0 %v1443
  %1982 = vmatpush.bf16.msra.mxu0 %v1441
  %1983 = vmatmul.bf16.gmra.mxu0 %v329
  %v1984 = vpop.f32.mrf.mxu0
  %v1985 = vadd.f32 %v1972, %v1984
  %v1986 = vpop.f32.mrf.mxu0
  %1987 = vdwg.mxu0
  %1988 = vmatpush.bf16.msra.mxu0 %v1471
  %1989 = vmatpush.bf16.msra.mxu0 %v1469
  %1990 = vmatpush.bf16.msra.mxu0 %v1467
  %1991 = vmatpush.bf16.msra.mxu0 %v1465
  %1992 = vmatpush.bf16.msra.mxu0 %v1463
  %1993 = vmatpush.bf16.msra.mxu0 %v1461
  %1994 = vmatpush.bf16.msra.mxu0 %v1459
  %1995 = vmatpush.bf16.msra.mxu0 %v1457
  %1996 = vmatmul.bf16.gmra.mxu0 %v330
  %v1997 = vpop.f32.mrf.mxu0
  %v1998 = vadd.f32 %v1985, %v1997
  %v1999 = vpop.f32.mrf.mxu0
  %2000 = vdwg.mxu0
  %2001 = vmatpush.bf16.msra.mxu0 %v1487
  %2002 = vmatpush.bf16.msra.mxu0 %v1485
  %2003 = vmatpush.bf16.msra.mxu0 %v1483
  %2004 = vmatpush.bf16.msra.mxu0 %v1481
  %2005 = vmatpush.bf16.msra.mxu0 %v1479
  %2006 = vmatpush.bf16.msra.mxu0 %v1477
  %2007 = vmatpush.bf16.msra.mxu0 %v1475
  %2008 = vmatpush.bf16.msra.mxu0 %v1473
  %2009 = vmatmul.bf16.gmra.mxu0 %v333
  %v2010 = vpop.f32.mrf.mxu0
  %v2011 = vadd.f32 %v1998, %v2010
  %v2012 = vpop.f32.mrf.mxu0
  %2013 = vdwg.mxu0
  %2014 = vmatpush.bf16.msra.mxu0 %v1503
  %2015 = vmatpush.bf16.msra.mxu0 %v1501
  %2016 = vmatpush.bf16.msra.mxu0 %v1499
  %2017 = vmatpush.bf16.msra.mxu0 %v1497
  %2018 = vmatpush.bf16.msra.mxu0 %v1495
  %2019 = vmatpush.bf16.msra.mxu0 %v1493
  %2020 = vmatpush.bf16.msra.mxu0 %v1491
  %2021 = vmatpush.bf16.msra.mxu0 %v1489
  %2022 = vmatmul.bf16.gmra.mxu0 %v334
  %v2023 = vpop.f32.mrf.mxu0
  %v2024 = vadd.f32 %v2011, %v2023
  %v2025 = vpop.f32.mrf.mxu0
  %2026 = vdwg.mxu0
  %2027 = vmatpush.bf16.msra.mxu0 %v1232
  %2028 = vmatpush.bf16.msra.mxu0 %v1230
  %2029 = vmatpush.bf16.msra.mxu0 %v1228
  %2030 = vmatpush.bf16.msra.mxu0 %v1226
  %2031 = vmatpush.bf16.msra.mxu0 %v1224
  %2032 = vmatpush.bf16.msra.mxu0 %v1222
  %2033 = vmatpush.bf16.msra.mxu0 %v1220
  %2034 = vmatpush.bf16.msra.mxu0 %v1218
  %2035 = vmatmul.bf16.gmra.mxu0 %v313
  %v2036 = vpop.f32.mrf.mxu0
  %v2037 = vadd.f32 %v308, %v2036
  %v2038 = vpop.f32.mrf.mxu0
  %2039 = vdwg.mxu0
  %2040 = vmatpush.bf16.msra.mxu0 %v1248
  %2041 = vmatpush.bf16.msra.mxu0 %v1246
  %2042 = vmatpush.bf16.msra.mxu0 %v1244
  %2043 = vmatpush.bf16.msra.mxu0 %v1242
  %2044 = vmatpush.bf16.msra.mxu0 %v1240
  %2045 = vmatpush.bf16.msra.mxu0 %v1238
  %2046 = vmatpush.bf16.msra.mxu0 %v1236
  %2047 = vmatpush.bf16.msra.mxu0 %v1234
  %2048 = vmatmul.bf16.gmra.mxu0 %v314
  %v2049 = vpop.f32.mrf.mxu0
  %v2050 = vadd.f32 %v2037, %v2049
  %v2051 = vpop.f32.mrf.mxu0
  %2052 = vdwg.mxu0
  %2053 = vmatpush.bf16.msra.mxu0 %v1264
  %2054 = vmatpush.bf16.msra.mxu0 %v1262
  %2055 = vmatpush.bf16.msra.mxu0 %v1260
  %2056 = vmatpush.bf16.msra.mxu0 %v1258
  %2057 = vmatpush.bf16.msra.mxu0 %v1256
  %2058 = vmatpush.bf16.msra.mxu0 %v1254
  %2059 = vmatpush.bf16.msra.mxu0 %v1252
  %2060 = vmatpush.bf16.msra.mxu0 %v1250
  %2061 = vmatmul.bf16.gmra.mxu0 %v315
  %v2062 = vpop.f32.mrf.mxu0
  %v2063 = vadd.f32 %v2050, %v2062
  %v2064 = vpop.f32.mrf.mxu0
  %2065 = vdwg.mxu0
  %2066 = vmatpush.bf16.msra.mxu0 %v1280
  %2067 = vmatpush.bf16.msra.mxu0 %v1278
  %2068 = vmatpush.bf16.msra.mxu0 %v1276
  %2069 = vmatpush.bf16.msra.mxu0 %v1274
  %2070 = vmatpush.bf16.msra.mxu0 %v1272
  %2071 = vmatpush.bf16.msra.mxu0 %v1270
  %2072 = vmatpush.bf16.msra.mxu0 %v1268
  %2073 = vmatpush.bf16.msra.mxu0 %v1266
  %2074 = vmatmul.bf16.gmra.mxu0 %v316
  %v2075 = vpop.f32.mrf.mxu0
  %v2076 = vadd.f32 %v2063, %v2075
  %v2077 = vpop.f32.mrf.mxu0
  %2078 = vdwg.mxu0
  %2079 = vmatpush.bf16.msra.mxu0 %v1296
  %2080 = vmatpush.bf16.msra.mxu0 %v1294
  %2081 = vmatpush.bf16.msra.mxu0 %v1292
  %2082 = vmatpush.bf16.msra.mxu0 %v1290
  %2083 = vmatpush.bf16.msra.mxu0 %v1288
  %2084 = vmatpush.bf16.msra.mxu0 %v1286
  %2085 = vmatpush.bf16.msra.mxu0 %v1284
  %2086 = vmatpush.bf16.msra.mxu0 %v1282
  %2087 = vmatmul.bf16.gmra.mxu0 %v317
  %v2088 = vpop.f32.mrf.mxu0
  %v2089 = vadd.f32 %v2076, %v2088
  %v2090 = vpop.f32.mrf.mxu0
  %2091 = vdwg.mxu0
  %2092 = vmatpush.bf16.msra.mxu0 %v1312
  %2093 = vmatpush.bf16.msra.mxu0 %v1310
  %2094 = vmatpush.bf16.msra.mxu0 %v1308
  %2095 = vmatpush.bf16.msra.mxu0 %v1306
  %2096 = vmatpush.bf16.msra.mxu0 %v1304
  %2097 = vmatpush.bf16.msra.mxu0 %v1302
  %2098 = vmatpush.bf16.msra.mxu0 %v1300
  %2099 = vmatpush.bf16.msra.mxu0 %v1298
  %2100 = vmatmul.bf16.gmra.mxu0 %v318
  %v2101 = vpop.f32.mrf.mxu0
  %v2102 = vadd.f32 %v2089, %v2101
  %v2103 = vpop.f32.mrf.mxu0
  %2104 = vdwg.mxu0
  %2105 = vmatpush.bf16.msra.mxu0 %v1328
  %2106 = vmatpush.bf16.msra.mxu0 %v1326
  %2107 = vmatpush.bf16.msra.mxu0 %v1324
  %2108 = vmatpush.bf16.msra.mxu0 %v1322
  %2109 = vmatpush.bf16.msra.mxu0 %v1320
  %2110 = vmatpush.bf16.msra.mxu0 %v1318
  %2111 = vmatpush.bf16.msra.mxu0 %v1316
  %2112 = vmatpush.bf16.msra.mxu0 %v1314
  %2113 = vmatmul.bf16.gmra.mxu0 %v319
  %v2114 = vpop.f32.mrf.mxu0
  %v2115 = vadd.f32 %v2102, %v2114
  %v2116 = vpop.f32.mrf.mxu0
  %2117 = vdwg.mxu0
  %2118 = vmatpush.bf16.msra.mxu0 %v1344
  %2119 = vmatpush.bf16.msra.mxu0 %v1342
  %2120 = vmatpush.bf16.msra.mxu0 %v1340
  %2121 = vmatpush.bf16.msra.mxu0 %v1338
  %2122 = vmatpush.bf16.msra.mxu0 %v1336
  %2123 = vmatpush.bf16.msra.mxu0 %v1334
  %2124 = vmatpush.bf16.msra.mxu0 %v1332
  %2125 = vmatpush.bf16.msra.mxu0 %v1330
  %2126 = vmatmul.bf16.gmra.mxu0 %v320
  %v2127 = vpop.f32.mrf.mxu0
  %v2128 = vadd.f32 %v2115, %v2127
  %v2129 = vpop.f32.mrf.mxu0
  %2130 = vdwg.mxu0
  %2131 = vmatpush.bf16.msra.mxu0 %v1360
  %2132 = vmatpush.bf16.msra.mxu0 %v1358
  %2133 = vmatpush.bf16.msra.mxu0 %v1356
  %2134 = vmatpush.bf16.msra.mxu0 %v1354
  %2135 = vmatpush.bf16.msra.mxu0 %v1352
  %2136 = vmatpush.bf16.msra.mxu0 %v1350
  %2137 = vmatpush.bf16.msra.mxu0 %v1348
  %2138 = vmatpush.bf16.msra.mxu0 %v1346
  %2139 = vmatmul.bf16.gmra.mxu0 %v323
  %v2140 = vpop.f32.mrf.mxu0
  %v2141 = vadd.f32 %v2128, %v2140
  %v2142 = vpop.f32.mrf.mxu0
  %2143 = vdwg.mxu0
  %2144 = vmatpush.bf16.msra.mxu0 %v1376
  %2145 = vmatpush.bf16.msra.mxu0 %v1374
  %2146 = vmatpush.bf16.msra.mxu0 %v1372
  %2147 = vmatpush.bf16.msra.mxu0 %v1370
  %2148 = vmatpush.bf16.msra.mxu0 %v1368
  %2149 = vmatpush.bf16.msra.mxu0 %v1366
  %2150 = vmatpush.bf16.msra.mxu0 %v1364
  %2151 = vmatpush.bf16.msra.mxu0 %v1362
  %2152 = vmatmul.bf16.gmra.mxu0 %v324
  %v2153 = vpop.f32.mrf.mxu0
  %v2154 = vadd.f32 %v2141, %v2153
  %v2155 = vpop.f32.mrf.mxu0
  %2156 = vdwg.mxu0
  %2157 = vmatpush.bf16.msra.mxu0 %v1392
  %2158 = vmatpush.bf16.msra.mxu0 %v1390
  %2159 = vmatpush.bf16.msra.mxu0 %v1388
  %2160 = vmatpush.bf16.msra.mxu0 %v1386
  %2161 = vmatpush.bf16.msra.mxu0 %v1384
  %2162 = vmatpush.bf16.msra.mxu0 %v1382
  %2163 = vmatpush.bf16.msra.mxu0 %v1380
  %2164 = vmatpush.bf16.msra.mxu0 %v1378
  %2165 = vmatmul.bf16.gmra.mxu0 %v325
  %v2166 = vpop.f32.mrf.mxu0
  %v2167 = vadd.f32 %v2154, %v2166
  %v2168 = vpop.f32.mrf.mxu0
  %2169 = vdwg.mxu0
  %2170 = vmatpush.bf16.msra.mxu0 %v1408
  %2171 = vmatpush.bf16.msra.mxu0 %v1406
  %2172 = vmatpush.bf16.msra.mxu0 %v1404
  %2173 = vmatpush.bf16.msra.mxu0 %v1402
  %2174 = vmatpush.bf16.msra.mxu0 %v1400
  %2175 = vmatpush.bf16.msra.mxu0 %v1398
  %2176 = vmatpush.bf16.msra.mxu0 %v1396
  %2177 = vmatpush.bf16.msra.mxu0 %v1394
  %2178 = vmatmul.bf16.gmra.mxu0 %v326
  %v2179 = vpop.f32.mrf.mxu0
  %v2180 = vadd.f32 %v2167, %v2179
  %v2181 = vpop.f32.mrf.mxu0
  %2182 = vdwg.mxu0
  %2183 = vmatpush.bf16.msra.mxu0 %v1424
  %2184 = vmatpush.bf16.msra.mxu0 %v1422
  %2185 = vmatpush.bf16.msra.mxu0 %v1420
  %2186 = vmatpush.bf16.msra.mxu0 %v1418
  %2187 = vmatpush.bf16.msra.mxu0 %v1416
  %2188 = vmatpush.bf16.msra.mxu0 %v1414
  %2189 = vmatpush.bf16.msra.mxu0 %v1412
  %2190 = vmatpush.bf16.msra.mxu0 %v1410
  %2191 = vmatmul.bf16.gmra.mxu0 %v327
  %v2192 = vpop.f32.mrf.mxu0
  %v2193 = vadd.f32 %v2180, %v2192
  %v2194 = vpop.f32.mrf.mxu0
  %2195 = vdwg.mxu0
  %2196 = vmatpush.bf16.msra.mxu0 %v1440
  %2197 = vmatpush.bf16.msra.mxu0 %v1438
  %2198 = vmatpush.bf16.msra.mxu0 %v1436
  %2199 = vmatpush.bf16.msra.mxu0 %v1434
  %2200 = vmatpush.bf16.msra.mxu0 %v1432
  %2201 = vmatpush.bf16.msra.mxu0 %v1430
  %2202 = vmatpush.bf16.msra.mxu0 %v1428
  %2203 = vmatpush.bf16.msra.mxu0 %v1426
  %2204 = vmatmul.bf16.gmra.mxu0 %v328
  %v2205 = vpop.f32.mrf.mxu0
  %v2206 = vadd.f32 %v2193, %v2205
  %v2207 = vpop.f32.mrf.mxu0
  %2208 = vdwg.mxu0
  %2209 = vmatpush.bf16.msra.mxu0 %v1456
  %2210 = vmatpush.bf16.msra.mxu0 %v1454
  %2211 = vmatpush.bf16.msra.mxu0 %v1452
  %2212 = vmatpush.bf16.msra.mxu0 %v1450
  %2213 = vmatpush.bf16.msra.mxu0 %v1448
  %2214 = vmatpush.bf16.msra.mxu0 %v1446
  %2215 = vmatpush.bf16.msra.mxu0 %v1444
  %2216 = vmatpush.bf16.msra.mxu0 %v1442
  %2217 = vmatmul.bf16.gmra.mxu0 %v329
  %v2218 = vpop.f32.mrf.mxu0
  %v2219 = vadd.f32 %v2206, %v2218
  %v2220 = vpop.f32.mrf.mxu0
  %2221 = vdwg.mxu0
  %2222 = vmatpush.bf16.msra.mxu0 %v1472
  %2223 = vmatpush.bf16.msra.mxu0 %v1470
  %2224 = vmatpush.bf16.msra.mxu0 %v1468
  %2225 = vmatpush.bf16.msra.mxu0 %v1466
  %2226 = vmatpush.bf16.msra.mxu0 %v1464
  %2227 = vmatpush.bf16.msra.mxu0 %v1462
  %2228 = vmatpush.bf16.msra.mxu0 %v1460
  %2229 = vmatpush.bf16.msra.mxu0 %v1458
  %2230 = vmatmul.bf16.gmra.mxu0 %v330
  %v2231 = vpop.f32.mrf.mxu0
  %v2232 = vadd.f32 %v2219, %v2231
  %v2233 = vpop.f32.mrf.mxu0
  %2234 = vdwg.mxu0
  %2235 = vmatpush.bf16.msra.mxu0 %v1488
  %2236 = vmatpush.bf16.msra.mxu0 %v1486
  %2237 = vmatpush.bf16.msra.mxu0 %v1484
  %2238 = vmatpush.bf16.msra.mxu0 %v1482
  %2239 = vmatpush.bf16.msra.mxu0 %v1480
  %2240 = vmatpush.bf16.msra.mxu0 %v1478
  %2241 = vmatpush.bf16.msra.mxu0 %v1476
  %2242 = vmatpush.bf16.msra.mxu0 %v1474
  %2243 = vmatmul.bf16.gmra.mxu0 %v333
  %v2244 = vpop.f32.mrf.mxu0
  %v2245 = vadd.f32 %v2232, %v2244
  %v2246 = vpop.f32.mrf.mxu0
  %2247 = vdwg.mxu0
  %2248 = vmatpush.bf16.msra.mxu0 %v1504
  %2249 = vmatpush.bf16.msra.mxu0 %v1502
  %2250 = vmatpush.bf16.msra.mxu0 %v1500
  %2251 = vmatpush.bf16.msra.mxu0 %v1498
  %2252 = vmatpush.bf16.msra.mxu0 %v1496
  %2253 = vmatpush.bf16.msra.mxu0 %v1494
  %2254 = vmatpush.bf16.msra.mxu0 %v1492
  %2255 = vmatpush.bf16.msra.mxu0 %v1490
  %2256 = vmatmul.bf16.gmra.mxu0 %v334
  %v2257 = vpop.f32.mrf.mxu0
  %v2258 = vadd.f32 %v2245, %v2257
  %v2259 = vpop.f32.mrf.mxu0
  %2260 = vdwg.mxu0
  %v2261 = vmax.f32 %v2024, 0.0
  %v2262 = vmax.f32 %v2258, 0.0
  %v2263 = vpack.c.bf16 %v2262, %v2261
  %v2265 = vrot.slane %v2263, 3
  %vm2266 = vcmask 1040384
  %v2269 = vsel %vm2266, %v2263, %v2265
  %2271 = vst [vmem:[%s3] sm:$0x3] %v2269
  // Predicated region
  $region14: #{_lambda_.35} parent=0 // pred_check
    _
  $region15: #{_lambda_.35} parent=0 // pred_check_branch
    %2273 = sbr.rel (0) target = $region17
  $region16: #{_lambda_.35} parent=0 // pred_region
    _
  $region17: #{_lambda_.35} parent=0 // pred_fallthru
    _
  // Predicated region
  $region18: #{_lambda_.35} parent=0 // pred_check
    _
  $region19: #{_lambda_.35} parent=0 // pred_check_branch
    %2275 = sbr.rel (0) target = $region21
  $region20: #{_lambda_.35} parent=0 // pred_region
    _
  $region21: #{_lambda_.35} parent=0 // pred_fallthru
    _

</llo_original>
